<compile_context>
chip_gen: v7x
topology: tpu7x:2x2x1
jax: 0.10.0
libtpu: 0.0.40
codegen_flags: <defaults>
</compile_context>

<pallas_src>
import functools

import jax
import jax.numpy as jnp
from jax.experimental import pallas as pl
from jax.experimental.pallas import tpu as pltpu

DROPOUT_P = 0.2
# keep element iff uint32 bits >= threshold;  P(drop) = threshold / 2^32 ~= 0.2
_DROP_THRESHOLD = int(round(DROPOUT_P * (1 << 32)))   # 858993459
_INV_KEEP = 1.0 / (1.0 - DROPOUT_P)


def _round_up(a, b):
    return (a + b - 1) // b * b


def ffn_kernel(x_ref, w1_ref, b1_ref, w2_ref, b2_ref, *rest, train, compute_dtype):
    # x_ref: (TM, C)  w1_ref: (C, H)  b1_ref: (1, H)  w2_ref: (H, C)  b2_ref: (1, C)
    if train:
        bits_ref, o_ref = rest
    else:
        (o_ref,) = rest

    x = x_ref[...].astype(compute_dtype)
    w1 = w1_ref[...].astype(compute_dtype)
    h = jnp.dot(x, w1, preferred_element_type=jnp.float32) + b1_ref[...]
    h = jnp.maximum(h, 0.0)  # ReLU in f32

    w2 = w2_ref[...].astype(compute_dtype)
    y = jnp.dot(h.astype(compute_dtype), w2,
                preferred_element_type=jnp.float32) + b2_ref[...]

    if train:
        # Inverted dropout: integer-threshold compare on raw bits + select.
        keep = bits_ref[...] >= jnp.uint32(_DROP_THRESHOLD)
        y = jnp.where(keep, y * _INV_KEEP, 0.0)

    o_ref[...] = y.astype(o_ref.dtype)


def feed_forward(x, w1, b1, w2, b2, *, key=None, train=True,
                 compute_dtype=jnp.float32, tm=256):
    """x: (B, T, C) float32.  Weights stored as (in, out) -> y = x @ W.  Returns (B, T, C)."""
    B, T, C = x.shape
    H = w1.shape[1]
    M = B * T

    # Tile M (clamp the tile when M is small); pad M up to a tile multiple.
    tm_eff = min(tm, _round_up(M, 8))
    m_pad = _round_up(M, tm_eff)
    num_tiles = m_pad // tm_eff

    x2 = x.reshape(M, C)
    if m_pad != M:
        x2 = jnp.pad(x2, ((0, m_pad - M), (0, 0)))
    b1_2 = b1.reshape(1, H)
    b2_2 = b2.reshape(1, C)

    args = [x2, w1, b1_2, w2, b2_2]
    in_specs = [
        pl.BlockSpec((tm_eff, C), lambda i: (i, 0)),   # x tile  (pipelined over i)
        pl.BlockSpec((C, H), lambda i: (0, 0)),        # w1      (resident, constant index)
        pl.BlockSpec((1, H), lambda i: (0, 0)),        # b1      (resident)
        pl.BlockSpec((H, C), lambda i: (0, 0)),        # w2      (resident)
        pl.BlockSpec((1, C), lambda i: (0, 0)),        # b2      (resident)
    ]
    if train:
        if key is None:
            raise ValueError("train=True requires a PRNG `key` for dropout")
        # Host-generated uint32 bits, one word per output element; each M tile
        # gets its own block so no mask repetition across tiles.
        bits = jax.random.bits(key, (m_pad, C), dtype=jnp.uint32)
        args.append(bits)
        in_specs.append(pl.BlockSpec((tm_eff, C), lambda i: (i, 0)))

    flops = 4 * m_pad * C * H                              # two M x C x H matmuls
    bytes_accessed = 4 * (m_pad * C * (3 if train else 2)  # x, out, (bits)
                          + 2 * C * H + H + C)             # weights + biases

    kernel = functools.partial(ffn_kernel, train=train, compute_dtype=compute_dtype)

    out = pl.pallas_call(
        kernel,
        out_shape=jax.ShapeDtypeStruct((m_pad, C), x.dtype),
        grid=(num_tiles,),
        in_specs=in_specs,
        out_specs=pl.BlockSpec((tm_eff, C), lambda i: (i, 0)),
        compiler_params=pltpu.CompilerParams(
            # M tiles are independent -> parallel (2 TCs on v7x; no-op on v5e/v6e).
            dimension_semantics=("parallel",),
            vmem_limit_bytes=32 * 1024 * 1024,
        ),
        cost_estimate=pl.CostEstimate(
            flops=flops, transcendentals=0, bytes_accessed=bytes_accessed),
    )(*args)

    return out[:M].reshape(B, T, C)


if __name__ == "__main__":
    # Shapes implied by the module: n_embd = 384, hidden = 4 * n_embd; small batch/seq.
    B, T, n_embd = 2, 256, 384
    hidden = 4 * n_embd

    key = jax.random.PRNGKey(0)
    kx, k1w, k1b, k2w, k2b, kdrop = jax.random.split(key, 6)

    x = jax.random.normal(kx, (B, T, n_embd), dtype=jnp.float32)

    # PyTorch nn.Linear default init: U(-1/sqrt(fan_in), 1/sqrt(fan_in)).
    bound1 = 1.0 / (n_embd ** 0.5)
    w1 = jax.random.uniform(k1w, (n_embd, hidden), jnp.float32, -bound1, bound1)
    b1 = jax.random.uniform(k1b, (hidden,), jnp.float32, -bound1, bound1)
    bound2 = 1.0 / (hidden ** 0.5)
    w2 = jax.random.uniform(k2w, (hidden, n_embd), jnp.float32, -bound2, bound2)
    b2 = jax.random.uniform(k2b, (n_embd,), jnp.float32, -bound2, bound2)

    # 1) Training-mode forward (dropout active) — the PyTorch module's default state.
    out_train = feed_forward(x, w1, b1, w2, b2, key=kdrop, train=True)
    out_train = jax.block_until_ready(out_train)
    assert out_train.shape == (B, T, n_embd)
    assert bool(jnp.all(jnp.isfinite(out_train)))
    # Roughly 20% of outputs should be zeroed by dropout.
    drop_frac = float(jnp.mean((out_train == 0.0).astype(jnp.float32)))
    assert 0.1 < drop_frac < 0.3, f"unexpected dropout fraction {drop_frac}"

    # 2) Eval-mode, f32 compute: check against a pure-JAX reference.
    #    Tolerance accounts for possible bf16-pass decomposition of f32 matmuls on the MXU.
    out_eval = feed_forward(x, w1, b1, w2, b2, train=False)
    out_eval = jax.block_until_ready(out_eval)
    ref = (jnp.maximum(x.reshape(-1, n_embd) @ w1 + b1, 0.0) @ w2 + b2)
    ref = ref.reshape(B, T, n_embd)
    assert jnp.allclose(out_eval, ref, atol=2e-2, rtol=2e-2), "f32 mismatch vs reference"

    # 3) Eval-mode, bf16 MXU compute path (native MXU dtype): loose check vs f32 reference.
    out_bf16 = feed_forward(x, w1, b1, w2, b2, train=False, compute_dtype=jnp.bfloat16)
    out_bf16 = jax.block_until_ready(out_bf16)
    assert jnp.allclose(out_bf16, ref, atol=1e-1, rtol=1e-1), "bf16 mismatch vs reference"

    print("KERNEL_OK")
</pallas_src>

<mosaic_0001>
module attributes {stable_mosaic.version = 11 : i64} {
  func.func @ffn_kernel(%arg0: i32, %arg1: memref<256x384xf32, #tpu.memory_space<vmem>>, %arg2: memref<384x1536xf32, #tpu.memory_space<vmem>>, %arg3: memref<1x1536xf32, #tpu.memory_space<vmem>>, %arg4: memref<1536x384xf32, #tpu.memory_space<vmem>>, %arg5: memref<1x384xf32, #tpu.memory_space<vmem>>, %arg6: memref<256x384xi32, #tpu.memory_space<vmem>>, %arg7: memref<256x384xf32, #tpu.memory_space<vmem>>) attributes {dimension_semantics = [#tpu.dimension_semantics<parallel>], iteration_bounds = array<i64: 2>, scalar_prefetch = 0 : i64, scratch_operands = 0 : i64, tpu.core_type = #tpu.core_type<tc>, window_params = [{transform_indices = @transform_0, window_bounds = array<i64: 256, 384>}, {pipeline_mode = #tpu.pipeline_mode<synchronous>, transform_indices = @transform_1, window_bounds = array<i64: 384, 1536>}, {pipeline_mode = #tpu.pipeline_mode<synchronous>, transform_indices = @transform_2, window_bounds = array<i64: 1, 1536>}, {pipeline_mode = #tpu.pipeline_mode<synchronous>, transform_indices = @transform_3, window_bounds = array<i64: 1536, 384>}, {pipeline_mode = #tpu.pipeline_mode<synchronous>, transform_indices = @transform_4, window_bounds = array<i64: 1, 384>}, {transform_indices = @transform_5, window_bounds = array<i64: 256, 384>}, {transform_indices = @transform_6, window_bounds = array<i64: 256, 384>}]} {
    %c0 = arith.constant 0 : index
    %c0_0 = arith.constant 0 : index
    %0 = vector.load %arg1[%c0, %c0_0] : memref<256x384xf32, #tpu.memory_space<vmem>>, vector<256x384xf32>
    %c0_1 = arith.constant 0 : index
    %c0_2 = arith.constant 0 : index
    %1 = vector.load %arg2[%c0_1, %c0_2] : memref<384x1536xf32, #tpu.memory_space<vmem>>, vector<384x1536xf32>
    %cst = arith.constant dense<0.000000e+00> : vector<256x1536xf32>
    %2 = tpu.matmul %0, %1, %cst {dimension_numbers = #tpu.dot_dimension_numbers<[1], [0], [0], [1], [0, 0, 1, 1], [], []>} : vector<256x384xf32>, vector<384x1536xf32>, vector<256x1536xf32> -> vector<256x1536xf32>
    %c0_3 = arith.constant 0 : index
    %c0_4 = arith.constant 0 : index
    %3 = vector.load %arg3[%c0_3, %c0_4] : memref<1x1536xf32, #tpu.memory_space<vmem>>, vector<1x1536xf32>
    %4 = vector.broadcast %3 : vector<1x1536xf32> to vector<256x1536xf32>
    %5 = arith.addf %2, %4 : vector<256x1536xf32>
    %cst_5 = arith.constant 0.000000e+00 : f32
    %6 = vector.broadcast %cst_5 : f32 to vector<256x1536xf32>
    %7 = arith.maximumf %5, %6 : vector<256x1536xf32>
    %c0_6 = arith.constant 0 : index
    %c0_7 = arith.constant 0 : index
    %8 = vector.load %arg4[%c0_6, %c0_7] : memref<1536x384xf32, #tpu.memory_space<vmem>>, vector<1536x384xf32>
    %cst_8 = arith.constant dense<0.000000e+00> : vector<256x384xf32>
    %9 = tpu.matmul %7, %8, %cst_8 {dimension_numbers = #tpu.dot_dimension_numbers<[1], [0], [0], [1], [0, 0, 1, 1], [], []>} : vector<256x1536xf32>, vector<1536x384xf32>, vector<256x384xf32> -> vector<256x384xf32>
    %c0_9 = arith.constant 0 : index
    %c0_10 = arith.constant 0 : index
    %10 = vector.load %arg5[%c0_9, %c0_10] : memref<1x384xf32, #tpu.memory_space<vmem>>, vector<1x384xf32>
    %11 = vector.broadcast %10 : vector<1x384xf32> to vector<256x384xf32>
    %12 = arith.addf %9, %11 : vector<256x384xf32>
    %c0_11 = arith.constant 0 : index
    %c0_12 = arith.constant 0 : index
    %13 = vector.load %arg6[%c0_11, %c0_12] : memref<256x384xi32, #tpu.memory_space<vmem>>, vector<256x384xi32>
    %c858993459_i32 = arith.constant 858993459 : i32
    %14 = vector.broadcast %c858993459_i32 : i32 to vector<256x384xi32>
    %15 = arith.cmpi uge, %13, %14 : vector<256x384xi32>
    %cst_13 = arith.constant 1.250000e+00 : f32
    %16 = vector.broadcast %cst_13 : f32 to vector<256x384xf32>
    %17 = arith.mulf %12, %16 : vector<256x384xf32>
    %cst_14 = arith.constant 0.000000e+00 : f32
    %18 = vector.broadcast %cst_14 : f32 to vector<256x384xf32>
    %19 = arith.select %15, %17, %18 : vector<256x384xi1>, vector<256x384xf32>
    %c0_15 = arith.constant 0 : index
    %c0_16 = arith.constant 0 : index
    %20 = vector.load %arg7[%c0_15, %c0_16] : memref<256x384xf32, #tpu.memory_space<vmem>>, vector<256x384xf32>
    tpu.vector_store %arg7[%c0_15, %c0_16], %19 {strides = array<i32>} : memref<256x384xf32, #tpu.memory_space<vmem>>, vector<256x384xf32>,
    return
  }
  func.func @transform_0(%arg0: i32) -> (i32, i32) {
    %c0_i32 = arith.constant 0 : i32
    %c0_i32_0 = arith.constant 0 : i32
    return %arg0, %c0_i32 : i32, i32
  }
  func.func @transform_1(%arg0: i32) -> (i32, i32) {
    %c0_i32 = arith.constant 0 : i32
    %c0_i32_0 = arith.constant 0 : i32
    %c0_i32_1 = arith.constant 0 : i32
    return %c0_i32, %c0_i32_0 : i32, i32
  }
  func.func @transform_2(%arg0: i32) -> (i32, i32) {
    %c0_i32 = arith.constant 0 : i32
    %c0_i32_0 = arith.constant 0 : i32
    %c0_i32_1 = arith.constant 0 : i32
    return %c0_i32, %c0_i32_0 : i32, i32
  }
  func.func @transform_3(%arg0: i32) -> (i32, i32) {
    %c0_i32 = arith.constant 0 : i32
    %c0_i32_0 = arith.constant 0 : i32
    %c0_i32_1 = arith.constant 0 : i32
    return %c0_i32, %c0_i32_0 : i32, i32
  }
  func.func @transform_4(%arg0: i32) -> (i32, i32) {
    %c0_i32 = arith.constant 0 : i32
    %c0_i32_0 = arith.constant 0 : i32
    %c0_i32_1 = arith.constant 0 : i32
    return %c0_i32, %c0_i32_0 : i32, i32
  }
  func.func @transform_5(%arg0: i32) -> (i32, i32) {
    %c0_i32 = arith.constant 0 : i32
    %c0_i32_0 = arith.constant 0 : i32
    return %arg0, %c0_i32 : i32, i32
  }
  func.func @transform_6(%arg0: i32) -> (i32, i32) {
    %c0_i32 = arith.constant 0 : i32
    %c0_i32_0 = arith.constant 0 : i32
    return %arg0, %c0_i32 : i32, i32
  }
}

</mosaic_0001>

<llo_original>
// kernel: tpu_custom_call.1
$region0: #{tpu_custom_call.1}
  #allocation0 [shape = 'u32[]', space=smem, size = 0x4, offset = 0x4, fixed_abs, tag = 'smem constant byte address 0x4 - core index']
  #allocation1 [shape = 'u32[144,128]{1,0:T(1,128)}', space=vmem, size = 0x12000, scoped, tag = 'internal scratch']
  %s0 = inlined_call_operand.hbm [shape: f32[512,384], index: 0, kind: input, shape index: {}]
  %s1 = inlined_call_operand.hbm [shape: f32[384,1536], index: 1, kind: input, shape index: {}]
  %s2 = inlined_call_operand.hbm [shape: f32[1,1536], index: 2, kind: input, shape index: {}]
  %s3 = inlined_call_operand.hbm [shape: f32[1536,384], index: 3, kind: input, shape index: {}]
  %s4 = inlined_call_operand.hbm [shape: f32[1,384], index: 4, kind: input, shape index: {}]
  %s5 = inlined_call_operand.hbm [shape: u32[512,384], index: 5, kind: input, shape index: {}]
  %s6 = inlined_call_operand.hbm [shape: f32[512,384], index: 6, kind: output, shape index: {}]
  %s7 = sld [smem:[#allocation0]]
  $region81: #{tpu_custom_call.1} parent=0
    _
  %s9 = ssub.s32 1, %s7
  %s10 = scalar_select 0, %s9, %s7
  $region1: #{tpu_custom_call.1} parent=0
    #allocation2 [shape = 'u8[786432]{0}', space=vmem, size = 0xc0000, scoped, tag = 'input window, operand 0']
    #allocation3 [shape = 's32[2]{0}', space=sflag, size = 0x8, scoped, tag = 'scoped memory for tpu_custom_call.1']
    #allocation4 [shape = 's32[2]{0}', space=sflag, size = 0x8, scoped, tag = 'scoped memory for tpu_custom_call.1']
    #allocation5 [shape = 'u8[2359296]{0}', space=vmem, size = 0x240000, scoped, tag = 'input window, operand 1, single buffered']
    #allocation6 [shape = 's32[1]{0}', space=sflag, size = 0x4, scoped, tag = 'scoped memory for tpu_custom_call.1']
    #allocation7 [shape = 'u8[6144]{0}', space=vmem, size = 0x1800, scoped, tag = 'input window, operand 2, single buffered']
    #allocation8 [shape = 'u8[2359296]{0}', space=vmem, size = 0x240000, scoped, tag = 'input window, operand 3, single buffered']
    #allocation9 [shape = 's32[1]{0}', space=sflag, size = 0x4, scoped, tag = 'scoped memory for tpu_custom_call.1']
    #allocation10 [shape = 'u8[1536]{0}', space=vmem, size = 0x800, scoped, tag = 'input window, operand 4, single buffered']
    #allocation11 [shape = 'u8[786432]{0}', space=vmem, size = 0xc0000, scoped, tag = 'input window, operand 5']
    #allocation12 [shape = 's32[2]{0}', space=sflag, size = 0x8, scoped, tag = 'scoped memory for tpu_custom_call.1']
    #allocation13 [shape = 'u8[786432]{0}', space=vmem, size = 0xc0000, scoped, tag = 'output window, operand 0']
    %11 = vsyncpa [#allocation3], 0
    %s12 = scalar_lea.sflag [#allocation3], 1
    %13 = vsyncpa %s12, 0
    %14 = vsyncpa [#allocation6], 0
    %15 = vsyncpa [#allocation9], 0
    %16 = vsyncpa [#allocation12], 0
    %s17 = scalar_lea.sflag [#allocation12], 1
    %18 = vsyncpa %s17, 0
    %19 = vsyncpa [#allocation4], 0
    %s20 = scalar_lea.sflag [#allocation4], 1
    %21 = vsyncpa %s20, 0
    loop: start=0, step=1, limit=4
    $region2: #{tpu_custom_call.1} parent=1 // loop_pre_header
      _
    $region3: #{tpu_custom_call.1} parent=1 // loop_header
      %s23 = sphi 0, %s27
      %p24 = scmp.ge.s32.totalorder %s23, 4
      %s33 = sphi 0, %s35
      %s36 = sphi 0, %s33
      %s37 = sphi 0, %s36
      %s53 = sphi 0, %s37
      %s57 = sphi 0, %s57
      %s59 = sphi 0, %s57
      %s60 = sphi 0, %s59
      %s74 = sphi 0, %s60
      %s78 = sphi 0, %s78
      %s80 = sphi 0, %s78
      %s81 = sphi 0, %s80
      %s95 = sphi 0, %s81
      %s99 = sphi 0, %s99
      %s101 = sphi 0, %s99
      %s102 = sphi 0, %s101
      %s116 = sphi 0, %s102
      %s120 = sphi 0, %s120
      %s122 = sphi 0, %s120
      %s123 = sphi 0, %s122
      %s137 = sphi 0, %s123
      %s143 = sphi 0, %s145
      %s146 = sphi 0, %s143
      %s147 = sphi 0, %s146
      %s163 = sphi 0, %s147
      %s169 = sphi 0, %s171
      %s172 = sphi 0, %s169
      %s173 = sphi 0, %s172
      %s189 = sphi 0, %s173
    $region4: #{tpu_custom_call.1} parent=1 // loop_header_branch
      %26 = sbr.rel (%p24) target = $region8
    $region5: #{tpu_custom_call.1} parent=1 // loop_body
      %s28 = ssub.s32 %s23, 1
      %s29 = ssub.s32 %s23, 2
      %s30 = sadd.s32 %s23, 1
      %s31 = ssub.s32 %s23, %s30
      %p32 = scmp.eq.s32.totalorder %s31, 0
      %s34 = sadd.s32 %s33, 1
      %s35 = scalar_select %p32, %s33, %s34
      %p38 = pneg %p32
      %p39 = scmp.eq.s32.totalorder %s23, 1
      %p40 = por %p38, %p39
      %p41 = scmp.ne.s32.totalorder %s33, %s36
      %p42 = scmp.eq.s32.totalorder %s23, 0
      %p43 = por %p41, %p42
      %p44 = scmp.ne.s32.totalorder %s33, %s36
      %p45 = scmp.eq.s32.totalorder %s28, 1
      %p46 = por %p44, %p45
      %p47 = scmp.ne.s32.totalorder %s36, %s37
      %p48 = scmp.eq.s32.totalorder %s28, 0
      %p49 = por %p47, %p48
      %p50 = scmp.ne.s32.totalorder %s36, %s37
      %p51 = scmp.eq.s32.totalorder %s29, 1
      %p52 = por %p50, %p51
      %p54 = scmp.ne.s32.totalorder %s37, %s53
      %p55 = scmp.eq.s32.totalorder %s29, 0
      %p56 = por %p54, %p55
      %s58 = sadd.s32 %s57, 1
      %p61 = scmp.eq.s32.totalorder %s23, 1
      %p62 = scmp.ne.s32.totalorder %s57, %s59
      %p63 = scmp.eq.s32.totalorder %s23, 0
      %p64 = por %p62, %p63
      %p65 = scmp.ne.s32.totalorder %s57, %s59
      %p66 = scmp.eq.s32.totalorder %s28, 1
      %p67 = por %p65, %p66
      %p68 = scmp.ne.s32.totalorder %s59, %s60
      %p69 = scmp.eq.s32.totalorder %s28, 0
      %p70 = por %p68, %p69
      %p71 = scmp.ne.s32.totalorder %s59, %s60
      %p72 = scmp.eq.s32.totalorder %s29, 1
      %p73 = por %p71, %p72
      %p75 = scmp.ne.s32.totalorder %s60, %s74
      %p76 = scmp.eq.s32.totalorder %s29, 0
      %p77 = por %p75, %p76
      %s79 = sadd.s32 %s78, 1
      %p82 = scmp.eq.s32.totalorder %s23, 1
      %p83 = scmp.ne.s32.totalorder %s78, %s80
      %p84 = scmp.eq.s32.totalorder %s23, 0
      %p85 = por %p83, %p84
      %p86 = scmp.ne.s32.totalorder %s78, %s80
      %p87 = scmp.eq.s32.totalorder %s28, 1
      %p88 = por %p86, %p87
      %p89 = scmp.ne.s32.totalorder %s80, %s81
      %p90 = scmp.eq.s32.totalorder %s28, 0
      %p91 = por %p89, %p90
      %p92 = scmp.ne.s32.totalorder %s80, %s81
      %p93 = scmp.eq.s32.totalorder %s29, 1
      %p94 = por %p92, %p93
      %p96 = scmp.ne.s32.totalorder %s81, %s95
      %p97 = scmp.eq.s32.totalorder %s29, 0
      %p98 = por %p96, %p97
      %s100 = sadd.s32 %s99, 1
      %p103 = scmp.eq.s32.totalorder %s23, 1
      %p104 = scmp.ne.s32.totalorder %s99, %s101
      %p105 = scmp.eq.s32.totalorder %s23, 0
      %p106 = por %p104, %p105
      %p107 = scmp.ne.s32.totalorder %s99, %s101
      %p108 = scmp.eq.s32.totalorder %s28, 1
      %p109 = por %p107, %p108
      %p110 = scmp.ne.s32.totalorder %s101, %s102
      %p111 = scmp.eq.s32.totalorder %s28, 0
      %p112 = por %p110, %p111
      %p113 = scmp.ne.s32.totalorder %s101, %s102
      %p114 = scmp.eq.s32.totalorder %s29, 1
      %p115 = por %p113, %p114
      %p117 = scmp.ne.s32.totalorder %s102, %s116
      %p118 = scmp.eq.s32.totalorder %s29, 0
      %p119 = por %p117, %p118
      %s121 = sadd.s32 %s120, 1
      %p124 = scmp.eq.s32.totalorder %s23, 1
      %p125 = scmp.ne.s32.totalorder %s120, %s122
      %p126 = scmp.eq.s32.totalorder %s23, 0
      %p127 = por %p125, %p126
      %p128 = scmp.ne.s32.totalorder %s120, %s122
      %p129 = scmp.eq.s32.totalorder %s28, 1
      %p130 = por %p128, %p129
      %p131 = scmp.ne.s32.totalorder %s122, %s123
      %p132 = scmp.eq.s32.totalorder %s28, 0
      %p133 = por %p131, %p132
      %p134 = scmp.ne.s32.totalorder %s122, %s123
      %p135 = scmp.eq.s32.totalorder %s29, 1
      %p136 = por %p134, %p135
      %p138 = scmp.ne.s32.totalorder %s123, %s137
      %p139 = scmp.eq.s32.totalorder %s29, 0
      %p140 = por %p138, %p139
      %s141 = ssub.s32 %s23, %s30
      %p142 = scmp.eq.s32.totalorder %s141, 0
      %s144 = sadd.s32 %s143, 1
      %s145 = scalar_select %p142, %s143, %s144
      %p148 = pneg %p142
      %p149 = scmp.eq.s32.totalorder %s23, 1
      %p150 = por %p148, %p149
      %p151 = scmp.ne.s32.totalorder %s143, %s146
      %p152 = scmp.eq.s32.totalorder %s23, 0
      %p153 = por %p151, %p152
      %p154 = scmp.ne.s32.totalorder %s143, %s146
      %p155 = scmp.eq.s32.totalorder %s28, 1
      %p156 = por %p154, %p155
      %p157 = scmp.ne.s32.totalorder %s146, %s147
      %p158 = scmp.eq.s32.totalorder %s28, 0
      %p159 = por %p157, %p158
      %p160 = scmp.ne.s32.totalorder %s146, %s147
      %p161 = scmp.eq.s32.totalorder %s29, 1
      %p162 = por %p160, %p161
      %p164 = scmp.ne.s32.totalorder %s147, %s163
      %p165 = scmp.eq.s32.totalorder %s29, 0
      %p166 = por %p164, %p165
      %s167 = ssub.s32 %s23, %s30
      %p168 = scmp.eq.s32.totalorder %s167, 0
      %s170 = sadd.s32 %s169, 1
      %s171 = scalar_select %p168, %s169, %s170
      %p174 = pneg %p168
      %p175 = scmp.eq.s32.totalorder %s23, 1
      %p176 = por %p174, %p175
      %p177 = scmp.ne.s32.totalorder %s169, %s172
      %p178 = scmp.eq.s32.totalorder %s23, 0
      %p179 = por %p177, %p178
      %p180 = scmp.ne.s32.totalorder %s169, %s172
      %p181 = scmp.eq.s32.totalorder %s28, 1
      %p182 = por %p180, %p181
      %p183 = scmp.ne.s32.totalorder %s172, %s173
      %p184 = scmp.eq.s32.totalorder %s28, 0
      %p185 = por %p183, %p184
      %p186 = scmp.ne.s32.totalorder %s172, %s173
      %p187 = scmp.eq.s32.totalorder %s29, 1
      %p188 = por %p186, %p187
      %p190 = scmp.ne.s32.totalorder %s173, %s189
      %p191 = scmp.eq.s32.totalorder %s29, 0
      %p192 = por %p190, %p191
      %p193 = scmp.le.s32.totalorder 1, %s23
      %p194 = scmp.lt.s32.totalorder %s23, 3
      %p195 = pnand %p193, %p194
      %p196 = pneg %p195
      // Predicated region
      $region9: #{tpu_custom_call.1} parent=5 // pred_check
        _
      $region10: #{tpu_custom_call.1} parent=5 // pred_check_branch
        %198 = sbr.rel (%p195) target = $region12
      $region11: #{tpu_custom_call.1} parent=5 // pred_region
        %s199 = ssub.s32 %s23, 1
        // Predicated region
        $region13: #{tpu_custom_call.1} parent=11 // pred_check
          %p200 = pneg %p70
        $region14: #{tpu_custom_call.1} parent=11 // pred_check_branch
          %202 = sbr.rel (%p200) target = $region16
        $region15: #{tpu_custom_call.1} parent=11 // pred_region
          %s204 = ssub.s32 73728, 73728
          %205 = vsyncadd [#allocation6], %s204
          %s206 = sshll.u32 [#allocation5], 4
          %s207 = int_to_ptr.vmem [resolvable:$true] %s206
          %212 = dma.hbm_to_vmem [thread:$0]  %s1, 73728, %s207, [#allocation6], 1536, 1536, 96
        $region16: #{tpu_custom_call.1} parent=11 // pred_fallthru
          _
        // Predicated region
        $region17: #{tpu_custom_call.1} parent=11 // pred_check
          %p213 = pneg %p91
        $region18: #{tpu_custom_call.1} parent=11 // pred_check_branch
          %215 = sbr.rel (%p213) target = $region20
        $region19: #{tpu_custom_call.1} parent=11 // pred_region
          %s217 = ssub.s32 192, 192
          %218 = vsyncadd [#allocation6], %s217
          %s220 = sshll.u32 [#allocation7], 4
          %s221 = int_to_ptr.vmem [resolvable:$true] %s220
          %223 = dma.hbm_to_vmem [thread:$0]  %s2, 192, %s221, [#allocation6]
        $region20: #{tpu_custom_call.1} parent=11 // pred_fallthru
          _
        // Predicated region
        $region21: #{tpu_custom_call.1} parent=11 // pred_check
          %p224 = pneg %p112
        $region22: #{tpu_custom_call.1} parent=11 // pred_check_branch
          %226 = sbr.rel (%p224) target = $region24
        $region23: #{tpu_custom_call.1} parent=11 // pred_region
          %s228 = ssub.s32 73728, 73728
          %229 = vsyncadd [#allocation9], %s228
          %s230 = sshll.u32 [#allocation8], 4
          %s231 = int_to_ptr.vmem [resolvable:$true] %s230
          %236 = dma.hbm_to_vmem [thread:$0]  %s3, 73728, %s231, [#allocation9], 384, 384, 24
        $region24: #{tpu_custom_call.1} parent=11 // pred_fallthru
          _
        // Predicated region
        $region25: #{tpu_custom_call.1} parent=11 // pred_check
          %p237 = pneg %p133
        $region26: #{tpu_custom_call.1} parent=11 // pred_check_branch
          %239 = sbr.rel (%p237) target = $region28
        $region27: #{tpu_custom_call.1} parent=11 // pred_region
          %s241 = ssub.s32 48, 48
          %242 = vsyncadd [#allocation9], %s241
          %s244 = sshll.u32 [#allocation10], 4
          %s245 = int_to_ptr.vmem [resolvable:$true] %s244
          %247 = dma.hbm_to_vmem [thread:$0]  %s4, 48, %s245, [#allocation9]
        $region28: #{tpu_custom_call.1} parent=11 // pred_fallthru
          _
      $region12: #{tpu_custom_call.1} parent=5 // pred_fallthru
        _
      %p248 = scmp.lt.s32.totalorder %s23, 2
      // Predicated region
      $region29: #{tpu_custom_call.1} parent=5 // pred_check
        %p249 = pneg %p248
      $region30: #{tpu_custom_call.1} parent=5 // pred_check_branch
        %251 = sbr.rel (%p249) target = $region32
      $region31: #{tpu_custom_call.1} parent=5 // pred_region
        // Predicated region
        $region33: #{tpu_custom_call.1} parent=31 // pred_check
          %p252 = pneg %p43
        $region34: #{tpu_custom_call.1} parent=31 // pred_check_branch
          %254 = sbr.rel (%p252) target = $region36
        $region35: #{tpu_custom_call.1} parent=31 // pred_region
          %s255 = sand.u32 %s33, 1
          %s256 = scalar_lea.sflag [#allocation3], %s255
          %s257 = sand.u32 %s33, 1
          %s258 = smul.addr %s257, 768
          %s259 = scalar_lea.vmem [#allocation2], %s258
          %s260 = smul.u32 32, %s23
          %s262 = ssub.s32 12288, 12288
          %263 = vsyncadd %s256, %s262
          %s264 = smul.addr %s260, 3
          %s265 = smul.addr %s264, 128
          %s266 = scalar_lea.hbm %s0, %s265
          %s267 = sshll.u32 %s259, 4
          %s268 = int_to_ptr.vmem [resolvable:$true] %s267
          %273 = dma.hbm_to_vmem [thread:$0]  %s266, 12288, %s268, %s256, 384, 384, 24
        $region36: #{tpu_custom_call.1} parent=31 // pred_fallthru
          _
        // Predicated region
        $region37: #{tpu_custom_call.1} parent=31 // pred_check
          %p274 = pneg %p153
        $region38: #{tpu_custom_call.1} parent=31 // pred_check_branch
          %276 = sbr.rel (%p274) target = $region40
        $region39: #{tpu_custom_call.1} parent=31 // pred_region
          %s277 = sand.u32 %s143, 1
          %s278 = scalar_lea.sflag [#allocation12], %s277
          %s279 = sand.u32 %s143, 1
          %s280 = smul.addr %s279, 768
          %s281 = scalar_lea.vmem [#allocation11], %s280
          %s282 = smul.u32 32, %s23
          %s284 = ssub.s32 12288, 12288
          %285 = vsyncadd %s278, %s284
          %s286 = smul.addr %s282, 3
          %s287 = smul.addr %s286, 128
          %s288 = scalar_lea.hbm %s5, %s287
          %s289 = sshll.u32 %s281, 4
          %s290 = int_to_ptr.vmem [resolvable:$true] %s289
          %295 = dma.hbm_to_vmem [thread:$0]  %s288, 12288, %s290, %s278, 384, 384, 24
        $region40: #{tpu_custom_call.1} parent=31 // pred_fallthru
          _
      $region32: #{tpu_custom_call.1} parent=5 // pred_fallthru
        _
      %p296 = scmp.le.s32.totalorder 1, %s23
      %p297 = scmp.lt.s32.totalorder %s23, 3
      %p298 = pnand %p296, %p297
      %p299 = pneg %p298
      // Predicated region
      $region41: #{tpu_custom_call.1} parent=5 // pred_check
        _
      $region42: #{tpu_custom_call.1} parent=5 // pred_check_branch
        %301 = sbr.rel (%p298) target = $region44
      $region43: #{tpu_custom_call.1} parent=5 // pred_region
        %s302 = ssub.s32 %s23, 1
        %s303 = sand.u32 %s36, 1
        %s304 = scalar_lea.sflag [#allocation3], %s303
        %s305 = sand.u32 %s36, 1
        %s306 = smul.addr %s305, 768
        %s307 = scalar_lea.vmem [#allocation2], %s306
        // Predicated region
        $region45: #{tpu_custom_call.1} parent=43 // pred_check
          %p308 = pneg %p49
        $region46: #{tpu_custom_call.1} parent=43 // pred_check_branch
          %310 = sbr.rel (%p308) target = $region48
        $region47: #{tpu_custom_call.1} parent=43 // pred_region
          %311 = dma.done %s304, 12288
        $region48: #{tpu_custom_call.1} parent=43 // pred_fallthru
          _
        // Predicated region
        $region49: #{tpu_custom_call.1} parent=43 // pred_check
          %p312 = pneg %p70
        $region50: #{tpu_custom_call.1} parent=43 // pred_check_branch
          %314 = sbr.rel (%p312) target = $region52
        $region51: #{tpu_custom_call.1} parent=43 // pred_region
          %315 = dma.done [#allocation6], 73728
        $region52: #{tpu_custom_call.1} parent=43 // pred_fallthru
          _
        // Predicated region
        $region53: #{tpu_custom_call.1} parent=43 // pred_check
          %p316 = pneg %p91
        $region54: #{tpu_custom_call.1} parent=43 // pred_check_branch
          %318 = sbr.rel (%p316) target = $region56
        $region55: #{tpu_custom_call.1} parent=43 // pred_region
          %319 = dma.done [#allocation6], 192
        $region56: #{tpu_custom_call.1} parent=43 // pred_fallthru
          _
        // Predicated region
        $region57: #{tpu_custom_call.1} parent=43 // pred_check
          %p320 = pneg %p112
        $region58: #{tpu_custom_call.1} parent=43 // pred_check_branch
          %322 = sbr.rel (%p320) target = $region60
        $region59: #{tpu_custom_call.1} parent=43 // pred_region
          %323 = dma.done [#allocation9], 73728
        $region60: #{tpu_custom_call.1} parent=43 // pred_fallthru
          _
        // Predicated region
        $region61: #{tpu_custom_call.1} parent=43 // pred_check
          %p324 = pneg %p133
        $region62: #{tpu_custom_call.1} parent=43 // pred_check_branch
          %326 = sbr.rel (%p324) target = $region64
        $region63: #{tpu_custom_call.1} parent=43 // pred_region
          %327 = dma.done [#allocation9], 48
        $region64: #{tpu_custom_call.1} parent=43 // pred_fallthru
          _
        %s328 = sand.u32 %s146, 1
        %s329 = scalar_lea.sflag [#allocation12], %s328
        %s330 = sand.u32 %s146, 1
        %s331 = smul.addr %s330, 768
        %s332 = scalar_lea.vmem [#allocation11], %s331
        // Predicated region
        $region65: #{tpu_custom_call.1} parent=43 // pred_check
          %p333 = pneg %p159
        $region66: #{tpu_custom_call.1} parent=43 // pred_check_branch
          %335 = sbr.rel (%p333) target = $region68
        $region67: #{tpu_custom_call.1} parent=43 // pred_region
          %336 = dma.done %s329, 12288
        $region68: #{tpu_custom_call.1} parent=43 // pred_fallthru
          _
        %s337 = sand.u32 %s36, 1
        %s338 = scalar_lea.sflag [#allocation3], %s337
        %s339 = sand.u32 %s36, 1
        %s340 = smul.addr %s339, 768
        %s341 = scalar_lea.vmem [#allocation2], %s340
        %p342 = pneg %p49
        %p343 = pneg %p46
        %p344 = pneg %p70
        %p345 = pneg %p67
        %p346 = pneg %p91
        %p347 = pneg %p88
        %p348 = pneg %p112
        %p349 = pneg %p109
        %p350 = pneg %p133
        %p351 = pneg %p130
        %s352 = sand.u32 %s146, 1
        %s353 = scalar_lea.sflag [#allocation12], %s352
        %s354 = sand.u32 %s146, 1
        %s355 = smul.addr %s354, 768
        %s356 = scalar_lea.vmem [#allocation11], %s355
        %p357 = pneg %p159
        %p358 = pneg %p156
        %p359 = pneg %p185
        %p360 = pneg %p182
        %s361 = sand.u32 %s172, 1
        %s362 = scalar_lea.sflag [#allocation4], %s361
        %s363 = sand.u32 %s172, 1
        %s364 = smul.addr %s363, 768
        %s365 = scalar_lea.vmem [#allocation13], %s364
        %s366 = smul.u32 32, %s28
        %s367 = smul.u32 32, %s28
        %s368 = smul.u32 32, %s28
        %v369 = vld [vmem:[%s307] sm:$0xff]
        %v370 = vld [vmem:[%s307 + $0x8] sm:$0xff]
        %v371 = vld [vmem:[%s307 + $0x10] sm:$0xff]
        %v372 = vld [vmem:[%s307 + $0x18] sm:$0xff]
        %v373 = vld [vmem:[%s307 + $0x20] sm:$0xff]
        %v374 = vld [vmem:[%s307 + $0x28] sm:$0xff]
        %v375 = vld [vmem:[%s307 + $0x30] sm:$0xff]
        %v376 = vld [vmem:[%s307 + $0x38] sm:$0xff]
        %v377 = vld [vmem:[%s307 + $0x40] sm:$0xff]
        %v378 = vld [vmem:[%s307 + $0x48] sm:$0xff]
        %v379 = vld [vmem:[%s307 + $0x50] sm:$0xff]
        %v380 = vld [vmem:[%s307 + $0x58] sm:$0xff]
        %v381 = vld [vmem:[%s307 + $0x60] sm:$0xff]
        %v382 = vld [vmem:[%s307 + $0x68] sm:$0xff]
        %v383 = vld [vmem:[%s307 + $0x70] sm:$0xff]
        %v384 = vld [vmem:[%s307 + $0x78] sm:$0xff]
        %v385 = vld [vmem:[%s307 + $0x80] sm:$0xff]
        %v386 = vld [vmem:[%s307 + $0x88] sm:$0xff]
        %v387 = vld [vmem:[%s307 + $0x90] sm:$0xff]
        %v388 = vld [vmem:[%s307 + $0x98] sm:$0xff]
        %v389 = vld [vmem:[%s307 + $0xa0] sm:$0xff]
        %v390 = vld [vmem:[%s307 + $0xa8] sm:$0xff]
        %v391 = vld [vmem:[%s307 + $0xb0] sm:$0xff]
        %v392 = vld [vmem:[%s307 + $0xb8] sm:$0xff]
        %v393 = vld [vmem:[%s307 + $0xc0] sm:$0xff]
        %v394 = vld [vmem:[%s307 + $0xc8] sm:$0xff]
        %v395 = vld [vmem:[%s307 + $0xd0] sm:$0xff]
        %v396 = vld [vmem:[%s307 + $0xd8] sm:$0xff]
        %v397 = vld [vmem:[%s307 + $0xe0] sm:$0xff]
        %v398 = vld [vmem:[%s307 + $0xe8] sm:$0xff]
        %v399 = vld [vmem:[%s307 + $0xf0] sm:$0xff]
        %v400 = vld [vmem:[%s307 + $0xf8] sm:$0xff]
        %v401 = vld [vmem:[%s307 + $0x100] sm:$0xff]
        %v402 = vld [vmem:[%s307 + $0x108] sm:$0xff]
        %v403 = vld [vmem:[%s307 + $0x110] sm:$0xff]
        %v404 = vld [vmem:[%s307 + $0x118] sm:$0xff]
        %v405 = vld [vmem:[%s307 + $0x120] sm:$0xff]
        %v406 = vld [vmem:[%s307 + $0x128] sm:$0xff]
        %v407 = vld [vmem:[%s307 + $0x130] sm:$0xff]
        %v408 = vld [vmem:[%s307 + $0x138] sm:$0xff]
        %v409 = vld [vmem:[%s307 + $0x140] sm:$0xff]
        %v410 = vld [vmem:[%s307 + $0x148] sm:$0xff]
        %v411 = vld [vmem:[%s307 + $0x150] sm:$0xff]
        %v412 = vld [vmem:[%s307 + $0x158] sm:$0xff]
        %v413 = vld [vmem:[%s307 + $0x160] sm:$0xff]
        %v414 = vld [vmem:[%s307 + $0x168] sm:$0xff]
        %v415 = vld [vmem:[%s307 + $0x170] sm:$0xff]
        %v416 = vld [vmem:[%s307 + $0x178] sm:$0xff]
        %v417 = vld [vmem:[%s307 + $0x180] sm:$0xff]
        %v418 = vld [vmem:[%s307 + $0x188] sm:$0xff]
        %v419 = vld [vmem:[%s307 + $0x190] sm:$0xff]
        %v420 = vld [vmem:[%s307 + $0x198] sm:$0xff]
        %v421 = vld [vmem:[%s307 + $0x1a0] sm:$0xff]
        %v422 = vld [vmem:[%s307 + $0x1a8] sm:$0xff]
        %v423 = vld [vmem:[%s307 + $0x1b0] sm:$0xff]
        %v424 = vld [vmem:[%s307 + $0x1b8] sm:$0xff]
        %v425 = vld [vmem:[%s307 + $0x1c0] sm:$0xff]
        %v426 = vld [vmem:[%s307 + $0x1c8] sm:$0xff]
        %v427 = vld [vmem:[%s307 + $0x1d0] sm:$0xff]
        %v428 = vld [vmem:[%s307 + $0x1d8] sm:$0xff]
        %v429 = vld [vmem:[%s307 + $0x1e0] sm:$0xff]
        %v430 = vld [vmem:[%s307 + $0x1e8] sm:$0xff]
        %v431 = vld [vmem:[%s307 + $0x1f0] sm:$0xff]
        %v432 = vld [vmem:[%s307 + $0x1f8] sm:$0xff]
        %v433 = vld [vmem:[%s307 + $0x200] sm:$0xff]
        %v434 = vld [vmem:[%s307 + $0x208] sm:$0xff]
        %v435 = vld [vmem:[%s307 + $0x210] sm:$0xff]
        %v436 = vld [vmem:[%s307 + $0x218] sm:$0xff]
        %v437 = vld [vmem:[%s307 + $0x220] sm:$0xff]
        %v438 = vld [vmem:[%s307 + $0x228] sm:$0xff]
        %v439 = vld [vmem:[%s307 + $0x230] sm:$0xff]
        %v440 = vld [vmem:[%s307 + $0x238] sm:$0xff]
        %v441 = vld [vmem:[%s307 + $0x240] sm:$0xff]
        %v442 = vld [vmem:[%s307 + $0x248] sm:$0xff]
        %v443 = vld [vmem:[%s307 + $0x250] sm:$0xff]
        %v444 = vld [vmem:[%s307 + $0x258] sm:$0xff]
        %v445 = vld [vmem:[%s307 + $0x260] sm:$0xff]
        %v446 = vld [vmem:[%s307 + $0x268] sm:$0xff]
        %v447 = vld [vmem:[%s307 + $0x270] sm:$0xff]
        %v448 = vld [vmem:[%s307 + $0x278] sm:$0xff]
        %v449 = vld [vmem:[%s307 + $0x280] sm:$0xff]
        %v450 = vld [vmem:[%s307 + $0x288] sm:$0xff]
        %v451 = vld [vmem:[%s307 + $0x290] sm:$0xff]
        %v452 = vld [vmem:[%s307 + $0x298] sm:$0xff]
        %v453 = vld [vmem:[%s307 + $0x2a0] sm:$0xff]
        %v454 = vld [vmem:[%s307 + $0x2a8] sm:$0xff]
        %v455 = vld [vmem:[%s307 + $0x2b0] sm:$0xff]
        %v456 = vld [vmem:[%s307 + $0x2b8] sm:$0xff]
        %v457 = vld [vmem:[%s307 + $0x2c0] sm:$0xff]
        %v458 = vld [vmem:[%s307 + $0x2c8] sm:$0xff]
        %v459 = vld [vmem:[%s307 + $0x2d0] sm:$0xff]
        %v460 = vld [vmem:[%s307 + $0x2d8] sm:$0xff]
        %v461 = vld [vmem:[%s307 + $0x2e0] sm:$0xff]
        %v462 = vld [vmem:[%s307 + $0x2e8] sm:$0xff]
        %v463 = vld [vmem:[%s307 + $0x2f0] sm:$0xff]
        %v464 = vld [vmem:[%s307 + $0x2f8] sm:$0xff]
        %v465 = vld [vmem:[#allocation5] sm:$0xff]
        %v466 = vld [vmem:[#allocation5 + $0x8] sm:$0xff]
        %v467 = vld [vmem:[#allocation5 + $0x10] sm:$0xff]
        %v468 = vld [vmem:[#allocation5 + $0x18] sm:$0xff]
        %v469 = vld [vmem:[#allocation5 + $0x20] sm:$0xff]
        %v470 = vld [vmem:[#allocation5 + $0x28] sm:$0xff]
        %v471 = vld [vmem:[#allocation5 + $0x30] sm:$0xff]
        %v472 = vld [vmem:[#allocation5 + $0x38] sm:$0xff]
        %v473 = vld [vmem:[#allocation5 + $0x40] sm:$0xff]
        %v474 = vld [vmem:[#allocation5 + $0x48] sm:$0xff]
        %v475 = vld [vmem:[#allocation5 + $0x50] sm:$0xff]
        %v476 = vld [vmem:[#allocation5 + $0x58] sm:$0xff]
        %v477 = vld [vmem:[#allocation5 + $0x60] sm:$0xff]
        %v478 = vld [vmem:[#allocation5 + $0x68] sm:$0xff]
        %v479 = vld [vmem:[#allocation5 + $0x70] sm:$0xff]
        %v480 = vld [vmem:[#allocation5 + $0x78] sm:$0xff]
        %v481 = vld [vmem:[#allocation5 + $0x80] sm:$0xff]
        %v482 = vld [vmem:[#allocation5 + $0x88] sm:$0xff]
        %v483 = vld [vmem:[#allocation5 + $0x90] sm:$0xff]
        %v484 = vld [vmem:[#allocation5 + $0x98] sm:$0xff]
        %v485 = vld [vmem:[#allocation5 + $0xa0] sm:$0xff]
        %v486 = vld [vmem:[#allocation5 + $0xa8] sm:$0xff]
        %v487 = vld [vmem:[#allocation5 + $0xb0] sm:$0xff]
        %v488 = vld [vmem:[#allocation5 + $0xb8] sm:$0xff]
        %v489 = vld [vmem:[#allocation5 + $0xc0] sm:$0xff]
        %v490 = vld [vmem:[#allocation5 + $0xc8] sm:$0xff]
        %v491 = vld [vmem:[#allocation5 + $0xd0] sm:$0xff]
        %v492 = vld [vmem:[#allocation5 + $0xd8] sm:$0xff]
        %v493 = vld [vmem:[#allocation5 + $0xe0] sm:$0xff]
        %v494 = vld [vmem:[#allocation5 + $0xe8] sm:$0xff]
        %v495 = vld [vmem:[#allocation5 + $0xf0] sm:$0xff]
        %v496 = vld [vmem:[#allocation5 + $0xf8] sm:$0xff]
        %v497 = vld [vmem:[#allocation5 + $0x100] sm:$0xff]
        %v498 = vld [vmem:[#allocation5 + $0x108] sm:$0xff]
        %v499 = vld [vmem:[#allocation5 + $0x110] sm:$0xff]
        %v500 = vld [vmem:[#allocation5 + $0x118] sm:$0xff]
        %v501 = vld [vmem:[#allocation5 + $0x120] sm:$0xff]
        %v502 = vld [vmem:[#allocation5 + $0x128] sm:$0xff]
        %v503 = vld [vmem:[#allocation5 + $0x130] sm:$0xff]
        %v504 = vld [vmem:[#allocation5 + $0x138] sm:$0xff]
        %v505 = vld [vmem:[#allocation5 + $0x140] sm:$0xff]
        %v506 = vld [vmem:[#allocation5 + $0x148] sm:$0xff]
        %v507 = vld [vmem:[#allocation5 + $0x150] sm:$0xff]
        %v508 = vld [vmem:[#allocation5 + $0x158] sm:$0xff]
        %v509 = vld [vmem:[#allocation5 + $0x160] sm:$0xff]
        %v510 = vld [vmem:[#allocation5 + $0x168] sm:$0xff]
        %v511 = vld [vmem:[#allocation5 + $0x170] sm:$0xff]
        %v512 = vld [vmem:[#allocation5 + $0x178] sm:$0xff]
        %v513 = vld [vmem:[#allocation5 + $0x180] sm:$0xff]
        %v514 = vld [vmem:[#allocation5 + $0x188] sm:$0xff]
        %v515 = vld [vmem:[#allocation5 + $0x190] sm:$0xff]
        %v516 = vld [vmem:[#allocation5 + $0x198] sm:$0xff]
        %v517 = vld [vmem:[#allocation5 + $0x1a0] sm:$0xff]
        %v518 = vld [vmem:[#allocation5 + $0x1a8] sm:$0xff]
        %v519 = vld [vmem:[#allocation5 + $0x1b0] sm:$0xff]
        %v520 = vld [vmem:[#allocation5 + $0x1b8] sm:$0xff]
        %v521 = vld [vmem:[#allocation5 + $0x1c0] sm:$0xff]
        %v522 = vld [vmem:[#allocation5 + $0x1c8] sm:$0xff]
        %v523 = vld [vmem:[#allocation5 + $0x1d0] sm:$0xff]
        %v524 = vld [vmem:[#allocation5 + $0x1d8] sm:$0xff]
        %v525 = vld [vmem:[#allocation5 + $0x1e0] sm:$0xff]
        %v526 = vld [vmem:[#allocation5 + $0x1e8] sm:$0xff]
        %v527 = vld [vmem:[#allocation5 + $0x1f0] sm:$0xff]
        %v528 = vld [vmem:[#allocation5 + $0x1f8] sm:$0xff]
        %v529 = vld [vmem:[#allocation5 + $0x200] sm:$0xff]
        %v530 = vld [vmem:[#allocation5 + $0x208] sm:$0xff]
        %v531 = vld [vmem:[#allocation5 + $0x210] sm:$0xff]
        %v532 = vld [vmem:[#allocation5 + $0x218] sm:$0xff]
        %v533 = vld [vmem:[#allocation5 + $0x220] sm:$0xff]
        %v534 = vld [vmem:[#allocation5 + $0x228] sm:$0xff]
        %v535 = vld [vmem:[#allocation5 + $0x230] sm:$0xff]
        %v536 = vld [vmem:[#allocation5 + $0x238] sm:$0xff]
        %v537 = vld [vmem:[#allocation5 + $0x240] sm:$0xff]
        %v538 = vld [vmem:[#allocation5 + $0x248] sm:$0xff]
        %v539 = vld [vmem:[#allocation5 + $0x250] sm:$0xff]
        %v540 = vld [vmem:[#allocation5 + $0x258] sm:$0xff]
        %v541 = vld [vmem:[#allocation5 + $0x260] sm:$0xff]
        %v542 = vld [vmem:[#allocation5 + $0x268] sm:$0xff]
        %v543 = vld [vmem:[#allocation5 + $0x270] sm:$0xff]
        %v544 = vld [vmem:[#allocation5 + $0x278] sm:$0xff]
        %v545 = vld [vmem:[#allocation5 + $0x280] sm:$0xff]
        %v546 = vld [vmem:[#allocation5 + $0x288] sm:$0xff]
        %v547 = vld [vmem:[#allocation5 + $0x290] sm:$0xff]
        %v548 = vld [vmem:[#allocation5 + $0x298] sm:$0xff]
        %v549 = vld [vmem:[#allocation5 + $0x2a0] sm:$0xff]
        %v550 = vld [vmem:[#allocation5 + $0x2a8] sm:$0xff]
        %v551 = vld [vmem:[#allocation5 + $0x2b0] sm:$0xff]
        %v552 = vld [vmem:[#allocation5 + $0x2b8] sm:$0xff]
        %v553 = vld [vmem:[#allocation5 + $0x2c0] sm:$0xff]
        %v554 = vld [vmem:[#allocation5 + $0x2c8] sm:$0xff]
        %v555 = vld [vmem:[#allocation5 + $0x2d0] sm:$0xff]
        %v556 = vld [vmem:[#allocation5 + $0x2d8] sm:$0xff]
        %v557 = vld [vmem:[#allocation5 + $0x2e0] sm:$0xff]
        %v558 = vld [vmem:[#allocation5 + $0x2e8] sm:$0xff]
        %v559 = vld [vmem:[#allocation5 + $0x2f0] sm:$0xff]
        %v560 = vld [vmem:[#allocation5 + $0x2f8] sm:$0xff]
        %v561 = vld [vmem:[#allocation5 + $0x300] sm:$0xff]
        %v562 = vld [vmem:[#allocation5 + $0x308] sm:$0xff]
        %v563 = vld [vmem:[#allocation5 + $0x310] sm:$0xff]
        %v564 = vld [vmem:[#allocation5 + $0x318] sm:$0xff]
        %v565 = vld [vmem:[#allocation5 + $0x320] sm:$0xff]
        %v566 = vld [vmem:[#allocation5 + $0x328] sm:$0xff]
        %v567 = vld [vmem:[#allocation5 + $0x330] sm:$0xff]
        %v568 = vld [vmem:[#allocation5 + $0x338] sm:$0xff]
        %v569 = vld [vmem:[#allocation5 + $0x340] sm:$0xff]
        %v570 = vld [vmem:[#allocation5 + $0x348] sm:$0xff]
        %v571 = vld [vmem:[#allocation5 + $0x350] sm:$0xff]
        %v572 = vld [vmem:[#allocation5 + $0x358] sm:$0xff]
        %v573 = vld [vmem:[#allocation5 + $0x360] sm:$0xff]
        %v574 = vld [vmem:[#allocation5 + $0x368] sm:$0xff]
        %v575 = vld [vmem:[#allocation5 + $0x370] sm:$0xff]
        %v576 = vld [vmem:[#allocation5 + $0x378] sm:$0xff]
        %v577 = vld [vmem:[#allocation5 + $0x380] sm:$0xff]
        %v578 = vld [vmem:[#allocation5 + $0x388] sm:$0xff]
        %v579 = vld [vmem:[#allocation5 + $0x390] sm:$0xff]
        %v580 = vld [vmem:[#allocation5 + $0x398] sm:$0xff]
        %v581 = vld [vmem:[#allocation5 + $0x3a0] sm:$0xff]
        %v582 = vld [vmem:[#allocation5 + $0x3a8] sm:$0xff]
        %v583 = vld [vmem:[#allocation5 + $0x3b0] sm:$0xff]
        %v584 = vld [vmem:[#allocation5 + $0x3b8] sm:$0xff]
        %v585 = vld [vmem:[#allocation5 + $0x3c0] sm:$0xff]
        %v586 = vld [vmem:[#allocation5 + $0x3c8] sm:$0xff]
        %v587 = vld [vmem:[#allocation5 + $0x3d0] sm:$0xff]
        %v588 = vld [vmem:[#allocation5 + $0x3d8] sm:$0xff]
        %v589 = vld [vmem:[#allocation5 + $0x3e0] sm:$0xff]
        %v590 = vld [vmem:[#allocation5 + $0x3e8] sm:$0xff]
        %v591 = vld [vmem:[#allocation5 + $0x3f0] sm:$0xff]
        %v592 = vld [vmem:[#allocation5 + $0x3f8] sm:$0xff]
        %v593 = vld [vmem:[#allocation5 + $0x400] sm:$0xff]
        %v594 = vld [vmem:[#allocation5 + $0x408] sm:$0xff]
        %v595 = vld [vmem:[#allocation5 + $0x410] sm:$0xff]
        %v596 = vld [vmem:[#allocation5 + $0x418] sm:$0xff]
        %v597 = vld [vmem:[#allocation5 + $0x420] sm:$0xff]
        %v598 = vld [vmem:[#allocation5 + $0x428] sm:$0xff]
        %v599 = vld [vmem:[#allocation5 + $0x430] sm:$0xff]
        %v600 = vld [vmem:[#allocation5 + $0x438] sm:$0xff]
        %v601 = vld [vmem:[#allocation5 + $0x440] sm:$0xff]
        %v602 = vld [vmem:[#allocation5 + $0x448] sm:$0xff]
        %v603 = vld [vmem:[#allocation5 + $0x450] sm:$0xff]
        %v604 = vld [vmem:[#allocation5 + $0x458] sm:$0xff]
        %v605 = vld [vmem:[#allocation5 + $0x460] sm:$0xff]
        %v606 = vld [vmem:[#allocation5 + $0x468] sm:$0xff]
        %v607 = vld [vmem:[#allocation5 + $0x470] sm:$0xff]
        %v608 = vld [vmem:[#allocation5 + $0x478] sm:$0xff]
        %v609 = vld [vmem:[#allocation5 + $0x480] sm:$0xff]
        %v610 = vld [vmem:[#allocation5 + $0x488] sm:$0xff]
        %v611 = vld [vmem:[#allocation5 + $0x490] sm:$0xff]
        %v612 = vld [vmem:[#allocation5 + $0x498] sm:$0xff]
        %v613 = vld [vmem:[#allocation5 + $0x4a0] sm:$0xff]
        %v614 = vld [vmem:[#allocation5 + $0x4a8] sm:$0xff]
        %v615 = vld [vmem:[#allocation5 + $0x4b0] sm:$0xff]
        %v616 = vld [vmem:[#allocation5 + $0x4b8] sm:$0xff]
        %v617 = vld [vmem:[#allocation5 + $0x4c0] sm:$0xff]
        %v618 = vld [vmem:[#allocation5 + $0x4c8] sm:$0xff]
        %v619 = vld [vmem:[#allocation5 + $0x4d0] sm:$0xff]
        %v620 = vld [vmem:[#allocation5 + $0x4d8] sm:$0xff]
        %v621 = vld [vmem:[#allocation5 + $0x4e0] sm:$0xff]
        %v622 = vld [vmem:[#allocation5 + $0x4e8] sm:$0xff]
        %v623 = vld [vmem:[#allocation5 + $0x4f0] sm:$0xff]
        %v624 = vld [vmem:[#allocation5 + $0x4f8] sm:$0xff]
        %v625 = vld [vmem:[#allocation5 + $0x500] sm:$0xff]
        %v626 = vld [vmem:[#allocation5 + $0x508] sm:$0xff]
        %v627 = vld [vmem:[#allocation5 + $0x510] sm:$0xff]
        %v628 = vld [vmem:[#allocation5 + $0x518] sm:$0xff]
        %v629 = vld [vmem:[#allocation5 + $0x520] sm:$0xff]
        %v630 = vld [vmem:[#allocation5 + $0x528] sm:$0xff]
        %v631 = vld [vmem:[#allocation5 + $0x530] sm:$0xff]
        %v632 = vld [vmem:[#allocation5 + $0x538] sm:$0xff]
        %v633 = vld [vmem:[#allocation5 + $0x540] sm:$0xff]
        %v634 = vld [vmem:[#allocation5 + $0x548] sm:$0xff]
        %v635 = vld [vmem:[#allocation5 + $0x550] sm:$0xff]
        %v636 = vld [vmem:[#allocation5 + $0x558] sm:$0xff]
        %v637 = vld [vmem:[#allocation5 + $0x560] sm:$0xff]
        %v638 = vld [vmem:[#allocation5 + $0x568] sm:$0xff]
        %v639 = vld [vmem:[#allocation5 + $0x570] sm:$0xff]
        %v640 = vld [vmem:[#allocation5 + $0x578] sm:$0xff]
        %v641 = vld [vmem:[#allocation5 + $0x580] sm:$0xff]
        %v642 = vld [vmem:[#allocation5 + $0x588] sm:$0xff]
        %v643 = vld [vmem:[#allocation5 + $0x590] sm:$0xff]
        %v644 = vld [vmem:[#allocation5 + $0x598] sm:$0xff]
        %v645 = vld [vmem:[#allocation5 + $0x5a0] sm:$0xff]
        %v646 = vld [vmem:[#allocation5 + $0x5a8] sm:$0xff]
        %v647 = vld [vmem:[#allocation5 + $0x5b0] sm:$0xff]
        %v648 = vld [vmem:[#allocation5 + $0x5b8] sm:$0xff]
        %v649 = vld [vmem:[#allocation5 + $0x5c0] sm:$0xff]
        %v650 = vld [vmem:[#allocation5 + $0x5c8] sm:$0xff]
        %v651 = vld [vmem:[#allocation5 + $0x5d0] sm:$0xff]
        %v652 = vld [vmem:[#allocation5 + $0x5d8] sm:$0xff]
        %v653 = vld [vmem:[#allocation5 + $0x5e0] sm:$0xff]
        %v654 = vld [vmem:[#allocation5 + $0x5e8] sm:$0xff]
        %v655 = vld [vmem:[#allocation5 + $0x5f0] sm:$0xff]
        %v656 = vld [vmem:[#allocation5 + $0x5f8] sm:$0xff]
        %v657 = vld [vmem:[#allocation5 + $0x600] sm:$0xff]
        %v658 = vld [vmem:[#allocation5 + $0x608] sm:$0xff]
        %v659 = vld [vmem:[#allocation5 + $0x610] sm:$0xff]
        %v660 = vld [vmem:[#allocation5 + $0x618] sm:$0xff]
        %v661 = vld [vmem:[#allocation5 + $0x620] sm:$0xff]
        %v662 = vld [vmem:[#allocation5 + $0x628] sm:$0xff]
        %v663 = vld [vmem:[#allocation5 + $0x630] sm:$0xff]
        %v664 = vld [vmem:[#allocation5 + $0x638] sm:$0xff]
        %v665 = vld [vmem:[#allocation5 + $0x640] sm:$0xff]
        %v666 = vld [vmem:[#allocation5 + $0x648] sm:$0xff]
        %v667 = vld [vmem:[#allocation5 + $0x650] sm:$0xff]
        %v668 = vld [vmem:[#allocation5 + $0x658] sm:$0xff]
        %v669 = vld [vmem:[#allocation5 + $0x660] sm:$0xff]
        %v670 = vld [vmem:[#allocation5 + $0x668] sm:$0xff]
        %v671 = vld [vmem:[#allocation5 + $0x670] sm:$0xff]
        %v672 = vld [vmem:[#allocation5 + $0x678] sm:$0xff]
        %v673 = vld [vmem:[#allocation5 + $0x680] sm:$0xff]
        %v674 = vld [vmem:[#allocation5 + $0x688] sm:$0xff]
        %v675 = vld [vmem:[#allocation5 + $0x690] sm:$0xff]
        %v676 = vld [vmem:[#allocation5 + $0x698] sm:$0xff]
        %v677 = vld [vmem:[#allocation5 + $0x6a0] sm:$0xff]
        %v678 = vld [vmem:[#allocation5 + $0x6a8] sm:$0xff]
        %v679 = vld [vmem:[#allocation5 + $0x6b0] sm:$0xff]
        %v680 = vld [vmem:[#allocation5 + $0x6b8] sm:$0xff]
        %v681 = vld [vmem:[#allocation5 + $0x6c0] sm:$0xff]
        %v682 = vld [vmem:[#allocation5 + $0x6c8] sm:$0xff]
        %v683 = vld [vmem:[#allocation5 + $0x6d0] sm:$0xff]
        %v684 = vld [vmem:[#allocation5 + $0x6d8] sm:$0xff]
        %v685 = vld [vmem:[#allocation5 + $0x6e0] sm:$0xff]
        %v686 = vld [vmem:[#allocation5 + $0x6e8] sm:$0xff]
        %v687 = vld [vmem:[#allocation5 + $0x6f0] sm:$0xff]
        %v688 = vld [vmem:[#allocation5 + $0x6f8] sm:$0xff]
        %v689 = vld [vmem:[#allocation5 + $0x700] sm:$0xff]
        %v690 = vld [vmem:[#allocation5 + $0x708] sm:$0xff]
        %v691 = vld [vmem:[#allocation5 + $0x710] sm:$0xff]
        %v692 = vld [vmem:[#allocation5 + $0x718] sm:$0xff]
        %v693 = vld [vmem:[#allocation5 + $0x720] sm:$0xff]
        %v694 = vld [vmem:[#allocation5 + $0x728] sm:$0xff]
        %v695 = vld [vmem:[#allocation5 + $0x730] sm:$0xff]
        %v696 = vld [vmem:[#allocation5 + $0x738] sm:$0xff]
        %v697 = vld [vmem:[#allocation5 + $0x740] sm:$0xff]
        %v698 = vld [vmem:[#allocation5 + $0x748] sm:$0xff]
        %v699 = vld [vmem:[#allocation5 + $0x750] sm:$0xff]
        %v700 = vld [vmem:[#allocation5 + $0x758] sm:$0xff]
        %v701 = vld [vmem:[#allocation5 + $0x760] sm:$0xff]
        %v702 = vld [vmem:[#allocation5 + $0x768] sm:$0xff]
        %v703 = vld [vmem:[#allocation5 + $0x770] sm:$0xff]
        %v704 = vld [vmem:[#allocation5 + $0x778] sm:$0xff]
        %v705 = vld [vmem:[#allocation5 + $0x780] sm:$0xff]
        %v706 = vld [vmem:[#allocation5 + $0x788] sm:$0xff]
        %v707 = vld [vmem:[#allocation5 + $0x790] sm:$0xff]
        %v708 = vld [vmem:[#allocation5 + $0x798] sm:$0xff]
        %v709 = vld [vmem:[#allocation5 + $0x7a0] sm:$0xff]
        %v710 = vld [vmem:[#allocation5 + $0x7a8] sm:$0xff]
        %v711 = vld [vmem:[#allocation5 + $0x7b0] sm:$0xff]
        %v712 = vld [vmem:[#allocation5 + $0x7b8] sm:$0xff]
        %v713 = vld [vmem:[#allocation5 + $0x7c0] sm:$0xff]
        %v714 = vld [vmem:[#allocation5 + $0x7c8] sm:$0xff]
        %v715 = vld [vmem:[#allocation5 + $0x7d0] sm:$0xff]
        %v716 = vld [vmem:[#allocation5 + $0x7d8] sm:$0xff]
        %v717 = vld [vmem:[#allocation5 + $0x7e0] sm:$0xff]
        %v718 = vld [vmem:[#allocation5 + $0x7e8] sm:$0xff]
        %v719 = vld [vmem:[#allocation5 + $0x7f0] sm:$0xff]
        %v720 = vld [vmem:[#allocation5 + $0x7f8] sm:$0xff]
        %v721 = vld [vmem:[#allocation5 + $0x800] sm:$0xff]
        %v722 = vld [vmem:[#allocation5 + $0x808] sm:$0xff]
        %v723 = vld [vmem:[#allocation5 + $0x810] sm:$0xff]
        %v724 = vld [vmem:[#allocation5 + $0x818] sm:$0xff]
        %v725 = vld [vmem:[#allocation5 + $0x820] sm:$0xff]
        %v726 = vld [vmem:[#allocation5 + $0x828] sm:$0xff]
        %v727 = vld [vmem:[#allocation5 + $0x830] sm:$0xff]
        %v728 = vld [vmem:[#allocation5 + $0x838] sm:$0xff]
        %v729 = vld [vmem:[#allocation5 + $0x840] sm:$0xff]
        %v730 = vld [vmem:[#allocation5 + $0x848] sm:$0xff]
        %v731 = vld [vmem:[#allocation5 + $0x850] sm:$0xff]
        %v732 = vld [vmem:[#allocation5 + $0x858] sm:$0xff]
        %v733 = vld [vmem:[#allocation5 + $0x860] sm:$0xff]
        %v734 = vld [vmem:[#allocation5 + $0x868] sm:$0xff]
        %v735 = vld [vmem:[#allocation5 + $0x870] sm:$0xff]
        %v736 = vld [vmem:[#allocation5 + $0x878] sm:$0xff]
        %v737 = vld [vmem:[#allocation5 + $0x880] sm:$0xff]
        %v738 = vld [vmem:[#allocation5 + $0x888] sm:$0xff]
        %v739 = vld [vmem:[#allocation5 + $0x890] sm:$0xff]
        %v740 = vld [vmem:[#allocation5 + $0x898] sm:$0xff]
        %v741 = vld [vmem:[#allocation5 + $0x8a0] sm:$0xff]
        %v742 = vld [vmem:[#allocation5 + $0x8a8] sm:$0xff]
        %v743 = vld [vmem:[#allocation5 + $0x8b0] sm:$0xff]
        %v744 = vld [vmem:[#allocation5 + $0x8b8] sm:$0xff]
        %v745 = vld [vmem:[#allocation5 + $0x8c0] sm:$0xff]
        %v746 = vld [vmem:[#allocation5 + $0x8c8] sm:$0xff]
        %v747 = vld [vmem:[#allocation5 + $0x8d0] sm:$0xff]
        %v748 = vld [vmem:[#allocation5 + $0x8d8] sm:$0xff]
        %v749 = vld [vmem:[#allocation5 + $0x8e0] sm:$0xff]
        %v750 = vld [vmem:[#allocation5 + $0x8e8] sm:$0xff]
        %v751 = vld [vmem:[#allocation5 + $0x8f0] sm:$0xff]
        %v752 = vld [vmem:[#allocation5 + $0x8f8] sm:$0xff]
        %v753 = vld [vmem:[#allocation5 + $0x900] sm:$0xff]
        %v754 = vld [vmem:[#allocation5 + $0x908] sm:$0xff]
        %v755 = vld [vmem:[#allocation5 + $0x910] sm:$0xff]
        %v756 = vld [vmem:[#allocation5 + $0x918] sm:$0xff]
        %v757 = vld [vmem:[#allocation5 + $0x920] sm:$0xff]
        %v758 = vld [vmem:[#allocation5 + $0x928] sm:$0xff]
        %v759 = vld [vmem:[#allocation5 + $0x930] sm:$0xff]
        %v760 = vld [vmem:[#allocation5 + $0x938] sm:$0xff]
        %v761 = vld [vmem:[#allocation5 + $0x940] sm:$0xff]
        %v762 = vld [vmem:[#allocation5 + $0x948] sm:$0xff]
        %v763 = vld [vmem:[#allocation5 + $0x950] sm:$0xff]
        %v764 = vld [vmem:[#allocation5 + $0x958] sm:$0xff]
        %v765 = vld [vmem:[#allocation5 + $0x960] sm:$0xff]
        %v766 = vld [vmem:[#allocation5 + $0x968] sm:$0xff]
        %v767 = vld [vmem:[#allocation5 + $0x970] sm:$0xff]
        %v768 = vld [vmem:[#allocation5 + $0x978] sm:$0xff]
        %v769 = vld [vmem:[#allocation5 + $0x980] sm:$0xff]
        %v770 = vld [vmem:[#allocation5 + $0x988] sm:$0xff]
        %v771 = vld [vmem:[#allocation5 + $0x990] sm:$0xff]
        %v772 = vld [vmem:[#allocation5 + $0x998] sm:$0xff]
        %v773 = vld [vmem:[#allocation5 + $0x9a0] sm:$0xff]
        %v774 = vld [vmem:[#allocation5 + $0x9a8] sm:$0xff]
        %v775 = vld [vmem:[#allocation5 + $0x9b0] sm:$0xff]
        %v776 = vld [vmem:[#allocation5 + $0x9b8] sm:$0xff]
        %v777 = vld [vmem:[#allocation5 + $0x9c0] sm:$0xff]
        %v778 = vld [vmem:[#allocation5 + $0x9c8] sm:$0xff]
        %v779 = vld [vmem:[#allocation5 + $0x9d0] sm:$0xff]
        %v780 = vld [vmem:[#allocation5 + $0x9d8] sm:$0xff]
        %v781 = vld [vmem:[#allocation5 + $0x9e0] sm:$0xff]
        %v782 = vld [vmem:[#allocation5 + $0x9e8] sm:$0xff]
        %v783 = vld [vmem:[#allocation5 + $0x9f0] sm:$0xff]
        %v784 = vld [vmem:[#allocation5 + $0x9f8] sm:$0xff]
        %v785 = vld [vmem:[#allocation5 + $0xa00] sm:$0xff]
        %v786 = vld [vmem:[#allocation5 + $0xa08] sm:$0xff]
        %v787 = vld [vmem:[#allocation5 + $0xa10] sm:$0xff]
        %v788 = vld [vmem:[#allocation5 + $0xa18] sm:$0xff]
        %v789 = vld [vmem:[#allocation5 + $0xa20] sm:$0xff]
        %v790 = vld [vmem:[#allocation5 + $0xa28] sm:$0xff]
        %v791 = vld [vmem:[#allocation5 + $0xa30] sm:$0xff]
        %v792 = vld [vmem:[#allocation5 + $0xa38] sm:$0xff]
        %v793 = vld [vmem:[#allocation5 + $0xa40] sm:$0xff]
        %v794 = vld [vmem:[#allocation5 + $0xa48] sm:$0xff]
        %v795 = vld [vmem:[#allocation5 + $0xa50] sm:$0xff]
        %v796 = vld [vmem:[#allocation5 + $0xa58] sm:$0xff]
        %v797 = vld [vmem:[#allocation5 + $0xa60] sm:$0xff]
        %v798 = vld [vmem:[#allocation5 + $0xa68] sm:$0xff]
        %v799 = vld [vmem:[#allocation5 + $0xa70] sm:$0xff]
        %v800 = vld [vmem:[#allocation5 + $0xa78] sm:$0xff]
        %v801 = vld [vmem:[#allocation5 + $0xa80] sm:$0xff]
        %v802 = vld [vmem:[#allocation5 + $0xa88] sm:$0xff]
        %v803 = vld [vmem:[#allocation5 + $0xa90] sm:$0xff]
        %v804 = vld [vmem:[#allocation5 + $0xa98] sm:$0xff]
        %v805 = vld [vmem:[#allocation5 + $0xaa0] sm:$0xff]
        %v806 = vld [vmem:[#allocation5 + $0xaa8] sm:$0xff]
        %v807 = vld [vmem:[#allocation5 + $0xab0] sm:$0xff]
        %v808 = vld [vmem:[#allocation5 + $0xab8] sm:$0xff]
        %v809 = vld [vmem:[#allocation5 + $0xac0] sm:$0xff]
        %v810 = vld [vmem:[#allocation5 + $0xac8] sm:$0xff]
        %v811 = vld [vmem:[#allocation5 + $0xad0] sm:$0xff]
        %v812 = vld [vmem:[#allocation5 + $0xad8] sm:$0xff]
        %v813 = vld [vmem:[#allocation5 + $0xae0] sm:$0xff]
        %v814 = vld [vmem:[#allocation5 + $0xae8] sm:$0xff]
        %v815 = vld [vmem:[#allocation5 + $0xaf0] sm:$0xff]
        %v816 = vld [vmem:[#allocation5 + $0xaf8] sm:$0xff]
        %v817 = vld [vmem:[#allocation5 + $0xb00] sm:$0xff]
        %v818 = vld [vmem:[#allocation5 + $0xb08] sm:$0xff]
        %v819 = vld [vmem:[#allocation5 + $0xb10] sm:$0xff]
        %v820 = vld [vmem:[#allocation5 + $0xb18] sm:$0xff]
        %v821 = vld [vmem:[#allocation5 + $0xb20] sm:$0xff]
        %v822 = vld [vmem:[#allocation5 + $0xb28] sm:$0xff]
        %v823 = vld [vmem:[#allocation5 + $0xb30] sm:$0xff]
        %v824 = vld [vmem:[#allocation5 + $0xb38] sm:$0xff]
        %v825 = vld [vmem:[#allocation5 + $0xb40] sm:$0xff]
        %v826 = vld [vmem:[#allocation5 + $0xb48] sm:$0xff]
        %v827 = vld [vmem:[#allocation5 + $0xb50] sm:$0xff]
        %v828 = vld [vmem:[#allocation5 + $0xb58] sm:$0xff]
        %v829 = vld [vmem:[#allocation5 + $0xb60] sm:$0xff]
        %v830 = vld [vmem:[#allocation5 + $0xb68] sm:$0xff]
        %v831 = vld [vmem:[#allocation5 + $0xb70] sm:$0xff]
        %v832 = vld [vmem:[#allocation5 + $0xb78] sm:$0xff]
        %v833 = vld [vmem:[#allocation5 + $0xb80] sm:$0xff]
        %v834 = vld [vmem:[#allocation5 + $0xb88] sm:$0xff]
        %v835 = vld [vmem:[#allocation5 + $0xb90] sm:$0xff]
        %v836 = vld [vmem:[#allocation5 + $0xb98] sm:$0xff]
        %v837 = vld [vmem:[#allocation5 + $0xba0] sm:$0xff]
        %v838 = vld [vmem:[#allocation5 + $0xba8] sm:$0xff]
        %v839 = vld [vmem:[#allocation5 + $0xbb0] sm:$0xff]
        %v840 = vld [vmem:[#allocation5 + $0xbb8] sm:$0xff]
        %v841 = vld [vmem:[#allocation5 + $0xbc0] sm:$0xff]
        %v842 = vld [vmem:[#allocation5 + $0xbc8] sm:$0xff]
        %v843 = vld [vmem:[#allocation5 + $0xbd0] sm:$0xff]
        %v844 = vld [vmem:[#allocation5 + $0xbd8] sm:$0xff]
        %v845 = vld [vmem:[#allocation5 + $0xbe0] sm:$0xff]
        %v846 = vld [vmem:[#allocation5 + $0xbe8] sm:$0xff]
        %v847 = vld [vmem:[#allocation5 + $0xbf0] sm:$0xff]
        %v848 = vld [vmem:[#allocation5 + $0xbf8] sm:$0xff]
        %v849 = vld [vmem:[#allocation5 + $0xc00] sm:$0xff]
        %v850 = vld [vmem:[#allocation5 + $0xc08] sm:$0xff]
        %v851 = vld [vmem:[#allocation5 + $0xc10] sm:$0xff]
        %v852 = vld [vmem:[#allocation5 + $0xc18] sm:$0xff]
        %v853 = vld [vmem:[#allocation5 + $0xc20] sm:$0xff]
        %v854 = vld [vmem:[#allocation5 + $0xc28] sm:$0xff]
        %v855 = vld [vmem:[#allocation5 + $0xc30] sm:$0xff]
        %v856 = vld [vmem:[#allocation5 + $0xc38] sm:$0xff]
        %v857 = vld [vmem:[#allocation5 + $0xc40] sm:$0xff]
        %v858 = vld [vmem:[#allocation5 + $0xc48] sm:$0xff]
        %v859 = vld [vmem:[#allocation5 + $0xc50] sm:$0xff]
        %v860 = vld [vmem:[#allocation5 + $0xc58] sm:$0xff]
        %v861 = vld [vmem:[#allocation5 + $0xc60] sm:$0xff]
        %v862 = vld [vmem:[#allocation5 + $0xc68] sm:$0xff]
        %v863 = vld [vmem:[#allocation5 + $0xc70] sm:$0xff]
        %v864 = vld [vmem:[#allocation5 + $0xc78] sm:$0xff]
        %v865 = vld [vmem:[#allocation5 + $0xc80] sm:$0xff]
        %v866 = vld [vmem:[#allocation5 + $0xc88] sm:$0xff]
        %v867 = vld [vmem:[#allocation5 + $0xc90] sm:$0xff]
        %v868 = vld [vmem:[#allocation5 + $0xc98] sm:$0xff]
        %v869 = vld [vmem:[#allocation5 + $0xca0] sm:$0xff]
        %v870 = vld [vmem:[#allocation5 + $0xca8] sm:$0xff]
        %v871 = vld [vmem:[#allocation5 + $0xcb0] sm:$0xff]
        %v872 = vld [vmem:[#allocation5 + $0xcb8] sm:$0xff]
        %v873 = vld [vmem:[#allocation5 + $0xcc0] sm:$0xff]
        %v874 = vld [vmem:[#allocation5 + $0xcc8] sm:$0xff]
        %v875 = vld [vmem:[#allocation5 + $0xcd0] sm:$0xff]
        %v876 = vld [vmem:[#allocation5 + $0xcd8] sm:$0xff]
        %v877 = vld [vmem:[#allocation5 + $0xce0] sm:$0xff]
        %v878 = vld [vmem:[#allocation5 + $0xce8] sm:$0xff]
        %v879 = vld [vmem:[#allocation5 + $0xcf0] sm:$0xff]
        %v880 = vld [vmem:[#allocation5 + $0xcf8] sm:$0xff]
        %v881 = vld [vmem:[#allocation5 + $0xd00] sm:$0xff]
        %v882 = vld [vmem:[#allocation5 + $0xd08] sm:$0xff]
        %v883 = vld [vmem:[#allocation5 + $0xd10] sm:$0xff]
        %v884 = vld [vmem:[#allocation5 + $0xd18] sm:$0xff]
        %v885 = vld [vmem:[#allocation5 + $0xd20] sm:$0xff]
        %v886 = vld [vmem:[#allocation5 + $0xd28] sm:$0xff]
        %v887 = vld [vmem:[#allocation5 + $0xd30] sm:$0xff]
        %v888 = vld [vmem:[#allocation5 + $0xd38] sm:$0xff]
        %v889 = vld [vmem:[#allocation5 + $0xd40] sm:$0xff]
        %v890 = vld [vmem:[#allocation5 + $0xd48] sm:$0xff]
        %v891 = vld [vmem:[#allocation5 + $0xd50] sm:$0xff]
        %v892 = vld [vmem:[#allocation5 + $0xd58] sm:$0xff]
        %v893 = vld [vmem:[#allocation5 + $0xd60] sm:$0xff]
        %v894 = vld [vmem:[#allocation5 + $0xd68] sm:$0xff]
        %v895 = vld [vmem:[#allocation5 + $0xd70] sm:$0xff]
        %v896 = vld [vmem:[#allocation5 + $0xd78] sm:$0xff]
        %v897 = vld [vmem:[#allocation5 + $0xd80] sm:$0xff]
        %v898 = vld [vmem:[#allocation5 + $0xd88] sm:$0xff]
        %v899 = vld [vmem:[#allocation5 + $0xd90] sm:$0xff]
        %v900 = vld [vmem:[#allocation5 + $0xd98] sm:$0xff]
        %v901 = vld [vmem:[#allocation5 + $0xda0] sm:$0xff]
        %v902 = vld [vmem:[#allocation5 + $0xda8] sm:$0xff]
        %v903 = vld [vmem:[#allocation5 + $0xdb0] sm:$0xff]
        %v904 = vld [vmem:[#allocation5 + $0xdb8] sm:$0xff]
        %v905 = vld [vmem:[#allocation5 + $0xdc0] sm:$0xff]
        %v906 = vld [vmem:[#allocation5 + $0xdc8] sm:$0xff]
        %v907 = vld [vmem:[#allocation5 + $0xdd0] sm:$0xff]
        %v908 = vld [vmem:[#allocation5 + $0xdd8] sm:$0xff]
        %v909 = vld [vmem:[#allocation5 + $0xde0] sm:$0xff]
        %v910 = vld [vmem:[#allocation5 + $0xde8] sm:$0xff]
        %v911 = vld [vmem:[#allocation5 + $0xdf0] sm:$0xff]
        %v912 = vld [vmem:[#allocation5 + $0xdf8] sm:$0xff]
        %v913 = vld [vmem:[#allocation5 + $0xe00] sm:$0xff]
        %v914 = vld [vmem:[#allocation5 + $0xe08] sm:$0xff]
        %v915 = vld [vmem:[#allocation5 + $0xe10] sm:$0xff]
        %v916 = vld [vmem:[#allocation5 + $0xe18] sm:$0xff]
        %v917 = vld [vmem:[#allocation5 + $0xe20] sm:$0xff]
        %v918 = vld [vmem:[#allocation5 + $0xe28] sm:$0xff]
        %v919 = vld [vmem:[#allocation5 + $0xe30] sm:$0xff]
        %v920 = vld [vmem:[#allocation5 + $0xe38] sm:$0xff]
        %v921 = vld [vmem:[#allocation5 + $0xe40] sm:$0xff]
        %v922 = vld [vmem:[#allocation5 + $0xe48] sm:$0xff]
        %v923 = vld [vmem:[#allocation5 + $0xe50] sm:$0xff]
        %v924 = vld [vmem:[#allocation5 + $0xe58] sm:$0xff]
        %v925 = vld [vmem:[#allocation5 + $0xe60] sm:$0xff]
        %v926 = vld [vmem:[#allocation5 + $0xe68] sm:$0xff]
        %v927 = vld [vmem:[#allocation5 + $0xe70] sm:$0xff]
        %v928 = vld [vmem:[#allocation5 + $0xe78] sm:$0xff]
        %v929 = vld [vmem:[#allocation5 + $0xe80] sm:$0xff]
        %v930 = vld [vmem:[#allocation5 + $0xe88] sm:$0xff]
        %v931 = vld [vmem:[#allocation5 + $0xe90] sm:$0xff]
        %v932 = vld [vmem:[#allocation5 + $0xe98] sm:$0xff]
        %v933 = vld [vmem:[#allocation5 + $0xea0] sm:$0xff]
        %v934 = vld [vmem:[#allocation5 + $0xea8] sm:$0xff]
        %v935 = vld [vmem:[#allocation5 + $0xeb0] sm:$0xff]
        %v936 = vld [vmem:[#allocation5 + $0xeb8] sm:$0xff]
        %v937 = vld [vmem:[#allocation5 + $0xec0] sm:$0xff]
        %v938 = vld [vmem:[#allocation5 + $0xec8] sm:$0xff]
        %v939 = vld [vmem:[#allocation5 + $0xed0] sm:$0xff]
        %v940 = vld [vmem:[#allocation5 + $0xed8] sm:$0xff]
        %v941 = vld [vmem:[#allocation5 + $0xee0] sm:$0xff]
        %v942 = vld [vmem:[#allocation5 + $0xee8] sm:$0xff]
        %v943 = vld [vmem:[#allocation5 + $0xef0] sm:$0xff]
        %v944 = vld [vmem:[#allocation5 + $0xef8] sm:$0xff]
        %v945 = vld [vmem:[#allocation5 + $0xf00] sm:$0xff]
        %v946 = vld [vmem:[#allocation5 + $0xf08] sm:$0xff]
        %v947 = vld [vmem:[#allocation5 + $0xf10] sm:$0xff]
        %v948 = vld [vmem:[#allocation5 + $0xf18] sm:$0xff]
        %v949 = vld [vmem:[#allocation5 + $0xf20] sm:$0xff]
        %v950 = vld [vmem:[#allocation5 + $0xf28] sm:$0xff]
        %v951 = vld [vmem:[#allocation5 + $0xf30] sm:$0xff]
        %v952 = vld [vmem:[#allocation5 + $0xf38] sm:$0xff]
        %v953 = vld [vmem:[#allocation5 + $0xf40] sm:$0xff]
        %v954 = vld [vmem:[#allocation5 + $0xf48] sm:$0xff]
        %v955 = vld [vmem:[#allocation5 + $0xf50] sm:$0xff]
        %v956 = vld [vmem:[#allocation5 + $0xf58] sm:$0xff]
        %v957 = vld [vmem:[#allocation5 + $0xf60] sm:$0xff]
        %v958 = vld [vmem:[#allocation5 + $0xf68] sm:$0xff]
        %v959 = vld [vmem:[#allocation5 + $0xf70] sm:$0xff]
        %v960 = vld [vmem:[#allocation5 + $0xf78] sm:$0xff]
        %v961 = vld [vmem:[#allocation5 + $0xf80] sm:$0xff]
        %v962 = vld [vmem:[#allocation5 + $0xf88] sm:$0xff]
        %v963 = vld [vmem:[#allocation5 + $0xf90] sm:$0xff]
        %v964 = vld [vmem:[#allocation5 + $0xf98] sm:$0xff]
        %v965 = vld [vmem:[#allocation5 + $0xfa0] sm:$0xff]
        %v966 = vld [vmem:[#allocation5 + $0xfa8] sm:$0xff]
        %v967 = vld [vmem:[#allocation5 + $0xfb0] sm:$0xff]
        %v968 = vld [vmem:[#allocation5 + $0xfb8] sm:$0xff]
        %v969 = vld [vmem:[#allocation5 + $0xfc0] sm:$0xff]
        %v970 = vld [vmem:[#allocation5 + $0xfc8] sm:$0xff]
        %v971 = vld [vmem:[#allocation5 + $0xfd0] sm:$0xff]
        %v972 = vld [vmem:[#allocation5 + $0xfd8] sm:$0xff]
        %v973 = vld [vmem:[#allocation5 + $0xfe0] sm:$0xff]
        %v974 = vld [vmem:[#allocation5 + $0xfe8] sm:$0xff]
        %v975 = vld [vmem:[#allocation5 + $0xff0] sm:$0xff]
        %v976 = vld [vmem:[#allocation5 + $0xff8] sm:$0xff]
        %v977 = vld [vmem:[#allocation5 + $0x1000] sm:$0xff]
        %v978 = vld [vmem:[#allocation5 + $0x1008] sm:$0xff]
        %v979 = vld [vmem:[#allocation5 + $0x1010] sm:$0xff]
        %v980 = vld [vmem:[#allocation5 + $0x1018] sm:$0xff]
        %v981 = vld [vmem:[#allocation5 + $0x1020] sm:$0xff]
        %v982 = vld [vmem:[#allocation5 + $0x1028] sm:$0xff]
        %v983 = vld [vmem:[#allocation5 + $0x1030] sm:$0xff]
        %v984 = vld [vmem:[#allocation5 + $0x1038] sm:$0xff]
        %v985 = vld [vmem:[#allocation5 + $0x1040] sm:$0xff]
        %v986 = vld [vmem:[#allocation5 + $0x1048] sm:$0xff]
        %v987 = vld [vmem:[#allocation5 + $0x1050] sm:$0xff]
        %v988 = vld [vmem:[#allocation5 + $0x1058] sm:$0xff]
        %v989 = vld [vmem:[#allocation5 + $0x1060] sm:$0xff]
        %v990 = vld [vmem:[#allocation5 + $0x1068] sm:$0xff]
        %v991 = vld [vmem:[#allocation5 + $0x1070] sm:$0xff]
        %v992 = vld [vmem:[#allocation5 + $0x1078] sm:$0xff]
        %v993 = vld [vmem:[#allocation5 + $0x1080] sm:$0xff]
        %v994 = vld [vmem:[#allocation5 + $0x1088] sm:$0xff]
        %v995 = vld [vmem:[#allocation5 + $0x1090] sm:$0xff]
        %v996 = vld [vmem:[#allocation5 + $0x1098] sm:$0xff]
        %v997 = vld [vmem:[#allocation5 + $0x10a0] sm:$0xff]
        %v998 = vld [vmem:[#allocation5 + $0x10a8] sm:$0xff]
        %v999 = vld [vmem:[#allocation5 + $0x10b0] sm:$0xff]
        %v1000 = vld [vmem:[#allocation5 + $0x10b8] sm:$0xff]
        %v1001 = vld [vmem:[#allocation5 + $0x10c0] sm:$0xff]
        %v1002 = vld [vmem:[#allocation5 + $0x10c8] sm:$0xff]
        %v1003 = vld [vmem:[#allocation5 + $0x10d0] sm:$0xff]
        %v1004 = vld [vmem:[#allocation5 + $0x10d8] sm:$0xff]
        %v1005 = vld [vmem:[#allocation5 + $0x10e0] sm:$0xff]
        %v1006 = vld [vmem:[#allocation5 + $0x10e8] sm:$0xff]
        %v1007 = vld [vmem:[#allocation5 + $0x10f0] sm:$0xff]
        %v1008 = vld [vmem:[#allocation5 + $0x10f8] sm:$0xff]
        %v1009 = vld [vmem:[#allocation5 + $0x1100] sm:$0xff]
        %v1010 = vld [vmem:[#allocation5 + $0x1108] sm:$0xff]
        %v1011 = vld [vmem:[#allocation5 + $0x1110] sm:$0xff]
        %v1012 = vld [vmem:[#allocation5 + $0x1118] sm:$0xff]
        %v1013 = vld [vmem:[#allocation5 + $0x1120] sm:$0xff]
        %v1014 = vld [vmem:[#allocation5 + $0x1128] sm:$0xff]
        %v1015 = vld [vmem:[#allocation5 + $0x1130] sm:$0xff]
        %v1016 = vld [vmem:[#allocation5 + $0x1138] sm:$0xff]
        %v1017 = vld [vmem:[#allocation5 + $0x1140] sm:$0xff]
        %v1018 = vld [vmem:[#allocation5 + $0x1148] sm:$0xff]
        %v1019 = vld [vmem:[#allocation5 + $0x1150] sm:$0xff]
        %v1020 = vld [vmem:[#allocation5 + $0x1158] sm:$0xff]
        %v1021 = vld [vmem:[#allocation5 + $0x1160] sm:$0xff]
        %v1022 = vld [vmem:[#allocation5 + $0x1168] sm:$0xff]
        %v1023 = vld [vmem:[#allocation5 + $0x1170] sm:$0xff]
        %v1024 = vld [vmem:[#allocation5 + $0x1178] sm:$0xff]
        %v1025 = vld [vmem:[#allocation5 + $0x1180] sm:$0xff]
        %v1026 = vld [vmem:[#allocation5 + $0x1188] sm:$0xff]
        %v1027 = vld [vmem:[#allocation5 + $0x1190] sm:$0xff]
        %v1028 = vld [vmem:[#allocation5 + $0x1198] sm:$0xff]
        %v1029 = vld [vmem:[#allocation5 + $0x11a0] sm:$0xff]
        %v1030 = vld [vmem:[#allocation5 + $0x11a8] sm:$0xff]
        %v1031 = vld [vmem:[#allocation5 + $0x11b0] sm:$0xff]
        %v1032 = vld [vmem:[#allocation5 + $0x11b8] sm:$0xff]
        %v1033 = vld [vmem:[#allocation5 + $0x11c0] sm:$0xff]
        %v1034 = vld [vmem:[#allocation5 + $0x11c8] sm:$0xff]
        %v1035 = vld [vmem:[#allocation5 + $0x11d0] sm:$0xff]
        %v1036 = vld [vmem:[#allocation5 + $0x11d8] sm:$0xff]
        %v1037 = vld [vmem:[#allocation5 + $0x11e0] sm:$0xff]
        %v1038 = vld [vmem:[#allocation5 + $0x11e8] sm:$0xff]
        %v1039 = vld [vmem:[#allocation5 + $0x11f0] sm:$0xff]
        %v1040 = vld [vmem:[#allocation5 + $0x11f8] sm:$0xff]
        %v1041 = vld [vmem:[#allocation7] sm:$0xff]
        %v1042 = vld [vmem:[#allocation7 + $0x8] sm:$0xf]
        %v1045 = vlaneseq
        %v1046 = vshrl.u32 %v1045, 7
        %v1047 = vsub.s32 0, %v1046
        %v1048 = vrot.slane %v1041, %v1047
        %v1049 = vlaneseq
        %v1050 = vshrl.u32 %v1049, 7
        %v1051 = vsub.s32 1, %v1050
        %v1052 = vrot.slane %v1041, %v1051
        %v1053 = vlaneseq
        %v1054 = vshrl.u32 %v1053, 7
        %v1055 = vsub.s32 2, %v1054
        %v1056 = vrot.slane %v1041, %v1055
        %v1057 = vlaneseq
        %v1058 = vshrl.u32 %v1057, 7
        %v1059 = vsub.s32 3, %v1058
        %v1060 = vrot.slane %v1041, %v1059
        %v1061 = vlaneseq
        %v1062 = vshrl.u32 %v1061, 7
        %v1063 = vsub.s32 4, %v1062
        %v1064 = vrot.slane %v1041, %v1063
        %v1065 = vlaneseq
        %v1066 = vshrl.u32 %v1065, 7
        %v1067 = vsub.s32 5, %v1066
        %v1068 = vrot.slane %v1041, %v1067
        %v1069 = vlaneseq
        %v1070 = vshrl.u32 %v1069, 7
        %v1071 = vsub.s32 6, %v1070
        %v1072 = vrot.slane %v1041, %v1071
        %v1073 = vlaneseq
        %v1074 = vshrl.u32 %v1073, 7
        %v1075 = vsub.s32 7, %v1074
        %v1076 = vrot.slane %v1041, %v1075
        %v1077 = vlaneseq
        %v1078 = vshrl.u32 %v1077, 7
        %v1079 = vsub.s32 0, %v1078
        %v1080 = vrot.slane %v1042, %v1079
        %v1081 = vlaneseq
        %v1082 = vshrl.u32 %v1081, 7
        %v1083 = vsub.s32 1, %v1082
        %v1084 = vrot.slane %v1042, %v1083
        %v1085 = vlaneseq
        %v1086 = vshrl.u32 %v1085, 7
        %v1087 = vsub.s32 2, %v1086
        %v1088 = vrot.slane %v1042, %v1087
        %v1089 = vlaneseq
        %v1090 = vshrl.u32 %v1089, 7
        %v1091 = vsub.s32 3, %v1090
        %v1092 = vrot.slane %v1042, %v1091
        %1105 = vmatprep.subr.mxu0 %v466
        %1106 = vmatpush1.msra.mxu0 %v465
        %1107 = vmatprep.subr.mxu0 %v478
        %1108 = vmatpush1.msra.mxu0 %v477
        %1109 = vmatprep.subr.mxu0 %v490
        %1110 = vmatpush1.msra.mxu0 %v489
        %1111 = vmatprep.subr.mxu0 %v502
        %1112 = vmatpush1.msra.mxu0 %v501
        %1113 = vmatprep.subr.mxu0 %v514
        %1114 = vmatpush1.msra.mxu0 %v513
        %1115 = vmatprep.subr.mxu0 %v526
        %1116 = vmatpush1.msra.mxu0 %v525
        %1117 = vmatprep.subr.mxu0 %v538
        %1118 = vmatpush1.msra.mxu0 %v537
        %1119 = vmatprep.subr.mxu0 %v550
        %1120 = vmatpush1.msra.mxu0 %v549
        %1121 = vmatprep.subr.mxu0 %v562
        %1122 = vmatpush1.msra.mxu0 %v561
        %1123 = vmatprep.subr.mxu0 %v574
        %1124 = vmatpush1.msra.mxu0 %v573
        %1125 = vmatprep.subr.mxu0 %v586
        %1126 = vmatpush1.msra.mxu0 %v585
        %1127 = vmatprep.subr.mxu0 %v598
        %1128 = vmatpush1.msra.mxu0 %v597
        %1129 = vmatprep.subr.mxu0 %v610
        %1130 = vmatpush1.msra.mxu0 %v609
        %1131 = vmatprep.subr.mxu0 %v622
        %1132 = vmatpush1.msra.mxu0 %v621
        %1133 = vmatprep.subr.mxu0 %v634
        %1134 = vmatpush1.msra.mxu0 %v633
        %1135 = vmatprep.subr.mxu0 %v646
        %1136 = vmatpush1.msra.mxu0 %v645
        %1137 = vmatprep.subr.mxu0 %v658
        %1138 = vmatpush1.msra.mxu0 %v657
        %1139 = vmatprep.subr.mxu0 %v670
        %1140 = vmatpush1.msra.mxu0 %v669
        %1141 = vmatprep.subr.mxu0 %v682
        %1142 = vmatpush1.msra.mxu0 %v681
        %1143 = vmatprep.subr.mxu0 %v694
        %1144 = vmatpush1.msra.mxu0 %v693
        %1145 = vmatprep.subr.mxu0 %v706
        %1146 = vmatpush1.msra.mxu0 %v705
        %1147 = vmatprep.subr.mxu0 %v718
        %1148 = vmatpush1.msra.mxu0 %v717
        %1149 = vmatprep.subr.mxu0 %v730
        %1150 = vmatpush1.msra.mxu0 %v729
        %1151 = vmatprep.subr.mxu0 %v742
        %1152 = vmatpush1.msra.mxu0 %v741
        %1153 = vmatprep.subr.mxu0 %v754
        %1154 = vmatpush1.msra.mxu0 %v753
        %1155 = vmatprep.subr.mxu0 %v766
        %1156 = vmatpush1.msra.mxu0 %v765
        %1157 = vmatprep.subr.mxu0 %v778
        %1158 = vmatpush1.msra.mxu0 %v777
        %1159 = vmatprep.subr.mxu0 %v790
        %1160 = vmatpush1.msra.mxu0 %v789
        %1161 = vmatprep.subr.mxu0 %v802
        %1162 = vmatpush1.msra.mxu0 %v801
        %1163 = vmatprep.subr.mxu0 %v814
        %1164 = vmatpush1.msra.mxu0 %v813
        %1165 = vmatprep.subr.mxu0 %v826
        %1166 = vmatpush1.msra.mxu0 %v825
        %1167 = vmatprep.subr.mxu0 %v838
        %1168 = vmatpush1.msra.mxu0 %v837
        %1169 = vmatprep.mubr.f32.mxu0 %v370
        %1170 = vmatmul.mubr.f32.gmra.mrb[0].mxu0 %v369
        %v1171 = vpop.f32.mrb[0].mxu0
        %v1172 = vadd.f32 %v1048, %v1171
        %v1173 = vpop.f32.mrb[0].mxu0
        %v1174 = vadd.f32 %v1052, %v1173
        %1175 = vmatprep.mubr.f32.mxu0 %v373
        %1176 = vmatmul.mubr.f32.gmra.mrb[0].mxu0 %v372
        %v1177 = vpop.f32.mrb[0].mxu0
        %v1178 = vadd.f32 %v1048, %v1177
        %v1179 = vpop.f32.mrb[0].mxu0
        %v1180 = vadd.f32 %v1052, %v1179
        %1181 = vmatprep.mubr.f32.mxu0 %v376
        %1182 = vmatmul.mubr.f32.gmra.mrb[0].mxu0 %v375
        %v1183 = vpop.f32.mrb[0].mxu0
        %v1184 = vadd.f32 %v1048, %v1183
        %v1185 = vpop.f32.mrb[0].mxu0
        %v1186 = vadd.f32 %v1052, %v1185
        %1187 = vmatprep.mubr.f32.mxu0 %v379
        %1188 = vmatmul.mubr.f32.gmra.mrb[0].mxu0 %v378
        %v1189 = vpop.f32.mrb[0].mxu0
        %v1190 = vadd.f32 %v1048, %v1189
        %v1191 = vpop.f32.mrb[0].mxu0
        %v1192 = vadd.f32 %v1052, %v1191
        %1193 = vmatprep.mubr.f32.mxu0 %v382
        %1194 = vmatmul.mubr.f32.gmra.mrb[0].mxu0 %v381
        %v1195 = vpop.f32.mrb[0].mxu0
        %v1196 = vadd.f32 %v1048, %v1195
        %v1197 = vpop.f32.mrb[0].mxu0
        %v1198 = vadd.f32 %v1052, %v1197
        %1199 = vmatprep.mubr.f32.mxu0 %v385
        %1200 = vmatmul.mubr.f32.gmra.mrb[0].mxu0 %v384
        %v1201 = vpop.f32.mrb[0].mxu0
        %v1202 = vadd.f32 %v1048, %v1201
        %v1203 = vpop.f32.mrb[0].mxu0
        %v1204 = vadd.f32 %v1052, %v1203
        %1205 = vmatprep.mubr.f32.mxu0 %v388
        %1206 = vmatmul.mubr.f32.gmra.mrb[0].mxu0 %v387
        %v1207 = vpop.f32.mrb[0].mxu0
        %v1208 = vadd.f32 %v1048, %v1207
        %v1209 = vpop.f32.mrb[0].mxu0
        %v1210 = vadd.f32 %v1052, %v1209
        %1211 = vmatprep.mubr.f32.mxu0 %v391
        %1212 = vmatmul.mubr.f32.gmra.mrb[0].mxu0 %v390
        %v1213 = vpop.f32.mrb[0].mxu0
        %v1214 = vadd.f32 %v1048, %v1213
        %v1215 = vpop.f32.mrb[0].mxu0
        %v1216 = vadd.f32 %v1052, %v1215
        %1217 = vmatprep.mubr.f32.mxu0 %v394
        %1218 = vmatmul.mubr.f32.gmra.mrb[0].mxu0 %v393
        %v1219 = vpop.f32.mrb[0].mxu0
        %v1220 = vadd.f32 %v1048, %v1219
        %v1221 = vpop.f32.mrb[0].mxu0
        %v1222 = vadd.f32 %v1052, %v1221
        %1223 = vmatprep.mubr.f32.mxu0 %v397
        %1224 = vmatmul.mubr.f32.gmra.mrb[0].mxu0 %v396
        %v1225 = vpop.f32.mrb[0].mxu0
        %v1226 = vadd.f32 %v1048, %v1225
        %v1227 = vpop.f32.mrb[0].mxu0
        %v1228 = vadd.f32 %v1052, %v1227
        %1229 = vmatprep.mubr.f32.mxu0 %v400
        %1230 = vmatmul.mubr.f32.gmra.mrb[0].mxu0 %v399
        %v1231 = vpop.f32.mrb[0].mxu0
        %v1232 = vadd.f32 %v1048, %v1231
        %v1233 = vpop.f32.mrb[0].mxu0
        %v1234 = vadd.f32 %v1052, %v1233
        %1235 = vmatprep.mubr.f32.mxu0 %v403
        %1236 = vmatmul.mubr.f32.gmra.mrb[0].mxu0 %v402
        %v1237 = vpop.f32.mrb[0].mxu0
        %v1238 = vadd.f32 %v1048, %v1237
        %v1239 = vpop.f32.mrb[0].mxu0
        %v1240 = vadd.f32 %v1052, %v1239
        %1241 = vmatprep.mubr.f32.mxu0 %v406
        %1242 = vmatmul.mubr.f32.gmra.mrb[0].mxu0 %v405
        %v1243 = vpop.f32.mrb[0].mxu0
        %v1244 = vadd.f32 %v1048, %v1243
        %v1245 = vpop.f32.mrb[0].mxu0
        %v1246 = vadd.f32 %v1052, %v1245
        %1247 = vmatprep.mubr.f32.mxu0 %v409
        %1248 = vmatmul.mubr.f32.gmra.mrb[0].mxu0 %v408
        %v1249 = vpop.f32.mrb[0].mxu0
        %v1250 = vadd.f32 %v1048, %v1249
        %v1251 = vpop.f32.mrb[0].mxu0
        %v1252 = vadd.f32 %v1052, %v1251
        %1253 = vmatprep.mubr.f32.mxu0 %v412
        %1254 = vmatmul.mubr.f32.gmra.mrb[0].mxu0 %v411
        %v1255 = vpop.f32.mrb[0].mxu0
        %v1256 = vadd.f32 %v1048, %v1255
        %v1257 = vpop.f32.mrb[0].mxu0
        %v1258 = vadd.f32 %v1052, %v1257
        %1259 = vmatprep.mubr.f32.mxu0 %v415
        %1260 = vmatmul.mubr.f32.gmra.mrb[0].mxu0 %v414
        %v1261 = vpop.f32.mrb[0].mxu0
        %v1262 = vadd.f32 %v1048, %v1261
        %v1263 = vpop.f32.mrb[0].mxu0
        %v1264 = vadd.f32 %v1052, %v1263
        %1265 = vmatprep.mubr.f32.mxu0 %v418
        %1266 = vmatmul.mubr.f32.gmra.mrb[0].mxu0 %v417
        %v1267 = vpop.f32.mrb[0].mxu0
        %v1268 = vadd.f32 %v1048, %v1267
        %v1269 = vpop.f32.mrb[0].mxu0
        %v1270 = vadd.f32 %v1052, %v1269
        %1271 = vmatprep.mubr.f32.mxu0 %v421
        %1272 = vmatmul.mubr.f32.gmra.mrb[0].mxu0 %v420
        %v1273 = vpop.f32.mrb[0].mxu0
        %v1274 = vadd.f32 %v1048, %v1273
        %v1275 = vpop.f32.mrb[0].mxu0
        %v1276 = vadd.f32 %v1052, %v1275
        %1277 = vmatprep.mubr.f32.mxu0 %v424
        %1278 = vmatmul.mubr.f32.gmra.mrb[0].mxu0 %v423
        %v1279 = vpop.f32.mrb[0].mxu0
        %v1280 = vadd.f32 %v1048, %v1279
        %v1281 = vpop.f32.mrb[0].mxu0
        %v1282 = vadd.f32 %v1052, %v1281
        %1283 = vmatprep.mubr.f32.mxu0 %v427
        %1284 = vmatmul.mubr.f32.gmra.mrb[0].mxu0 %v426
        %v1285 = vpop.f32.mrb[0].mxu0
        %v1286 = vadd.f32 %v1048, %v1285
        %v1287 = vpop.f32.mrb[0].mxu0
        %v1288 = vadd.f32 %v1052, %v1287
        %1289 = vmatprep.mubr.f32.mxu0 %v430
        %1290 = vmatmul.mubr.f32.gmra.mrb[0].mxu0 %v429
        %v1291 = vpop.f32.mrb[0].mxu0
        %v1292 = vadd.f32 %v1048, %v1291
        %v1293 = vpop.f32.mrb[0].mxu0
        %v1294 = vadd.f32 %v1052, %v1293
        %1295 = vmatprep.mubr.f32.mxu0 %v433
        %1296 = vmatmul.mubr.f32.gmra.mrb[0].mxu0 %v432
        %v1297 = vpop.f32.mrb[0].mxu0
        %v1298 = vadd.f32 %v1048, %v1297
        %v1299 = vpop.f32.mrb[0].mxu0
        %v1300 = vadd.f32 %v1052, %v1299
        %1301 = vmatprep.mubr.f32.mxu0 %v436
        %1302 = vmatmul.mubr.f32.gmra.mrb[0].mxu0 %v435
        %v1303 = vpop.f32.mrb[0].mxu0
        %v1304 = vadd.f32 %v1048, %v1303
        %v1305 = vpop.f32.mrb[0].mxu0
        %v1306 = vadd.f32 %v1052, %v1305
        %1307 = vmatprep.mubr.f32.mxu0 %v439
        %1308 = vmatmul.mubr.f32.gmra.mrb[0].mxu0 %v438
        %v1309 = vpop.f32.mrb[0].mxu0
        %v1310 = vadd.f32 %v1048, %v1309
        %v1311 = vpop.f32.mrb[0].mxu0
        %v1312 = vadd.f32 %v1052, %v1311
        %1313 = vmatprep.mubr.f32.mxu0 %v442
        %1314 = vmatmul.mubr.f32.gmra.mrb[0].mxu0 %v441
        %v1315 = vpop.f32.mrb[0].mxu0
        %v1316 = vadd.f32 %v1048, %v1315
        %v1317 = vpop.f32.mrb[0].mxu0
        %v1318 = vadd.f32 %v1052, %v1317
        %1319 = vmatprep.mubr.f32.mxu0 %v445
        %1320 = vmatmul.mubr.f32.gmra.mrb[0].mxu0 %v444
        %v1321 = vpop.f32.mrb[0].mxu0
        %v1322 = vadd.f32 %v1048, %v1321
        %v1323 = vpop.f32.mrb[0].mxu0
        %v1324 = vadd.f32 %v1052, %v1323
        %1325 = vmatprep.mubr.f32.mxu0 %v448
        %1326 = vmatmul.mubr.f32.gmra.mrb[0].mxu0 %v447
        %v1327 = vpop.f32.mrb[0].mxu0
        %v1328 = vadd.f32 %v1048, %v1327
        %v1329 = vpop.f32.mrb[0].mxu0
        %v1330 = vadd.f32 %v1052, %v1329
        %1331 = vmatprep.mubr.f32.mxu0 %v451
        %1332 = vmatmul.mubr.f32.gmra.mrb[0].mxu0 %v450
        %v1333 = vpop.f32.mrb[0].mxu0
        %v1334 = vadd.f32 %v1048, %v1333
        %v1335 = vpop.f32.mrb[0].mxu0
        %v1336 = vadd.f32 %v1052, %v1335
        %1337 = vmatprep.mubr.f32.mxu0 %v454
        %1338 = vmatmul.mubr.f32.gmra.mrb[0].mxu0 %v453
        %v1339 = vpop.f32.mrb[0].mxu0
        %v1340 = vadd.f32 %v1048, %v1339
        %v1341 = vpop.f32.mrb[0].mxu0
        %v1342 = vadd.f32 %v1052, %v1341
        %1343 = vmatprep.mubr.f32.mxu0 %v457
        %1344 = vmatmul.mubr.f32.gmra.mrb[0].mxu0 %v456
        %v1345 = vpop.f32.mrb[0].mxu0
        %v1346 = vadd.f32 %v1048, %v1345
        %v1347 = vpop.f32.mrb[0].mxu0
        %v1348 = vadd.f32 %v1052, %v1347
        %1349 = vmatprep.mubr.f32.mxu0 %v460
        %1350 = vmatmul.mubr.f32.gmra.mrb[0].mxu0 %v459
        %v1351 = vpop.f32.mrb[0].mxu0
        %v1352 = vadd.f32 %v1048, %v1351
        %v1353 = vpop.f32.mrb[0].mxu0
        %v1354 = vadd.f32 %v1052, %v1353
        %1355 = vmatprep.mubr.f32.mxu0 %v463
        %1356 = vmatmul.mubr.f32.gmra.mrb[0].mxu0 %v462
        %v1357 = vpop.f32.mrb[0].mxu0
        %v1358 = vadd.f32 %v1048, %v1357
        %v1359 = vpop.f32.mrb[0].mxu0
        %v1360 = vadd.f32 %v1052, %v1359
        %1361 = vdwg.mxu0
        %1362 = vmatprep.subr.mxu0 %v850
        %1363 = vmatpush1.msra.mxu0 %v849
        %1364 = vmatprep.subr.mxu0 %v862
        %1365 = vmatpush1.msra.mxu0 %v861
        %1366 = vmatprep.subr.mxu0 %v874
        %1367 = vmatpush1.msra.mxu0 %v873
        %1368 = vmatprep.subr.mxu0 %v886
        %1369 = vmatpush1.msra.mxu0 %v885
        %1370 = vmatprep.subr.mxu0 %v898
        %1371 = vmatpush1.msra.mxu0 %v897
        %1372 = vmatprep.subr.mxu0 %v910
        %1373 = vmatpush1.msra.mxu0 %v909
        %1374 = vmatprep.subr.mxu0 %v922
        %1375 = vmatpush1.msra.mxu0 %v921
        %1376 = vmatprep.subr.mxu0 %v934
        %1377 = vmatpush1.msra.mxu0 %v933
        %1378 = vmatprep.subr.mxu0 %v946
        %1379 = vmatpush1.msra.mxu0 %v945
        %1380 = vmatprep.subr.mxu0 %v958
        %1381 = vmatpush1.msra.mxu0 %v957
        %1382 = vmatprep.subr.mxu0 %v970
        %1383 = vmatpush1.msra.mxu0 %v969
        %1384 = vmatprep.subr.mxu0 %v982
        %1385 = vmatpush1.msra.mxu0 %v981
        %1386 = vmatprep.subr.mxu0 %v994
        %1387 = vmatpush1.msra.mxu0 %v993
        %1388 = vmatprep.subr.mxu0 %v1006
        %1389 = vmatpush1.msra.mxu0 %v1005
        %1390 = vmatprep.subr.mxu0 %v1018
        %1391 = vmatpush1.msra.mxu0 %v1017
        %1392 = vmatprep.subr.mxu0 %v1030
        %1393 = vmatpush1.msra.mxu0 %v1029
        %1394 = vmatprep.subr.mxu0 0.0
        %1395 = vmatpush1.msra.mxu0 0.0
        %1396 = vmatprep.subr.mxu0 0.0
        %1397 = vmatpush1.msra.mxu0 0.0
        %1398 = vmatprep.subr.mxu0 0.0
        %1399 = vmatpush1.msra.mxu0 0.0
        %1400 = vmatprep.subr.mxu0 0.0
        %1401 = vmatpush1.msra.mxu0 0.0
        %1402 = vmatprep.subr.mxu0 0.0
        %1403 = vmatpush1.msra.mxu0 0.0
        %1404 = vmatprep.subr.mxu0 0.0
        %1405 = vmatpush1.msra.mxu0 0.0
        %1406 = vmatprep.subr.mxu0 0.0
        %1407 = vmatpush1.msra.mxu0 0.0
        %1408 = vmatprep.subr.mxu0 0.0
        %1409 = vmatpush1.msra.mxu0 0.0
        %1410 = vmatprep.subr.mxu0 0.0
        %1411 = vmatpush1.msra.mxu0 0.0
        %1412 = vmatprep.subr.mxu0 0.0
        %1413 = vmatpush1.msra.mxu0 0.0
        %1414 = vmatprep.subr.mxu0 0.0
        %1415 = vmatpush1.msra.mxu0 0.0
        %1416 = vmatprep.subr.mxu0 0.0
        %1417 = vmatpush1.msra.mxu0 0.0
        %1418 = vmatprep.subr.mxu0 0.0
        %1419 = vmatpush1.msra.mxu0 0.0
        %1420 = vmatprep.subr.mxu0 0.0
        %1421 = vmatpush1.msra.mxu0 0.0
        %1422 = vmatprep.subr.mxu0 0.0
        %1423 = vmatpush1.msra.mxu0 0.0
        %1424 = vmatprep.subr.mxu0 0.0
        %1425 = vmatpush1.msra.mxu0 0.0
        %1426 = vmatprep.mubr.f32.mxu0 0.0
        %1427 = vmatmul.mubr.f32.gmra.mrb[0].mxu0 %v371
        %v1428 = vpop.f32.mrb[0].mxu0
        %v1429 = vadd.f32 %v1172, %v1428
        %v1430 = vpop.f32.mrb[0].mxu0
        %v1431 = vadd.f32 %v1174, %v1430
        %1432 = vmatprep.mubr.f32.mxu0 0.0
        %1433 = vmatmul.mubr.f32.gmra.mrb[0].mxu0 %v374
        %v1434 = vpop.f32.mrb[0].mxu0
        %v1435 = vadd.f32 %v1178, %v1434
        %v1436 = vpop.f32.mrb[0].mxu0
        %v1437 = vadd.f32 %v1180, %v1436
        %1438 = vmatprep.mubr.f32.mxu0 0.0
        %1439 = vmatmul.mubr.f32.gmra.mrb[0].mxu0 %v377
        %v1440 = vpop.f32.mrb[0].mxu0
        %v1441 = vadd.f32 %v1184, %v1440
        %v1442 = vpop.f32.mrb[0].mxu0
        %v1443 = vadd.f32 %v1186, %v1442
        %1444 = vmatprep.mubr.f32.mxu0 0.0
        %1445 = vmatmul.mubr.f32.gmra.mrb[0].mxu0 %v380
        %v1446 = vpop.f32.mrb[0].mxu0
        %v1447 = vadd.f32 %v1190, %v1446
        %v1448 = vpop.f32.mrb[0].mxu0
        %v1449 = vadd.f32 %v1192, %v1448
        %1450 = vmatprep.mubr.f32.mxu0 0.0
        %1451 = vmatmul.mubr.f32.gmra.mrb[0].mxu0 %v383
        %v1452 = vpop.f32.mrb[0].mxu0
        %v1453 = vadd.f32 %v1196, %v1452
        %v1454 = vpop.f32.mrb[0].mxu0
        %v1455 = vadd.f32 %v1198, %v1454
        %1456 = vmatprep.mubr.f32.mxu0 0.0
        %1457 = vmatmul.mubr.f32.gmra.mrb[0].mxu0 %v386
        %v1458 = vpop.f32.mrb[0].mxu0
        %v1459 = vadd.f32 %v1202, %v1458
        %v1460 = vpop.f32.mrb[0].mxu0
        %v1461 = vadd.f32 %v1204, %v1460
        %1462 = vmatprep.mubr.f32.mxu0 0.0
        %1463 = vmatmul.mubr.f32.gmra.mrb[0].mxu0 %v389
        %v1464 = vpop.f32.mrb[0].mxu0
        %v1465 = vadd.f32 %v1208, %v1464
        %v1466 = vpop.f32.mrb[0].mxu0
        %v1467 = vadd.f32 %v1210, %v1466
        %1468 = vmatprep.mubr.f32.mxu0 0.0
        %1469 = vmatmul.mubr.f32.gmra.mrb[0].mxu0 %v392
        %v1470 = vpop.f32.mrb[0].mxu0
        %v1471 = vadd.f32 %v1214, %v1470
        %v1472 = vpop.f32.mrb[0].mxu0
        %v1473 = vadd.f32 %v1216, %v1472
        %1474 = vmatprep.mubr.f32.mxu0 0.0
        %1475 = vmatmul.mubr.f32.gmra.mrb[0].mxu0 %v395
        %v1476 = vpop.f32.mrb[0].mxu0
        %v1477 = vadd.f32 %v1220, %v1476
        %v1478 = vpop.f32.mrb[0].mxu0
        %v1479 = vadd.f32 %v1222, %v1478
        %1480 = vmatprep.mubr.f32.mxu0 0.0
        %1481 = vmatmul.mubr.f32.gmra.mrb[0].mxu0 %v398
        %v1482 = vpop.f32.mrb[0].mxu0
        %v1483 = vadd.f32 %v1226, %v1482
        %v1484 = vpop.f32.mrb[0].mxu0
        %v1485 = vadd.f32 %v1228, %v1484
        %1486 = vmatprep.mubr.f32.mxu0 0.0
        %1487 = vmatmul.mubr.f32.gmra.mrb[0].mxu0 %v401
        %v1488 = vpop.f32.mrb[0].mxu0
        %v1489 = vadd.f32 %v1232, %v1488
        %v1490 = vpop.f32.mrb[0].mxu0
        %v1491 = vadd.f32 %v1234, %v1490
        %1492 = vmatprep.mubr.f32.mxu0 0.0
        %1493 = vmatmul.mubr.f32.gmra.mrb[0].mxu0 %v404
        %v1494 = vpop.f32.mrb[0].mxu0
        %v1495 = vadd.f32 %v1238, %v1494
        %v1496 = vpop.f32.mrb[0].mxu0
        %v1497 = vadd.f32 %v1240, %v1496
        %1498 = vmatprep.mubr.f32.mxu0 0.0
        %1499 = vmatmul.mubr.f32.gmra.mrb[0].mxu0 %v407
        %v1500 = vpop.f32.mrb[0].mxu0
        %v1501 = vadd.f32 %v1244, %v1500
        %v1502 = vpop.f32.mrb[0].mxu0
        %v1503 = vadd.f32 %v1246, %v1502
        %1504 = vmatprep.mubr.f32.mxu0 0.0
        %1505 = vmatmul.mubr.f32.gmra.mrb[0].mxu0 %v410
        %v1506 = vpop.f32.mrb[0].mxu0
        %v1507 = vadd.f32 %v1250, %v1506
        %v1508 = vpop.f32.mrb[0].mxu0
        %v1509 = vadd.f32 %v1252, %v1508
        %1510 = vmatprep.mubr.f32.mxu0 0.0
        %1511 = vmatmul.mubr.f32.gmra.mrb[0].mxu0 %v413
        %v1512 = vpop.f32.mrb[0].mxu0
        %v1513 = vadd.f32 %v1256, %v1512
        %v1514 = vpop.f32.mrb[0].mxu0
        %v1515 = vadd.f32 %v1258, %v1514
        %1516 = vmatprep.mubr.f32.mxu0 0.0
        %1517 = vmatmul.mubr.f32.gmra.mrb[0].mxu0 %v416
        %v1518 = vpop.f32.mrb[0].mxu0
        %v1519 = vadd.f32 %v1262, %v1518
        %v1520 = vpop.f32.mrb[0].mxu0
        %v1521 = vadd.f32 %v1264, %v1520
        %1522 = vmatprep.mubr.f32.mxu0 0.0
        %1523 = vmatmul.mubr.f32.gmra.mrb[0].mxu0 %v419
        %v1524 = vpop.f32.mrb[0].mxu0
        %v1525 = vadd.f32 %v1268, %v1524
        %v1526 = vpop.f32.mrb[0].mxu0
        %v1527 = vadd.f32 %v1270, %v1526
        %1528 = vmatprep.mubr.f32.mxu0 0.0
        %1529 = vmatmul.mubr.f32.gmra.mrb[0].mxu0 %v422
        %v1530 = vpop.f32.mrb[0].mxu0
        %v1531 = vadd.f32 %v1274, %v1530
        %v1532 = vpop.f32.mrb[0].mxu0
        %v1533 = vadd.f32 %v1276, %v1532
        %1534 = vmatprep.mubr.f32.mxu0 0.0
        %1535 = vmatmul.mubr.f32.gmra.mrb[0].mxu0 %v425
        %v1536 = vpop.f32.mrb[0].mxu0
        %v1537 = vadd.f32 %v1280, %v1536
        %v1538 = vpop.f32.mrb[0].mxu0
        %v1539 = vadd.f32 %v1282, %v1538
        %1540 = vmatprep.mubr.f32.mxu0 0.0
        %1541 = vmatmul.mubr.f32.gmra.mrb[0].mxu0 %v428
        %v1542 = vpop.f32.mrb[0].mxu0
        %v1543 = vadd.f32 %v1286, %v1542
        %v1544 = vpop.f32.mrb[0].mxu0
        %v1545 = vadd.f32 %v1288, %v1544
        %1546 = vmatprep.mubr.f32.mxu0 0.0
        %1547 = vmatmul.mubr.f32.gmra.mrb[0].mxu0 %v431
        %v1548 = vpop.f32.mrb[0].mxu0
        %v1549 = vadd.f32 %v1292, %v1548
        %v1550 = vpop.f32.mrb[0].mxu0
        %v1551 = vadd.f32 %v1294, %v1550
        %1552 = vmatprep.mubr.f32.mxu0 0.0
        %1553 = vmatmul.mubr.f32.gmra.mrb[0].mxu0 %v434
        %v1554 = vpop.f32.mrb[0].mxu0
        %v1555 = vadd.f32 %v1298, %v1554
        %v1556 = vpop.f32.mrb[0].mxu0
        %v1557 = vadd.f32 %v1300, %v1556
        %1558 = vmatprep.mubr.f32.mxu0 0.0
        %1559 = vmatmul.mubr.f32.gmra.mrb[0].mxu0 %v437
        %v1560 = vpop.f32.mrb[0].mxu0
        %v1561 = vadd.f32 %v1304, %v1560
        %v1562 = vpop.f32.mrb[0].mxu0
        %v1563 = vadd.f32 %v1306, %v1562
        %1564 = vmatprep.mubr.f32.mxu0 0.0
        %1565 = vmatmul.mubr.f32.gmra.mrb[0].mxu0 %v440
        %v1566 = vpop.f32.mrb[0].mxu0
        %v1567 = vadd.f32 %v1310, %v1566
        %v1568 = vpop.f32.mrb[0].mxu0
        %v1569 = vadd.f32 %v1312, %v1568
        %1570 = vmatprep.mubr.f32.mxu0 0.0
        %1571 = vmatmul.mubr.f32.gmra.mrb[0].mxu0 %v443
        %v1572 = vpop.f32.mrb[0].mxu0
        %v1573 = vadd.f32 %v1316, %v1572
        %v1574 = vpop.f32.mrb[0].mxu0
        %v1575 = vadd.f32 %v1318, %v1574
        %1576 = vmatprep.mubr.f32.mxu0 0.0
        %1577 = vmatmul.mubr.f32.gmra.mrb[0].mxu0 %v446
        %v1578 = vpop.f32.mrb[0].mxu0
        %v1579 = vadd.f32 %v1322, %v1578
        %v1580 = vpop.f32.mrb[0].mxu0
        %v1581 = vadd.f32 %v1324, %v1580
        %1582 = vmatprep.mubr.f32.mxu0 0.0
        %1583 = vmatmul.mubr.f32.gmra.mrb[0].mxu0 %v449
        %v1584 = vpop.f32.mrb[0].mxu0
        %v1585 = vadd.f32 %v1328, %v1584
        %v1586 = vpop.f32.mrb[0].mxu0
        %v1587 = vadd.f32 %v1330, %v1586
        %1588 = vmatprep.mubr.f32.mxu0 0.0
        %1589 = vmatmul.mubr.f32.gmra.mrb[0].mxu0 %v452
        %v1590 = vpop.f32.mrb[0].mxu0
        %v1591 = vadd.f32 %v1334, %v1590
        %v1592 = vpop.f32.mrb[0].mxu0
        %v1593 = vadd.f32 %v1336, %v1592
        %1594 = vmatprep.mubr.f32.mxu0 0.0
        %1595 = vmatmul.mubr.f32.gmra.mrb[0].mxu0 %v455
        %v1596 = vpop.f32.mrb[0].mxu0
        %v1597 = vadd.f32 %v1340, %v1596
        %v1598 = vpop.f32.mrb[0].mxu0
        %v1599 = vadd.f32 %v1342, %v1598
        %1600 = vmatprep.mubr.f32.mxu0 0.0
        %1601 = vmatmul.mubr.f32.gmra.mrb[0].mxu0 %v458
        %v1602 = vpop.f32.mrb[0].mxu0
        %v1603 = vadd.f32 %v1346, %v1602
        %v1604 = vpop.f32.mrb[0].mxu0
        %v1605 = vadd.f32 %v1348, %v1604
        %1606 = vmatprep.mubr.f32.mxu0 0.0
        %1607 = vmatmul.mubr.f32.gmra.mrb[0].mxu0 %v461
        %v1608 = vpop.f32.mrb[0].mxu0
        %v1609 = vadd.f32 %v1352, %v1608
        %v1610 = vpop.f32.mrb[0].mxu0
        %v1611 = vadd.f32 %v1354, %v1610
        %1612 = vmatprep.mubr.f32.mxu0 0.0
        %1613 = vmatmul.mubr.f32.gmra.mrb[0].mxu0 %v464
        %v1614 = vpop.f32.mrb[0].mxu0
        %v1615 = vadd.f32 %v1358, %v1614
        %v1616 = vpop.f32.mrb[0].mxu0
        %v1617 = vadd.f32 %v1360, %v1616
        %1618 = vdwg.mxu0
        %1619 = vmatprep.subr.mxu0 %v468
        %1620 = vmatpush1.msra.mxu0 %v467
        %1621 = vmatprep.subr.mxu0 %v480
        %1622 = vmatpush1.msra.mxu0 %v479
        %1623 = vmatprep.subr.mxu0 %v492
        %1624 = vmatpush1.msra.mxu0 %v491
        %1625 = vmatprep.subr.mxu0 %v504
        %1626 = vmatpush1.msra.mxu0 %v503
        %1627 = vmatprep.subr.mxu0 %v516
        %1628 = vmatpush1.msra.mxu0 %v515
        %1629 = vmatprep.subr.mxu0 %v528
        %1630 = vmatpush1.msra.mxu0 %v527
        %1631 = vmatprep.subr.mxu0 %v540
        %1632 = vmatpush1.msra.mxu0 %v539
        %1633 = vmatprep.subr.mxu0 %v552
        %1634 = vmatpush1.msra.mxu0 %v551
        %1635 = vmatprep.subr.mxu0 %v564
        %1636 = vmatpush1.msra.mxu0 %v563
        %1637 = vmatprep.subr.mxu0 %v576
        %1638 = vmatpush1.msra.mxu0 %v575
        %1639 = vmatprep.subr.mxu0 %v588
        %1640 = vmatpush1.msra.mxu0 %v587
        %1641 = vmatprep.subr.mxu0 %v600
        %1642 = vmatpush1.msra.mxu0 %v599
        %1643 = vmatprep.subr.mxu0 %v612
        %1644 = vmatpush1.msra.mxu0 %v611
        %1645 = vmatprep.subr.mxu0 %v624
        %1646 = vmatpush1.msra.mxu0 %v623
        %1647 = vmatprep.subr.mxu0 %v636
        %1648 = vmatpush1.msra.mxu0 %v635
        %1649 = vmatprep.subr.mxu0 %v648
        %1650 = vmatpush1.msra.mxu0 %v647
        %1651 = vmatprep.subr.mxu0 %v660
        %1652 = vmatpush1.msra.mxu0 %v659
        %1653 = vmatprep.subr.mxu0 %v672
        %1654 = vmatpush1.msra.mxu0 %v671
        %1655 = vmatprep.subr.mxu0 %v684
        %1656 = vmatpush1.msra.mxu0 %v683
        %1657 = vmatprep.subr.mxu0 %v696
        %1658 = vmatpush1.msra.mxu0 %v695
        %1659 = vmatprep.subr.mxu0 %v708
        %1660 = vmatpush1.msra.mxu0 %v707
        %1661 = vmatprep.subr.mxu0 %v720
        %1662 = vmatpush1.msra.mxu0 %v719
        %1663 = vmatprep.subr.mxu0 %v732
        %1664 = vmatpush1.msra.mxu0 %v731
        %1665 = vmatprep.subr.mxu0 %v744
        %1666 = vmatpush1.msra.mxu0 %v743
        %1667 = vmatprep.subr.mxu0 %v756
        %1668 = vmatpush1.msra.mxu0 %v755
        %1669 = vmatprep.subr.mxu0 %v768
        %1670 = vmatpush1.msra.mxu0 %v767
        %1671 = vmatprep.subr.mxu0 %v780
        %1672 = vmatpush1.msra.mxu0 %v779
        %1673 = vmatprep.subr.mxu0 %v792
        %1674 = vmatpush1.msra.mxu0 %v791
        %1675 = vmatprep.subr.mxu0 %v804
        %1676 = vmatpush1.msra.mxu0 %v803
        %1677 = vmatprep.subr.mxu0 %v816
        %1678 = vmatpush1.msra.mxu0 %v815
        %1679 = vmatprep.subr.mxu0 %v828
        %1680 = vmatpush1.msra.mxu0 %v827
        %1681 = vmatprep.subr.mxu0 %v840
        %1682 = vmatpush1.msra.mxu0 %v839
        %1683 = vmatprep.mubr.f32.mxu0 %v370
        %1684 = vmatmul.mubr.f32.gmra.mrb[0].mxu0 %v369
        %v1685 = vpop.f32.mrb[0].mxu0
        %v1686 = vadd.f32 %v1056, %v1685
        %v1687 = vpop.f32.mrb[0].mxu0
        %v1688 = vadd.f32 %v1060, %v1687
        %1689 = vmatprep.mubr.f32.mxu0 %v373
        %1690 = vmatmul.mubr.f32.gmra.mrb[0].mxu0 %v372
        %v1691 = vpop.f32.mrb[0].mxu0
        %v1692 = vadd.f32 %v1056, %v1691
        %v1693 = vpop.f32.mrb[0].mxu0
        %v1694 = vadd.f32 %v1060, %v1693
        %1695 = vmatprep.mubr.f32.mxu0 %v376
        %1696 = vmatmul.mubr.f32.gmra.mrb[0].mxu0 %v375
        %v1697 = vpop.f32.mrb[0].mxu0
        %v1698 = vadd.f32 %v1056, %v1697
        %v1699 = vpop.f32.mrb[0].mxu0
        %v1700 = vadd.f32 %v1060, %v1699
        %1701 = vmatprep.mubr.f32.mxu0 %v379
        %1702 = vmatmul.mubr.f32.gmra.mrb[0].mxu0 %v378
        %v1703 = vpop.f32.mrb[0].mxu0
        %v1704 = vadd.f32 %v1056, %v1703
        %v1705 = vpop.f32.mrb[0].mxu0
        %v1706 = vadd.f32 %v1060, %v1705
        %1707 = vmatprep.mubr.f32.mxu0 %v382
        %1708 = vmatmul.mubr.f32.gmra.mrb[0].mxu0 %v381
        %v1709 = vpop.f32.mrb[0].mxu0
        %v1710 = vadd.f32 %v1056, %v1709
        %v1711 = vpop.f32.mrb[0].mxu0
        %v1712 = vadd.f32 %v1060, %v1711
        %1713 = vmatprep.mubr.f32.mxu0 %v385
        %1714 = vmatmul.mubr.f32.gmra.mrb[0].mxu0 %v384
        %v1715 = vpop.f32.mrb[0].mxu0
        %v1716 = vadd.f32 %v1056, %v1715
        %v1717 = vpop.f32.mrb[0].mxu0
        %v1718 = vadd.f32 %v1060, %v1717
        %1719 = vmatprep.mubr.f32.mxu0 %v388
        %1720 = vmatmul.mubr.f32.gmra.mrb[0].mxu0 %v387
        %v1721 = vpop.f32.mrb[0].mxu0
        %v1722 = vadd.f32 %v1056, %v1721
        %v1723 = vpop.f32.mrb[0].mxu0
        %v1724 = vadd.f32 %v1060, %v1723
        %1725 = vmatprep.mubr.f32.mxu0 %v391
        %1726 = vmatmul.mubr.f32.gmra.mrb[0].mxu0 %v390
        %v1727 = vpop.f32.mrb[0].mxu0
        %v1728 = vadd.f32 %v1056, %v1727
        %v1729 = vpop.f32.mrb[0].mxu0
        %v1730 = vadd.f32 %v1060, %v1729
        %1731 = vmatprep.mubr.f32.mxu0 %v394
        %1732 = vmatmul.mubr.f32.gmra.mrb[0].mxu0 %v393
        %v1733 = vpop.f32.mrb[0].mxu0
        %v1734 = vadd.f32 %v1056, %v1733
        %v1735 = vpop.f32.mrb[0].mxu0
        %v1736 = vadd.f32 %v1060, %v1735
        %1737 = vmatprep.mubr.f32.mxu0 %v397
        %1738 = vmatmul.mubr.f32.gmra.mrb[0].mxu0 %v396
        %v1739 = vpop.f32.mrb[0].mxu0
        %v1740 = vadd.f32 %v1056, %v1739
        %v1741 = vpop.f32.mrb[0].mxu0
        %v1742 = vadd.f32 %v1060, %v1741
        %1743 = vmatprep.mubr.f32.mxu0 %v400
        %1744 = vmatmul.mubr.f32.gmra.mrb[0].mxu0 %v399
        %v1745 = vpop.f32.mrb[0].mxu0
        %v1746 = vadd.f32 %v1056, %v1745
        %v1747 = vpop.f32.mrb[0].mxu0
        %v1748 = vadd.f32 %v1060, %v1747
        %1749 = vmatprep.mubr.f32.mxu0 %v403
        %1750 = vmatmul.mubr.f32.gmra.mrb[0].mxu0 %v402
        %v1751 = vpop.f32.mrb[0].mxu0
        %v1752 = vadd.f32 %v1056, %v1751
        %v1753 = vpop.f32.mrb[0].mxu0
        %v1754 = vadd.f32 %v1060, %v1753
        %1755 = vmatprep.mubr.f32.mxu0 %v406
        %1756 = vmatmul.mubr.f32.gmra.mrb[0].mxu0 %v405
        %v1757 = vpop.f32.mrb[0].mxu0
        %v1758 = vadd.f32 %v1056, %v1757
        %v1759 = vpop.f32.mrb[0].mxu0
        %v1760 = vadd.f32 %v1060, %v1759
        %1761 = vmatprep.mubr.f32.mxu0 %v409
        %1762 = vmatmul.mubr.f32.gmra.mrb[0].mxu0 %v408
        %v1763 = vpop.f32.mrb[0].mxu0
        %v1764 = vadd.f32 %v1056, %v1763
        %v1765 = vpop.f32.mrb[0].mxu0
        %v1766 = vadd.f32 %v1060, %v1765
        %1767 = vmatprep.mubr.f32.mxu0 %v412
        %1768 = vmatmul.mubr.f32.gmra.mrb[0].mxu0 %v411
        %v1769 = vpop.f32.mrb[0].mxu0
        %v1770 = vadd.f32 %v1056, %v1769
        %v1771 = vpop.f32.mrb[0].mxu0
        %v1772 = vadd.f32 %v1060, %v1771
        %1773 = vmatprep.mubr.f32.mxu0 %v415
        %1774 = vmatmul.mubr.f32.gmra.mrb[0].mxu0 %v414
        %v1775 = vpop.f32.mrb[0].mxu0
        %v1776 = vadd.f32 %v1056, %v1775
        %v1777 = vpop.f32.mrb[0].mxu0
        %v1778 = vadd.f32 %v1060, %v1777
        %1779 = vmatprep.mubr.f32.mxu0 %v418
        %1780 = vmatmul.mubr.f32.gmra.mrb[0].mxu0 %v417
        %v1781 = vpop.f32.mrb[0].mxu0
        %v1782 = vadd.f32 %v1056, %v1781
        %v1783 = vpop.f32.mrb[0].mxu0
        %v1784 = vadd.f32 %v1060, %v1783
        %1785 = vmatprep.mubr.f32.mxu0 %v421
        %1786 = vmatmul.mubr.f32.gmra.mrb[0].mxu0 %v420
        %v1787 = vpop.f32.mrb[0].mxu0
        %v1788 = vadd.f32 %v1056, %v1787
        %v1789 = vpop.f32.mrb[0].mxu0
        %v1790 = vadd.f32 %v1060, %v1789
        %1791 = vmatprep.mubr.f32.mxu0 %v424
        %1792 = vmatmul.mubr.f32.gmra.mrb[0].mxu0 %v423
        %v1793 = vpop.f32.mrb[0].mxu0
        %v1794 = vadd.f32 %v1056, %v1793
        %v1795 = vpop.f32.mrb[0].mxu0
        %v1796 = vadd.f32 %v1060, %v1795
        %1797 = vmatprep.mubr.f32.mxu0 %v427
        %1798 = vmatmul.mubr.f32.gmra.mrb[0].mxu0 %v426
        %v1799 = vpop.f32.mrb[0].mxu0
        %v1800 = vadd.f32 %v1056, %v1799
        %v1801 = vpop.f32.mrb[0].mxu0
        %v1802 = vadd.f32 %v1060, %v1801
        %1803 = vmatprep.mubr.f32.mxu0 %v430
        %1804 = vmatmul.mubr.f32.gmra.mrb[0].mxu0 %v429
        %v1805 = vpop.f32.mrb[0].mxu0
        %v1806 = vadd.f32 %v1056, %v1805
        %v1807 = vpop.f32.mrb[0].mxu0
        %v1808 = vadd.f32 %v1060, %v1807
        %1809 = vmatprep.mubr.f32.mxu0 %v433
        %1810 = vmatmul.mubr.f32.gmra.mrb[0].mxu0 %v432
        %v1811 = vpop.f32.mrb[0].mxu0
        %v1812 = vadd.f32 %v1056, %v1811
        %v1813 = vpop.f32.mrb[0].mxu0
        %v1814 = vadd.f32 %v1060, %v1813
        %1815 = vmatprep.mubr.f32.mxu0 %v436
        %1816 = vmatmul.mubr.f32.gmra.mrb[0].mxu0 %v435
        %v1817 = vpop.f32.mrb[0].mxu0
        %v1818 = vadd.f32 %v1056, %v1817
        %v1819 = vpop.f32.mrb[0].mxu0
        %v1820 = vadd.f32 %v1060, %v1819
        %1821 = vmatprep.mubr.f32.mxu0 %v439
        %1822 = vmatmul.mubr.f32.gmra.mrb[0].mxu0 %v438
        %v1823 = vpop.f32.mrb[0].mxu0
        %v1824 = vadd.f32 %v1056, %v1823
        %v1825 = vpop.f32.mrb[0].mxu0
        %v1826 = vadd.f32 %v1060, %v1825
        %1827 = vmatprep.mubr.f32.mxu0 %v442
        %1828 = vmatmul.mubr.f32.gmra.mrb[0].mxu0 %v441
        %v1829 = vpop.f32.mrb[0].mxu0
        %v1830 = vadd.f32 %v1056, %v1829
        %v1831 = vpop.f32.mrb[0].mxu0
        %v1832 = vadd.f32 %v1060, %v1831
        %1833 = vmatprep.mubr.f32.mxu0 %v445
        %1834 = vmatmul.mubr.f32.gmra.mrb[0].mxu0 %v444
        %v1835 = vpop.f32.mrb[0].mxu0
        %v1836 = vadd.f32 %v1056, %v1835
        %v1837 = vpop.f32.mrb[0].mxu0
        %v1838 = vadd.f32 %v1060, %v1837
        %1839 = vmatprep.mubr.f32.mxu0 %v448
        %1840 = vmatmul.mubr.f32.gmra.mrb[0].mxu0 %v447
        %v1841 = vpop.f32.mrb[0].mxu0
        %v1842 = vadd.f32 %v1056, %v1841
        %v1843 = vpop.f32.mrb[0].mxu0
        %v1844 = vadd.f32 %v1060, %v1843
        %1845 = vmatprep.mubr.f32.mxu0 %v451
        %1846 = vmatmul.mubr.f32.gmra.mrb[0].mxu0 %v450
        %v1847 = vpop.f32.mrb[0].mxu0
        %v1848 = vadd.f32 %v1056, %v1847
        %v1849 = vpop.f32.mrb[0].mxu0
        %v1850 = vadd.f32 %v1060, %v1849
        %1851 = vmatprep.mubr.f32.mxu0 %v454
        %1852 = vmatmul.mubr.f32.gmra.mrb[0].mxu0 %v453
        %v1853 = vpop.f32.mrb[0].mxu0
        %v1854 = vadd.f32 %v1056, %v1853
        %v1855 = vpop.f32.mrb[0].mxu0
        %v1856 = vadd.f32 %v1060, %v1855
        %1857 = vmatprep.mubr.f32.mxu0 %v457
        %1858 = vmatmul.mubr.f32.gmra.mrb[0].mxu0 %v456
        %v1859 = vpop.f32.mrb[0].mxu0
        %v1860 = vadd.f32 %v1056, %v1859
        %v1861 = vpop.f32.mrb[0].mxu0
        %v1862 = vadd.f32 %v1060, %v1861
        %1863 = vmatprep.mubr.f32.mxu0 %v460
        %1864 = vmatmul.mubr.f32.gmra.mrb[0].mxu0 %v459
        %v1865 = vpop.f32.mrb[0].mxu0
        %v1866 = vadd.f32 %v1056, %v1865
        %v1867 = vpop.f32.mrb[0].mxu0
        %v1868 = vadd.f32 %v1060, %v1867
        %1869 = vmatprep.mubr.f32.mxu0 %v463
        %1870 = vmatmul.mubr.f32.gmra.mrb[0].mxu0 %v462
        %v1871 = vpop.f32.mrb[0].mxu0
        %v1872 = vadd.f32 %v1056, %v1871
        %v1873 = vpop.f32.mrb[0].mxu0
        %v1874 = vadd.f32 %v1060, %v1873
        %1875 = vdwg.mxu0
        %1876 = vmatprep.subr.mxu0 %v852
        %1877 = vmatpush1.msra.mxu0 %v851
        %1878 = vmatprep.subr.mxu0 %v864
        %1879 = vmatpush1.msra.mxu0 %v863
        %1880 = vmatprep.subr.mxu0 %v876
        %1881 = vmatpush1.msra.mxu0 %v875
        %1882 = vmatprep.subr.mxu0 %v888
        %1883 = vmatpush1.msra.mxu0 %v887
        %1884 = vmatprep.subr.mxu0 %v900
        %1885 = vmatpush1.msra.mxu0 %v899
        %1886 = vmatprep.subr.mxu0 %v912
        %1887 = vmatpush1.msra.mxu0 %v911
        %1888 = vmatprep.subr.mxu0 %v924
        %1889 = vmatpush1.msra.mxu0 %v923
        %1890 = vmatprep.subr.mxu0 %v936
        %1891 = vmatpush1.msra.mxu0 %v935
        %1892 = vmatprep.subr.mxu0 %v948
        %1893 = vmatpush1.msra.mxu0 %v947
        %1894 = vmatprep.subr.mxu0 %v960
        %1895 = vmatpush1.msra.mxu0 %v959
        %1896 = vmatprep.subr.mxu0 %v972
        %1897 = vmatpush1.msra.mxu0 %v971
        %1898 = vmatprep.subr.mxu0 %v984
        %1899 = vmatpush1.msra.mxu0 %v983
        %1900 = vmatprep.subr.mxu0 %v996
        %1901 = vmatpush1.msra.mxu0 %v995
        %1902 = vmatprep.subr.mxu0 %v1008
        %1903 = vmatpush1.msra.mxu0 %v1007
        %1904 = vmatprep.subr.mxu0 %v1020
        %1905 = vmatpush1.msra.mxu0 %v1019
        %1906 = vmatprep.subr.mxu0 %v1032
        %1907 = vmatpush1.msra.mxu0 %v1031
        %1908 = vmatprep.subr.mxu0 0.0
        %1909 = vmatpush1.msra.mxu0 0.0
        %1910 = vmatprep.subr.mxu0 0.0
        %1911 = vmatpush1.msra.mxu0 0.0
        %1912 = vmatprep.subr.mxu0 0.0
        %1913 = vmatpush1.msra.mxu0 0.0
        %1914 = vmatprep.subr.mxu0 0.0
        %1915 = vmatpush1.msra.mxu0 0.0
        %1916 = vmatprep.subr.mxu0 0.0
        %1917 = vmatpush1.msra.mxu0 0.0
        %1918 = vmatprep.subr.mxu0 0.0
        %1919 = vmatpush1.msra.mxu0 0.0
        %1920 = vmatprep.subr.mxu0 0.0
        %1921 = vmatpush1.msra.mxu0 0.0
        %1922 = vmatprep.subr.mxu0 0.0
        %1923 = vmatpush1.msra.mxu0 0.0
        %1924 = vmatprep.subr.mxu0 0.0
        %1925 = vmatpush1.msra.mxu0 0.0
        %1926 = vmatprep.subr.mxu0 0.0
        %1927 = vmatpush1.msra.mxu0 0.0
        %1928 = vmatprep.subr.mxu0 0.0
        %1929 = vmatpush1.msra.mxu0 0.0
        %1930 = vmatprep.subr.mxu0 0.0
        %1931 = vmatpush1.msra.mxu0 0.0
        %1932 = vmatprep.subr.mxu0 0.0
        %1933 = vmatpush1.msra.mxu0 0.0
        %1934 = vmatprep.subr.mxu0 0.0
        %1935 = vmatpush1.msra.mxu0 0.0
        %1936 = vmatprep.subr.mxu0 0.0
        %1937 = vmatpush1.msra.mxu0 0.0
        %1938 = vmatprep.subr.mxu0 0.0
        %1939 = vmatpush1.msra.mxu0 0.0
        %1940 = vmatprep.mubr.f32.mxu0 0.0
        %1941 = vmatmul.mubr.f32.gmra.mrb[0].mxu0 %v371
        %v1942 = vpop.f32.mrb[0].mxu0
        %v1943 = vadd.f32 %v1686, %v1942
        %v1944 = vpop.f32.mrb[0].mxu0
        %v1945 = vadd.f32 %v1688, %v1944
        %1946 = vmatprep.mubr.f32.mxu0 0.0
        %1947 = vmatmul.mubr.f32.gmra.mrb[0].mxu0 %v374
        %v1948 = vpop.f32.mrb[0].mxu0
        %v1949 = vadd.f32 %v1692, %v1948
        %v1950 = vpop.f32.mrb[0].mxu0
        %v1951 = vadd.f32 %v1694, %v1950
        %1952 = vmatprep.mubr.f32.mxu0 0.0
        %1953 = vmatmul.mubr.f32.gmra.mrb[0].mxu0 %v377
        %v1954 = vpop.f32.mrb[0].mxu0
        %v1955 = vadd.f32 %v1698, %v1954
        %v1956 = vpop.f32.mrb[0].mxu0
        %v1957 = vadd.f32 %v1700, %v1956
        %1958 = vmatprep.mubr.f32.mxu0 0.0
        %1959 = vmatmul.mubr.f32.gmra.mrb[0].mxu0 %v380
        %v1960 = vpop.f32.mrb[0].mxu0
        %v1961 = vadd.f32 %v1704, %v1960
        %v1962 = vpop.f32.mrb[0].mxu0
        %v1963 = vadd.f32 %v1706, %v1962
        %1964 = vmatprep.mubr.f32.mxu0 0.0
        %1965 = vmatmul.mubr.f32.gmra.mrb[0].mxu0 %v383
        %v1966 = vpop.f32.mrb[0].mxu0
        %v1967 = vadd.f32 %v1710, %v1966
        %v1968 = vpop.f32.mrb[0].mxu0
        %v1969 = vadd.f32 %v1712, %v1968
        %1970 = vmatprep.mubr.f32.mxu0 0.0
        %1971 = vmatmul.mubr.f32.gmra.mrb[0].mxu0 %v386
        %v1972 = vpop.f32.mrb[0].mxu0
        %v1973 = vadd.f32 %v1716, %v1972
        %v1974 = vpop.f32.mrb[0].mxu0
        %v1975 = vadd.f32 %v1718, %v1974
        %1976 = vmatprep.mubr.f32.mxu0 0.0
        %1977 = vmatmul.mubr.f32.gmra.mrb[0].mxu0 %v389
        %v1978 = vpop.f32.mrb[0].mxu0
        %v1979 = vadd.f32 %v1722, %v1978
        %v1980 = vpop.f32.mrb[0].mxu0
        %v1981 = vadd.f32 %v1724, %v1980
        %1982 = vmatprep.mubr.f32.mxu0 0.0
        %1983 = vmatmul.mubr.f32.gmra.mrb[0].mxu0 %v392
        %v1984 = vpop.f32.mrb[0].mxu0
        %v1985 = vadd.f32 %v1728, %v1984
        %v1986 = vpop.f32.mrb[0].mxu0
        %v1987 = vadd.f32 %v1730, %v1986
        %1988 = vmatprep.mubr.f32.mxu0 0.0
        %1989 = vmatmul.mubr.f32.gmra.mrb[0].mxu0 %v395
        %v1990 = vpop.f32.mrb[0].mxu0
        %v1991 = vadd.f32 %v1734, %v1990
        %v1992 = vpop.f32.mrb[0].mxu0
        %v1993 = vadd.f32 %v1736, %v1992
        %1994 = vmatprep.mubr.f32.mxu0 0.0
        %1995 = vmatmul.mubr.f32.gmra.mrb[0].mxu0 %v398
        %v1996 = vpop.f32.mrb[0].mxu0
        %v1997 = vadd.f32 %v1740, %v1996
        %v1998 = vpop.f32.mrb[0].mxu0
        %v1999 = vadd.f32 %v1742, %v1998
        %2000 = vmatprep.mubr.f32.mxu0 0.0
        %2001 = vmatmul.mubr.f32.gmra.mrb[0].mxu0 %v401
        %v2002 = vpop.f32.mrb[0].mxu0
        %v2003 = vadd.f32 %v1746, %v2002
        %v2004 = vpop.f32.mrb[0].mxu0
        %v2005 = vadd.f32 %v1748, %v2004
        %2006 = vmatprep.mubr.f32.mxu0 0.0
        %2007 = vmatmul.mubr.f32.gmra.mrb[0].mxu0 %v404
        %v2008 = vpop.f32.mrb[0].mxu0
        %v2009 = vadd.f32 %v1752, %v2008
        %v2010 = vpop.f32.mrb[0].mxu0
        %v2011 = vadd.f32 %v1754, %v2010
        %2012 = vmatprep.mubr.f32.mxu0 0.0
        %2013 = vmatmul.mubr.f32.gmra.mrb[0].mxu0 %v407
        %v2014 = vpop.f32.mrb[0].mxu0
        %v2015 = vadd.f32 %v1758, %v2014
        %v2016 = vpop.f32.mrb[0].mxu0
        %v2017 = vadd.f32 %v1760, %v2016
        %2018 = vmatprep.mubr.f32.mxu0 0.0
        %2019 = vmatmul.mubr.f32.gmra.mrb[0].mxu0 %v410
        %v2020 = vpop.f32.mrb[0].mxu0
        %v2021 = vadd.f32 %v1764, %v2020
        %v2022 = vpop.f32.mrb[0].mxu0
        %v2023 = vadd.f32 %v1766, %v2022
        %2024 = vmatprep.mubr.f32.mxu0 0.0
        %2025 = vmatmul.mubr.f32.gmra.mrb[0].mxu0 %v413
        %v2026 = vpop.f32.mrb[0].mxu0
        %v2027 = vadd.f32 %v1770, %v2026
        %v2028 = vpop.f32.mrb[0].mxu0
        %v2029 = vadd.f32 %v1772, %v2028
        %2030 = vmatprep.mubr.f32.mxu0 0.0
        %2031 = vmatmul.mubr.f32.gmra.mrb[0].mxu0 %v416
        %v2032 = vpop.f32.mrb[0].mxu0
        %v2033 = vadd.f32 %v1776, %v2032
        %v2034 = vpop.f32.mrb[0].mxu0
        %v2035 = vadd.f32 %v1778, %v2034
        %2036 = vmatprep.mubr.f32.mxu0 0.0
        %2037 = vmatmul.mubr.f32.gmra.mrb[0].mxu0 %v419
        %v2038 = vpop.f32.mrb[0].mxu0
        %v2039 = vadd.f32 %v1782, %v2038
        %v2040 = vpop.f32.mrb[0].mxu0
        %v2041 = vadd.f32 %v1784, %v2040
        %2042 = vmatprep.mubr.f32.mxu0 0.0
        %2043 = vmatmul.mubr.f32.gmra.mrb[0].mxu0 %v422
        %v2044 = vpop.f32.mrb[0].mxu0
        %v2045 = vadd.f32 %v1788, %v2044
        %v2046 = vpop.f32.mrb[0].mxu0
        %v2047 = vadd.f32 %v1790, %v2046
        %2048 = vmatprep.mubr.f32.mxu0 0.0
        %2049 = vmatmul.mubr.f32.gmra.mrb[0].mxu0 %v425
        %v2050 = vpop.f32.mrb[0].mxu0
        %v2051 = vadd.f32 %v1794, %v2050
        %v2052 = vpop.f32.mrb[0].mxu0
        %v2053 = vadd.f32 %v1796, %v2052
        %2054 = vmatprep.mubr.f32.mxu0 0.0
        %2055 = vmatmul.mubr.f32.gmra.mrb[0].mxu0 %v428
        %v2056 = vpop.f32.mrb[0].mxu0
        %v2057 = vadd.f32 %v1800, %v2056
        %v2058 = vpop.f32.mrb[0].mxu0
        %v2059 = vadd.f32 %v1802, %v2058
        %2060 = vmatprep.mubr.f32.mxu0 0.0
        %2061 = vmatmul.mubr.f32.gmra.mrb[0].mxu0 %v431
        %v2062 = vpop.f32.mrb[0].mxu0
        %v2063 = vadd.f32 %v1806, %v2062
        %v2064 = vpop.f32.mrb[0].mxu0
        %v2065 = vadd.f32 %v1808, %v2064
        %2066 = vmatprep.mubr.f32.mxu0 0.0
        %2067 = vmatmul.mubr.f32.gmra.mrb[0].mxu0 %v434
        %v2068 = vpop.f32.mrb[0].mxu0
        %v2069 = vadd.f32 %v1812, %v2068
        %v2070 = vpop.f32.mrb[0].mxu0
        %v2071 = vadd.f32 %v1814, %v2070
        %2072 = vmatprep.mubr.f32.mxu0 0.0
        %2073 = vmatmul.mubr.f32.gmra.mrb[0].mxu0 %v437
        %v2074 = vpop.f32.mrb[0].mxu0
        %v2075 = vadd.f32 %v1818, %v2074
        %v2076 = vpop.f32.mrb[0].mxu0
        %v2077 = vadd.f32 %v1820, %v2076
        %2078 = vmatprep.mubr.f32.mxu0 0.0
        %2079 = vmatmul.mubr.f32.gmra.mrb[0].mxu0 %v440
        %v2080 = vpop.f32.mrb[0].mxu0
        %v2081 = vadd.f32 %v1824, %v2080
        %v2082 = vpop.f32.mrb[0].mxu0
        %v2083 = vadd.f32 %v1826, %v2082
        %2084 = vmatprep.mubr.f32.mxu0 0.0
        %2085 = vmatmul.mubr.f32.gmra.mrb[0].mxu0 %v443
        %v2086 = vpop.f32.mrb[0].mxu0
        %v2087 = vadd.f32 %v1830, %v2086
        %v2088 = vpop.f32.mrb[0].mxu0
        %v2089 = vadd.f32 %v1832, %v2088
        %2090 = vmatprep.mubr.f32.mxu0 0.0
        %2091 = vmatmul.mubr.f32.gmra.mrb[0].mxu0 %v446
        %v2092 = vpop.f32.mrb[0].mxu0
        %v2093 = vadd.f32 %v1836, %v2092
        %v2094 = vpop.f32.mrb[0].mxu0
        %v2095 = vadd.f32 %v1838, %v2094
        %2096 = vmatprep.mubr.f32.mxu0 0.0
        %2097 = vmatmul.mubr.f32.gmra.mrb[0].mxu0 %v449
        %v2098 = vpop.f32.mrb[0].mxu0
        %v2099 = vadd.f32 %v1842, %v2098
        %v2100 = vpop.f32.mrb[0].mxu0
        %v2101 = vadd.f32 %v1844, %v2100
        %2102 = vmatprep.mubr.f32.mxu0 0.0
        %2103 = vmatmul.mubr.f32.gmra.mrb[0].mxu0 %v452
        %v2104 = vpop.f32.mrb[0].mxu0
        %v2105 = vadd.f32 %v1848, %v2104
        %v2106 = vpop.f32.mrb[0].mxu0
        %v2107 = vadd.f32 %v1850, %v2106
        %2108 = vmatprep.mubr.f32.mxu0 0.0
        %2109 = vmatmul.mubr.f32.gmra.mrb[0].mxu0 %v455
        %v2110 = vpop.f32.mrb[0].mxu0
        %v2111 = vadd.f32 %v1854, %v2110
        %v2112 = vpop.f32.mrb[0].mxu0
        %v2113 = vadd.f32 %v1856, %v2112
        %2114 = vmatprep.mubr.f32.mxu0 0.0
        %2115 = vmatmul.mubr.f32.gmra.mrb[0].mxu0 %v458
        %v2116 = vpop.f32.mrb[0].mxu0
        %v2117 = vadd.f32 %v1860, %v2116
        %v2118 = vpop.f32.mrb[0].mxu0
        %v2119 = vadd.f32 %v1862, %v2118
        %2120 = vmatprep.mubr.f32.mxu0 0.0
        %2121 = vmatmul.mubr.f32.gmra.mrb[0].mxu0 %v461
        %v2122 = vpop.f32.mrb[0].mxu0
        %v2123 = vadd.f32 %v1866, %v2122
        %v2124 = vpop.f32.mrb[0].mxu0
        %v2125 = vadd.f32 %v1868, %v2124
        %2126 = vmatprep.mubr.f32.mxu0 0.0
        %2127 = vmatmul.mubr.f32.gmra.mrb[0].mxu0 %v464
        %v2128 = vpop.f32.mrb[0].mxu0
        %v2129 = vadd.f32 %v1872, %v2128
        %v2130 = vpop.f32.mrb[0].mxu0
        %v2131 = vadd.f32 %v1874, %v2130
        %2132 = vdwg.mxu0
        %2133 = vmatprep.subr.mxu0 %v470
        %2134 = vmatpush1.msra.mxu0 %v469
        %2135 = vmatprep.subr.mxu0 %v482
        %2136 = vmatpush1.msra.mxu0 %v481
        %2137 = vmatprep.subr.mxu0 %v494
        %2138 = vmatpush1.msra.mxu0 %v493
        %2139 = vmatprep.subr.mxu0 %v506
        %2140 = vmatpush1.msra.mxu0 %v505
        %2141 = vmatprep.subr.mxu0 %v518
        %2142 = vmatpush1.msra.mxu0 %v517
        %2143 = vmatprep.subr.mxu0 %v530
        %2144 = vmatpush1.msra.mxu0 %v529
        %2145 = vmatprep.subr.mxu0 %v542
        %2146 = vmatpush1.msra.mxu0 %v541
        %2147 = vmatprep.subr.mxu0 %v554
        %2148 = vmatpush1.msra.mxu0 %v553
        %2149 = vmatprep.subr.mxu0 %v566
        %2150 = vmatpush1.msra.mxu0 %v565
        %2151 = vmatprep.subr.mxu0 %v578
        %2152 = vmatpush1.msra.mxu0 %v577
        %2153 = vmatprep.subr.mxu0 %v590
        %2154 = vmatpush1.msra.mxu0 %v589
        %2155 = vmatprep.subr.mxu0 %v602
        %2156 = vmatpush1.msra.mxu0 %v601
        %2157 = vmatprep.subr.mxu0 %v614
        %2158 = vmatpush1.msra.mxu0 %v613
        %2159 = vmatprep.subr.mxu0 %v626
        %2160 = vmatpush1.msra.mxu0 %v625
        %2161 = vmatprep.subr.mxu0 %v638
        %2162 = vmatpush1.msra.mxu0 %v637
        %2163 = vmatprep.subr.mxu0 %v650
        %2164 = vmatpush1.msra.mxu0 %v649
        %2165 = vmatprep.subr.mxu0 %v662
        %2166 = vmatpush1.msra.mxu0 %v661
        %2167 = vmatprep.subr.mxu0 %v674
        %2168 = vmatpush1.msra.mxu0 %v673
        %2169 = vmatprep.subr.mxu0 %v686
        %2170 = vmatpush1.msra.mxu0 %v685
        %2171 = vmatprep.subr.mxu0 %v698
        %2172 = vmatpush1.msra.mxu0 %v697
        %2173 = vmatprep.subr.mxu0 %v710
        %2174 = vmatpush1.msra.mxu0 %v709
        %2175 = vmatprep.subr.mxu0 %v722
        %2176 = vmatpush1.msra.mxu0 %v721
        %2177 = vmatprep.subr.mxu0 %v734
        %2178 = vmatpush1.msra.mxu0 %v733
        %2179 = vmatprep.subr.mxu0 %v746
        %2180 = vmatpush1.msra.mxu0 %v745
        %2181 = vmatprep.subr.mxu0 %v758
        %2182 = vmatpush1.msra.mxu0 %v757
        %2183 = vmatprep.subr.mxu0 %v770
        %2184 = vmatpush1.msra.mxu0 %v769
        %2185 = vmatprep.subr.mxu0 %v782
        %2186 = vmatpush1.msra.mxu0 %v781
        %2187 = vmatprep.subr.mxu0 %v794
        %2188 = vmatpush1.msra.mxu0 %v793
        %2189 = vmatprep.subr.mxu0 %v806
        %2190 = vmatpush1.msra.mxu0 %v805
        %2191 = vmatprep.subr.mxu0 %v818
        %2192 = vmatpush1.msra.mxu0 %v817
        %2193 = vmatprep.subr.mxu0 %v830
        %2194 = vmatpush1.msra.mxu0 %v829
        %2195 = vmatprep.subr.mxu0 %v842
        %2196 = vmatpush1.msra.mxu0 %v841
        %2197 = vmatprep.mubr.f32.mxu0 %v370
        %2198 = vmatmul.mubr.f32.gmra.mrb[0].mxu0 %v369
        %v2199 = vpop.f32.mrb[0].mxu0
        %v2200 = vadd.f32 %v1064, %v2199
        %v2201 = vpop.f32.mrb[0].mxu0
        %v2202 = vadd.f32 %v1068, %v2201
        %2203 = vmatprep.mubr.f32.mxu0 %v373
        %2204 = vmatmul.mubr.f32.gmra.mrb[0].mxu0 %v372
        %v2205 = vpop.f32.mrb[0].mxu0
        %v2206 = vadd.f32 %v1064, %v2205
        %v2207 = vpop.f32.mrb[0].mxu0
        %v2208 = vadd.f32 %v1068, %v2207
        %2209 = vmatprep.mubr.f32.mxu0 %v376
        %2210 = vmatmul.mubr.f32.gmra.mrb[0].mxu0 %v375
        %v2211 = vpop.f32.mrb[0].mxu0
        %v2212 = vadd.f32 %v1064, %v2211
        %v2213 = vpop.f32.mrb[0].mxu0
        %v2214 = vadd.f32 %v1068, %v2213
        %2215 = vmatprep.mubr.f32.mxu0 %v379
        %2216 = vmatmul.mubr.f32.gmra.mrb[0].mxu0 %v378
        %v2217 = vpop.f32.mrb[0].mxu0
        %v2218 = vadd.f32 %v1064, %v2217
        %v2219 = vpop.f32.mrb[0].mxu0
        %v2220 = vadd.f32 %v1068, %v2219
        %2221 = vmatprep.mubr.f32.mxu0 %v382
        %2222 = vmatmul.mubr.f32.gmra.mrb[0].mxu0 %v381
        %v2223 = vpop.f32.mrb[0].mxu0
        %v2224 = vadd.f32 %v1064, %v2223
        %v2225 = vpop.f32.mrb[0].mxu0
        %v2226 = vadd.f32 %v1068, %v2225
        %2227 = vmatprep.mubr.f32.mxu0 %v385
        %2228 = vmatmul.mubr.f32.gmra.mrb[0].mxu0 %v384
        %v2229 = vpop.f32.mrb[0].mxu0
        %v2230 = vadd.f32 %v1064, %v2229
        %v2231 = vpop.f32.mrb[0].mxu0
        %v2232 = vadd.f32 %v1068, %v2231
        %2233 = vmatprep.mubr.f32.mxu0 %v388
        %2234 = vmatmul.mubr.f32.gmra.mrb[0].mxu0 %v387
        %v2235 = vpop.f32.mrb[0].mxu0
        %v2236 = vadd.f32 %v1064, %v2235
        %v2237 = vpop.f32.mrb[0].mxu0
        %v2238 = vadd.f32 %v1068, %v2237
        %2239 = vmatprep.mubr.f32.mxu0 %v391
        %2240 = vmatmul.mubr.f32.gmra.mrb[0].mxu0 %v390
        %v2241 = vpop.f32.mrb[0].mxu0
        %v2242 = vadd.f32 %v1064, %v2241
        %v2243 = vpop.f32.mrb[0].mxu0
        %v2244 = vadd.f32 %v1068, %v2243
        %2245 = vmatprep.mubr.f32.mxu0 %v394
        %2246 = vmatmul.mubr.f32.gmra.mrb[0].mxu0 %v393
        %v2247 = vpop.f32.mrb[0].mxu0
        %v2248 = vadd.f32 %v1064, %v2247
        %v2249 = vpop.f32.mrb[0].mxu0
        %v2250 = vadd.f32 %v1068, %v2249
        %2251 = vmatprep.mubr.f32.mxu0 %v397
        %2252 = vmatmul.mubr.f32.gmra.mrb[0].mxu0 %v396
        %v2253 = vpop.f32.mrb[0].mxu0
        %v2254 = vadd.f32 %v1064, %v2253
        %v2255 = vpop.f32.mrb[0].mxu0
        %v2256 = vadd.f32 %v1068, %v2255
        %2257 = vmatprep.mubr.f32.mxu0 %v400
        %2258 = vmatmul.mubr.f32.gmra.mrb[0].mxu0 %v399
        %v2259 = vpop.f32.mrb[0].mxu0
        %v2260 = vadd.f32 %v1064, %v2259
        %v2261 = vpop.f32.mrb[0].mxu0
        %v2262 = vadd.f32 %v1068, %v2261
        %2263 = vmatprep.mubr.f32.mxu0 %v403
        %2264 = vmatmul.mubr.f32.gmra.mrb[0].mxu0 %v402
        %v2265 = vpop.f32.mrb[0].mxu0
        %v2266 = vadd.f32 %v1064, %v2265
        %v2267 = vpop.f32.mrb[0].mxu0
        %v2268 = vadd.f32 %v1068, %v2267
        %2269 = vmatprep.mubr.f32.mxu0 %v406
        %2270 = vmatmul.mubr.f32.gmra.mrb[0].mxu0 %v405
        %v2271 = vpop.f32.mrb[0].mxu0
        %v2272 = vadd.f32 %v1064, %v2271
        %v2273 = vpop.f32.mrb[0].mxu0
        %v2274 = vadd.f32 %v1068, %v2273
        %2275 = vmatprep.mubr.f32.mxu0 %v409
        %2276 = vmatmul.mubr.f32.gmra.mrb[0].mxu0 %v408
        %v2277 = vpop.f32.mrb[0].mxu0
        %v2278 = vadd.f32 %v1064, %v2277
        %v2279 = vpop.f32.mrb[0].mxu0
        %v2280 = vadd.f32 %v1068, %v2279
        %2281 = vmatprep.mubr.f32.mxu0 %v412
        %2282 = vmatmul.mubr.f32.gmra.mrb[0].mxu0 %v411
        %v2283 = vpop.f32.mrb[0].mxu0
        %v2284 = vadd.f32 %v1064, %v2283
        %v2285 = vpop.f32.mrb[0].mxu0
        %v2286 = vadd.f32 %v1068, %v2285
        %2287 = vmatprep.mubr.f32.mxu0 %v415
        %2288 = vmatmul.mubr.f32.gmra.mrb[0].mxu0 %v414
        %v2289 = vpop.f32.mrb[0].mxu0
        %v2290 = vadd.f32 %v1064, %v2289
        %v2291 = vpop.f32.mrb[0].mxu0
        %v2292 = vadd.f32 %v1068, %v2291
        %2293 = vmatprep.mubr.f32.mxu0 %v418
        %2294 = vmatmul.mubr.f32.gmra.mrb[0].mxu0 %v417
        %v2295 = vpop.f32.mrb[0].mxu0
        %v2296 = vadd.f32 %v1064, %v2295
        %v2297 = vpop.f32.mrb[0].mxu0
        %v2298 = vadd.f32 %v1068, %v2297
        %2299 = vmatprep.mubr.f32.mxu0 %v421
        %2300 = vmatmul.mubr.f32.gmra.mrb[0].mxu0 %v420
        %v2301 = vpop.f32.mrb[0].mxu0
        %v2302 = vadd.f32 %v1064, %v2301
        %v2303 = vpop.f32.mrb[0].mxu0
        %v2304 = vadd.f32 %v1068, %v2303
        %2305 = vmatprep.mubr.f32.mxu0 %v424
        %2306 = vmatmul.mubr.f32.gmra.mrb[0].mxu0 %v423
        %v2307 = vpop.f32.mrb[0].mxu0
        %v2308 = vadd.f32 %v1064, %v2307
        %v2309 = vpop.f32.mrb[0].mxu0
        %v2310 = vadd.f32 %v1068, %v2309
        %2311 = vmatprep.mubr.f32.mxu0 %v427
        %2312 = vmatmul.mubr.f32.gmra.mrb[0].mxu0 %v426
        %v2313 = vpop.f32.mrb[0].mxu0
        %v2314 = vadd.f32 %v1064, %v2313
        %v2315 = vpop.f32.mrb[0].mxu0
        %v2316 = vadd.f32 %v1068, %v2315
        %2317 = vmatprep.mubr.f32.mxu0 %v430
        %2318 = vmatmul.mubr.f32.gmra.mrb[0].mxu0 %v429
        %v2319 = vpop.f32.mrb[0].mxu0
        %v2320 = vadd.f32 %v1064, %v2319
        %v2321 = vpop.f32.mrb[0].mxu0
        %v2322 = vadd.f32 %v1068, %v2321
        %2323 = vmatprep.mubr.f32.mxu0 %v433
        %2324 = vmatmul.mubr.f32.gmra.mrb[0].mxu0 %v432
        %v2325 = vpop.f32.mrb[0].mxu0
        %v2326 = vadd.f32 %v1064, %v2325
        %v2327 = vpop.f32.mrb[0].mxu0
        %v2328 = vadd.f32 %v1068, %v2327
        %2329 = vmatprep.mubr.f32.mxu0 %v436
        %2330 = vmatmul.mubr.f32.gmra.mrb[0].mxu0 %v435
        %v2331 = vpop.f32.mrb[0].mxu0
        %v2332 = vadd.f32 %v1064, %v2331
        %v2333 = vpop.f32.mrb[0].mxu0
        %v2334 = vadd.f32 %v1068, %v2333
        %2335 = vmatprep.mubr.f32.mxu0 %v439
        %2336 = vmatmul.mubr.f32.gmra.mrb[0].mxu0 %v438
        %v2337 = vpop.f32.mrb[0].mxu0
        %v2338 = vadd.f32 %v1064, %v2337
        %v2339 = vpop.f32.mrb[0].mxu0
        %v2340 = vadd.f32 %v1068, %v2339
        %2341 = vmatprep.mubr.f32.mxu0 %v442
        %2342 = vmatmul.mubr.f32.gmra.mrb[0].mxu0 %v441
        %v2343 = vpop.f32.mrb[0].mxu0
        %v2344 = vadd.f32 %v1064, %v2343
        %v2345 = vpop.f32.mrb[0].mxu0
        %v2346 = vadd.f32 %v1068, %v2345
        %2347 = vmatprep.mubr.f32.mxu0 %v445
        %2348 = vmatmul.mubr.f32.gmra.mrb[0].mxu0 %v444
        %v2349 = vpop.f32.mrb[0].mxu0
        %v2350 = vadd.f32 %v1064, %v2349
        %v2351 = vpop.f32.mrb[0].mxu0
        %v2352 = vadd.f32 %v1068, %v2351
        %2353 = vmatprep.mubr.f32.mxu0 %v448
        %2354 = vmatmul.mubr.f32.gmra.mrb[0].mxu0 %v447
        %v2355 = vpop.f32.mrb[0].mxu0
        %v2356 = vadd.f32 %v1064, %v2355
        %v2357 = vpop.f32.mrb[0].mxu0
        %v2358 = vadd.f32 %v1068, %v2357
        %2359 = vmatprep.mubr.f32.mxu0 %v451
        %2360 = vmatmul.mubr.f32.gmra.mrb[0].mxu0 %v450
        %v2361 = vpop.f32.mrb[0].mxu0
        %v2362 = vadd.f32 %v1064, %v2361
        %v2363 = vpop.f32.mrb[0].mxu0
        %v2364 = vadd.f32 %v1068, %v2363
        %2365 = vmatprep.mubr.f32.mxu0 %v454
        %2366 = vmatmul.mubr.f32.gmra.mrb[0].mxu0 %v453
        %v2367 = vpop.f32.mrb[0].mxu0
        %v2368 = vadd.f32 %v1064, %v2367
        %v2369 = vpop.f32.mrb[0].mxu0
        %v2370 = vadd.f32 %v1068, %v2369
        %2371 = vmatprep.mubr.f32.mxu0 %v457
        %2372 = vmatmul.mubr.f32.gmra.mrb[0].mxu0 %v456
        %v2373 = vpop.f32.mrb[0].mxu0
        %v2374 = vadd.f32 %v1064, %v2373
        %v2375 = vpop.f32.mrb[0].mxu0
        %v2376 = vadd.f32 %v1068, %v2375
        %2377 = vmatprep.mubr.f32.mxu0 %v460
        %2378 = vmatmul.mubr.f32.gmra.mrb[0].mxu0 %v459
        %v2379 = vpop.f32.mrb[0].mxu0
        %v2380 = vadd.f32 %v1064, %v2379
        %v2381 = vpop.f32.mrb[0].mxu0
        %v2382 = vadd.f32 %v1068, %v2381
        %2383 = vmatprep.mubr.f32.mxu0 %v463
        %2384 = vmatmul.mubr.f32.gmra.mrb[0].mxu0 %v462
        %v2385 = vpop.f32.mrb[0].mxu0
        %v2386 = vadd.f32 %v1064, %v2385
        %v2387 = vpop.f32.mrb[0].mxu0
        %v2388 = vadd.f32 %v1068, %v2387
        %2389 = vdwg.mxu0
        %2390 = vmatprep.subr.mxu0 %v854
        %2391 = vmatpush1.msra.mxu0 %v853
        %2392 = vmatprep.subr.mxu0 %v866
        %2393 = vmatpush1.msra.mxu0 %v865
        %2394 = vmatprep.subr.mxu0 %v878
        %2395 = vmatpush1.msra.mxu0 %v877
        %2396 = vmatprep.subr.mxu0 %v890
        %2397 = vmatpush1.msra.mxu0 %v889
        %2398 = vmatprep.subr.mxu0 %v902
        %2399 = vmatpush1.msra.mxu0 %v901
        %2400 = vmatprep.subr.mxu0 %v914
        %2401 = vmatpush1.msra.mxu0 %v913
        %2402 = vmatprep.subr.mxu0 %v926
        %2403 = vmatpush1.msra.mxu0 %v925
        %2404 = vmatprep.subr.mxu0 %v938
        %2405 = vmatpush1.msra.mxu0 %v937
        %2406 = vmatprep.subr.mxu0 %v950
        %2407 = vmatpush1.msra.mxu0 %v949
        %2408 = vmatprep.subr.mxu0 %v962
        %2409 = vmatpush1.msra.mxu0 %v961
        %2410 = vmatprep.subr.mxu0 %v974
        %2411 = vmatpush1.msra.mxu0 %v973
        %2412 = vmatprep.subr.mxu0 %v986
        %2413 = vmatpush1.msra.mxu0 %v985
        %2414 = vmatprep.subr.mxu0 %v998
        %2415 = vmatpush1.msra.mxu0 %v997
        %2416 = vmatprep.subr.mxu0 %v1010
        %2417 = vmatpush1.msra.mxu0 %v1009
        %2418 = vmatprep.subr.mxu0 %v1022
        %2419 = vmatpush1.msra.mxu0 %v1021
        %2420 = vmatprep.subr.mxu0 %v1034
        %2421 = vmatpush1.msra.mxu0 %v1033
        %2422 = vmatprep.subr.mxu0 0.0
        %2423 = vmatpush1.msra.mxu0 0.0
        %2424 = vmatprep.subr.mxu0 0.0
        %2425 = vmatpush1.msra.mxu0 0.0
        %2426 = vmatprep.subr.mxu0 0.0
        %2427 = vmatpush1.msra.mxu0 0.0
        %2428 = vmatprep.subr.mxu0 0.0
        %2429 = vmatpush1.msra.mxu0 0.0
        %2430 = vmatprep.subr.mxu0 0.0
        %2431 = vmatpush1.msra.mxu0 0.0
        %2432 = vmatprep.subr.mxu0 0.0
        %2433 = vmatpush1.msra.mxu0 0.0
        %2434 = vmatprep.subr.mxu0 0.0
        %2435 = vmatpush1.msra.mxu0 0.0
        %2436 = vmatprep.subr.mxu0 0.0
        %2437 = vmatpush1.msra.mxu0 0.0
        %2438 = vmatprep.subr.mxu0 0.0
        %2439 = vmatpush1.msra.mxu0 0.0
        %2440 = vmatprep.subr.mxu0 0.0
        %2441 = vmatpush1.msra.mxu0 0.0
        %2442 = vmatprep.subr.mxu0 0.0
        %2443 = vmatpush1.msra.mxu0 0.0
        %2444 = vmatprep.subr.mxu0 0.0
        %2445 = vmatpush1.msra.mxu0 0.0
        %2446 = vmatprep.subr.mxu0 0.0
        %2447 = vmatpush1.msra.mxu0 0.0
        %2448 = vmatprep.subr.mxu0 0.0
        %2449 = vmatpush1.msra.mxu0 0.0
        %2450 = vmatprep.subr.mxu0 0.0
        %2451 = vmatpush1.msra.mxu0 0.0
        %2452 = vmatprep.subr.mxu0 0.0
        %2453 = vmatpush1.msra.mxu0 0.0
        %2454 = vmatprep.mubr.f32.mxu0 0.0
        %2455 = vmatmul.mubr.f32.gmra.mrb[0].mxu0 %v371
        %v2456 = vpop.f32.mrb[0].mxu0
        %v2457 = vadd.f32 %v2200, %v2456
        %v2458 = vpop.f32.mrb[0].mxu0
        %v2459 = vadd.f32 %v2202, %v2458
        %2460 = vmatprep.mubr.f32.mxu0 0.0
        %2461 = vmatmul.mubr.f32.gmra.mrb[0].mxu0 %v374
        %v2462 = vpop.f32.mrb[0].mxu0
        %v2463 = vadd.f32 %v2206, %v2462
        %v2464 = vpop.f32.mrb[0].mxu0
        %v2465 = vadd.f32 %v2208, %v2464
        %2466 = vmatprep.mubr.f32.mxu0 0.0
        %2467 = vmatmul.mubr.f32.gmra.mrb[0].mxu0 %v377
        %v2468 = vpop.f32.mrb[0].mxu0
        %v2469 = vadd.f32 %v2212, %v2468
        %v2470 = vpop.f32.mrb[0].mxu0
        %v2471 = vadd.f32 %v2214, %v2470
        %2472 = vmatprep.mubr.f32.mxu0 0.0
        %2473 = vmatmul.mubr.f32.gmra.mrb[0].mxu0 %v380
        %v2474 = vpop.f32.mrb[0].mxu0
        %v2475 = vadd.f32 %v2218, %v2474
        %v2476 = vpop.f32.mrb[0].mxu0
        %v2477 = vadd.f32 %v2220, %v2476
        %2478 = vmatprep.mubr.f32.mxu0 0.0
        %2479 = vmatmul.mubr.f32.gmra.mrb[0].mxu0 %v383
        %v2480 = vpop.f32.mrb[0].mxu0
        %v2481 = vadd.f32 %v2224, %v2480
        %v2482 = vpop.f32.mrb[0].mxu0
        %v2483 = vadd.f32 %v2226, %v2482
        %2484 = vmatprep.mubr.f32.mxu0 0.0
        %2485 = vmatmul.mubr.f32.gmra.mrb[0].mxu0 %v386
        %v2486 = vpop.f32.mrb[0].mxu0
        %v2487 = vadd.f32 %v2230, %v2486
        %v2488 = vpop.f32.mrb[0].mxu0
        %v2489 = vadd.f32 %v2232, %v2488
        %2490 = vmatprep.mubr.f32.mxu0 0.0
        %2491 = vmatmul.mubr.f32.gmra.mrb[0].mxu0 %v389
        %v2492 = vpop.f32.mrb[0].mxu0
        %v2493 = vadd.f32 %v2236, %v2492
        %v2494 = vpop.f32.mrb[0].mxu0
        %v2495 = vadd.f32 %v2238, %v2494
        %2496 = vmatprep.mubr.f32.mxu0 0.0
        %2497 = vmatmul.mubr.f32.gmra.mrb[0].mxu0 %v392
        %v2498 = vpop.f32.mrb[0].mxu0
        %v2499 = vadd.f32 %v2242, %v2498
        %v2500 = vpop.f32.mrb[0].mxu0
        %v2501 = vadd.f32 %v2244, %v2500
        %2502 = vmatprep.mubr.f32.mxu0 0.0
        %2503 = vmatmul.mubr.f32.gmra.mrb[0].mxu0 %v395
        %v2504 = vpop.f32.mrb[0].mxu0
        %v2505 = vadd.f32 %v2248, %v2504
        %v2506 = vpop.f32.mrb[0].mxu0
        %v2507 = vadd.f32 %v2250, %v2506
        %2508 = vmatprep.mubr.f32.mxu0 0.0
        %2509 = vmatmul.mubr.f32.gmra.mrb[0].mxu0 %v398
        %v2510 = vpop.f32.mrb[0].mxu0
        %v2511 = vadd.f32 %v2254, %v2510
        %v2512 = vpop.f32.mrb[0].mxu0
        %v2513 = vadd.f32 %v2256, %v2512
        %2514 = vmatprep.mubr.f32.mxu0 0.0
        %2515 = vmatmul.mubr.f32.gmra.mrb[0].mxu0 %v401
        %v2516 = vpop.f32.mrb[0].mxu0
        %v2517 = vadd.f32 %v2260, %v2516
        %v2518 = vpop.f32.mrb[0].mxu0
        %v2519 = vadd.f32 %v2262, %v2518
        %2520 = vmatprep.mubr.f32.mxu0 0.0
        %2521 = vmatmul.mubr.f32.gmra.mrb[0].mxu0 %v404
        %v2522 = vpop.f32.mrb[0].mxu0
        %v2523 = vadd.f32 %v2266, %v2522
        %v2524 = vpop.f32.mrb[0].mxu0
        %v2525 = vadd.f32 %v2268, %v2524
        %2526 = vmatprep.mubr.f32.mxu0 0.0
        %2527 = vmatmul.mubr.f32.gmra.mrb[0].mxu0 %v407
        %v2528 = vpop.f32.mrb[0].mxu0
        %v2529 = vadd.f32 %v2272, %v2528
        %v2530 = vpop.f32.mrb[0].mxu0
        %v2531 = vadd.f32 %v2274, %v2530
        %2532 = vmatprep.mubr.f32.mxu0 0.0
        %2533 = vmatmul.mubr.f32.gmra.mrb[0].mxu0 %v410
        %v2534 = vpop.f32.mrb[0].mxu0
        %v2535 = vadd.f32 %v2278, %v2534
        %v2536 = vpop.f32.mrb[0].mxu0
        %v2537 = vadd.f32 %v2280, %v2536
        %2538 = vmatprep.mubr.f32.mxu0 0.0
        %2539 = vmatmul.mubr.f32.gmra.mrb[0].mxu0 %v413
        %v2540 = vpop.f32.mrb[0].mxu0
        %v2541 = vadd.f32 %v2284, %v2540
        %v2542 = vpop.f32.mrb[0].mxu0
        %v2543 = vadd.f32 %v2286, %v2542
        %2544 = vmatprep.mubr.f32.mxu0 0.0
        %2545 = vmatmul.mubr.f32.gmra.mrb[0].mxu0 %v416
        %v2546 = vpop.f32.mrb[0].mxu0
        %v2547 = vadd.f32 %v2290, %v2546
        %v2548 = vpop.f32.mrb[0].mxu0
        %v2549 = vadd.f32 %v2292, %v2548
        %2550 = vmatprep.mubr.f32.mxu0 0.0
        %2551 = vmatmul.mubr.f32.gmra.mrb[0].mxu0 %v419
        %v2552 = vpop.f32.mrb[0].mxu0
        %v2553 = vadd.f32 %v2296, %v2552
        %v2554 = vpop.f32.mrb[0].mxu0
        %v2555 = vadd.f32 %v2298, %v2554
        %2556 = vmatprep.mubr.f32.mxu0 0.0
        %2557 = vmatmul.mubr.f32.gmra.mrb[0].mxu0 %v422
        %v2558 = vpop.f32.mrb[0].mxu0
        %v2559 = vadd.f32 %v2302, %v2558
        %v2560 = vpop.f32.mrb[0].mxu0
        %v2561 = vadd.f32 %v2304, %v2560
        %2562 = vmatprep.mubr.f32.mxu0 0.0
        %2563 = vmatmul.mubr.f32.gmra.mrb[0].mxu0 %v425
        %v2564 = vpop.f32.mrb[0].mxu0
        %v2565 = vadd.f32 %v2308, %v2564
        %v2566 = vpop.f32.mrb[0].mxu0
        %v2567 = vadd.f32 %v2310, %v2566
        %2568 = vmatprep.mubr.f32.mxu0 0.0
        %2569 = vmatmul.mubr.f32.gmra.mrb[0].mxu0 %v428
        %v2570 = vpop.f32.mrb[0].mxu0
        %v2571 = vadd.f32 %v2314, %v2570
        %v2572 = vpop.f32.mrb[0].mxu0
        %v2573 = vadd.f32 %v2316, %v2572
        %2574 = vmatprep.mubr.f32.mxu0 0.0
        %2575 = vmatmul.mubr.f32.gmra.mrb[0].mxu0 %v431
        %v2576 = vpop.f32.mrb[0].mxu0
        %v2577 = vadd.f32 %v2320, %v2576
        %v2578 = vpop.f32.mrb[0].mxu0
        %v2579 = vadd.f32 %v2322, %v2578
        %2580 = vmatprep.mubr.f32.mxu0 0.0
        %2581 = vmatmul.mubr.f32.gmra.mrb[0].mxu0 %v434
        %v2582 = vpop.f32.mrb[0].mxu0
        %v2583 = vadd.f32 %v2326, %v2582
        %v2584 = vpop.f32.mrb[0].mxu0
        %v2585 = vadd.f32 %v2328, %v2584
        %2586 = vmatprep.mubr.f32.mxu0 0.0
        %2587 = vmatmul.mubr.f32.gmra.mrb[0].mxu0 %v437
        %v2588 = vpop.f32.mrb[0].mxu0
        %v2589 = vadd.f32 %v2332, %v2588
        %v2590 = vpop.f32.mrb[0].mxu0
        %v2591 = vadd.f32 %v2334, %v2590
        %2592 = vmatprep.mubr.f32.mxu0 0.0
        %2593 = vmatmul.mubr.f32.gmra.mrb[0].mxu0 %v440
        %v2594 = vpop.f32.mrb[0].mxu0
        %v2595 = vadd.f32 %v2338, %v2594
        %v2596 = vpop.f32.mrb[0].mxu0
        %v2597 = vadd.f32 %v2340, %v2596
        %2598 = vmatprep.mubr.f32.mxu0 0.0
        %2599 = vmatmul.mubr.f32.gmra.mrb[0].mxu0 %v443
        %v2600 = vpop.f32.mrb[0].mxu0
        %v2601 = vadd.f32 %v2344, %v2600
        %v2602 = vpop.f32.mrb[0].mxu0
        %v2603 = vadd.f32 %v2346, %v2602
        %2604 = vmatprep.mubr.f32.mxu0 0.0
        %2605 = vmatmul.mubr.f32.gmra.mrb[0].mxu0 %v446
        %v2606 = vpop.f32.mrb[0].mxu0
        %v2607 = vadd.f32 %v2350, %v2606
        %v2608 = vpop.f32.mrb[0].mxu0
        %v2609 = vadd.f32 %v2352, %v2608
        %2610 = vmatprep.mubr.f32.mxu0 0.0
        %2611 = vmatmul.mubr.f32.gmra.mrb[0].mxu0 %v449
        %v2612 = vpop.f32.mrb[0].mxu0
        %v2613 = vadd.f32 %v2356, %v2612
        %v2614 = vpop.f32.mrb[0].mxu0
        %v2615 = vadd.f32 %v2358, %v2614
        %2616 = vmatprep.mubr.f32.mxu0 0.0
        %2617 = vmatmul.mubr.f32.gmra.mrb[0].mxu0 %v452
        %v2618 = vpop.f32.mrb[0].mxu0
        %v2619 = vadd.f32 %v2362, %v2618
        %v2620 = vpop.f32.mrb[0].mxu0
        %v2621 = vadd.f32 %v2364, %v2620
        %2622 = vmatprep.mubr.f32.mxu0 0.0
        %2623 = vmatmul.mubr.f32.gmra.mrb[0].mxu0 %v455
        %v2624 = vpop.f32.mrb[0].mxu0
        %v2625 = vadd.f32 %v2368, %v2624
        %v2626 = vpop.f32.mrb[0].mxu0
        %v2627 = vadd.f32 %v2370, %v2626
        %2628 = vmatprep.mubr.f32.mxu0 0.0
        %2629 = vmatmul.mubr.f32.gmra.mrb[0].mxu0 %v458
        %v2630 = vpop.f32.mrb[0].mxu0
        %v2631 = vadd.f32 %v2374, %v2630
        %v2632 = vpop.f32.mrb[0].mxu0
        %v2633 = vadd.f32 %v2376, %v2632
        %2634 = vmatprep.mubr.f32.mxu0 0.0
        %2635 = vmatmul.mubr.f32.gmra.mrb[0].mxu0 %v461
        %v2636 = vpop.f32.mrb[0].mxu0
        %v2637 = vadd.f32 %v2380, %v2636
        %v2638 = vpop.f32.mrb[0].mxu0
        %v2639 = vadd.f32 %v2382, %v2638
        %2640 = vmatprep.mubr.f32.mxu0 0.0
        %2641 = vmatmul.mubr.f32.gmra.mrb[0].mxu0 %v464
        %v2642 = vpop.f32.mrb[0].mxu0
        %v2643 = vadd.f32 %v2386, %v2642
        %v2644 = vpop.f32.mrb[0].mxu0
        %v2645 = vadd.f32 %v2388, %v2644
        %2646 = vdwg.mxu0
        %2647 = vmatprep.subr.mxu0 %v472
        %2648 = vmatpush1.msra.mxu0 %v471
        %2649 = vmatprep.subr.mxu0 %v484
        %2650 = vmatpush1.msra.mxu0 %v483
        %2651 = vmatprep.subr.mxu0 %v496
        %2652 = vmatpush1.msra.mxu0 %v495
        %2653 = vmatprep.subr.mxu0 %v508
        %2654 = vmatpush1.msra.mxu0 %v507
        %2655 = vmatprep.subr.mxu0 %v520
        %2656 = vmatpush1.msra.mxu0 %v519
        %2657 = vmatprep.subr.mxu0 %v532
        %2658 = vmatpush1.msra.mxu0 %v531
        %2659 = vmatprep.subr.mxu0 %v544
        %2660 = vmatpush1.msra.mxu0 %v543
        %2661 = vmatprep.subr.mxu0 %v556
        %2662 = vmatpush1.msra.mxu0 %v555
        %2663 = vmatprep.subr.mxu0 %v568
        %2664 = vmatpush1.msra.mxu0 %v567
        %2665 = vmatprep.subr.mxu0 %v580
        %2666 = vmatpush1.msra.mxu0 %v579
        %2667 = vmatprep.subr.mxu0 %v592
        %2668 = vmatpush1.msra.mxu0 %v591
        %2669 = vmatprep.subr.mxu0 %v604
        %2670 = vmatpush1.msra.mxu0 %v603
        %2671 = vmatprep.subr.mxu0 %v616
        %2672 = vmatpush1.msra.mxu0 %v615
        %2673 = vmatprep.subr.mxu0 %v628
        %2674 = vmatpush1.msra.mxu0 %v627
        %2675 = vmatprep.subr.mxu0 %v640
        %2676 = vmatpush1.msra.mxu0 %v639
        %2677 = vmatprep.subr.mxu0 %v652
        %2678 = vmatpush1.msra.mxu0 %v651
        %2679 = vmatprep.subr.mxu0 %v664
        %2680 = vmatpush1.msra.mxu0 %v663
        %2681 = vmatprep.subr.mxu0 %v676
        %2682 = vmatpush1.msra.mxu0 %v675
        %2683 = vmatprep.subr.mxu0 %v688
        %2684 = vmatpush1.msra.mxu0 %v687
        %2685 = vmatprep.subr.mxu0 %v700
        %2686 = vmatpush1.msra.mxu0 %v699
        %2687 = vmatprep.subr.mxu0 %v712
        %2688 = vmatpush1.msra.mxu0 %v711
        %2689 = vmatprep.subr.mxu0 %v724
        %2690 = vmatpush1.msra.mxu0 %v723
        %2691 = vmatprep.subr.mxu0 %v736
        %2692 = vmatpush1.msra.mxu0 %v735
        %2693 = vmatprep.subr.mxu0 %v748
        %2694 = vmatpush1.msra.mxu0 %v747
        %2695 = vmatprep.subr.mxu0 %v760
        %2696 = vmatpush1.msra.mxu0 %v759
        %2697 = vmatprep.subr.mxu0 %v772
        %2698 = vmatpush1.msra.mxu0 %v771
        %2699 = vmatprep.subr.mxu0 %v784
        %2700 = vmatpush1.msra.mxu0 %v783
        %2701 = vmatprep.subr.mxu0 %v796
        %2702 = vmatpush1.msra.mxu0 %v795
        %2703 = vmatprep.subr.mxu0 %v808
        %2704 = vmatpush1.msra.mxu0 %v807
        %2705 = vmatprep.subr.mxu0 %v820
        %2706 = vmatpush1.msra.mxu0 %v819
        %2707 = vmatprep.subr.mxu0 %v832
        %2708 = vmatpush1.msra.mxu0 %v831
        %2709 = vmatprep.subr.mxu0 %v844
        %2710 = vmatpush1.msra.mxu0 %v843
        %2711 = vmatprep.mubr.f32.mxu0 %v370
        %2712 = vmatmul.mubr.f32.gmra.mrb[0].mxu0 %v369
        %v2713 = vpop.f32.mrb[0].mxu0
        %v2714 = vadd.f32 %v1072, %v2713
        %v2715 = vpop.f32.mrb[0].mxu0
        %v2716 = vadd.f32 %v1076, %v2715
        %2717 = vmatprep.mubr.f32.mxu0 %v373
        %2718 = vmatmul.mubr.f32.gmra.mrb[0].mxu0 %v372
        %v2719 = vpop.f32.mrb[0].mxu0
        %v2720 = vadd.f32 %v1072, %v2719
        %v2721 = vpop.f32.mrb[0].mxu0
        %v2722 = vadd.f32 %v1076, %v2721
        %2723 = vmatprep.mubr.f32.mxu0 %v376
        %2724 = vmatmul.mubr.f32.gmra.mrb[0].mxu0 %v375
        %v2725 = vpop.f32.mrb[0].mxu0
        %v2726 = vadd.f32 %v1072, %v2725
        %v2727 = vpop.f32.mrb[0].mxu0
        %v2728 = vadd.f32 %v1076, %v2727
        %2729 = vmatprep.mubr.f32.mxu0 %v379
        %2730 = vmatmul.mubr.f32.gmra.mrb[0].mxu0 %v378
        %v2731 = vpop.f32.mrb[0].mxu0
        %v2732 = vadd.f32 %v1072, %v2731
        %v2733 = vpop.f32.mrb[0].mxu0
        %v2734 = vadd.f32 %v1076, %v2733
        %2735 = vmatprep.mubr.f32.mxu0 %v382
        %2736 = vmatmul.mubr.f32.gmra.mrb[0].mxu0 %v381
        %v2737 = vpop.f32.mrb[0].mxu0
        %v2738 = vadd.f32 %v1072, %v2737
        %v2739 = vpop.f32.mrb[0].mxu0
        %v2740 = vadd.f32 %v1076, %v2739
        %2741 = vmatprep.mubr.f32.mxu0 %v385
        %2742 = vmatmul.mubr.f32.gmra.mrb[0].mxu0 %v384
        %v2743 = vpop.f32.mrb[0].mxu0
        %v2744 = vadd.f32 %v1072, %v2743
        %v2745 = vpop.f32.mrb[0].mxu0
        %v2746 = vadd.f32 %v1076, %v2745
        %2747 = vmatprep.mubr.f32.mxu0 %v388
        %2748 = vmatmul.mubr.f32.gmra.mrb[0].mxu0 %v387
        %v2749 = vpop.f32.mrb[0].mxu0
        %v2750 = vadd.f32 %v1072, %v2749
        %v2751 = vpop.f32.mrb[0].mxu0
        %v2752 = vadd.f32 %v1076, %v2751
        %2753 = vmatprep.mubr.f32.mxu0 %v391
        %2754 = vmatmul.mubr.f32.gmra.mrb[0].mxu0 %v390
        %v2755 = vpop.f32.mrb[0].mxu0
        %v2756 = vadd.f32 %v1072, %v2755
        %v2757 = vpop.f32.mrb[0].mxu0
        %v2758 = vadd.f32 %v1076, %v2757
        %2759 = vmatprep.mubr.f32.mxu0 %v394
        %2760 = vmatmul.mubr.f32.gmra.mrb[0].mxu0 %v393
        %v2761 = vpop.f32.mrb[0].mxu0
        %v2762 = vadd.f32 %v1072, %v2761
        %v2763 = vpop.f32.mrb[0].mxu0
        %v2764 = vadd.f32 %v1076, %v2763
        %2765 = vmatprep.mubr.f32.mxu0 %v397
        %2766 = vmatmul.mubr.f32.gmra.mrb[0].mxu0 %v396
        %v2767 = vpop.f32.mrb[0].mxu0
        %v2768 = vadd.f32 %v1072, %v2767
        %v2769 = vpop.f32.mrb[0].mxu0
        %v2770 = vadd.f32 %v1076, %v2769
        %2771 = vmatprep.mubr.f32.mxu0 %v400
        %2772 = vmatmul.mubr.f32.gmra.mrb[0].mxu0 %v399
        %v2773 = vpop.f32.mrb[0].mxu0
        %v2774 = vadd.f32 %v1072, %v2773
        %v2775 = vpop.f32.mrb[0].mxu0
        %v2776 = vadd.f32 %v1076, %v2775
        %2777 = vmatprep.mubr.f32.mxu0 %v403
        %2778 = vmatmul.mubr.f32.gmra.mrb[0].mxu0 %v402
        %v2779 = vpop.f32.mrb[0].mxu0
        %v2780 = vadd.f32 %v1072, %v2779
        %v2781 = vpop.f32.mrb[0].mxu0
        %v2782 = vadd.f32 %v1076, %v2781
        %2783 = vmatprep.mubr.f32.mxu0 %v406
        %2784 = vmatmul.mubr.f32.gmra.mrb[0].mxu0 %v405
        %v2785 = vpop.f32.mrb[0].mxu0
        %v2786 = vadd.f32 %v1072, %v2785
        %v2787 = vpop.f32.mrb[0].mxu0
        %v2788 = vadd.f32 %v1076, %v2787
        %2789 = vmatprep.mubr.f32.mxu0 %v409
        %2790 = vmatmul.mubr.f32.gmra.mrb[0].mxu0 %v408
        %v2791 = vpop.f32.mrb[0].mxu0
        %v2792 = vadd.f32 %v1072, %v2791
        %v2793 = vpop.f32.mrb[0].mxu0
        %v2794 = vadd.f32 %v1076, %v2793
        %2795 = vmatprep.mubr.f32.mxu0 %v412
        %2796 = vmatmul.mubr.f32.gmra.mrb[0].mxu0 %v411
        %v2797 = vpop.f32.mrb[0].mxu0
        %v2798 = vadd.f32 %v1072, %v2797
        %v2799 = vpop.f32.mrb[0].mxu0
        %v2800 = vadd.f32 %v1076, %v2799
        %2801 = vmatprep.mubr.f32.mxu0 %v415
        %2802 = vmatmul.mubr.f32.gmra.mrb[0].mxu0 %v414
        %v2803 = vpop.f32.mrb[0].mxu0
        %v2804 = vadd.f32 %v1072, %v2803
        %v2805 = vpop.f32.mrb[0].mxu0
        %v2806 = vadd.f32 %v1076, %v2805
        %2807 = vmatprep.mubr.f32.mxu0 %v418
        %2808 = vmatmul.mubr.f32.gmra.mrb[0].mxu0 %v417
        %v2809 = vpop.f32.mrb[0].mxu0
        %v2810 = vadd.f32 %v1072, %v2809
        %v2811 = vpop.f32.mrb[0].mxu0
        %v2812 = vadd.f32 %v1076, %v2811
        %2813 = vmatprep.mubr.f32.mxu0 %v421
        %2814 = vmatmul.mubr.f32.gmra.mrb[0].mxu0 %v420
        %v2815 = vpop.f32.mrb[0].mxu0
        %v2816 = vadd.f32 %v1072, %v2815
        %v2817 = vpop.f32.mrb[0].mxu0
        %v2818 = vadd.f32 %v1076, %v2817
        %2819 = vmatprep.mubr.f32.mxu0 %v424
        %2820 = vmatmul.mubr.f32.gmra.mrb[0].mxu0 %v423
        %v2821 = vpop.f32.mrb[0].mxu0
        %v2822 = vadd.f32 %v1072, %v2821
        %v2823 = vpop.f32.mrb[0].mxu0
        %v2824 = vadd.f32 %v1076, %v2823
        %2825 = vmatprep.mubr.f32.mxu0 %v427
        %2826 = vmatmul.mubr.f32.gmra.mrb[0].mxu0 %v426
        %v2827 = vpop.f32.mrb[0].mxu0
        %v2828 = vadd.f32 %v1072, %v2827
        %v2829 = vpop.f32.mrb[0].mxu0
        %v2830 = vadd.f32 %v1076, %v2829
        %2831 = vmatprep.mubr.f32.mxu0 %v430
        %2832 = vmatmul.mubr.f32.gmra.mrb[0].mxu0 %v429
        %v2833 = vpop.f32.mrb[0].mxu0
        %v2834 = vadd.f32 %v1072, %v2833
        %v2835 = vpop.f32.mrb[0].mxu0
        %v2836 = vadd.f32 %v1076, %v2835
        %2837 = vmatprep.mubr.f32.mxu0 %v433
        %2838 = vmatmul.mubr.f32.gmra.mrb[0].mxu0 %v432
        %v2839 = vpop.f32.mrb[0].mxu0
        %v2840 = vadd.f32 %v1072, %v2839
        %v2841 = vpop.f32.mrb[0].mxu0
        %v2842 = vadd.f32 %v1076, %v2841
        %2843 = vmatprep.mubr.f32.mxu0 %v436
        %2844 = vmatmul.mubr.f32.gmra.mrb[0].mxu0 %v435
        %v2845 = vpop.f32.mrb[0].mxu0
        %v2846 = vadd.f32 %v1072, %v2845
        %v2847 = vpop.f32.mrb[0].mxu0
        %v2848 = vadd.f32 %v1076, %v2847
        %2849 = vmatprep.mubr.f32.mxu0 %v439
        %2850 = vmatmul.mubr.f32.gmra.mrb[0].mxu0 %v438
        %v2851 = vpop.f32.mrb[0].mxu0
        %v2852 = vadd.f32 %v1072, %v2851
        %v2853 = vpop.f32.mrb[0].mxu0
        %v2854 = vadd.f32 %v1076, %v2853
        %2855 = vmatprep.mubr.f32.mxu0 %v442
        %2856 = vmatmul.mubr.f32.gmra.mrb[0].mxu0 %v441
        %v2857 = vpop.f32.mrb[0].mxu0
        %v2858 = vadd.f32 %v1072, %v2857
        %v2859 = vpop.f32.mrb[0].mxu0
        %v2860 = vadd.f32 %v1076, %v2859
        %2861 = vmatprep.mubr.f32.mxu0 %v445
        %2862 = vmatmul.mubr.f32.gmra.mrb[0].mxu0 %v444
        %v2863 = vpop.f32.mrb[0].mxu0
        %v2864 = vadd.f32 %v1072, %v2863
        %v2865 = vpop.f32.mrb[0].mxu0
        %v2866 = vadd.f32 %v1076, %v2865
        %2867 = vmatprep.mubr.f32.mxu0 %v448
        %2868 = vmatmul.mubr.f32.gmra.mrb[0].mxu0 %v447
        %v2869 = vpop.f32.mrb[0].mxu0
        %v2870 = vadd.f32 %v1072, %v2869
        %v2871 = vpop.f32.mrb[0].mxu0
        %v2872 = vadd.f32 %v1076, %v2871
        %2873 = vmatprep.mubr.f32.mxu0 %v451
        %2874 = vmatmul.mubr.f32.gmra.mrb[0].mxu0 %v450
        %v2875 = vpop.f32.mrb[0].mxu0
        %v2876 = vadd.f32 %v1072, %v2875
        %v2877 = vpop.f32.mrb[0].mxu0
        %v2878 = vadd.f32 %v1076, %v2877
        %2879 = vmatprep.mubr.f32.mxu0 %v454
        %2880 = vmatmul.mubr.f32.gmra.mrb[0].mxu0 %v453
        %v2881 = vpop.f32.mrb[0].mxu0
        %v2882 = vadd.f32 %v1072, %v2881
        %v2883 = vpop.f32.mrb[0].mxu0
        %v2884 = vadd.f32 %v1076, %v2883
        %2885 = vmatprep.mubr.f32.mxu0 %v457
        %2886 = vmatmul.mubr.f32.gmra.mrb[0].mxu0 %v456
        %v2887 = vpop.f32.mrb[0].mxu0
        %v2888 = vadd.f32 %v1072, %v2887
        %v2889 = vpop.f32.mrb[0].mxu0
        %v2890 = vadd.f32 %v1076, %v2889
        %2891 = vmatprep.mubr.f32.mxu0 %v460
        %2892 = vmatmul.mubr.f32.gmra.mrb[0].mxu0 %v459
        %v2893 = vpop.f32.mrb[0].mxu0
        %v2894 = vadd.f32 %v1072, %v2893
        %v2895 = vpop.f32.mrb[0].mxu0
        %v2896 = vadd.f32 %v1076, %v2895
        %2897 = vmatprep.mubr.f32.mxu0 %v463
        %2898 = vmatmul.mubr.f32.gmra.mrb[0].mxu0 %v462
        %v2899 = vpop.f32.mrb[0].mxu0
        %v2900 = vadd.f32 %v1072, %v2899
        %v2901 = vpop.f32.mrb[0].mxu0
        %v2902 = vadd.f32 %v1076, %v2901
        %2903 = vdwg.mxu0
        %2904 = vmatprep.subr.mxu0 %v856
        %2905 = vmatpush1.msra.mxu0 %v855
        %2906 = vmatprep.subr.mxu0 %v868
        %2907 = vmatpush1.msra.mxu0 %v867
        %2908 = vmatprep.subr.mxu0 %v880
        %2909 = vmatpush1.msra.mxu0 %v879
        %2910 = vmatprep.subr.mxu0 %v892
        %2911 = vmatpush1.msra.mxu0 %v891
        %2912 = vmatprep.subr.mxu0 %v904
        %2913 = vmatpush1.msra.mxu0 %v903
        %2914 = vmatprep.subr.mxu0 %v916
        %2915 = vmatpush1.msra.mxu0 %v915
        %2916 = vmatprep.subr.mxu0 %v928
        %2917 = vmatpush1.msra.mxu0 %v927
        %2918 = vmatprep.subr.mxu0 %v940
        %2919 = vmatpush1.msra.mxu0 %v939
        %2920 = vmatprep.subr.mxu0 %v952
        %2921 = vmatpush1.msra.mxu0 %v951
        %2922 = vmatprep.subr.mxu0 %v964
        %2923 = vmatpush1.msra.mxu0 %v963
        %2924 = vmatprep.subr.mxu0 %v976
        %2925 = vmatpush1.msra.mxu0 %v975
        %2926 = vmatprep.subr.mxu0 %v988
        %2927 = vmatpush1.msra.mxu0 %v987
        %2928 = vmatprep.subr.mxu0 %v1000
        %2929 = vmatpush1.msra.mxu0 %v999
        %2930 = vmatprep.subr.mxu0 %v1012
        %2931 = vmatpush1.msra.mxu0 %v1011
        %2932 = vmatprep.subr.mxu0 %v1024
        %2933 = vmatpush1.msra.mxu0 %v1023
        %2934 = vmatprep.subr.mxu0 %v1036
        %2935 = vmatpush1.msra.mxu0 %v1035
        %2936 = vmatprep.subr.mxu0 0.0
        %2937 = vmatpush1.msra.mxu0 0.0
        %2938 = vmatprep.subr.mxu0 0.0
        %2939 = vmatpush1.msra.mxu0 0.0
        %2940 = vmatprep.subr.mxu0 0.0
        %2941 = vmatpush1.msra.mxu0 0.0
        %2942 = vmatprep.subr.mxu0 0.0
        %2943 = vmatpush1.msra.mxu0 0.0
        %2944 = vmatprep.subr.mxu0 0.0
        %2945 = vmatpush1.msra.mxu0 0.0
        %2946 = vmatprep.subr.mxu0 0.0
        %2947 = vmatpush1.msra.mxu0 0.0
        %2948 = vmatprep.subr.mxu0 0.0
        %2949 = vmatpush1.msra.mxu0 0.0
        %2950 = vmatprep.subr.mxu0 0.0
        %2951 = vmatpush1.msra.mxu0 0.0
        %2952 = vmatprep.subr.mxu0 0.0
        %2953 = vmatpush1.msra.mxu0 0.0
        %2954 = vmatprep.subr.mxu0 0.0
        %2955 = vmatpush1.msra.mxu0 0.0
        %2956 = vmatprep.subr.mxu0 0.0
        %2957 = vmatpush1.msra.mxu0 0.0
        %2958 = vmatprep.subr.mxu0 0.0
        %2959 = vmatpush1.msra.mxu0 0.0
        %2960 = vmatprep.subr.mxu0 0.0
        %2961 = vmatpush1.msra.mxu0 0.0
        %2962 = vmatprep.subr.mxu0 0.0
        %2963 = vmatpush1.msra.mxu0 0.0
        %2964 = vmatprep.subr.mxu0 0.0
        %2965 = vmatpush1.msra.mxu0 0.0
        %2966 = vmatprep.subr.mxu0 0.0
        %2967 = vmatpush1.msra.mxu0 0.0
        %2968 = vmatprep.mubr.f32.mxu0 0.0
        %2969 = vmatmul.mubr.f32.gmra.mrb[0].mxu0 %v371
        %v2970 = vpop.f32.mrb[0].mxu0
        %v2971 = vadd.f32 %v2714, %v2970
        %v2972 = vpop.f32.mrb[0].mxu0
        %v2973 = vadd.f32 %v2716, %v2972
        %2974 = vmatprep.mubr.f32.mxu0 0.0
        %2975 = vmatmul.mubr.f32.gmra.mrb[0].mxu0 %v374
        %v2976 = vpop.f32.mrb[0].mxu0
        %v2977 = vadd.f32 %v2720, %v2976
        %v2978 = vpop.f32.mrb[0].mxu0
        %v2979 = vadd.f32 %v2722, %v2978
        %2980 = vmatprep.mubr.f32.mxu0 0.0
        %2981 = vmatmul.mubr.f32.gmra.mrb[0].mxu0 %v377
        %v2982 = vpop.f32.mrb[0].mxu0
        %v2983 = vadd.f32 %v2726, %v2982
        %v2984 = vpop.f32.mrb[0].mxu0
        %v2985 = vadd.f32 %v2728, %v2984
        %2986 = vmatprep.mubr.f32.mxu0 0.0
        %2987 = vmatmul.mubr.f32.gmra.mrb[0].mxu0 %v380
        %v2988 = vpop.f32.mrb[0].mxu0
        %v2989 = vadd.f32 %v2732, %v2988
        %v2990 = vpop.f32.mrb[0].mxu0
        %v2991 = vadd.f32 %v2734, %v2990
        %2992 = vmatprep.mubr.f32.mxu0 0.0
        %2993 = vmatmul.mubr.f32.gmra.mrb[0].mxu0 %v383
        %v2994 = vpop.f32.mrb[0].mxu0
        %v2995 = vadd.f32 %v2738, %v2994
        %v2996 = vpop.f32.mrb[0].mxu0
        %v2997 = vadd.f32 %v2740, %v2996
        %2998 = vmatprep.mubr.f32.mxu0 0.0
        %2999 = vmatmul.mubr.f32.gmra.mrb[0].mxu0 %v386
        %v3000 = vpop.f32.mrb[0].mxu0
        %v3001 = vadd.f32 %v2744, %v3000
        %v3002 = vpop.f32.mrb[0].mxu0
        %v3003 = vadd.f32 %v2746, %v3002
        %3004 = vmatprep.mubr.f32.mxu0 0.0
        %3005 = vmatmul.mubr.f32.gmra.mrb[0].mxu0 %v389
        %v3006 = vpop.f32.mrb[0].mxu0
        %v3007 = vadd.f32 %v2750, %v3006
        %v3008 = vpop.f32.mrb[0].mxu0
        %v3009 = vadd.f32 %v2752, %v3008
        %3010 = vmatprep.mubr.f32.mxu0 0.0
        %3011 = vmatmul.mubr.f32.gmra.mrb[0].mxu0 %v392
        %v3012 = vpop.f32.mrb[0].mxu0
        %v3013 = vadd.f32 %v2756, %v3012
        %v3014 = vpop.f32.mrb[0].mxu0
        %v3015 = vadd.f32 %v2758, %v3014
        %3016 = vmatprep.mubr.f32.mxu0 0.0
        %3017 = vmatmul.mubr.f32.gmra.mrb[0].mxu0 %v395
        %v3018 = vpop.f32.mrb[0].mxu0
        %v3019 = vadd.f32 %v2762, %v3018
        %v3020 = vpop.f32.mrb[0].mxu0
        %v3021 = vadd.f32 %v2764, %v3020
        %3022 = vmatprep.mubr.f32.mxu0 0.0
        %3023 = vmatmul.mubr.f32.gmra.mrb[0].mxu0 %v398
        %v3024 = vpop.f32.mrb[0].mxu0
        %v3025 = vadd.f32 %v2768, %v3024
        %v3026 = vpop.f32.mrb[0].mxu0
        %v3027 = vadd.f32 %v2770, %v3026
        %3028 = vmatprep.mubr.f32.mxu0 0.0
        %3029 = vmatmul.mubr.f32.gmra.mrb[0].mxu0 %v401
        %v3030 = vpop.f32.mrb[0].mxu0
        %v3031 = vadd.f32 %v2774, %v3030
        %v3032 = vpop.f32.mrb[0].mxu0
        %v3033 = vadd.f32 %v2776, %v3032
        %3034 = vmatprep.mubr.f32.mxu0 0.0
        %3035 = vmatmul.mubr.f32.gmra.mrb[0].mxu0 %v404
        %v3036 = vpop.f32.mrb[0].mxu0
        %v3037 = vadd.f32 %v2780, %v3036
        %v3038 = vpop.f32.mrb[0].mxu0
        %v3039 = vadd.f32 %v2782, %v3038
        %3040 = vmatprep.mubr.f32.mxu0 0.0
        %3041 = vmatmul.mubr.f32.gmra.mrb[0].mxu0 %v407
        %v3042 = vpop.f32.mrb[0].mxu0
        %v3043 = vadd.f32 %v2786, %v3042
        %v3044 = vpop.f32.mrb[0].mxu0
        %v3045 = vadd.f32 %v2788, %v3044
        %3046 = vmatprep.mubr.f32.mxu0 0.0
        %3047 = vmatmul.mubr.f32.gmra.mrb[0].mxu0 %v410
        %v3048 = vpop.f32.mrb[0].mxu0
        %v3049 = vadd.f32 %v2792, %v3048
        %v3050 = vpop.f32.mrb[0].mxu0
        %v3051 = vadd.f32 %v2794, %v3050
        %3052 = vmatprep.mubr.f32.mxu0 0.0
        %3053 = vmatmul.mubr.f32.gmra.mrb[0].mxu0 %v413
        %v3054 = vpop.f32.mrb[0].mxu0
        %v3055 = vadd.f32 %v2798, %v3054
        %v3056 = vpop.f32.mrb[0].mxu0
        %v3057 = vadd.f32 %v2800, %v3056
        %3058 = vmatprep.mubr.f32.mxu0 0.0
        %3059 = vmatmul.mubr.f32.gmra.mrb[0].mxu0 %v416
        %v3060 = vpop.f32.mrb[0].mxu0
        %v3061 = vadd.f32 %v2804, %v3060
        %v3062 = vpop.f32.mrb[0].mxu0
        %v3063 = vadd.f32 %v2806, %v3062
        %3064 = vmatprep.mubr.f32.mxu0 0.0
        %3065 = vmatmul.mubr.f32.gmra.mrb[0].mxu0 %v419
        %v3066 = vpop.f32.mrb[0].mxu0
        %v3067 = vadd.f32 %v2810, %v3066
        %v3068 = vpop.f32.mrb[0].mxu0
        %v3069 = vadd.f32 %v2812, %v3068
        %3070 = vmatprep.mubr.f32.mxu0 0.0
        %3071 = vmatmul.mubr.f32.gmra.mrb[0].mxu0 %v422
        %v3072 = vpop.f32.mrb[0].mxu0
        %v3073 = vadd.f32 %v2816, %v3072
        %v3074 = vpop.f32.mrb[0].mxu0
        %v3075 = vadd.f32 %v2818, %v3074
        %3076 = vmatprep.mubr.f32.mxu0 0.0
        %3077 = vmatmul.mubr.f32.gmra.mrb[0].mxu0 %v425
        %v3078 = vpop.f32.mrb[0].mxu0
        %v3079 = vadd.f32 %v2822, %v3078
        %v3080 = vpop.f32.mrb[0].mxu0
        %v3081 = vadd.f32 %v2824, %v3080
        %3082 = vmatprep.mubr.f32.mxu0 0.0
        %3083 = vmatmul.mubr.f32.gmra.mrb[0].mxu0 %v428
        %v3084 = vpop.f32.mrb[0].mxu0
        %v3085 = vadd.f32 %v2828, %v3084
        %v3086 = vpop.f32.mrb[0].mxu0
        %v3087 = vadd.f32 %v2830, %v3086
        %3088 = vmatprep.mubr.f32.mxu0 0.0
        %3089 = vmatmul.mubr.f32.gmra.mrb[0].mxu0 %v431
        %v3090 = vpop.f32.mrb[0].mxu0
        %v3091 = vadd.f32 %v2834, %v3090
        %v3092 = vpop.f32.mrb[0].mxu0
        %v3093 = vadd.f32 %v2836, %v3092
        %3094 = vmatprep.mubr.f32.mxu0 0.0
        %3095 = vmatmul.mubr.f32.gmra.mrb[0].mxu0 %v434
        %v3096 = vpop.f32.mrb[0].mxu0
        %v3097 = vadd.f32 %v2840, %v3096
        %v3098 = vpop.f32.mrb[0].mxu0
        %v3099 = vadd.f32 %v2842, %v3098
        %3100 = vmatprep.mubr.f32.mxu0 0.0
        %3101 = vmatmul.mubr.f32.gmra.mrb[0].mxu0 %v437
        %v3102 = vpop.f32.mrb[0].mxu0
        %v3103 = vadd.f32 %v2846, %v3102
        %v3104 = vpop.f32.mrb[0].mxu0
        %v3105 = vadd.f32 %v2848, %v3104
        %3106 = vmatprep.mubr.f32.mxu0 0.0
        %3107 = vmatmul.mubr.f32.gmra.mrb[0].mxu0 %v440
        %v3108 = vpop.f32.mrb[0].mxu0
        %v3109 = vadd.f32 %v2852, %v3108
        %v3110 = vpop.f32.mrb[0].mxu0
        %v3111 = vadd.f32 %v2854, %v3110
        %3112 = vmatprep.mubr.f32.mxu0 0.0
        %3113 = vmatmul.mubr.f32.gmra.mrb[0].mxu0 %v443
        %v3114 = vpop.f32.mrb[0].mxu0
        %v3115 = vadd.f32 %v2858, %v3114
        %v3116 = vpop.f32.mrb[0].mxu0
        %v3117 = vadd.f32 %v2860, %v3116
        %3118 = vmatprep.mubr.f32.mxu0 0.0
        %3119 = vmatmul.mubr.f32.gmra.mrb[0].mxu0 %v446
        %v3120 = vpop.f32.mrb[0].mxu0
        %v3121 = vadd.f32 %v2864, %v3120
        %v3122 = vpop.f32.mrb[0].mxu0
        %v3123 = vadd.f32 %v2866, %v3122
        %3124 = vmatprep.mubr.f32.mxu0 0.0
        %3125 = vmatmul.mubr.f32.gmra.mrb[0].mxu0 %v449
        %v3126 = vpop.f32.mrb[0].mxu0
        %v3127 = vadd.f32 %v2870, %v3126
        %v3128 = vpop.f32.mrb[0].mxu0
        %v3129 = vadd.f32 %v2872, %v3128
        %3130 = vmatprep.mubr.f32.mxu0 0.0
        %3131 = vmatmul.mubr.f32.gmra.mrb[0].mxu0 %v452
        %v3132 = vpop.f32.mrb[0].mxu0
        %v3133 = vadd.f32 %v2876, %v3132
        %v3134 = vpop.f32.mrb[0].mxu0
        %v3135 = vadd.f32 %v2878, %v3134
        %3136 = vmatprep.mubr.f32.mxu0 0.0
        %3137 = vmatmul.mubr.f32.gmra.mrb[0].mxu0 %v455
        %v3138 = vpop.f32.mrb[0].mxu0
        %v3139 = vadd.f32 %v2882, %v3138
        %v3140 = vpop.f32.mrb[0].mxu0
        %v3141 = vadd.f32 %v2884, %v3140
        %3142 = vmatprep.mubr.f32.mxu0 0.0
        %3143 = vmatmul.mubr.f32.gmra.mrb[0].mxu0 %v458
        %v3144 = vpop.f32.mrb[0].mxu0
        %v3145 = vadd.f32 %v2888, %v3144
        %v3146 = vpop.f32.mrb[0].mxu0
        %v3147 = vadd.f32 %v2890, %v3146
        %3148 = vmatprep.mubr.f32.mxu0 0.0
        %3149 = vmatmul.mubr.f32.gmra.mrb[0].mxu0 %v461
        %v3150 = vpop.f32.mrb[0].mxu0
        %v3151 = vadd.f32 %v2894, %v3150
        %v3152 = vpop.f32.mrb[0].mxu0
        %v3153 = vadd.f32 %v2896, %v3152
        %3154 = vmatprep.mubr.f32.mxu0 0.0
        %3155 = vmatmul.mubr.f32.gmra.mrb[0].mxu0 %v464
        %v3156 = vpop.f32.mrb[0].mxu0
        %v3157 = vadd.f32 %v2900, %v3156
        %v3158 = vpop.f32.mrb[0].mxu0
        %v3159 = vadd.f32 %v2902, %v3158
        %3160 = vdwg.mxu0
        %3161 = vmatprep.subr.mxu0 %v474
        %3162 = vmatpush1.msra.mxu0 %v473
        %3163 = vmatprep.subr.mxu0 %v486
        %3164 = vmatpush1.msra.mxu0 %v485
        %3165 = vmatprep.subr.mxu0 %v498
        %3166 = vmatpush1.msra.mxu0 %v497
        %3167 = vmatprep.subr.mxu0 %v510
        %3168 = vmatpush1.msra.mxu0 %v509
        %3169 = vmatprep.subr.mxu0 %v522
        %3170 = vmatpush1.msra.mxu0 %v521
        %3171 = vmatprep.subr.mxu0 %v534
        %3172 = vmatpush1.msra.mxu0 %v533
        %3173 = vmatprep.subr.mxu0 %v546
        %3174 = vmatpush1.msra.mxu0 %v545
        %3175 = vmatprep.subr.mxu0 %v558
        %3176 = vmatpush1.msra.mxu0 %v557
        %3177 = vmatprep.subr.mxu0 %v570
        %3178 = vmatpush1.msra.mxu0 %v569
        %3179 = vmatprep.subr.mxu0 %v582
        %3180 = vmatpush1.msra.mxu0 %v581
        %3181 = vmatprep.subr.mxu0 %v594
        %3182 = vmatpush1.msra.mxu0 %v593
        %3183 = vmatprep.subr.mxu0 %v606
        %3184 = vmatpush1.msra.mxu0 %v605
        %3185 = vmatprep.subr.mxu0 %v618
        %3186 = vmatpush1.msra.mxu0 %v617
        %3187 = vmatprep.subr.mxu0 %v630
        %3188 = vmatpush1.msra.mxu0 %v629
        %3189 = vmatprep.subr.mxu0 %v642
        %3190 = vmatpush1.msra.mxu0 %v641
        %3191 = vmatprep.subr.mxu0 %v654
        %3192 = vmatpush1.msra.mxu0 %v653
        %3193 = vmatprep.subr.mxu0 %v666
        %3194 = vmatpush1.msra.mxu0 %v665
        %3195 = vmatprep.subr.mxu0 %v678
        %3196 = vmatpush1.msra.mxu0 %v677
        %3197 = vmatprep.subr.mxu0 %v690
        %3198 = vmatpush1.msra.mxu0 %v689
        %3199 = vmatprep.subr.mxu0 %v702
        %3200 = vmatpush1.msra.mxu0 %v701
        %3201 = vmatprep.subr.mxu0 %v714
        %3202 = vmatpush1.msra.mxu0 %v713
        %3203 = vmatprep.subr.mxu0 %v726
        %3204 = vmatpush1.msra.mxu0 %v725
        %3205 = vmatprep.subr.mxu0 %v738
        %3206 = vmatpush1.msra.mxu0 %v737
        %3207 = vmatprep.subr.mxu0 %v750
        %3208 = vmatpush1.msra.mxu0 %v749
        %3209 = vmatprep.subr.mxu0 %v762
        %3210 = vmatpush1.msra.mxu0 %v761
        %3211 = vmatprep.subr.mxu0 %v774
        %3212 = vmatpush1.msra.mxu0 %v773
        %3213 = vmatprep.subr.mxu0 %v786
        %3214 = vmatpush1.msra.mxu0 %v785
        %3215 = vmatprep.subr.mxu0 %v798
        %3216 = vmatpush1.msra.mxu0 %v797
        %3217 = vmatprep.subr.mxu0 %v810
        %3218 = vmatpush1.msra.mxu0 %v809
        %3219 = vmatprep.subr.mxu0 %v822
        %3220 = vmatpush1.msra.mxu0 %v821
        %3221 = vmatprep.subr.mxu0 %v834
        %3222 = vmatpush1.msra.mxu0 %v833
        %3223 = vmatprep.subr.mxu0 %v846
        %3224 = vmatpush1.msra.mxu0 %v845
        %3225 = vmatprep.mubr.f32.mxu0 %v370
        %3226 = vmatmul.mubr.f32.gmra.mrb[0].mxu0 %v369
        %v3227 = vpop.f32.mrb[0].mxu0
        %v3228 = vadd.f32 %v1080, %v3227
        %v3229 = vpop.f32.mrb[0].mxu0
        %v3230 = vadd.f32 %v1084, %v3229
        %3231 = vmatprep.mubr.f32.mxu0 %v373
        %3232 = vmatmul.mubr.f32.gmra.mrb[0].mxu0 %v372
        %v3233 = vpop.f32.mrb[0].mxu0
        %v3234 = vadd.f32 %v1080, %v3233
        %v3235 = vpop.f32.mrb[0].mxu0
        %v3236 = vadd.f32 %v1084, %v3235
        %3237 = vmatprep.mubr.f32.mxu0 %v376
        %3238 = vmatmul.mubr.f32.gmra.mrb[0].mxu0 %v375
        %v3239 = vpop.f32.mrb[0].mxu0
        %v3240 = vadd.f32 %v1080, %v3239
        %v3241 = vpop.f32.mrb[0].mxu0
        %v3242 = vadd.f32 %v1084, %v3241
        %3243 = vmatprep.mubr.f32.mxu0 %v379
        %3244 = vmatmul.mubr.f32.gmra.mrb[0].mxu0 %v378
        %v3245 = vpop.f32.mrb[0].mxu0
        %v3246 = vadd.f32 %v1080, %v3245
        %v3247 = vpop.f32.mrb[0].mxu0
        %v3248 = vadd.f32 %v1084, %v3247
        %3249 = vmatprep.mubr.f32.mxu0 %v382
        %3250 = vmatmul.mubr.f32.gmra.mrb[0].mxu0 %v381
        %v3251 = vpop.f32.mrb[0].mxu0
        %v3252 = vadd.f32 %v1080, %v3251
        %v3253 = vpop.f32.mrb[0].mxu0
        %v3254 = vadd.f32 %v1084, %v3253
        %3255 = vmatprep.mubr.f32.mxu0 %v385
        %3256 = vmatmul.mubr.f32.gmra.mrb[0].mxu0 %v384
        %v3257 = vpop.f32.mrb[0].mxu0
        %v3258 = vadd.f32 %v1080, %v3257
        %v3259 = vpop.f32.mrb[0].mxu0
        %v3260 = vadd.f32 %v1084, %v3259
        %3261 = vmatprep.mubr.f32.mxu0 %v388
        %3262 = vmatmul.mubr.f32.gmra.mrb[0].mxu0 %v387
        %v3263 = vpop.f32.mrb[0].mxu0
        %v3264 = vadd.f32 %v1080, %v3263
        %v3265 = vpop.f32.mrb[0].mxu0
        %v3266 = vadd.f32 %v1084, %v3265
        %3267 = vmatprep.mubr.f32.mxu0 %v391
        %3268 = vmatmul.mubr.f32.gmra.mrb[0].mxu0 %v390
        %v3269 = vpop.f32.mrb[0].mxu0
        %v3270 = vadd.f32 %v1080, %v3269
        %v3271 = vpop.f32.mrb[0].mxu0
        %v3272 = vadd.f32 %v1084, %v3271
        %3273 = vmatprep.mubr.f32.mxu0 %v394
        %3274 = vmatmul.mubr.f32.gmra.mrb[0].mxu0 %v393
        %v3275 = vpop.f32.mrb[0].mxu0
        %v3276 = vadd.f32 %v1080, %v3275
        %v3277 = vpop.f32.mrb[0].mxu0
        %v3278 = vadd.f32 %v1084, %v3277
        %3279 = vmatprep.mubr.f32.mxu0 %v397
        %3280 = vmatmul.mubr.f32.gmra.mrb[0].mxu0 %v396
        %v3281 = vpop.f32.mrb[0].mxu0
        %v3282 = vadd.f32 %v1080, %v3281
        %v3283 = vpop.f32.mrb[0].mxu0
        %v3284 = vadd.f32 %v1084, %v3283
        %3285 = vmatprep.mubr.f32.mxu0 %v400
        %3286 = vmatmul.mubr.f32.gmra.mrb[0].mxu0 %v399
        %v3287 = vpop.f32.mrb[0].mxu0
        %v3288 = vadd.f32 %v1080, %v3287
        %v3289 = vpop.f32.mrb[0].mxu0
        %v3290 = vadd.f32 %v1084, %v3289
        %3291 = vmatprep.mubr.f32.mxu0 %v403
        %3292 = vmatmul.mubr.f32.gmra.mrb[0].mxu0 %v402
        %v3293 = vpop.f32.mrb[0].mxu0
        %v3294 = vadd.f32 %v1080, %v3293
        %v3295 = vpop.f32.mrb[0].mxu0
        %v3296 = vadd.f32 %v1084, %v3295
        %3297 = vmatprep.mubr.f32.mxu0 %v406
        %3298 = vmatmul.mubr.f32.gmra.mrb[0].mxu0 %v405
        %v3299 = vpop.f32.mrb[0].mxu0
        %v3300 = vadd.f32 %v1080, %v3299
        %v3301 = vpop.f32.mrb[0].mxu0
        %v3302 = vadd.f32 %v1084, %v3301
        %3303 = vmatprep.mubr.f32.mxu0 %v409
        %3304 = vmatmul.mubr.f32.gmra.mrb[0].mxu0 %v408
        %v3305 = vpop.f32.mrb[0].mxu0
        %v3306 = vadd.f32 %v1080, %v3305
        %v3307 = vpop.f32.mrb[0].mxu0
        %v3308 = vadd.f32 %v1084, %v3307
        %3309 = vmatprep.mubr.f32.mxu0 %v412
        %3310 = vmatmul.mubr.f32.gmra.mrb[0].mxu0 %v411
        %v3311 = vpop.f32.mrb[0].mxu0
        %v3312 = vadd.f32 %v1080, %v3311
        %v3313 = vpop.f32.mrb[0].mxu0
        %v3314 = vadd.f32 %v1084, %v3313
        %3315 = vmatprep.mubr.f32.mxu0 %v415
        %3316 = vmatmul.mubr.f32.gmra.mrb[0].mxu0 %v414
        %v3317 = vpop.f32.mrb[0].mxu0
        %v3318 = vadd.f32 %v1080, %v3317
        %v3319 = vpop.f32.mrb[0].mxu0
        %v3320 = vadd.f32 %v1084, %v3319
        %3321 = vmatprep.mubr.f32.mxu0 %v418
        %3322 = vmatmul.mubr.f32.gmra.mrb[0].mxu0 %v417
        %v3323 = vpop.f32.mrb[0].mxu0
        %v3324 = vadd.f32 %v1080, %v3323
        %v3325 = vpop.f32.mrb[0].mxu0
        %v3326 = vadd.f32 %v1084, %v3325
        %3327 = vmatprep.mubr.f32.mxu0 %v421
        %3328 = vmatmul.mubr.f32.gmra.mrb[0].mxu0 %v420
        %v3329 = vpop.f32.mrb[0].mxu0
        %v3330 = vadd.f32 %v1080, %v3329
        %v3331 = vpop.f32.mrb[0].mxu0
        %v3332 = vadd.f32 %v1084, %v3331
        %3333 = vmatprep.mubr.f32.mxu0 %v424
        %3334 = vmatmul.mubr.f32.gmra.mrb[0].mxu0 %v423
        %v3335 = vpop.f32.mrb[0].mxu0
        %v3336 = vadd.f32 %v1080, %v3335
        %v3337 = vpop.f32.mrb[0].mxu0
        %v3338 = vadd.f32 %v1084, %v3337
        %3339 = vmatprep.mubr.f32.mxu0 %v427
        %3340 = vmatmul.mubr.f32.gmra.mrb[0].mxu0 %v426
        %v3341 = vpop.f32.mrb[0].mxu0
        %v3342 = vadd.f32 %v1080, %v3341
        %v3343 = vpop.f32.mrb[0].mxu0
        %v3344 = vadd.f32 %v1084, %v3343
        %3345 = vmatprep.mubr.f32.mxu0 %v430
        %3346 = vmatmul.mubr.f32.gmra.mrb[0].mxu0 %v429
        %v3347 = vpop.f32.mrb[0].mxu0
        %v3348 = vadd.f32 %v1080, %v3347
        %v3349 = vpop.f32.mrb[0].mxu0
        %v3350 = vadd.f32 %v1084, %v3349
        %3351 = vmatprep.mubr.f32.mxu0 %v433
        %3352 = vmatmul.mubr.f32.gmra.mrb[0].mxu0 %v432
        %v3353 = vpop.f32.mrb[0].mxu0
        %v3354 = vadd.f32 %v1080, %v3353
        %v3355 = vpop.f32.mrb[0].mxu0
        %v3356 = vadd.f32 %v1084, %v3355
        %3357 = vmatprep.mubr.f32.mxu0 %v436
        %3358 = vmatmul.mubr.f32.gmra.mrb[0].mxu0 %v435
        %v3359 = vpop.f32.mrb[0].mxu0
        %v3360 = vadd.f32 %v1080, %v3359
        %v3361 = vpop.f32.mrb[0].mxu0
        %v3362 = vadd.f32 %v1084, %v3361
        %3363 = vmatprep.mubr.f32.mxu0 %v439
        %3364 = vmatmul.mubr.f32.gmra.mrb[0].mxu0 %v438
        %v3365 = vpop.f32.mrb[0].mxu0
        %v3366 = vadd.f32 %v1080, %v3365
        %v3367 = vpop.f32.mrb[0].mxu0
        %v3368 = vadd.f32 %v1084, %v3367
        %3369 = vmatprep.mubr.f32.mxu0 %v442
        %3370 = vmatmul.mubr.f32.gmra.mrb[0].mxu0 %v441
        %v3371 = vpop.f32.mrb[0].mxu0
        %v3372 = vadd.f32 %v1080, %v3371
        %v3373 = vpop.f32.mrb[0].mxu0
        %v3374 = vadd.f32 %v1084, %v3373
        %3375 = vmatprep.mubr.f32.mxu0 %v445
        %3376 = vmatmul.mubr.f32.gmra.mrb[0].mxu0 %v444
        %v3377 = vpop.f32.mrb[0].mxu0
        %v3378 = vadd.f32 %v1080, %v3377
        %v3379 = vpop.f32.mrb[0].mxu0
        %v3380 = vadd.f32 %v1084, %v3379
        %3381 = vmatprep.mubr.f32.mxu0 %v448
        %3382 = vmatmul.mubr.f32.gmra.mrb[0].mxu0 %v447
        %v3383 = vpop.f32.mrb[0].mxu0
        %v3384 = vadd.f32 %v1080, %v3383
        %v3385 = vpop.f32.mrb[0].mxu0
        %v3386 = vadd.f32 %v1084, %v3385
        %3387 = vmatprep.mubr.f32.mxu0 %v451
        %3388 = vmatmul.mubr.f32.gmra.mrb[0].mxu0 %v450
        %v3389 = vpop.f32.mrb[0].mxu0
        %v3390 = vadd.f32 %v1080, %v3389
        %v3391 = vpop.f32.mrb[0].mxu0
        %v3392 = vadd.f32 %v1084, %v3391
        %3393 = vmatprep.mubr.f32.mxu0 %v454
        %3394 = vmatmul.mubr.f32.gmra.mrb[0].mxu0 %v453
        %v3395 = vpop.f32.mrb[0].mxu0
        %v3396 = vadd.f32 %v1080, %v3395
        %v3397 = vpop.f32.mrb[0].mxu0
        %v3398 = vadd.f32 %v1084, %v3397
        %3399 = vmatprep.mubr.f32.mxu0 %v457
        %3400 = vmatmul.mubr.f32.gmra.mrb[0].mxu0 %v456
        %v3401 = vpop.f32.mrb[0].mxu0
        %v3402 = vadd.f32 %v1080, %v3401
        %v3403 = vpop.f32.mrb[0].mxu0
        %v3404 = vadd.f32 %v1084, %v3403
        %3405 = vmatprep.mubr.f32.mxu0 %v460
        %3406 = vmatmul.mubr.f32.gmra.mrb[0].mxu0 %v459
        %v3407 = vpop.f32.mrb[0].mxu0
        %v3408 = vadd.f32 %v1080, %v3407
        %v3409 = vpop.f32.mrb[0].mxu0
        %v3410 = vadd.f32 %v1084, %v3409
        %3411 = vmatprep.mubr.f32.mxu0 %v463
        %3412 = vmatmul.mubr.f32.gmra.mrb[0].mxu0 %v462
        %v3413 = vpop.f32.mrb[0].mxu0
        %v3414 = vadd.f32 %v1080, %v3413
        %v3415 = vpop.f32.mrb[0].mxu0
        %v3416 = vadd.f32 %v1084, %v3415
        %3417 = vdwg.mxu0
        %3418 = vmatprep.subr.mxu0 %v858
        %3419 = vmatpush1.msra.mxu0 %v857
        %3420 = vmatprep.subr.mxu0 %v870
        %3421 = vmatpush1.msra.mxu0 %v869
        %3422 = vmatprep.subr.mxu0 %v882
        %3423 = vmatpush1.msra.mxu0 %v881
        %3424 = vmatprep.subr.mxu0 %v894
        %3425 = vmatpush1.msra.mxu0 %v893
        %3426 = vmatprep.subr.mxu0 %v906
        %3427 = vmatpush1.msra.mxu0 %v905
        %3428 = vmatprep.subr.mxu0 %v918
        %3429 = vmatpush1.msra.mxu0 %v917
        %3430 = vmatprep.subr.mxu0 %v930
        %3431 = vmatpush1.msra.mxu0 %v929
        %3432 = vmatprep.subr.mxu0 %v942
        %3433 = vmatpush1.msra.mxu0 %v941
        %3434 = vmatprep.subr.mxu0 %v954
        %3435 = vmatpush1.msra.mxu0 %v953
        %3436 = vmatprep.subr.mxu0 %v966
        %3437 = vmatpush1.msra.mxu0 %v965
        %3438 = vmatprep.subr.mxu0 %v978
        %3439 = vmatpush1.msra.mxu0 %v977
        %3440 = vmatprep.subr.mxu0 %v990
        %3441 = vmatpush1.msra.mxu0 %v989
        %3442 = vmatprep.subr.mxu0 %v1002
        %3443 = vmatpush1.msra.mxu0 %v1001
        %3444 = vmatprep.subr.mxu0 %v1014
        %3445 = vmatpush1.msra.mxu0 %v1013
        %3446 = vmatprep.subr.mxu0 %v1026
        %3447 = vmatpush1.msra.mxu0 %v1025
        %3448 = vmatprep.subr.mxu0 %v1038
        %3449 = vmatpush1.msra.mxu0 %v1037
        %3450 = vmatprep.subr.mxu0 0.0
        %3451 = vmatpush1.msra.mxu0 0.0
        %3452 = vmatprep.subr.mxu0 0.0
        %3453 = vmatpush1.msra.mxu0 0.0
        %3454 = vmatprep.subr.mxu0 0.0
        %3455 = vmatpush1.msra.mxu0 0.0
        %3456 = vmatprep.subr.mxu0 0.0
        %3457 = vmatpush1.msra.mxu0 0.0
        %3458 = vmatprep.subr.mxu0 0.0
        %3459 = vmatpush1.msra.mxu0 0.0
        %3460 = vmatprep.subr.mxu0 0.0
        %3461 = vmatpush1.msra.mxu0 0.0
        %3462 = vmatprep.subr.mxu0 0.0
        %3463 = vmatpush1.msra.mxu0 0.0
        %3464 = vmatprep.subr.mxu0 0.0
        %3465 = vmatpush1.msra.mxu0 0.0
        %3466 = vmatprep.subr.mxu0 0.0
        %3467 = vmatpush1.msra.mxu0 0.0
        %3468 = vmatprep.subr.mxu0 0.0
        %3469 = vmatpush1.msra.mxu0 0.0
        %3470 = vmatprep.subr.mxu0 0.0
        %3471 = vmatpush1.msra.mxu0 0.0
        %3472 = vmatprep.subr.mxu0 0.0
        %3473 = vmatpush1.msra.mxu0 0.0
        %3474 = vmatprep.subr.mxu0 0.0
        %3475 = vmatpush1.msra.mxu0 0.0
        %3476 = vmatprep.subr.mxu0 0.0
        %3477 = vmatpush1.msra.mxu0 0.0
        %3478 = vmatprep.subr.mxu0 0.0
        %3479 = vmatpush1.msra.mxu0 0.0
        %3480 = vmatprep.subr.mxu0 0.0
        %3481 = vmatpush1.msra.mxu0 0.0
        %3482 = vmatprep.mubr.f32.mxu0 0.0
        %3483 = vmatmul.mubr.f32.gmra.mrb[0].mxu0 %v371
        %v3484 = vpop.f32.mrb[0].mxu0
        %v3485 = vadd.f32 %v3228, %v3484
        %v3486 = vpop.f32.mrb[0].mxu0
        %v3487 = vadd.f32 %v3230, %v3486
        %3488 = vmatprep.mubr.f32.mxu0 0.0
        %3489 = vmatmul.mubr.f32.gmra.mrb[0].mxu0 %v374
        %v3490 = vpop.f32.mrb[0].mxu0
        %v3491 = vadd.f32 %v3234, %v3490
        %v3492 = vpop.f32.mrb[0].mxu0
        %v3493 = vadd.f32 %v3236, %v3492
        %3494 = vmatprep.mubr.f32.mxu0 0.0
        %3495 = vmatmul.mubr.f32.gmra.mrb[0].mxu0 %v377
        %v3496 = vpop.f32.mrb[0].mxu0
        %v3497 = vadd.f32 %v3240, %v3496
        %v3498 = vpop.f32.mrb[0].mxu0
        %v3499 = vadd.f32 %v3242, %v3498
        %3500 = vmatprep.mubr.f32.mxu0 0.0
        %3501 = vmatmul.mubr.f32.gmra.mrb[0].mxu0 %v380
        %v3502 = vpop.f32.mrb[0].mxu0
        %v3503 = vadd.f32 %v3246, %v3502
        %v3504 = vpop.f32.mrb[0].mxu0
        %v3505 = vadd.f32 %v3248, %v3504
        %3506 = vmatprep.mubr.f32.mxu0 0.0
        %3507 = vmatmul.mubr.f32.gmra.mrb[0].mxu0 %v383
        %v3508 = vpop.f32.mrb[0].mxu0
        %v3509 = vadd.f32 %v3252, %v3508
        %v3510 = vpop.f32.mrb[0].mxu0
        %v3511 = vadd.f32 %v3254, %v3510
        %3512 = vmatprep.mubr.f32.mxu0 0.0
        %3513 = vmatmul.mubr.f32.gmra.mrb[0].mxu0 %v386
        %v3514 = vpop.f32.mrb[0].mxu0
        %v3515 = vadd.f32 %v3258, %v3514
        %v3516 = vpop.f32.mrb[0].mxu0
        %v3517 = vadd.f32 %v3260, %v3516
        %3518 = vmatprep.mubr.f32.mxu0 0.0
        %3519 = vmatmul.mubr.f32.gmra.mrb[0].mxu0 %v389
        %v3520 = vpop.f32.mrb[0].mxu0
        %v3521 = vadd.f32 %v3264, %v3520
        %v3522 = vpop.f32.mrb[0].mxu0
        %v3523 = vadd.f32 %v3266, %v3522
        %3524 = vmatprep.mubr.f32.mxu0 0.0
        %3525 = vmatmul.mubr.f32.gmra.mrb[0].mxu0 %v392
        %v3526 = vpop.f32.mrb[0].mxu0
        %v3527 = vadd.f32 %v3270, %v3526
        %v3528 = vpop.f32.mrb[0].mxu0
        %v3529 = vadd.f32 %v3272, %v3528
        %3530 = vmatprep.mubr.f32.mxu0 0.0
        %3531 = vmatmul.mubr.f32.gmra.mrb[0].mxu0 %v395
        %v3532 = vpop.f32.mrb[0].mxu0
        %v3533 = vadd.f32 %v3276, %v3532
        %v3534 = vpop.f32.mrb[0].mxu0
        %v3535 = vadd.f32 %v3278, %v3534
        %3536 = vmatprep.mubr.f32.mxu0 0.0
        %3537 = vmatmul.mubr.f32.gmra.mrb[0].mxu0 %v398
        %v3538 = vpop.f32.mrb[0].mxu0
        %v3539 = vadd.f32 %v3282, %v3538
        %v3540 = vpop.f32.mrb[0].mxu0
        %v3541 = vadd.f32 %v3284, %v3540
        %3542 = vmatprep.mubr.f32.mxu0 0.0
        %3543 = vmatmul.mubr.f32.gmra.mrb[0].mxu0 %v401
        %v3544 = vpop.f32.mrb[0].mxu0
        %v3545 = vadd.f32 %v3288, %v3544
        %v3546 = vpop.f32.mrb[0].mxu0
        %v3547 = vadd.f32 %v3290, %v3546
        %3548 = vmatprep.mubr.f32.mxu0 0.0
        %3549 = vmatmul.mubr.f32.gmra.mrb[0].mxu0 %v404
        %v3550 = vpop.f32.mrb[0].mxu0
        %v3551 = vadd.f32 %v3294, %v3550
        %v3552 = vpop.f32.mrb[0].mxu0
        %v3553 = vadd.f32 %v3296, %v3552
        %3554 = vmatprep.mubr.f32.mxu0 0.0
        %3555 = vmatmul.mubr.f32.gmra.mrb[0].mxu0 %v407
        %v3556 = vpop.f32.mrb[0].mxu0
        %v3557 = vadd.f32 %v3300, %v3556
        %v3558 = vpop.f32.mrb[0].mxu0
        %v3559 = vadd.f32 %v3302, %v3558
        %3560 = vmatprep.mubr.f32.mxu0 0.0
        %3561 = vmatmul.mubr.f32.gmra.mrb[0].mxu0 %v410
        %v3562 = vpop.f32.mrb[0].mxu0
        %v3563 = vadd.f32 %v3306, %v3562
        %v3564 = vpop.f32.mrb[0].mxu0
        %v3565 = vadd.f32 %v3308, %v3564
        %3566 = vmatprep.mubr.f32.mxu0 0.0
        %3567 = vmatmul.mubr.f32.gmra.mrb[0].mxu0 %v413
        %v3568 = vpop.f32.mrb[0].mxu0
        %v3569 = vadd.f32 %v3312, %v3568
        %v3570 = vpop.f32.mrb[0].mxu0
        %v3571 = vadd.f32 %v3314, %v3570
        %3572 = vmatprep.mubr.f32.mxu0 0.0
        %3573 = vmatmul.mubr.f32.gmra.mrb[0].mxu0 %v416
        %v3574 = vpop.f32.mrb[0].mxu0
        %v3575 = vadd.f32 %v3318, %v3574
        %v3576 = vpop.f32.mrb[0].mxu0
        %v3577 = vadd.f32 %v3320, %v3576
        %3578 = vmatprep.mubr.f32.mxu0 0.0
        %3579 = vmatmul.mubr.f32.gmra.mrb[0].mxu0 %v419
        %v3580 = vpop.f32.mrb[0].mxu0
        %v3581 = vadd.f32 %v3324, %v3580
        %v3582 = vpop.f32.mrb[0].mxu0
        %v3583 = vadd.f32 %v3326, %v3582
        %3584 = vmatprep.mubr.f32.mxu0 0.0
        %3585 = vmatmul.mubr.f32.gmra.mrb[0].mxu0 %v422
        %v3586 = vpop.f32.mrb[0].mxu0
        %v3587 = vadd.f32 %v3330, %v3586
        %v3588 = vpop.f32.mrb[0].mxu0
        %v3589 = vadd.f32 %v3332, %v3588
        %3590 = vmatprep.mubr.f32.mxu0 0.0
        %3591 = vmatmul.mubr.f32.gmra.mrb[0].mxu0 %v425
        %v3592 = vpop.f32.mrb[0].mxu0
        %v3593 = vadd.f32 %v3336, %v3592
        %v3594 = vpop.f32.mrb[0].mxu0
        %v3595 = vadd.f32 %v3338, %v3594
        %3596 = vmatprep.mubr.f32.mxu0 0.0
        %3597 = vmatmul.mubr.f32.gmra.mrb[0].mxu0 %v428
        %v3598 = vpop.f32.mrb[0].mxu0
        %v3599 = vadd.f32 %v3342, %v3598
        %v3600 = vpop.f32.mrb[0].mxu0
        %v3601 = vadd.f32 %v3344, %v3600
        %3602 = vmatprep.mubr.f32.mxu0 0.0
        %3603 = vmatmul.mubr.f32.gmra.mrb[0].mxu0 %v431
        %v3604 = vpop.f32.mrb[0].mxu0
        %v3605 = vadd.f32 %v3348, %v3604
        %v3606 = vpop.f32.mrb[0].mxu0
        %v3607 = vadd.f32 %v3350, %v3606
        %3608 = vmatprep.mubr.f32.mxu0 0.0
        %3609 = vmatmul.mubr.f32.gmra.mrb[0].mxu0 %v434
        %v3610 = vpop.f32.mrb[0].mxu0
        %v3611 = vadd.f32 %v3354, %v3610
        %v3612 = vpop.f32.mrb[0].mxu0
        %v3613 = vadd.f32 %v3356, %v3612
        %3614 = vmatprep.mubr.f32.mxu0 0.0
        %3615 = vmatmul.mubr.f32.gmra.mrb[0].mxu0 %v437
        %v3616 = vpop.f32.mrb[0].mxu0
        %v3617 = vadd.f32 %v3360, %v3616
        %v3618 = vpop.f32.mrb[0].mxu0
        %v3619 = vadd.f32 %v3362, %v3618
        %3620 = vmatprep.mubr.f32.mxu0 0.0
        %3621 = vmatmul.mubr.f32.gmra.mrb[0].mxu0 %v440
        %v3622 = vpop.f32.mrb[0].mxu0
        %v3623 = vadd.f32 %v3366, %v3622
        %v3624 = vpop.f32.mrb[0].mxu0
        %v3625 = vadd.f32 %v3368, %v3624
        %3626 = vmatprep.mubr.f32.mxu0 0.0
        %3627 = vmatmul.mubr.f32.gmra.mrb[0].mxu0 %v443
        %v3628 = vpop.f32.mrb[0].mxu0
        %v3629 = vadd.f32 %v3372, %v3628
        %v3630 = vpop.f32.mrb[0].mxu0
        %v3631 = vadd.f32 %v3374, %v3630
        %3632 = vmatprep.mubr.f32.mxu0 0.0
        %3633 = vmatmul.mubr.f32.gmra.mrb[0].mxu0 %v446
        %v3634 = vpop.f32.mrb[0].mxu0
        %v3635 = vadd.f32 %v3378, %v3634
        %v3636 = vpop.f32.mrb[0].mxu0
        %v3637 = vadd.f32 %v3380, %v3636
        %3638 = vmatprep.mubr.f32.mxu0 0.0
        %3639 = vmatmul.mubr.f32.gmra.mrb[0].mxu0 %v449
        %v3640 = vpop.f32.mrb[0].mxu0
        %v3641 = vadd.f32 %v3384, %v3640
        %v3642 = vpop.f32.mrb[0].mxu0
        %v3643 = vadd.f32 %v3386, %v3642
        %3644 = vmatprep.mubr.f32.mxu0 0.0
        %3645 = vmatmul.mubr.f32.gmra.mrb[0].mxu0 %v452
        %v3646 = vpop.f32.mrb[0].mxu0
        %v3647 = vadd.f32 %v3390, %v3646
        %v3648 = vpop.f32.mrb[0].mxu0
        %v3649 = vadd.f32 %v3392, %v3648
        %3650 = vmatprep.mubr.f32.mxu0 0.0
        %3651 = vmatmul.mubr.f32.gmra.mrb[0].mxu0 %v455
        %v3652 = vpop.f32.mrb[0].mxu0
        %v3653 = vadd.f32 %v3396, %v3652
        %v3654 = vpop.f32.mrb[0].mxu0
        %v3655 = vadd.f32 %v3398, %v3654
        %3656 = vmatprep.mubr.f32.mxu0 0.0
        %3657 = vmatmul.mubr.f32.gmra.mrb[0].mxu0 %v458
        %v3658 = vpop.f32.mrb[0].mxu0
        %v3659 = vadd.f32 %v3402, %v3658
        %v3660 = vpop.f32.mrb[0].mxu0
        %v3661 = vadd.f32 %v3404, %v3660
        %3662 = vmatprep.mubr.f32.mxu0 0.0
        %3663 = vmatmul.mubr.f32.gmra.mrb[0].mxu0 %v461
        %v3664 = vpop.f32.mrb[0].mxu0
        %v3665 = vadd.f32 %v3408, %v3664
        %v3666 = vpop.f32.mrb[0].mxu0
        %v3667 = vadd.f32 %v3410, %v3666
        %3668 = vmatprep.mubr.f32.mxu0 0.0
        %3669 = vmatmul.mubr.f32.gmra.mrb[0].mxu0 %v464
        %v3670 = vpop.f32.mrb[0].mxu0
        %v3671 = vadd.f32 %v3414, %v3670
        %v3672 = vpop.f32.mrb[0].mxu0
        %v3673 = vadd.f32 %v3416, %v3672
        %3674 = vdwg.mxu0
        %3675 = vmatprep.subr.mxu0 %v476
        %3676 = vmatpush1.msra.mxu0 %v475
        %3677 = vmatprep.subr.mxu0 %v488
        %3678 = vmatpush1.msra.mxu0 %v487
        %3679 = vmatprep.subr.mxu0 %v500
        %3680 = vmatpush1.msra.mxu0 %v499
        %3681 = vmatprep.subr.mxu0 %v512
        %3682 = vmatpush1.msra.mxu0 %v511
        %3683 = vmatprep.subr.mxu0 %v524
        %3684 = vmatpush1.msra.mxu0 %v523
        %3685 = vmatprep.subr.mxu0 %v536
        %3686 = vmatpush1.msra.mxu0 %v535
        %3687 = vmatprep.subr.mxu0 %v548
        %3688 = vmatpush1.msra.mxu0 %v547
        %3689 = vmatprep.subr.mxu0 %v560
        %3690 = vmatpush1.msra.mxu0 %v559
        %3691 = vmatprep.subr.mxu0 %v572
        %3692 = vmatpush1.msra.mxu0 %v571
        %3693 = vmatprep.subr.mxu0 %v584
        %3694 = vmatpush1.msra.mxu0 %v583
        %3695 = vmatprep.subr.mxu0 %v596
        %3696 = vmatpush1.msra.mxu0 %v595
        %3697 = vmatprep.subr.mxu0 %v608
        %3698 = vmatpush1.msra.mxu0 %v607
        %3699 = vmatprep.subr.mxu0 %v620
        %3700 = vmatpush1.msra.mxu0 %v619
        %3701 = vmatprep.subr.mxu0 %v632
        %3702 = vmatpush1.msra.mxu0 %v631
        %3703 = vmatprep.subr.mxu0 %v644
        %3704 = vmatpush1.msra.mxu0 %v643
        %3705 = vmatprep.subr.mxu0 %v656
        %3706 = vmatpush1.msra.mxu0 %v655
        %3707 = vmatprep.subr.mxu0 %v668
        %3708 = vmatpush1.msra.mxu0 %v667
        %3709 = vmatprep.subr.mxu0 %v680
        %3710 = vmatpush1.msra.mxu0 %v679
        %3711 = vmatprep.subr.mxu0 %v692
        %3712 = vmatpush1.msra.mxu0 %v691
        %3713 = vmatprep.subr.mxu0 %v704
        %3714 = vmatpush1.msra.mxu0 %v703
        %3715 = vmatprep.subr.mxu0 %v716
        %3716 = vmatpush1.msra.mxu0 %v715
        %3717 = vmatprep.subr.mxu0 %v728
        %3718 = vmatpush1.msra.mxu0 %v727
        %3719 = vmatprep.subr.mxu0 %v740
        %3720 = vmatpush1.msra.mxu0 %v739
        %3721 = vmatprep.subr.mxu0 %v752
        %3722 = vmatpush1.msra.mxu0 %v751
        %3723 = vmatprep.subr.mxu0 %v764
        %3724 = vmatpush1.msra.mxu0 %v763
        %3725 = vmatprep.subr.mxu0 %v776
        %3726 = vmatpush1.msra.mxu0 %v775
        %3727 = vmatprep.subr.mxu0 %v788
        %3728 = vmatpush1.msra.mxu0 %v787
        %3729 = vmatprep.subr.mxu0 %v800
        %3730 = vmatpush1.msra.mxu0 %v799
        %3731 = vmatprep.subr.mxu0 %v812
        %3732 = vmatpush1.msra.mxu0 %v811
        %3733 = vmatprep.subr.mxu0 %v824
        %3734 = vmatpush1.msra.mxu0 %v823
        %3735 = vmatprep.subr.mxu0 %v836
        %3736 = vmatpush1.msra.mxu0 %v835
        %3737 = vmatprep.subr.mxu0 %v848
        %3738 = vmatpush1.msra.mxu0 %v847
        %3739 = vmatprep.mubr.f32.mxu0 %v370
        %3740 = vmatmul.mubr.f32.gmra.mrb[0].mxu0 %v369
        %v3741 = vpop.f32.mrb[0].mxu0
        %v3742 = vadd.f32 %v1088, %v3741
        %v3743 = vpop.f32.mrb[0].mxu0
        %v3744 = vadd.f32 %v1092, %v3743
        %3745 = vmatprep.mubr.f32.mxu0 %v373
        %3746 = vmatmul.mubr.f32.gmra.mrb[0].mxu0 %v372
        %v3747 = vpop.f32.mrb[0].mxu0
        %v3748 = vadd.f32 %v1088, %v3747
        %v3749 = vpop.f32.mrb[0].mxu0
        %v3750 = vadd.f32 %v1092, %v3749
        %3751 = vmatprep.mubr.f32.mxu0 %v376
        %3752 = vmatmul.mubr.f32.gmra.mrb[0].mxu0 %v375
        %v3753 = vpop.f32.mrb[0].mxu0
        %v3754 = vadd.f32 %v1088, %v3753
        %v3755 = vpop.f32.mrb[0].mxu0
        %v3756 = vadd.f32 %v1092, %v3755
        %3757 = vmatprep.mubr.f32.mxu0 %v379
        %3758 = vmatmul.mubr.f32.gmra.mrb[0].mxu0 %v378
        %v3759 = vpop.f32.mrb[0].mxu0
        %v3760 = vadd.f32 %v1088, %v3759
        %v3761 = vpop.f32.mrb[0].mxu0
        %v3762 = vadd.f32 %v1092, %v3761
        %3763 = vmatprep.mubr.f32.mxu0 %v382
        %3764 = vmatmul.mubr.f32.gmra.mrb[0].mxu0 %v381
        %v3765 = vpop.f32.mrb[0].mxu0
        %v3766 = vadd.f32 %v1088, %v3765
        %v3767 = vpop.f32.mrb[0].mxu0
        %v3768 = vadd.f32 %v1092, %v3767
        %3769 = vmatprep.mubr.f32.mxu0 %v385
        %3770 = vmatmul.mubr.f32.gmra.mrb[0].mxu0 %v384
        %v3771 = vpop.f32.mrb[0].mxu0
        %v3772 = vadd.f32 %v1088, %v3771
        %v3773 = vpop.f32.mrb[0].mxu0
        %v3774 = vadd.f32 %v1092, %v3773
        %3775 = vmatprep.mubr.f32.mxu0 %v388
        %3776 = vmatmul.mubr.f32.gmra.mrb[0].mxu0 %v387
        %v3777 = vpop.f32.mrb[0].mxu0
        %v3778 = vadd.f32 %v1088, %v3777
        %v3779 = vpop.f32.mrb[0].mxu0
        %v3780 = vadd.f32 %v1092, %v3779
        %3781 = vmatprep.mubr.f32.mxu0 %v391
        %3782 = vmatmul.mubr.f32.gmra.mrb[0].mxu0 %v390
        %v3783 = vpop.f32.mrb[0].mxu0
        %v3784 = vadd.f32 %v1088, %v3783
        %v3785 = vpop.f32.mrb[0].mxu0
        %v3786 = vadd.f32 %v1092, %v3785
        %3787 = vmatprep.mubr.f32.mxu0 %v394
        %3788 = vmatmul.mubr.f32.gmra.mrb[0].mxu0 %v393
        %v3789 = vpop.f32.mrb[0].mxu0
        %v3790 = vadd.f32 %v1088, %v3789
        %v3791 = vpop.f32.mrb[0].mxu0
        %v3792 = vadd.f32 %v1092, %v3791
        %3793 = vmatprep.mubr.f32.mxu0 %v397
        %3794 = vmatmul.mubr.f32.gmra.mrb[0].mxu0 %v396
        %v3795 = vpop.f32.mrb[0].mxu0
        %v3796 = vadd.f32 %v1088, %v3795
        %v3797 = vpop.f32.mrb[0].mxu0
        %v3798 = vadd.f32 %v1092, %v3797
        %3799 = vmatprep.mubr.f32.mxu0 %v400
        %3800 = vmatmul.mubr.f32.gmra.mrb[0].mxu0 %v399
        %v3801 = vpop.f32.mrb[0].mxu0
        %v3802 = vadd.f32 %v1088, %v3801
        %v3803 = vpop.f32.mrb[0].mxu0
        %v3804 = vadd.f32 %v1092, %v3803
        %3805 = vmatprep.mubr.f32.mxu0 %v403
        %3806 = vmatmul.mubr.f32.gmra.mrb[0].mxu0 %v402
        %v3807 = vpop.f32.mrb[0].mxu0
        %v3808 = vadd.f32 %v1088, %v3807
        %v3809 = vpop.f32.mrb[0].mxu0
        %v3810 = vadd.f32 %v1092, %v3809
        %3811 = vmatprep.mubr.f32.mxu0 %v406
        %3812 = vmatmul.mubr.f32.gmra.mrb[0].mxu0 %v405
        %v3813 = vpop.f32.mrb[0].mxu0
        %v3814 = vadd.f32 %v1088, %v3813
        %v3815 = vpop.f32.mrb[0].mxu0
        %v3816 = vadd.f32 %v1092, %v3815
        %3817 = vmatprep.mubr.f32.mxu0 %v409
        %3818 = vmatmul.mubr.f32.gmra.mrb[0].mxu0 %v408
        %v3819 = vpop.f32.mrb[0].mxu0
        %v3820 = vadd.f32 %v1088, %v3819
        %v3821 = vpop.f32.mrb[0].mxu0
        %v3822 = vadd.f32 %v1092, %v3821
        %3823 = vmatprep.mubr.f32.mxu0 %v412
        %3824 = vmatmul.mubr.f32.gmra.mrb[0].mxu0 %v411
        %v3825 = vpop.f32.mrb[0].mxu0
        %v3826 = vadd.f32 %v1088, %v3825
        %v3827 = vpop.f32.mrb[0].mxu0
        %v3828 = vadd.f32 %v1092, %v3827
        %3829 = vmatprep.mubr.f32.mxu0 %v415
        %3830 = vmatmul.mubr.f32.gmra.mrb[0].mxu0 %v414
        %v3831 = vpop.f32.mrb[0].mxu0
        %v3832 = vadd.f32 %v1088, %v3831
        %v3833 = vpop.f32.mrb[0].mxu0
        %v3834 = vadd.f32 %v1092, %v3833
        %3835 = vmatprep.mubr.f32.mxu0 %v418
        %3836 = vmatmul.mubr.f32.gmra.mrb[0].mxu0 %v417
        %v3837 = vpop.f32.mrb[0].mxu0
        %v3838 = vadd.f32 %v1088, %v3837
        %v3839 = vpop.f32.mrb[0].mxu0
        %v3840 = vadd.f32 %v1092, %v3839
        %3841 = vmatprep.mubr.f32.mxu0 %v421
        %3842 = vmatmul.mubr.f32.gmra.mrb[0].mxu0 %v420
        %v3843 = vpop.f32.mrb[0].mxu0
        %v3844 = vadd.f32 %v1088, %v3843
        %v3845 = vpop.f32.mrb[0].mxu0
        %v3846 = vadd.f32 %v1092, %v3845
        %3847 = vmatprep.mubr.f32.mxu0 %v424
        %3848 = vmatmul.mubr.f32.gmra.mrb[0].mxu0 %v423
        %v3849 = vpop.f32.mrb[0].mxu0
        %v3850 = vadd.f32 %v1088, %v3849
        %v3851 = vpop.f32.mrb[0].mxu0
        %v3852 = vadd.f32 %v1092, %v3851
        %3853 = vmatprep.mubr.f32.mxu0 %v427
        %3854 = vmatmul.mubr.f32.gmra.mrb[0].mxu0 %v426
        %v3855 = vpop.f32.mrb[0].mxu0
        %v3856 = vadd.f32 %v1088, %v3855
        %v3857 = vpop.f32.mrb[0].mxu0
        %v3858 = vadd.f32 %v1092, %v3857
        %3859 = vmatprep.mubr.f32.mxu0 %v430
        %3860 = vmatmul.mubr.f32.gmra.mrb[0].mxu0 %v429
        %v3861 = vpop.f32.mrb[0].mxu0
        %v3862 = vadd.f32 %v1088, %v3861
        %v3863 = vpop.f32.mrb[0].mxu0
        %v3864 = vadd.f32 %v1092, %v3863
        %3865 = vmatprep.mubr.f32.mxu0 %v433
        %3866 = vmatmul.mubr.f32.gmra.mrb[0].mxu0 %v432
        %v3867 = vpop.f32.mrb[0].mxu0
        %v3868 = vadd.f32 %v1088, %v3867
        %v3869 = vpop.f32.mrb[0].mxu0
        %v3870 = vadd.f32 %v1092, %v3869
        %3871 = vmatprep.mubr.f32.mxu0 %v436
        %3872 = vmatmul.mubr.f32.gmra.mrb[0].mxu0 %v435
        %v3873 = vpop.f32.mrb[0].mxu0
        %v3874 = vadd.f32 %v1088, %v3873
        %v3875 = vpop.f32.mrb[0].mxu0
        %v3876 = vadd.f32 %v1092, %v3875
        %3877 = vmatprep.mubr.f32.mxu0 %v439
        %3878 = vmatmul.mubr.f32.gmra.mrb[0].mxu0 %v438
        %v3879 = vpop.f32.mrb[0].mxu0
        %v3880 = vadd.f32 %v1088, %v3879
        %v3881 = vpop.f32.mrb[0].mxu0
        %v3882 = vadd.f32 %v1092, %v3881
        %3883 = vmatprep.mubr.f32.mxu0 %v442
        %3884 = vmatmul.mubr.f32.gmra.mrb[0].mxu0 %v441
        %v3885 = vpop.f32.mrb[0].mxu0
        %v3886 = vadd.f32 %v1088, %v3885
        %v3887 = vpop.f32.mrb[0].mxu0
        %v3888 = vadd.f32 %v1092, %v3887
        %3889 = vmatprep.mubr.f32.mxu0 %v445
        %3890 = vmatmul.mubr.f32.gmra.mrb[0].mxu0 %v444
        %v3891 = vpop.f32.mrb[0].mxu0
        %v3892 = vadd.f32 %v1088, %v3891
        %v3893 = vpop.f32.mrb[0].mxu0
        %v3894 = vadd.f32 %v1092, %v3893
        %3895 = vmatprep.mubr.f32.mxu0 %v448
        %3896 = vmatmul.mubr.f32.gmra.mrb[0].mxu0 %v447
        %v3897 = vpop.f32.mrb[0].mxu0
        %v3898 = vadd.f32 %v1088, %v3897
        %v3899 = vpop.f32.mrb[0].mxu0
        %v3900 = vadd.f32 %v1092, %v3899
        %3901 = vmatprep.mubr.f32.mxu0 %v451
        %3902 = vmatmul.mubr.f32.gmra.mrb[0].mxu0 %v450
        %v3903 = vpop.f32.mrb[0].mxu0
        %v3904 = vadd.f32 %v1088, %v3903
        %v3905 = vpop.f32.mrb[0].mxu0
        %v3906 = vadd.f32 %v1092, %v3905
        %3907 = vmatprep.mubr.f32.mxu0 %v454
        %3908 = vmatmul.mubr.f32.gmra.mrb[0].mxu0 %v453
        %v3909 = vpop.f32.mrb[0].mxu0
        %v3910 = vadd.f32 %v1088, %v3909
        %v3911 = vpop.f32.mrb[0].mxu0
        %v3912 = vadd.f32 %v1092, %v3911
        %3913 = vmatprep.mubr.f32.mxu0 %v457
        %3914 = vmatmul.mubr.f32.gmra.mrb[0].mxu0 %v456
        %v3915 = vpop.f32.mrb[0].mxu0
        %v3916 = vadd.f32 %v1088, %v3915
        %v3917 = vpop.f32.mrb[0].mxu0
        %v3918 = vadd.f32 %v1092, %v3917
        %3919 = vmatprep.mubr.f32.mxu0 %v460
        %3920 = vmatmul.mubr.f32.gmra.mrb[0].mxu0 %v459
        %v3921 = vpop.f32.mrb[0].mxu0
        %v3922 = vadd.f32 %v1088, %v3921
        %v3923 = vpop.f32.mrb[0].mxu0
        %v3924 = vadd.f32 %v1092, %v3923
        %3925 = vmatprep.mubr.f32.mxu0 %v463
        %3926 = vmatmul.mubr.f32.gmra.mrb[0].mxu0 %v462
        %v3927 = vpop.f32.mrb[0].mxu0
        %v3928 = vadd.f32 %v1088, %v3927
        %v3929 = vpop.f32.mrb[0].mxu0
        %v3930 = vadd.f32 %v1092, %v3929
        %3931 = vdwg.mxu0
        %3932 = vmatprep.subr.mxu0 %v860
        %3933 = vmatpush1.msra.mxu0 %v859
        %3934 = vmatprep.subr.mxu0 %v872
        %3935 = vmatpush1.msra.mxu0 %v871
        %3936 = vmatprep.subr.mxu0 %v884
        %3937 = vmatpush1.msra.mxu0 %v883
        %3938 = vmatprep.subr.mxu0 %v896
        %3939 = vmatpush1.msra.mxu0 %v895
        %3940 = vmatprep.subr.mxu0 %v908
        %3941 = vmatpush1.msra.mxu0 %v907
        %3942 = vmatprep.subr.mxu0 %v920
        %3943 = vmatpush1.msra.mxu0 %v919
        %3944 = vmatprep.subr.mxu0 %v932
        %3945 = vmatpush1.msra.mxu0 %v931
        %3946 = vmatprep.subr.mxu0 %v944
        %3947 = vmatpush1.msra.mxu0 %v943
        %3948 = vmatprep.subr.mxu0 %v956
        %3949 = vmatpush1.msra.mxu0 %v955
        %3950 = vmatprep.subr.mxu0 %v968
        %3951 = vmatpush1.msra.mxu0 %v967
        %3952 = vmatprep.subr.mxu0 %v980
        %3953 = vmatpush1.msra.mxu0 %v979
        %3954 = vmatprep.subr.mxu0 %v992
        %3955 = vmatpush1.msra.mxu0 %v991
        %3956 = vmatprep.subr.mxu0 %v1004
        %3957 = vmatpush1.msra.mxu0 %v1003
        %3958 = vmatprep.subr.mxu0 %v1016
        %3959 = vmatpush1.msra.mxu0 %v1015
        %3960 = vmatprep.subr.mxu0 %v1028
        %3961 = vmatpush1.msra.mxu0 %v1027
        %3962 = vmatprep.subr.mxu0 %v1040
        %3963 = vmatpush1.msra.mxu0 %v1039
        %3964 = vmatprep.subr.mxu0 0.0
        %3965 = vmatpush1.msra.mxu0 0.0
        %3966 = vmatprep.subr.mxu0 0.0
        %3967 = vmatpush1.msra.mxu0 0.0
        %3968 = vmatprep.subr.mxu0 0.0
        %3969 = vmatpush1.msra.mxu0 0.0
        %3970 = vmatprep.subr.mxu0 0.0
        %3971 = vmatpush1.msra.mxu0 0.0
        %3972 = vmatprep.subr.mxu0 0.0
        %3973 = vmatpush1.msra.mxu0 0.0
        %3974 = vmatprep.subr.mxu0 0.0
        %3975 = vmatpush1.msra.mxu0 0.0
        %3976 = vmatprep.subr.mxu0 0.0
        %3977 = vmatpush1.msra.mxu0 0.0
        %3978 = vmatprep.subr.mxu0 0.0
        %3979 = vmatpush1.msra.mxu0 0.0
        %3980 = vmatprep.subr.mxu0 0.0
        %3981 = vmatpush1.msra.mxu0 0.0
        %3982 = vmatprep.subr.mxu0 0.0
        %3983 = vmatpush1.msra.mxu0 0.0
        %3984 = vmatprep.subr.mxu0 0.0
        %3985 = vmatpush1.msra.mxu0 0.0
        %3986 = vmatprep.subr.mxu0 0.0
        %3987 = vmatpush1.msra.mxu0 0.0
        %3988 = vmatprep.subr.mxu0 0.0
        %3989 = vmatpush1.msra.mxu0 0.0
        %3990 = vmatprep.subr.mxu0 0.0
        %3991 = vmatpush1.msra.mxu0 0.0
        %3992 = vmatprep.subr.mxu0 0.0
        %3993 = vmatpush1.msra.mxu0 0.0
        %3994 = vmatprep.subr.mxu0 0.0
        %3995 = vmatpush1.msra.mxu0 0.0
        %3996 = vmatprep.mubr.f32.mxu0 0.0
        %3997 = vmatmul.mubr.f32.gmra.mrb[0].mxu0 %v371
        %v3998 = vpop.f32.mrb[0].mxu0
        %v3999 = vadd.f32 %v3742, %v3998
        %v4000 = vpop.f32.mrb[0].mxu0
        %v4001 = vadd.f32 %v3744, %v4000
        %4002 = vmatprep.mubr.f32.mxu0 0.0
        %4003 = vmatmul.mubr.f32.gmra.mrb[0].mxu0 %v374
        %v4004 = vpop.f32.mrb[0].mxu0
        %v4005 = vadd.f32 %v3748, %v4004
        %v4006 = vpop.f32.mrb[0].mxu0
        %v4007 = vadd.f32 %v3750, %v4006
        %4008 = vmatprep.mubr.f32.mxu0 0.0
        %4009 = vmatmul.mubr.f32.gmra.mrb[0].mxu0 %v377
        %v4010 = vpop.f32.mrb[0].mxu0
        %v4011 = vadd.f32 %v3754, %v4010
        %v4012 = vpop.f32.mrb[0].mxu0
        %v4013 = vadd.f32 %v3756, %v4012
        %4014 = vmatprep.mubr.f32.mxu0 0.0
        %4015 = vmatmul.mubr.f32.gmra.mrb[0].mxu0 %v380
        %v4016 = vpop.f32.mrb[0].mxu0
        %v4017 = vadd.f32 %v3760, %v4016
        %v4018 = vpop.f32.mrb[0].mxu0
        %v4019 = vadd.f32 %v3762, %v4018
        %4020 = vmatprep.mubr.f32.mxu0 0.0
        %4021 = vmatmul.mubr.f32.gmra.mrb[0].mxu0 %v383
        %v4022 = vpop.f32.mrb[0].mxu0
        %v4023 = vadd.f32 %v3766, %v4022
        %v4024 = vpop.f32.mrb[0].mxu0
        %v4025 = vadd.f32 %v3768, %v4024
        %4026 = vmatprep.mubr.f32.mxu0 0.0
        %4027 = vmatmul.mubr.f32.gmra.mrb[0].mxu0 %v386
        %v4028 = vpop.f32.mrb[0].mxu0
        %v4029 = vadd.f32 %v3772, %v4028
        %v4030 = vpop.f32.mrb[0].mxu0
        %v4031 = vadd.f32 %v3774, %v4030
        %4032 = vmatprep.mubr.f32.mxu0 0.0
        %4033 = vmatmul.mubr.f32.gmra.mrb[0].mxu0 %v389
        %v4034 = vpop.f32.mrb[0].mxu0
        %v4035 = vadd.f32 %v3778, %v4034
        %v4036 = vpop.f32.mrb[0].mxu0
        %v4037 = vadd.f32 %v3780, %v4036
        %4038 = vmatprep.mubr.f32.mxu0 0.0
        %4039 = vmatmul.mubr.f32.gmra.mrb[0].mxu0 %v392
        %v4040 = vpop.f32.mrb[0].mxu0
        %v4041 = vadd.f32 %v3784, %v4040
        %v4042 = vpop.f32.mrb[0].mxu0
        %v4043 = vadd.f32 %v3786, %v4042
        %4044 = vmatprep.mubr.f32.mxu0 0.0
        %4045 = vmatmul.mubr.f32.gmra.mrb[0].mxu0 %v395
        %v4046 = vpop.f32.mrb[0].mxu0
        %v4047 = vadd.f32 %v3790, %v4046
        %v4048 = vpop.f32.mrb[0].mxu0
        %v4049 = vadd.f32 %v3792, %v4048
        %4050 = vmatprep.mubr.f32.mxu0 0.0
        %4051 = vmatmul.mubr.f32.gmra.mrb[0].mxu0 %v398
        %v4052 = vpop.f32.mrb[0].mxu0
        %v4053 = vadd.f32 %v3796, %v4052
        %v4054 = vpop.f32.mrb[0].mxu0
        %v4055 = vadd.f32 %v3798, %v4054
        %4056 = vmatprep.mubr.f32.mxu0 0.0
        %4057 = vmatmul.mubr.f32.gmra.mrb[0].mxu0 %v401
        %v4058 = vpop.f32.mrb[0].mxu0
        %v4059 = vadd.f32 %v3802, %v4058
        %v4060 = vpop.f32.mrb[0].mxu0
        %v4061 = vadd.f32 %v3804, %v4060
        %4062 = vmatprep.mubr.f32.mxu0 0.0
        %4063 = vmatmul.mubr.f32.gmra.mrb[0].mxu0 %v404
        %v4064 = vpop.f32.mrb[0].mxu0
        %v4065 = vadd.f32 %v3808, %v4064
        %v4066 = vpop.f32.mrb[0].mxu0
        %v4067 = vadd.f32 %v3810, %v4066
        %4068 = vmatprep.mubr.f32.mxu0 0.0
        %4069 = vmatmul.mubr.f32.gmra.mrb[0].mxu0 %v407
        %v4070 = vpop.f32.mrb[0].mxu0
        %v4071 = vadd.f32 %v3814, %v4070
        %v4072 = vpop.f32.mrb[0].mxu0
        %v4073 = vadd.f32 %v3816, %v4072
        %4074 = vmatprep.mubr.f32.mxu0 0.0
        %4075 = vmatmul.mubr.f32.gmra.mrb[0].mxu0 %v410
        %v4076 = vpop.f32.mrb[0].mxu0
        %v4077 = vadd.f32 %v3820, %v4076
        %v4078 = vpop.f32.mrb[0].mxu0
        %v4079 = vadd.f32 %v3822, %v4078
        %4080 = vmatprep.mubr.f32.mxu0 0.0
        %4081 = vmatmul.mubr.f32.gmra.mrb[0].mxu0 %v413
        %v4082 = vpop.f32.mrb[0].mxu0
        %v4083 = vadd.f32 %v3826, %v4082
        %v4084 = vpop.f32.mrb[0].mxu0
        %v4085 = vadd.f32 %v3828, %v4084
        %4086 = vmatprep.mubr.f32.mxu0 0.0
        %4087 = vmatmul.mubr.f32.gmra.mrb[0].mxu0 %v416
        %v4088 = vpop.f32.mrb[0].mxu0
        %v4089 = vadd.f32 %v3832, %v4088
        %v4090 = vpop.f32.mrb[0].mxu0
        %v4091 = vadd.f32 %v3834, %v4090
        %4092 = vmatprep.mubr.f32.mxu0 0.0
        %4093 = vmatmul.mubr.f32.gmra.mrb[0].mxu0 %v419
        %v4094 = vpop.f32.mrb[0].mxu0
        %v4095 = vadd.f32 %v3838, %v4094
        %v4096 = vpop.f32.mrb[0].mxu0
        %v4097 = vadd.f32 %v3840, %v4096
        %4098 = vmatprep.mubr.f32.mxu0 0.0
        %4099 = vmatmul.mubr.f32.gmra.mrb[0].mxu0 %v422
        %v4100 = vpop.f32.mrb[0].mxu0
        %v4101 = vadd.f32 %v3844, %v4100
        %v4102 = vpop.f32.mrb[0].mxu0
        %v4103 = vadd.f32 %v3846, %v4102
        %4104 = vmatprep.mubr.f32.mxu0 0.0
        %4105 = vmatmul.mubr.f32.gmra.mrb[0].mxu0 %v425
        %v4106 = vpop.f32.mrb[0].mxu0
        %v4107 = vadd.f32 %v3850, %v4106
        %v4108 = vpop.f32.mrb[0].mxu0
        %v4109 = vadd.f32 %v3852, %v4108
        %4110 = vmatprep.mubr.f32.mxu0 0.0
        %4111 = vmatmul.mubr.f32.gmra.mrb[0].mxu0 %v428
        %v4112 = vpop.f32.mrb[0].mxu0
        %v4113 = vadd.f32 %v3856, %v4112
        %v4114 = vpop.f32.mrb[0].mxu0
        %v4115 = vadd.f32 %v3858, %v4114
        %4116 = vmatprep.mubr.f32.mxu0 0.0
        %4117 = vmatmul.mubr.f32.gmra.mrb[0].mxu0 %v431
        %v4118 = vpop.f32.mrb[0].mxu0
        %v4119 = vadd.f32 %v3862, %v4118
        %v4120 = vpop.f32.mrb[0].mxu0
        %v4121 = vadd.f32 %v3864, %v4120
        %4122 = vmatprep.mubr.f32.mxu0 0.0
        %4123 = vmatmul.mubr.f32.gmra.mrb[0].mxu0 %v434
        %v4124 = vpop.f32.mrb[0].mxu0
        %v4125 = vadd.f32 %v3868, %v4124
        %v4126 = vpop.f32.mrb[0].mxu0
        %v4127 = vadd.f32 %v3870, %v4126
        %4128 = vmatprep.mubr.f32.mxu0 0.0
        %4129 = vmatmul.mubr.f32.gmra.mrb[0].mxu0 %v437
        %v4130 = vpop.f32.mrb[0].mxu0
        %v4131 = vadd.f32 %v3874, %v4130
        %v4132 = vpop.f32.mrb[0].mxu0
        %v4133 = vadd.f32 %v3876, %v4132
        %4134 = vmatprep.mubr.f32.mxu0 0.0
        %4135 = vmatmul.mubr.f32.gmra.mrb[0].mxu0 %v440
        %v4136 = vpop.f32.mrb[0].mxu0
        %v4137 = vadd.f32 %v3880, %v4136
        %v4138 = vpop.f32.mrb[0].mxu0
        %v4139 = vadd.f32 %v3882, %v4138
        %4140 = vmatprep.mubr.f32.mxu0 0.0
        %4141 = vmatmul.mubr.f32.gmra.mrb[0].mxu0 %v443
        %v4142 = vpop.f32.mrb[0].mxu0
        %v4143 = vadd.f32 %v3886, %v4142
        %v4144 = vpop.f32.mrb[0].mxu0
        %v4145 = vadd.f32 %v3888, %v4144
        %4146 = vmatprep.mubr.f32.mxu0 0.0
        %4147 = vmatmul.mubr.f32.gmra.mrb[0].mxu0 %v446
        %v4148 = vpop.f32.mrb[0].mxu0
        %v4149 = vadd.f32 %v3892, %v4148
        %v4150 = vpop.f32.mrb[0].mxu0
        %v4151 = vadd.f32 %v3894, %v4150
        %4152 = vmatprep.mubr.f32.mxu0 0.0
        %4153 = vmatmul.mubr.f32.gmra.mrb[0].mxu0 %v449
        %v4154 = vpop.f32.mrb[0].mxu0
        %v4155 = vadd.f32 %v3898, %v4154
        %v4156 = vpop.f32.mrb[0].mxu0
        %v4157 = vadd.f32 %v3900, %v4156
        %4158 = vmatprep.mubr.f32.mxu0 0.0
        %4159 = vmatmul.mubr.f32.gmra.mrb[0].mxu0 %v452
        %v4160 = vpop.f32.mrb[0].mxu0
        %v4161 = vadd.f32 %v3904, %v4160
        %v4162 = vpop.f32.mrb[0].mxu0
        %v4163 = vadd.f32 %v3906, %v4162
        %4164 = vmatprep.mubr.f32.mxu0 0.0
        %4165 = vmatmul.mubr.f32.gmra.mrb[0].mxu0 %v455
        %v4166 = vpop.f32.mrb[0].mxu0
        %v4167 = vadd.f32 %v3910, %v4166
        %v4168 = vpop.f32.mrb[0].mxu0
        %v4169 = vadd.f32 %v3912, %v4168
        %4170 = vmatprep.mubr.f32.mxu0 0.0
        %4171 = vmatmul.mubr.f32.gmra.mrb[0].mxu0 %v458
        %v4172 = vpop.f32.mrb[0].mxu0
        %v4173 = vadd.f32 %v3916, %v4172
        %v4174 = vpop.f32.mrb[0].mxu0
        %v4175 = vadd.f32 %v3918, %v4174
        %4176 = vmatprep.mubr.f32.mxu0 0.0
        %4177 = vmatmul.mubr.f32.gmra.mrb[0].mxu0 %v461
        %v4178 = vpop.f32.mrb[0].mxu0
        %v4179 = vadd.f32 %v3922, %v4178
        %v4180 = vpop.f32.mrb[0].mxu0
        %v4181 = vadd.f32 %v3924, %v4180
        %4182 = vmatprep.mubr.f32.mxu0 0.0
        %4183 = vmatmul.mubr.f32.gmra.mrb[0].mxu0 %v464
        %v4184 = vpop.f32.mrb[0].mxu0
        %v4185 = vadd.f32 %v3928, %v4184
        %v4186 = vpop.f32.mrb[0].mxu0
        %v4187 = vadd.f32 %v3930, %v4186
        %4188 = vdwg.mxu0
        %v4189 = vmax.f32 %v1429, 0.0
        %v4190 = vmax.f32 %v1431, 0.0
        %v4191 = vmax.f32 %v1943, 0.0
        %v4192 = vmax.f32 %v1945, 0.0
        %v4193 = vmax.f32 %v2457, 0.0
        %v4194 = vmax.f32 %v2459, 0.0
        %v4195 = vmax.f32 %v2971, 0.0
        %v4196 = vmax.f32 %v2973, 0.0
        %v4197 = vmax.f32 %v3485, 0.0
        %v4198 = vmax.f32 %v3487, 0.0
        %v4199 = vmax.f32 %v3999, 0.0
        %v4200 = vmax.f32 %v4001, 0.0
        %v4201 = vmax.f32 %v1435, 0.0
        %v4202 = vmax.f32 %v1437, 0.0
        %v4203 = vmax.f32 %v1949, 0.0
        %v4204 = vmax.f32 %v1951, 0.0
        %v4205 = vmax.f32 %v2463, 0.0
        %v4206 = vmax.f32 %v2465, 0.0
        %v4207 = vmax.f32 %v2977, 0.0
        %v4208 = vmax.f32 %v2979, 0.0
        %v4209 = vmax.f32 %v3491, 0.0
        %v4210 = vmax.f32 %v3493, 0.0
        %v4211 = vmax.f32 %v4005, 0.0
        %v4212 = vmax.f32 %v4007, 0.0
        %v4213 = vmax.f32 %v1441, 0.0
        %v4214 = vmax.f32 %v1443, 0.0
        %v4215 = vmax.f32 %v1955, 0.0
        %v4216 = vmax.f32 %v1957, 0.0
        %v4217 = vmax.f32 %v2469, 0.0
        %v4218 = vmax.f32 %v2471, 0.0
        %v4219 = vmax.f32 %v2983, 0.0
        %v4220 = vmax.f32 %v2985, 0.0
        %v4221 = vmax.f32 %v3497, 0.0
        %v4222 = vmax.f32 %v3499, 0.0
        %v4223 = vmax.f32 %v4011, 0.0
        %v4224 = vmax.f32 %v4013, 0.0
        %v4225 = vmax.f32 %v1447, 0.0
        %v4226 = vmax.f32 %v1449, 0.0
        %v4227 = vmax.f32 %v1961, 0.0
        %v4228 = vmax.f32 %v1963, 0.0
        %v4229 = vmax.f32 %v2475, 0.0
        %v4230 = vmax.f32 %v2477, 0.0
        %v4231 = vmax.f32 %v2989, 0.0
        %v4232 = vmax.f32 %v2991, 0.0
        %v4233 = vmax.f32 %v3503, 0.0
        %v4234 = vmax.f32 %v3505, 0.0
        %v4235 = vmax.f32 %v4017, 0.0
        %v4236 = vmax.f32 %v4019, 0.0
        %v4237 = vmax.f32 %v1453, 0.0
        %v4238 = vmax.f32 %v1455, 0.0
        %v4239 = vmax.f32 %v1967, 0.0
        %v4240 = vmax.f32 %v1969, 0.0
        %v4241 = vmax.f32 %v2481, 0.0
        %v4242 = vmax.f32 %v2483, 0.0
        %v4243 = vmax.f32 %v2995, 0.0
        %v4244 = vmax.f32 %v2997, 0.0
        %v4245 = vmax.f32 %v3509, 0.0
        %v4246 = vmax.f32 %v3511, 0.0
        %v4247 = vmax.f32 %v4023, 0.0
        %v4248 = vmax.f32 %v4025, 0.0
        %v4249 = vmax.f32 %v1459, 0.0
        %v4250 = vmax.f32 %v1461, 0.0
        %v4251 = vmax.f32 %v1973, 0.0
        %v4252 = vmax.f32 %v1975, 0.0
        %v4253 = vmax.f32 %v2487, 0.0
        %v4254 = vmax.f32 %v2489, 0.0
        %v4255 = vmax.f32 %v3001, 0.0
        %v4256 = vmax.f32 %v3003, 0.0
        %v4257 = vmax.f32 %v3515, 0.0
        %v4258 = vmax.f32 %v3517, 0.0
        %v4259 = vmax.f32 %v4029, 0.0
        %v4260 = vmax.f32 %v4031, 0.0
        %v4261 = vmax.f32 %v1465, 0.0
        %v4262 = vmax.f32 %v1467, 0.0
        %v4263 = vmax.f32 %v1979, 0.0
        %v4264 = vmax.f32 %v1981, 0.0
        %v4265 = vmax.f32 %v2493, 0.0
        %v4266 = vmax.f32 %v2495, 0.0
        %v4267 = vmax.f32 %v3007, 0.0
        %v4268 = vmax.f32 %v3009, 0.0
        %v4269 = vmax.f32 %v3521, 0.0
        %v4270 = vmax.f32 %v3523, 0.0
        %v4271 = vmax.f32 %v4035, 0.0
        %v4272 = vmax.f32 %v4037, 0.0
        %v4273 = vmax.f32 %v1471, 0.0
        %v4274 = vmax.f32 %v1473, 0.0
        %v4275 = vmax.f32 %v1985, 0.0
        %v4276 = vmax.f32 %v1987, 0.0
        %v4277 = vmax.f32 %v2499, 0.0
        %v4278 = vmax.f32 %v2501, 0.0
        %v4279 = vmax.f32 %v3013, 0.0
        %v4280 = vmax.f32 %v3015, 0.0
        %v4281 = vmax.f32 %v3527, 0.0
        %v4282 = vmax.f32 %v3529, 0.0
        %v4283 = vmax.f32 %v4041, 0.0
        %v4284 = vmax.f32 %v4043, 0.0
        %v4285 = vmax.f32 %v1477, 0.0
        %v4286 = vmax.f32 %v1479, 0.0
        %v4287 = vmax.f32 %v1991, 0.0
        %v4288 = vmax.f32 %v1993, 0.0
        %v4289 = vmax.f32 %v2505, 0.0
        %v4290 = vmax.f32 %v2507, 0.0
        %v4291 = vmax.f32 %v3019, 0.0
        %v4292 = vmax.f32 %v3021, 0.0
        %v4293 = vmax.f32 %v3533, 0.0
        %v4294 = vmax.f32 %v3535, 0.0
        %v4295 = vmax.f32 %v4047, 0.0
        %v4296 = vmax.f32 %v4049, 0.0
        %v4297 = vmax.f32 %v1483, 0.0
        %v4298 = vmax.f32 %v1485, 0.0
        %v4299 = vmax.f32 %v1997, 0.0
        %v4300 = vmax.f32 %v1999, 0.0
        %v4301 = vmax.f32 %v2511, 0.0
        %v4302 = vmax.f32 %v2513, 0.0
        %v4303 = vmax.f32 %v3025, 0.0
        %v4304 = vmax.f32 %v3027, 0.0
        %v4305 = vmax.f32 %v3539, 0.0
        %v4306 = vmax.f32 %v3541, 0.0
        %v4307 = vmax.f32 %v4053, 0.0
        %v4308 = vmax.f32 %v4055, 0.0
        %v4309 = vmax.f32 %v1489, 0.0
        %v4310 = vmax.f32 %v1491, 0.0
        %v4311 = vmax.f32 %v2003, 0.0
        %v4312 = vmax.f32 %v2005, 0.0
        %v4313 = vmax.f32 %v2517, 0.0
        %v4314 = vmax.f32 %v2519, 0.0
        %v4315 = vmax.f32 %v3031, 0.0
        %v4316 = vmax.f32 %v3033, 0.0
        %v4317 = vmax.f32 %v3545, 0.0
        %v4318 = vmax.f32 %v3547, 0.0
        %v4319 = vmax.f32 %v4059, 0.0
        %v4320 = vmax.f32 %v4061, 0.0
        %v4321 = vmax.f32 %v1495, 0.0
        %v4322 = vmax.f32 %v1497, 0.0
        %v4323 = vmax.f32 %v2009, 0.0
        %v4324 = vmax.f32 %v2011, 0.0
        %v4325 = vmax.f32 %v2523, 0.0
        %v4326 = vmax.f32 %v2525, 0.0
        %v4327 = vmax.f32 %v3037, 0.0
        %v4328 = vmax.f32 %v3039, 0.0
        %v4329 = vmax.f32 %v3551, 0.0
        %v4330 = vmax.f32 %v3553, 0.0
        %v4331 = vmax.f32 %v4065, 0.0
        %v4332 = vmax.f32 %v4067, 0.0
        %v4333 = vmax.f32 %v1501, 0.0
        %v4334 = vmax.f32 %v1503, 0.0
        %v4335 = vmax.f32 %v2015, 0.0
        %v4336 = vmax.f32 %v2017, 0.0
        %v4337 = vmax.f32 %v2529, 0.0
        %v4338 = vmax.f32 %v2531, 0.0
        %v4339 = vmax.f32 %v3043, 0.0
        %v4340 = vmax.f32 %v3045, 0.0
        %v4341 = vmax.f32 %v3557, 0.0
        %v4342 = vmax.f32 %v3559, 0.0
        %v4343 = vmax.f32 %v4071, 0.0
        %v4344 = vmax.f32 %v4073, 0.0
        %v4345 = vmax.f32 %v1507, 0.0
        %v4346 = vmax.f32 %v1509, 0.0
        %v4347 = vmax.f32 %v2021, 0.0
        %v4348 = vmax.f32 %v2023, 0.0
        %v4349 = vmax.f32 %v2535, 0.0
        %v4350 = vmax.f32 %v2537, 0.0
        %v4351 = vmax.f32 %v3049, 0.0
        %v4352 = vmax.f32 %v3051, 0.0
        %v4353 = vmax.f32 %v3563, 0.0
        %v4354 = vmax.f32 %v3565, 0.0
        %v4355 = vmax.f32 %v4077, 0.0
        %v4356 = vmax.f32 %v4079, 0.0
        %v4357 = vmax.f32 %v1513, 0.0
        %v4358 = vmax.f32 %v1515, 0.0
        %v4359 = vmax.f32 %v2027, 0.0
        %v4360 = vmax.f32 %v2029, 0.0
        %v4361 = vmax.f32 %v2541, 0.0
        %v4362 = vmax.f32 %v2543, 0.0
        %v4363 = vmax.f32 %v3055, 0.0
        %v4364 = vmax.f32 %v3057, 0.0
        %v4365 = vmax.f32 %v3569, 0.0
        %v4366 = vmax.f32 %v3571, 0.0
        %v4367 = vmax.f32 %v4083, 0.0
        %v4368 = vmax.f32 %v4085, 0.0
        %v4369 = vmax.f32 %v1519, 0.0
        %v4370 = vmax.f32 %v1521, 0.0
        %v4371 = vmax.f32 %v2033, 0.0
        %v4372 = vmax.f32 %v2035, 0.0
        %v4373 = vmax.f32 %v2547, 0.0
        %v4374 = vmax.f32 %v2549, 0.0
        %v4375 = vmax.f32 %v3061, 0.0
        %v4376 = vmax.f32 %v3063, 0.0
        %v4377 = vmax.f32 %v3575, 0.0
        %v4378 = vmax.f32 %v3577, 0.0
        %v4379 = vmax.f32 %v4089, 0.0
        %v4380 = vmax.f32 %v4091, 0.0
        %v4381 = vmax.f32 %v1525, 0.0
        %v4382 = vmax.f32 %v1527, 0.0
        %v4383 = vmax.f32 %v2039, 0.0
        %v4384 = vmax.f32 %v2041, 0.0
        %v4385 = vmax.f32 %v2553, 0.0
        %v4386 = vmax.f32 %v2555, 0.0
        %v4387 = vmax.f32 %v3067, 0.0
        %v4388 = vmax.f32 %v3069, 0.0
        %v4389 = vmax.f32 %v3581, 0.0
        %v4390 = vmax.f32 %v3583, 0.0
        %v4391 = vmax.f32 %v4095, 0.0
        %v4392 = vmax.f32 %v4097, 0.0
        %v4393 = vmax.f32 %v1531, 0.0
        %v4394 = vmax.f32 %v1533, 0.0
        %v4395 = vmax.f32 %v2045, 0.0
        %v4396 = vmax.f32 %v2047, 0.0
        %v4397 = vmax.f32 %v2559, 0.0
        %v4398 = vmax.f32 %v2561, 0.0
        %v4399 = vmax.f32 %v3073, 0.0
        %v4400 = vmax.f32 %v3075, 0.0
        %v4401 = vmax.f32 %v3587, 0.0
        %v4402 = vmax.f32 %v3589, 0.0
        %v4403 = vmax.f32 %v4101, 0.0
        %v4404 = vmax.f32 %v4103, 0.0
        %v4405 = vmax.f32 %v1537, 0.0
        %v4406 = vmax.f32 %v1539, 0.0
        %v4407 = vmax.f32 %v2051, 0.0
        %v4408 = vmax.f32 %v2053, 0.0
        %v4409 = vmax.f32 %v2565, 0.0
        %v4410 = vmax.f32 %v2567, 0.0
        %v4411 = vmax.f32 %v3079, 0.0
        %v4412 = vmax.f32 %v3081, 0.0
        %v4413 = vmax.f32 %v3593, 0.0
        %v4414 = vmax.f32 %v3595, 0.0
        %v4415 = vmax.f32 %v4107, 0.0
        %v4416 = vmax.f32 %v4109, 0.0
        %v4417 = vmax.f32 %v1543, 0.0
        %v4418 = vmax.f32 %v1545, 0.0
        %v4419 = vmax.f32 %v2057, 0.0
        %v4420 = vmax.f32 %v2059, 0.0
        %v4421 = vmax.f32 %v2571, 0.0
        %v4422 = vmax.f32 %v2573, 0.0
        %v4423 = vmax.f32 %v3085, 0.0
        %v4424 = vmax.f32 %v3087, 0.0
        %v4425 = vmax.f32 %v3599, 0.0
        %v4426 = vmax.f32 %v3601, 0.0
        %v4427 = vmax.f32 %v4113, 0.0
        %v4428 = vmax.f32 %v4115, 0.0
        %v4429 = vmax.f32 %v1549, 0.0
        %v4430 = vmax.f32 %v1551, 0.0
        %v4431 = vmax.f32 %v2063, 0.0
        %v4432 = vmax.f32 %v2065, 0.0
        %v4433 = vmax.f32 %v2577, 0.0
        %v4434 = vmax.f32 %v2579, 0.0
        %v4435 = vmax.f32 %v3091, 0.0
        %v4436 = vmax.f32 %v3093, 0.0
        %v4437 = vmax.f32 %v3605, 0.0
        %v4438 = vmax.f32 %v3607, 0.0
        %v4439 = vmax.f32 %v4119, 0.0
        %v4440 = vmax.f32 %v4121, 0.0
        %v4441 = vmax.f32 %v1555, 0.0
        %v4442 = vmax.f32 %v1557, 0.0
        %v4443 = vmax.f32 %v2069, 0.0
        %v4444 = vmax.f32 %v2071, 0.0
        %v4445 = vmax.f32 %v2583, 0.0
        %v4446 = vmax.f32 %v2585, 0.0
        %v4447 = vmax.f32 %v3097, 0.0
        %v4448 = vmax.f32 %v3099, 0.0
        %v4449 = vmax.f32 %v3611, 0.0
        %v4450 = vmax.f32 %v3613, 0.0
        %v4451 = vmax.f32 %v4125, 0.0
        %v4452 = vmax.f32 %v4127, 0.0
        %v4453 = vmax.f32 %v1561, 0.0
        %v4454 = vmax.f32 %v1563, 0.0
        %v4455 = vmax.f32 %v2075, 0.0
        %v4456 = vmax.f32 %v2077, 0.0
        %v4457 = vmax.f32 %v2589, 0.0
        %v4458 = vmax.f32 %v2591, 0.0
        %v4459 = vmax.f32 %v3103, 0.0
        %v4460 = vmax.f32 %v3105, 0.0
        %v4461 = vmax.f32 %v3617, 0.0
        %v4462 = vmax.f32 %v3619, 0.0
        %v4463 = vmax.f32 %v4131, 0.0
        %v4464 = vmax.f32 %v4133, 0.0
        %v4465 = vmax.f32 %v1567, 0.0
        %v4466 = vmax.f32 %v1569, 0.0
        %v4467 = vmax.f32 %v2081, 0.0
        %v4468 = vmax.f32 %v2083, 0.0
        %v4469 = vmax.f32 %v2595, 0.0
        %v4470 = vmax.f32 %v2597, 0.0
        %v4471 = vmax.f32 %v3109, 0.0
        %v4472 = vmax.f32 %v3111, 0.0
        %v4473 = vmax.f32 %v3623, 0.0
        %v4474 = vmax.f32 %v3625, 0.0
        %v4475 = vmax.f32 %v4137, 0.0
        %v4476 = vmax.f32 %v4139, 0.0
        %v4477 = vmax.f32 %v1573, 0.0
        %v4478 = vmax.f32 %v1575, 0.0
        %v4479 = vmax.f32 %v2087, 0.0
        %v4480 = vmax.f32 %v2089, 0.0
        %v4481 = vmax.f32 %v2601, 0.0
        %v4482 = vmax.f32 %v2603, 0.0
        %v4483 = vmax.f32 %v3115, 0.0
        %v4484 = vmax.f32 %v3117, 0.0
        %v4485 = vmax.f32 %v3629, 0.0
        %v4486 = vmax.f32 %v3631, 0.0
        %v4487 = vmax.f32 %v4143, 0.0
        %v4488 = vmax.f32 %v4145, 0.0
        %v4489 = vmax.f32 %v1579, 0.0
        %v4490 = vmax.f32 %v1581, 0.0
        %v4491 = vmax.f32 %v2093, 0.0
        %v4492 = vmax.f32 %v2095, 0.0
        %v4493 = vmax.f32 %v2607, 0.0
        %v4494 = vmax.f32 %v2609, 0.0
        %v4495 = vmax.f32 %v3121, 0.0
        %v4496 = vmax.f32 %v3123, 0.0
        %v4497 = vmax.f32 %v3635, 0.0
        %v4498 = vmax.f32 %v3637, 0.0
        %v4499 = vmax.f32 %v4149, 0.0
        %v4500 = vmax.f32 %v4151, 0.0
        %v4501 = vmax.f32 %v1585, 0.0
        %v4502 = vmax.f32 %v1587, 0.0
        %v4503 = vmax.f32 %v2099, 0.0
        %v4504 = vmax.f32 %v2101, 0.0
        %v4505 = vmax.f32 %v2613, 0.0
        %v4506 = vmax.f32 %v2615, 0.0
        %v4507 = vmax.f32 %v3127, 0.0
        %v4508 = vmax.f32 %v3129, 0.0
        %v4509 = vmax.f32 %v3641, 0.0
        %v4510 = vmax.f32 %v3643, 0.0
        %v4511 = vmax.f32 %v4155, 0.0
        %v4512 = vmax.f32 %v4157, 0.0
        %v4513 = vmax.f32 %v1591, 0.0
        %v4514 = vmax.f32 %v1593, 0.0
        %v4515 = vmax.f32 %v2105, 0.0
        %v4516 = vmax.f32 %v2107, 0.0
        %v4517 = vmax.f32 %v2619, 0.0
        %v4518 = vmax.f32 %v2621, 0.0
        %v4519 = vmax.f32 %v3133, 0.0
        %v4520 = vmax.f32 %v3135, 0.0
        %v4521 = vmax.f32 %v3647, 0.0
        %v4522 = vmax.f32 %v3649, 0.0
        %v4523 = vmax.f32 %v4161, 0.0
        %v4524 = vmax.f32 %v4163, 0.0
        %v4525 = vmax.f32 %v1597, 0.0
        %v4526 = vmax.f32 %v1599, 0.0
        %v4527 = vmax.f32 %v2111, 0.0
        %v4528 = vmax.f32 %v2113, 0.0
        %v4529 = vmax.f32 %v2625, 0.0
        %v4530 = vmax.f32 %v2627, 0.0
        %v4531 = vmax.f32 %v3139, 0.0
        %v4532 = vmax.f32 %v3141, 0.0
        %v4533 = vmax.f32 %v3653, 0.0
        %v4534 = vmax.f32 %v3655, 0.0
        %v4535 = vmax.f32 %v4167, 0.0
        %v4536 = vmax.f32 %v4169, 0.0
        %v4537 = vmax.f32 %v1603, 0.0
        %v4538 = vmax.f32 %v1605, 0.0
        %v4539 = vmax.f32 %v2117, 0.0
        %v4540 = vmax.f32 %v2119, 0.0
        %v4541 = vmax.f32 %v2631, 0.0
        %v4542 = vmax.f32 %v2633, 0.0
        %v4543 = vmax.f32 %v3145, 0.0
        %v4544 = vmax.f32 %v3147, 0.0
        %v4545 = vmax.f32 %v3659, 0.0
        %v4546 = vmax.f32 %v3661, 0.0
        %v4547 = vmax.f32 %v4173, 0.0
        %v4548 = vmax.f32 %v4175, 0.0
        %v4549 = vmax.f32 %v1609, 0.0
        %v4550 = vmax.f32 %v1611, 0.0
        %v4551 = vmax.f32 %v2123, 0.0
        %v4552 = vmax.f32 %v2125, 0.0
        %v4553 = vmax.f32 %v2637, 0.0
        %v4554 = vmax.f32 %v2639, 0.0
        %v4555 = vmax.f32 %v3151, 0.0
        %v4556 = vmax.f32 %v3153, 0.0
        %v4557 = vmax.f32 %v3665, 0.0
        %v4558 = vmax.f32 %v3667, 0.0
        %v4559 = vmax.f32 %v4179, 0.0
        %v4560 = vmax.f32 %v4181, 0.0
        %v4561 = vmax.f32 %v1615, 0.0
        %v4562 = vmax.f32 %v1617, 0.0
        %v4563 = vmax.f32 %v2129, 0.0
        %v4564 = vmax.f32 %v2131, 0.0
        %v4565 = vmax.f32 %v2643, 0.0
        %v4566 = vmax.f32 %v2645, 0.0
        %v4567 = vmax.f32 %v3157, 0.0
        %v4568 = vmax.f32 %v3159, 0.0
        %v4569 = vmax.f32 %v3671, 0.0
        %v4570 = vmax.f32 %v3673, 0.0
        %v4571 = vmax.f32 %v4185, 0.0
        %v4572 = vmax.f32 %v4187, 0.0
        %v4573 = vld [vmem:[#allocation8] sm:$0xff]
        %v4574 = vld [vmem:[#allocation8 + $0x8] sm:$0xff]
        %v4575 = vld [vmem:[#allocation8 + $0x10] sm:$0xff]
        %v4576 = vld [vmem:[#allocation8 + $0x18] sm:$0xff]
        %v4577 = vld [vmem:[#allocation8 + $0x20] sm:$0xff]
        %v4578 = vld [vmem:[#allocation8 + $0x28] sm:$0xff]
        %v4579 = vld [vmem:[#allocation8 + $0x30] sm:$0xff]
        %v4580 = vld [vmem:[#allocation8 + $0x38] sm:$0xff]
        %v4581 = vld [vmem:[#allocation8 + $0x40] sm:$0xff]
        %v4582 = vld [vmem:[#allocation8 + $0x48] sm:$0xff]
        %v4583 = vld [vmem:[#allocation8 + $0x50] sm:$0xff]
        %v4584 = vld [vmem:[#allocation8 + $0x58] sm:$0xff]
        %v4585 = vld [vmem:[#allocation8 + $0x60] sm:$0xff]
        %v4586 = vld [vmem:[#allocation8 + $0x68] sm:$0xff]
        %v4587 = vld [vmem:[#allocation8 + $0x70] sm:$0xff]
        %v4588 = vld [vmem:[#allocation8 + $0x78] sm:$0xff]
        %v4589 = vld [vmem:[#allocation8 + $0x80] sm:$0xff]
        %v4590 = vld [vmem:[#allocation8 + $0x88] sm:$0xff]
        %v4591 = vld [vmem:[#allocation8 + $0x90] sm:$0xff]
        %v4592 = vld [vmem:[#allocation8 + $0x98] sm:$0xff]
        %v4593 = vld [vmem:[#allocation8 + $0xa0] sm:$0xff]
        %v4594 = vld [vmem:[#allocation8 + $0xa8] sm:$0xff]
        %v4595 = vld [vmem:[#allocation8 + $0xb0] sm:$0xff]
        %v4596 = vld [vmem:[#allocation8 + $0xb8] sm:$0xff]
        %v4597 = vld [vmem:[#allocation8 + $0xc0] sm:$0xff]
        %v4598 = vld [vmem:[#allocation8 + $0xc8] sm:$0xff]
        %v4599 = vld [vmem:[#allocation8 + $0xd0] sm:$0xff]
        %v4600 = vld [vmem:[#allocation8 + $0xd8] sm:$0xff]
        %v4601 = vld [vmem:[#allocation8 + $0xe0] sm:$0xff]
        %v4602 = vld [vmem:[#allocation8 + $0xe8] sm:$0xff]
        %v4603 = vld [vmem:[#allocation8 + $0xf0] sm:$0xff]
        %v4604 = vld [vmem:[#allocation8 + $0xf8] sm:$0xff]
        %v4605 = vld [vmem:[#allocation8 + $0x100] sm:$0xff]
        %v4606 = vld [vmem:[#allocation8 + $0x108] sm:$0xff]
        %v4607 = vld [vmem:[#allocation8 + $0x110] sm:$0xff]
        %v4608 = vld [vmem:[#allocation8 + $0x118] sm:$0xff]
        %v4609 = vld [vmem:[#allocation8 + $0x120] sm:$0xff]
        %v4610 = vld [vmem:[#allocation8 + $0x128] sm:$0xff]
        %v4611 = vld [vmem:[#allocation8 + $0x130] sm:$0xff]
        %v4612 = vld [vmem:[#allocation8 + $0x138] sm:$0xff]
        %v4613 = vld [vmem:[#allocation8 + $0x140] sm:$0xff]
        %v4614 = vld [vmem:[#allocation8 + $0x148] sm:$0xff]
        %v4615 = vld [vmem:[#allocation8 + $0x150] sm:$0xff]
        %v4616 = vld [vmem:[#allocation8 + $0x158] sm:$0xff]
        %v4617 = vld [vmem:[#allocation8 + $0x160] sm:$0xff]
        %v4618 = vld [vmem:[#allocation8 + $0x168] sm:$0xff]
        %v4619 = vld [vmem:[#allocation8 + $0x170] sm:$0xff]
        %v4620 = vld [vmem:[#allocation8 + $0x178] sm:$0xff]
        %v4621 = vld [vmem:[#allocation8 + $0x180] sm:$0xff]
        %v4622 = vld [vmem:[#allocation8 + $0x188] sm:$0xff]
        %v4623 = vld [vmem:[#allocation8 + $0x190] sm:$0xff]
        %v4624 = vld [vmem:[#allocation8 + $0x198] sm:$0xff]
        %v4625 = vld [vmem:[#allocation8 + $0x1a0] sm:$0xff]
        %v4626 = vld [vmem:[#allocation8 + $0x1a8] sm:$0xff]
        %v4627 = vld [vmem:[#allocation8 + $0x1b0] sm:$0xff]
        %v4628 = vld [vmem:[#allocation8 + $0x1b8] sm:$0xff]
        %v4629 = vld [vmem:[#allocation8 + $0x1c0] sm:$0xff]
        %v4630 = vld [vmem:[#allocation8 + $0x1c8] sm:$0xff]
        %v4631 = vld [vmem:[#allocation8 + $0x1d0] sm:$0xff]
        %v4632 = vld [vmem:[#allocation8 + $0x1d8] sm:$0xff]
        %v4633 = vld [vmem:[#allocation8 + $0x1e0] sm:$0xff]
        %v4634 = vld [vmem:[#allocation8 + $0x1e8] sm:$0xff]
        %v4635 = vld [vmem:[#allocation8 + $0x1f0] sm:$0xff]
        %v4636 = vld [vmem:[#allocation8 + $0x1f8] sm:$0xff]
        %v4637 = vld [vmem:[#allocation8 + $0x200] sm:$0xff]
        %v4638 = vld [vmem:[#allocation8 + $0x208] sm:$0xff]
        %v4639 = vld [vmem:[#allocation8 + $0x210] sm:$0xff]
        %v4640 = vld [vmem:[#allocation8 + $0x218] sm:$0xff]
        %v4641 = vld [vmem:[#allocation8 + $0x220] sm:$0xff]
        %v4642 = vld [vmem:[#allocation8 + $0x228] sm:$0xff]
        %v4643 = vld [vmem:[#allocation8 + $0x230] sm:$0xff]
        %v4644 = vld [vmem:[#allocation8 + $0x238] sm:$0xff]
        %v4645 = vld [vmem:[#allocation8 + $0x240] sm:$0xff]
        %v4646 = vld [vmem:[#allocation8 + $0x248] sm:$0xff]
        %v4647 = vld [vmem:[#allocation8 + $0x250] sm:$0xff]
        %v4648 = vld [vmem:[#allocation8 + $0x258] sm:$0xff]
        %v4649 = vld [vmem:[#allocation8 + $0x260] sm:$0xff]
        %v4650 = vld [vmem:[#allocation8 + $0x268] sm:$0xff]
        %v4651 = vld [vmem:[#allocation8 + $0x270] sm:$0xff]
        %v4652 = vld [vmem:[#allocation8 + $0x278] sm:$0xff]
        %v4653 = vld [vmem:[#allocation8 + $0x280] sm:$0xff]
        %v4654 = vld [vmem:[#allocation8 + $0x288] sm:$0xff]
        %v4655 = vld [vmem:[#allocation8 + $0x290] sm:$0xff]
        %v4656 = vld [vmem:[#allocation8 + $0x298] sm:$0xff]
        %v4657 = vld [vmem:[#allocation8 + $0x2a0] sm:$0xff]
        %v4658 = vld [vmem:[#allocation8 + $0x2a8] sm:$0xff]
        %v4659 = vld [vmem:[#allocation8 + $0x2b0] sm:$0xff]
        %v4660 = vld [vmem:[#allocation8 + $0x2b8] sm:$0xff]
        %v4661 = vld [vmem:[#allocation8 + $0x2c0] sm:$0xff]
        %v4662 = vld [vmem:[#allocation8 + $0x2c8] sm:$0xff]
        %v4663 = vld [vmem:[#allocation8 + $0x2d0] sm:$0xff]
        %v4664 = vld [vmem:[#allocation8 + $0x2d8] sm:$0xff]
        %v4665 = vld [vmem:[#allocation8 + $0x2e0] sm:$0xff]
        %v4666 = vld [vmem:[#allocation8 + $0x2e8] sm:$0xff]
        %v4667 = vld [vmem:[#allocation8 + $0x2f0] sm:$0xff]
        %v4668 = vld [vmem:[#allocation8 + $0x2f8] sm:$0xff]
        %v4669 = vld [vmem:[#allocation8 + $0x300] sm:$0xff]
        %v4670 = vld [vmem:[#allocation8 + $0x308] sm:$0xff]
        %v4671 = vld [vmem:[#allocation8 + $0x310] sm:$0xff]
        %v4672 = vld [vmem:[#allocation8 + $0x318] sm:$0xff]
        %v4673 = vld [vmem:[#allocation8 + $0x320] sm:$0xff]
        %v4674 = vld [vmem:[#allocation8 + $0x328] sm:$0xff]
        %v4675 = vld [vmem:[#allocation8 + $0x330] sm:$0xff]
        %v4676 = vld [vmem:[#allocation8 + $0x338] sm:$0xff]
        %v4677 = vld [vmem:[#allocation8 + $0x340] sm:$0xff]
        %v4678 = vld [vmem:[#allocation8 + $0x348] sm:$0xff]
        %v4679 = vld [vmem:[#allocation8 + $0x350] sm:$0xff]
        %v4680 = vld [vmem:[#allocation8 + $0x358] sm:$0xff]
        %v4681 = vld [vmem:[#allocation8 + $0x360] sm:$0xff]
        %v4682 = vld [vmem:[#allocation8 + $0x368] sm:$0xff]
        %v4683 = vld [vmem:[#allocation8 + $0x370] sm:$0xff]
        %v4684 = vld [vmem:[#allocation8 + $0x378] sm:$0xff]
        %v4685 = vld [vmem:[#allocation8 + $0x380] sm:$0xff]
        %v4686 = vld [vmem:[#allocation8 + $0x388] sm:$0xff]
        %v4687 = vld [vmem:[#allocation8 + $0x390] sm:$0xff]
        %v4688 = vld [vmem:[#allocation8 + $0x398] sm:$0xff]
        %v4689 = vld [vmem:[#allocation8 + $0x3a0] sm:$0xff]
        %v4690 = vld [vmem:[#allocation8 + $0x3a8] sm:$0xff]
        %v4691 = vld [vmem:[#allocation8 + $0x3b0] sm:$0xff]
        %v4692 = vld [vmem:[#allocation8 + $0x3b8] sm:$0xff]
        %v4693 = vld [vmem:[#allocation8 + $0x3c0] sm:$0xff]
        %v4694 = vld [vmem:[#allocation8 + $0x3c8] sm:$0xff]
        %v4695 = vld [vmem:[#allocation8 + $0x3d0] sm:$0xff]
        %v4696 = vld [vmem:[#allocation8 + $0x3d8] sm:$0xff]
        %v4697 = vld [vmem:[#allocation8 + $0x3e0] sm:$0xff]
        %v4698 = vld [vmem:[#allocation8 + $0x3e8] sm:$0xff]
        %v4699 = vld [vmem:[#allocation8 + $0x3f0] sm:$0xff]
        %v4700 = vld [vmem:[#allocation8 + $0x3f8] sm:$0xff]
        %v4701 = vld [vmem:[#allocation8 + $0x400] sm:$0xff]
        %v4702 = vld [vmem:[#allocation8 + $0x408] sm:$0xff]
        %v4703 = vld [vmem:[#allocation8 + $0x410] sm:$0xff]
        %v4704 = vld [vmem:[#allocation8 + $0x418] sm:$0xff]
        %v4705 = vld [vmem:[#allocation8 + $0x420] sm:$0xff]
        %v4706 = vld [vmem:[#allocation8 + $0x428] sm:$0xff]
        %v4707 = vld [vmem:[#allocation8 + $0x430] sm:$0xff]
        %v4708 = vld [vmem:[#allocation8 + $0x438] sm:$0xff]
        %v4709 = vld [vmem:[#allocation8 + $0x440] sm:$0xff]
        %v4710 = vld [vmem:[#allocation8 + $0x448] sm:$0xff]
        %v4711 = vld [vmem:[#allocation8 + $0x450] sm:$0xff]
        %v4712 = vld [vmem:[#allocation8 + $0x458] sm:$0xff]
        %v4713 = vld [vmem:[#allocation8 + $0x460] sm:$0xff]
        %v4714 = vld [vmem:[#allocation8 + $0x468] sm:$0xff]
        %v4715 = vld [vmem:[#allocation8 + $0x470] sm:$0xff]
        %v4716 = vld [vmem:[#allocation8 + $0x478] sm:$0xff]
        %v4717 = vld [vmem:[#allocation8 + $0x480] sm:$0xff]
        %v4718 = vld [vmem:[#allocation8 + $0x488] sm:$0xff]
        %v4719 = vld [vmem:[#allocation8 + $0x490] sm:$0xff]
        %v4720 = vld [vmem:[#allocation8 + $0x498] sm:$0xff]
        %v4721 = vld [vmem:[#allocation8 + $0x4a0] sm:$0xff]
        %v4722 = vld [vmem:[#allocation8 + $0x4a8] sm:$0xff]
        %v4723 = vld [vmem:[#allocation8 + $0x4b0] sm:$0xff]
        %v4724 = vld [vmem:[#allocation8 + $0x4b8] sm:$0xff]
        %v4725 = vld [vmem:[#allocation8 + $0x4c0] sm:$0xff]
        %v4726 = vld [vmem:[#allocation8 + $0x4c8] sm:$0xff]
        %v4727 = vld [vmem:[#allocation8 + $0x4d0] sm:$0xff]
        %v4728 = vld [vmem:[#allocation8 + $0x4d8] sm:$0xff]
        %v4729 = vld [vmem:[#allocation8 + $0x4e0] sm:$0xff]
        %v4730 = vld [vmem:[#allocation8 + $0x4e8] sm:$0xff]
        %v4731 = vld [vmem:[#allocation8 + $0x4f0] sm:$0xff]
        %v4732 = vld [vmem:[#allocation8 + $0x4f8] sm:$0xff]
        %v4733 = vld [vmem:[#allocation8 + $0x500] sm:$0xff]
        %v4734 = vld [vmem:[#allocation8 + $0x508] sm:$0xff]
        %v4735 = vld [vmem:[#allocation8 + $0x510] sm:$0xff]
        %v4736 = vld [vmem:[#allocation8 + $0x518] sm:$0xff]
        %v4737 = vld [vmem:[#allocation8 + $0x520] sm:$0xff]
        %v4738 = vld [vmem:[#allocation8 + $0x528] sm:$0xff]
        %v4739 = vld [vmem:[#allocation8 + $0x530] sm:$0xff]
        %v4740 = vld [vmem:[#allocation8 + $0x538] sm:$0xff]
        %v4741 = vld [vmem:[#allocation8 + $0x540] sm:$0xff]
        %v4742 = vld [vmem:[#allocation8 + $0x548] sm:$0xff]
        %v4743 = vld [vmem:[#allocation8 + $0x550] sm:$0xff]
        %v4744 = vld [vmem:[#allocation8 + $0x558] sm:$0xff]
        %v4745 = vld [vmem:[#allocation8 + $0x560] sm:$0xff]
        %v4746 = vld [vmem:[#allocation8 + $0x568] sm:$0xff]
        %v4747 = vld [vmem:[#allocation8 + $0x570] sm:$0xff]
        %v4748 = vld [vmem:[#allocation8 + $0x578] sm:$0xff]
        %v4749 = vld [vmem:[#allocation8 + $0x580] sm:$0xff]
        %v4750 = vld [vmem:[#allocation8 + $0x588] sm:$0xff]
        %v4751 = vld [vmem:[#allocation8 + $0x590] sm:$0xff]
        %v4752 = vld [vmem:[#allocation8 + $0x598] sm:$0xff]
        %v4753 = vld [vmem:[#allocation8 + $0x5a0] sm:$0xff]
        %v4754 = vld [vmem:[#allocation8 + $0x5a8] sm:$0xff]
        %v4755 = vld [vmem:[#allocation8 + $0x5b0] sm:$0xff]
        %v4756 = vld [vmem:[#allocation8 + $0x5b8] sm:$0xff]
        %v4757 = vld [vmem:[#allocation8 + $0x5c0] sm:$0xff]
        %v4758 = vld [vmem:[#allocation8 + $0x5c8] sm:$0xff]
        %v4759 = vld [vmem:[#allocation8 + $0x5d0] sm:$0xff]
        %v4760 = vld [vmem:[#allocation8 + $0x5d8] sm:$0xff]
        %v4761 = vld [vmem:[#allocation8 + $0x5e0] sm:$0xff]
        %v4762 = vld [vmem:[#allocation8 + $0x5e8] sm:$0xff]
        %v4763 = vld [vmem:[#allocation8 + $0x5f0] sm:$0xff]
        %v4764 = vld [vmem:[#allocation8 + $0x5f8] sm:$0xff]
        %v4765 = vld [vmem:[#allocation8 + $0x600] sm:$0xff]
        %v4766 = vld [vmem:[#allocation8 + $0x608] sm:$0xff]
        %v4767 = vld [vmem:[#allocation8 + $0x610] sm:$0xff]
        %v4768 = vld [vmem:[#allocation8 + $0x618] sm:$0xff]
        %v4769 = vld [vmem:[#allocation8 + $0x620] sm:$0xff]
        %v4770 = vld [vmem:[#allocation8 + $0x628] sm:$0xff]
        %v4771 = vld [vmem:[#allocation8 + $0x630] sm:$0xff]
        %v4772 = vld [vmem:[#allocation8 + $0x638] sm:$0xff]
        %v4773 = vld [vmem:[#allocation8 + $0x640] sm:$0xff]
        %v4774 = vld [vmem:[#allocation8 + $0x648] sm:$0xff]
        %v4775 = vld [vmem:[#allocation8 + $0x650] sm:$0xff]
        %v4776 = vld [vmem:[#allocation8 + $0x658] sm:$0xff]
        %v4777 = vld [vmem:[#allocation8 + $0x660] sm:$0xff]
        %v4778 = vld [vmem:[#allocation8 + $0x668] sm:$0xff]
        %v4779 = vld [vmem:[#allocation8 + $0x670] sm:$0xff]
        %v4780 = vld [vmem:[#allocation8 + $0x678] sm:$0xff]
        %v4781 = vld [vmem:[#allocation8 + $0x680] sm:$0xff]
        %v4782 = vld [vmem:[#allocation8 + $0x688] sm:$0xff]
        %v4783 = vld [vmem:[#allocation8 + $0x690] sm:$0xff]
        %v4784 = vld [vmem:[#allocation8 + $0x698] sm:$0xff]
        %v4785 = vld [vmem:[#allocation8 + $0x6a0] sm:$0xff]
        %v4786 = vld [vmem:[#allocation8 + $0x6a8] sm:$0xff]
        %v4787 = vld [vmem:[#allocation8 + $0x6b0] sm:$0xff]
        %v4788 = vld [vmem:[#allocation8 + $0x6b8] sm:$0xff]
        %v4789 = vld [vmem:[#allocation8 + $0x6c0] sm:$0xff]
        %v4790 = vld [vmem:[#allocation8 + $0x6c8] sm:$0xff]
        %v4791 = vld [vmem:[#allocation8 + $0x6d0] sm:$0xff]
        %v4792 = vld [vmem:[#allocation8 + $0x6d8] sm:$0xff]
        %v4793 = vld [vmem:[#allocation8 + $0x6e0] sm:$0xff]
        %v4794 = vld [vmem:[#allocation8 + $0x6e8] sm:$0xff]
        %v4795 = vld [vmem:[#allocation8 + $0x6f0] sm:$0xff]
        %v4796 = vld [vmem:[#allocation8 + $0x6f8] sm:$0xff]
        %v4797 = vld [vmem:[#allocation8 + $0x700] sm:$0xff]
        %v4798 = vld [vmem:[#allocation8 + $0x708] sm:$0xff]
        %v4799 = vld [vmem:[#allocation8 + $0x710] sm:$0xff]
        %v4800 = vld [vmem:[#allocation8 + $0x718] sm:$0xff]
        %v4801 = vld [vmem:[#allocation8 + $0x720] sm:$0xff]
        %v4802 = vld [vmem:[#allocation8 + $0x728] sm:$0xff]
        %v4803 = vld [vmem:[#allocation8 + $0x730] sm:$0xff]
        %v4804 = vld [vmem:[#allocation8 + $0x738] sm:$0xff]
        %v4805 = vld [vmem:[#allocation8 + $0x740] sm:$0xff]
        %v4806 = vld [vmem:[#allocation8 + $0x748] sm:$0xff]
        %v4807 = vld [vmem:[#allocation8 + $0x750] sm:$0xff]
        %v4808 = vld [vmem:[#allocation8 + $0x758] sm:$0xff]
        %v4809 = vld [vmem:[#allocation8 + $0x760] sm:$0xff]
        %v4810 = vld [vmem:[#allocation8 + $0x768] sm:$0xff]
        %v4811 = vld [vmem:[#allocation8 + $0x770] sm:$0xff]
        %v4812 = vld [vmem:[#allocation8 + $0x778] sm:$0xff]
        %v4813 = vld [vmem:[#allocation8 + $0x780] sm:$0xff]
        %v4814 = vld [vmem:[#allocation8 + $0x788] sm:$0xff]
        %v4815 = vld [vmem:[#allocation8 + $0x790] sm:$0xff]
        %v4816 = vld [vmem:[#allocation8 + $0x798] sm:$0xff]
        %v4817 = vld [vmem:[#allocation8 + $0x7a0] sm:$0xff]
        %v4818 = vld [vmem:[#allocation8 + $0x7a8] sm:$0xff]
        %v4819 = vld [vmem:[#allocation8 + $0x7b0] sm:$0xff]
        %v4820 = vld [vmem:[#allocation8 + $0x7b8] sm:$0xff]
        %v4821 = vld [vmem:[#allocation8 + $0x7c0] sm:$0xff]
        %v4822 = vld [vmem:[#allocation8 + $0x7c8] sm:$0xff]
        %v4823 = vld [vmem:[#allocation8 + $0x7d0] sm:$0xff]
        %v4824 = vld [vmem:[#allocation8 + $0x7d8] sm:$0xff]
        %v4825 = vld [vmem:[#allocation8 + $0x7e0] sm:$0xff]
        %v4826 = vld [vmem:[#allocation8 + $0x7e8] sm:$0xff]
        %v4827 = vld [vmem:[#allocation8 + $0x7f0] sm:$0xff]
        %v4828 = vld [vmem:[#allocation8 + $0x7f8] sm:$0xff]
        %v4829 = vld [vmem:[#allocation8 + $0x800] sm:$0xff]
        %v4830 = vld [vmem:[#allocation8 + $0x808] sm:$0xff]
        %v4831 = vld [vmem:[#allocation8 + $0x810] sm:$0xff]
        %v4832 = vld [vmem:[#allocation8 + $0x818] sm:$0xff]
        %v4833 = vld [vmem:[#allocation8 + $0x820] sm:$0xff]
        %v4834 = vld [vmem:[#allocation8 + $0x828] sm:$0xff]
        %v4835 = vld [vmem:[#allocation8 + $0x830] sm:$0xff]
        %v4836 = vld [vmem:[#allocation8 + $0x838] sm:$0xff]
        %v4837 = vld [vmem:[#allocation8 + $0x840] sm:$0xff]
        %v4838 = vld [vmem:[#allocation8 + $0x848] sm:$0xff]
        %v4839 = vld [vmem:[#allocation8 + $0x850] sm:$0xff]
        %v4840 = vld [vmem:[#allocation8 + $0x858] sm:$0xff]
        %v4841 = vld [vmem:[#allocation8 + $0x860] sm:$0xff]
        %v4842 = vld [vmem:[#allocation8 + $0x868] sm:$0xff]
        %v4843 = vld [vmem:[#allocation8 + $0x870] sm:$0xff]
        %v4844 = vld [vmem:[#allocation8 + $0x878] sm:$0xff]
        %v4845 = vld [vmem:[#allocation8 + $0x880] sm:$0xff]
        %v4846 = vld [vmem:[#allocation8 + $0x888] sm:$0xff]
        %v4847 = vld [vmem:[#allocation8 + $0x890] sm:$0xff]
        %v4848 = vld [vmem:[#allocation8 + $0x898] sm:$0xff]
        %v4849 = vld [vmem:[#allocation8 + $0x8a0] sm:$0xff]
        %v4850 = vld [vmem:[#allocation8 + $0x8a8] sm:$0xff]
        %v4851 = vld [vmem:[#allocation8 + $0x8b0] sm:$0xff]
        %v4852 = vld [vmem:[#allocation8 + $0x8b8] sm:$0xff]
        %v4853 = vld [vmem:[#allocation8 + $0x8c0] sm:$0xff]
        %v4854 = vld [vmem:[#allocation8 + $0x8c8] sm:$0xff]
        %v4855 = vld [vmem:[#allocation8 + $0x8d0] sm:$0xff]
        %v4856 = vld [vmem:[#allocation8 + $0x8d8] sm:$0xff]
        %v4857 = vld [vmem:[#allocation8 + $0x8e0] sm:$0xff]
        %v4858 = vld [vmem:[#allocation8 + $0x8e8] sm:$0xff]
        %v4859 = vld [vmem:[#allocation8 + $0x8f0] sm:$0xff]
        %v4860 = vld [vmem:[#allocation8 + $0x8f8] sm:$0xff]
        %v4861 = vld [vmem:[#allocation8 + $0x900] sm:$0xff]
        %v4862 = vld [vmem:[#allocation8 + $0x908] sm:$0xff]
        %v4863 = vld [vmem:[#allocation8 + $0x910] sm:$0xff]
        %v4864 = vld [vmem:[#allocation8 + $0x918] sm:$0xff]
        %v4865 = vld [vmem:[#allocation8 + $0x920] sm:$0xff]
        %v4866 = vld [vmem:[#allocation8 + $0x928] sm:$0xff]
        %v4867 = vld [vmem:[#allocation8 + $0x930] sm:$0xff]
        %v4868 = vld [vmem:[#allocation8 + $0x938] sm:$0xff]
        %v4869 = vld [vmem:[#allocation8 + $0x940] sm:$0xff]
        %v4870 = vld [vmem:[#allocation8 + $0x948] sm:$0xff]
        %v4871 = vld [vmem:[#allocation8 + $0x950] sm:$0xff]
        %v4872 = vld [vmem:[#allocation8 + $0x958] sm:$0xff]
        %v4873 = vld [vmem:[#allocation8 + $0x960] sm:$0xff]
        %v4874 = vld [vmem:[#allocation8 + $0x968] sm:$0xff]
        %v4875 = vld [vmem:[#allocation8 + $0x970] sm:$0xff]
        %v4876 = vld [vmem:[#allocation8 + $0x978] sm:$0xff]
        %v4877 = vld [vmem:[#allocation8 + $0x980] sm:$0xff]
        %v4878 = vld [vmem:[#allocation8 + $0x988] sm:$0xff]
        %v4879 = vld [vmem:[#allocation8 + $0x990] sm:$0xff]
        %v4880 = vld [vmem:[#allocation8 + $0x998] sm:$0xff]
        %v4881 = vld [vmem:[#allocation8 + $0x9a0] sm:$0xff]
        %v4882 = vld [vmem:[#allocation8 + $0x9a8] sm:$0xff]
        %v4883 = vld [vmem:[#allocation8 + $0x9b0] sm:$0xff]
        %v4884 = vld [vmem:[#allocation8 + $0x9b8] sm:$0xff]
        %v4885 = vld [vmem:[#allocation8 + $0x9c0] sm:$0xff]
        %v4886 = vld [vmem:[#allocation8 + $0x9c8] sm:$0xff]
        %v4887 = vld [vmem:[#allocation8 + $0x9d0] sm:$0xff]
        %v4888 = vld [vmem:[#allocation8 + $0x9d8] sm:$0xff]
        %v4889 = vld [vmem:[#allocation8 + $0x9e0] sm:$0xff]
        %v4890 = vld [vmem:[#allocation8 + $0x9e8] sm:$0xff]
        %v4891 = vld [vmem:[#allocation8 + $0x9f0] sm:$0xff]
        %v4892 = vld [vmem:[#allocation8 + $0x9f8] sm:$0xff]
        %v4893 = vld [vmem:[#allocation8 + $0xa00] sm:$0xff]
        %v4894 = vld [vmem:[#allocation8 + $0xa08] sm:$0xff]
        %v4895 = vld [vmem:[#allocation8 + $0xa10] sm:$0xff]
        %v4896 = vld [vmem:[#allocation8 + $0xa18] sm:$0xff]
        %v4897 = vld [vmem:[#allocation8 + $0xa20] sm:$0xff]
        %v4898 = vld [vmem:[#allocation8 + $0xa28] sm:$0xff]
        %v4899 = vld [vmem:[#allocation8 + $0xa30] sm:$0xff]
        %v4900 = vld [vmem:[#allocation8 + $0xa38] sm:$0xff]
        %v4901 = vld [vmem:[#allocation8 + $0xa40] sm:$0xff]
        %v4902 = vld [vmem:[#allocation8 + $0xa48] sm:$0xff]
        %v4903 = vld [vmem:[#allocation8 + $0xa50] sm:$0xff]
        %v4904 = vld [vmem:[#allocation8 + $0xa58] sm:$0xff]
        %v4905 = vld [vmem:[#allocation8 + $0xa60] sm:$0xff]
        %v4906 = vld [vmem:[#allocation8 + $0xa68] sm:$0xff]
        %v4907 = vld [vmem:[#allocation8 + $0xa70] sm:$0xff]
        %v4908 = vld [vmem:[#allocation8 + $0xa78] sm:$0xff]
        %v4909 = vld [vmem:[#allocation8 + $0xa80] sm:$0xff]
        %v4910 = vld [vmem:[#allocation8 + $0xa88] sm:$0xff]
        %v4911 = vld [vmem:[#allocation8 + $0xa90] sm:$0xff]
        %v4912 = vld [vmem:[#allocation8 + $0xa98] sm:$0xff]
        %v4913 = vld [vmem:[#allocation8 + $0xaa0] sm:$0xff]
        %v4914 = vld [vmem:[#allocation8 + $0xaa8] sm:$0xff]
        %v4915 = vld [vmem:[#allocation8 + $0xab0] sm:$0xff]
        %v4916 = vld [vmem:[#allocation8 + $0xab8] sm:$0xff]
        %v4917 = vld [vmem:[#allocation8 + $0xac0] sm:$0xff]
        %v4918 = vld [vmem:[#allocation8 + $0xac8] sm:$0xff]
        %v4919 = vld [vmem:[#allocation8 + $0xad0] sm:$0xff]
        %v4920 = vld [vmem:[#allocation8 + $0xad8] sm:$0xff]
        %v4921 = vld [vmem:[#allocation8 + $0xae0] sm:$0xff]
        %v4922 = vld [vmem:[#allocation8 + $0xae8] sm:$0xff]
        %v4923 = vld [vmem:[#allocation8 + $0xaf0] sm:$0xff]
        %v4924 = vld [vmem:[#allocation8 + $0xaf8] sm:$0xff]
        %v4925 = vld [vmem:[#allocation8 + $0xb00] sm:$0xff]
        %v4926 = vld [vmem:[#allocation8 + $0xb08] sm:$0xff]
        %v4927 = vld [vmem:[#allocation8 + $0xb10] sm:$0xff]
        %v4928 = vld [vmem:[#allocation8 + $0xb18] sm:$0xff]
        %v4929 = vld [vmem:[#allocation8 + $0xb20] sm:$0xff]
        %v4930 = vld [vmem:[#allocation8 + $0xb28] sm:$0xff]
        %v4931 = vld [vmem:[#allocation8 + $0xb30] sm:$0xff]
        %v4932 = vld [vmem:[#allocation8 + $0xb38] sm:$0xff]
        %v4933 = vld [vmem:[#allocation8 + $0xb40] sm:$0xff]
        %v4934 = vld [vmem:[#allocation8 + $0xb48] sm:$0xff]
        %v4935 = vld [vmem:[#allocation8 + $0xb50] sm:$0xff]
        %v4936 = vld [vmem:[#allocation8 + $0xb58] sm:$0xff]
        %v4937 = vld [vmem:[#allocation8 + $0xb60] sm:$0xff]
        %v4938 = vld [vmem:[#allocation8 + $0xb68] sm:$0xff]
        %v4939 = vld [vmem:[#allocation8 + $0xb70] sm:$0xff]
        %v4940 = vld [vmem:[#allocation8 + $0xb78] sm:$0xff]
        %v4941 = vld [vmem:[#allocation8 + $0xb80] sm:$0xff]
        %v4942 = vld [vmem:[#allocation8 + $0xb88] sm:$0xff]
        %v4943 = vld [vmem:[#allocation8 + $0xb90] sm:$0xff]
        %v4944 = vld [vmem:[#allocation8 + $0xb98] sm:$0xff]
        %v4945 = vld [vmem:[#allocation8 + $0xba0] sm:$0xff]
        %v4946 = vld [vmem:[#allocation8 + $0xba8] sm:$0xff]
        %v4947 = vld [vmem:[#allocation8 + $0xbb0] sm:$0xff]
        %v4948 = vld [vmem:[#allocation8 + $0xbb8] sm:$0xff]
        %v4949 = vld [vmem:[#allocation8 + $0xbc0] sm:$0xff]
        %v4950 = vld [vmem:[#allocation8 + $0xbc8] sm:$0xff]
        %v4951 = vld [vmem:[#allocation8 + $0xbd0] sm:$0xff]
        %v4952 = vld [vmem:[#allocation8 + $0xbd8] sm:$0xff]
        %v4953 = vld [vmem:[#allocation8 + $0xbe0] sm:$0xff]
        %v4954 = vld [vmem:[#allocation8 + $0xbe8] sm:$0xff]
        %v4955 = vld [vmem:[#allocation8 + $0xbf0] sm:$0xff]
        %v4956 = vld [vmem:[#allocation8 + $0xbf8] sm:$0xff]
        %v4957 = vld [vmem:[#allocation8 + $0xc00] sm:$0xff]
        %v4958 = vld [vmem:[#allocation8 + $0xc08] sm:$0xff]
        %v4959 = vld [vmem:[#allocation8 + $0xc10] sm:$0xff]
        %v4960 = vld [vmem:[#allocation8 + $0xc18] sm:$0xff]
        %v4961 = vld [vmem:[#allocation8 + $0xc20] sm:$0xff]
        %v4962 = vld [vmem:[#allocation8 + $0xc28] sm:$0xff]
        %v4963 = vld [vmem:[#allocation8 + $0xc30] sm:$0xff]
        %v4964 = vld [vmem:[#allocation8 + $0xc38] sm:$0xff]
        %v4965 = vld [vmem:[#allocation8 + $0xc40] sm:$0xff]
        %v4966 = vld [vmem:[#allocation8 + $0xc48] sm:$0xff]
        %v4967 = vld [vmem:[#allocation8 + $0xc50] sm:$0xff]
        %v4968 = vld [vmem:[#allocation8 + $0xc58] sm:$0xff]
        %v4969 = vld [vmem:[#allocation8 + $0xc60] sm:$0xff]
        %v4970 = vld [vmem:[#allocation8 + $0xc68] sm:$0xff]
        %v4971 = vld [vmem:[#allocation8 + $0xc70] sm:$0xff]
        %v4972 = vld [vmem:[#allocation8 + $0xc78] sm:$0xff]
        %v4973 = vld [vmem:[#allocation8 + $0xc80] sm:$0xff]
        %v4974 = vld [vmem:[#allocation8 + $0xc88] sm:$0xff]
        %v4975 = vld [vmem:[#allocation8 + $0xc90] sm:$0xff]
        %v4976 = vld [vmem:[#allocation8 + $0xc98] sm:$0xff]
        %v4977 = vld [vmem:[#allocation8 + $0xca0] sm:$0xff]
        %v4978 = vld [vmem:[#allocation8 + $0xca8] sm:$0xff]
        %v4979 = vld [vmem:[#allocation8 + $0xcb0] sm:$0xff]
        %v4980 = vld [vmem:[#allocation8 + $0xcb8] sm:$0xff]
        %v4981 = vld [vmem:[#allocation8 + $0xcc0] sm:$0xff]
        %v4982 = vld [vmem:[#allocation8 + $0xcc8] sm:$0xff]
        %v4983 = vld [vmem:[#allocation8 + $0xcd0] sm:$0xff]
        %v4984 = vld [vmem:[#allocation8 + $0xcd8] sm:$0xff]
        %v4985 = vld [vmem:[#allocation8 + $0xce0] sm:$0xff]
        %v4986 = vld [vmem:[#allocation8 + $0xce8] sm:$0xff]
        %v4987 = vld [vmem:[#allocation8 + $0xcf0] sm:$0xff]
        %v4988 = vld [vmem:[#allocation8 + $0xcf8] sm:$0xff]
        %v4989 = vld [vmem:[#allocation8 + $0xd00] sm:$0xff]
        %v4990 = vld [vmem:[#allocation8 + $0xd08] sm:$0xff]
        %v4991 = vld [vmem:[#allocation8 + $0xd10] sm:$0xff]
        %v4992 = vld [vmem:[#allocation8 + $0xd18] sm:$0xff]
        %v4993 = vld [vmem:[#allocation8 + $0xd20] sm:$0xff]
        %v4994 = vld [vmem:[#allocation8 + $0xd28] sm:$0xff]
        %v4995 = vld [vmem:[#allocation8 + $0xd30] sm:$0xff]
        %v4996 = vld [vmem:[#allocation8 + $0xd38] sm:$0xff]
        %v4997 = vld [vmem:[#allocation8 + $0xd40] sm:$0xff]
        %v4998 = vld [vmem:[#allocation8 + $0xd48] sm:$0xff]
        %v4999 = vld [vmem:[#allocation8 + $0xd50] sm:$0xff]
        %v5000 = vld [vmem:[#allocation8 + $0xd58] sm:$0xff]
        %v5001 = vld [vmem:[#allocation8 + $0xd60] sm:$0xff]
        %v5002 = vld [vmem:[#allocation8 + $0xd68] sm:$0xff]
        %v5003 = vld [vmem:[#allocation8 + $0xd70] sm:$0xff]
        %v5004 = vld [vmem:[#allocation8 + $0xd78] sm:$0xff]
        %v5005 = vld [vmem:[#allocation8 + $0xd80] sm:$0xff]
        %v5006 = vld [vmem:[#allocation8 + $0xd88] sm:$0xff]
        %v5007 = vld [vmem:[#allocation8 + $0xd90] sm:$0xff]
        %v5008 = vld [vmem:[#allocation8 + $0xd98] sm:$0xff]
        %v5009 = vld [vmem:[#allocation8 + $0xda0] sm:$0xff]
        %v5010 = vld [vmem:[#allocation8 + $0xda8] sm:$0xff]
        %v5011 = vld [vmem:[#allocation8 + $0xdb0] sm:$0xff]
        %v5012 = vld [vmem:[#allocation8 + $0xdb8] sm:$0xff]
        %v5013 = vld [vmem:[#allocation8 + $0xdc0] sm:$0xff]
        %v5014 = vld [vmem:[#allocation8 + $0xdc8] sm:$0xff]
        %v5015 = vld [vmem:[#allocation8 + $0xdd0] sm:$0xff]
        %v5016 = vld [vmem:[#allocation8 + $0xdd8] sm:$0xff]
        %v5017 = vld [vmem:[#allocation8 + $0xde0] sm:$0xff]
        %v5018 = vld [vmem:[#allocation8 + $0xde8] sm:$0xff]
        %v5019 = vld [vmem:[#allocation8 + $0xdf0] sm:$0xff]
        %v5020 = vld [vmem:[#allocation8 + $0xdf8] sm:$0xff]
        %v5021 = vld [vmem:[#allocation8 + $0xe00] sm:$0xff]
        %v5022 = vld [vmem:[#allocation8 + $0xe08] sm:$0xff]
        %v5023 = vld [vmem:[#allocation8 + $0xe10] sm:$0xff]
        %v5024 = vld [vmem:[#allocation8 + $0xe18] sm:$0xff]
        %v5025 = vld [vmem:[#allocation8 + $0xe20] sm:$0xff]
        %v5026 = vld [vmem:[#allocation8 + $0xe28] sm:$0xff]
        %v5027 = vld [vmem:[#allocation8 + $0xe30] sm:$0xff]
        %v5028 = vld [vmem:[#allocation8 + $0xe38] sm:$0xff]
        %v5029 = vld [vmem:[#allocation8 + $0xe40] sm:$0xff]
        %v5030 = vld [vmem:[#allocation8 + $0xe48] sm:$0xff]
        %v5031 = vld [vmem:[#allocation8 + $0xe50] sm:$0xff]
        %v5032 = vld [vmem:[#allocation8 + $0xe58] sm:$0xff]
        %v5033 = vld [vmem:[#allocation8 + $0xe60] sm:$0xff]
        %v5034 = vld [vmem:[#allocation8 + $0xe68] sm:$0xff]
        %v5035 = vld [vmem:[#allocation8 + $0xe70] sm:$0xff]
        %v5036 = vld [vmem:[#allocation8 + $0xe78] sm:$0xff]
        %v5037 = vld [vmem:[#allocation8 + $0xe80] sm:$0xff]
        %v5038 = vld [vmem:[#allocation8 + $0xe88] sm:$0xff]
        %v5039 = vld [vmem:[#allocation8 + $0xe90] sm:$0xff]
        %v5040 = vld [vmem:[#allocation8 + $0xe98] sm:$0xff]
        %v5041 = vld [vmem:[#allocation8 + $0xea0] sm:$0xff]
        %v5042 = vld [vmem:[#allocation8 + $0xea8] sm:$0xff]
        %v5043 = vld [vmem:[#allocation8 + $0xeb0] sm:$0xff]
        %v5044 = vld [vmem:[#allocation8 + $0xeb8] sm:$0xff]
        %v5045 = vld [vmem:[#allocation8 + $0xec0] sm:$0xff]
        %v5046 = vld [vmem:[#allocation8 + $0xec8] sm:$0xff]
        %v5047 = vld [vmem:[#allocation8 + $0xed0] sm:$0xff]
        %v5048 = vld [vmem:[#allocation8 + $0xed8] sm:$0xff]
        %v5049 = vld [vmem:[#allocation8 + $0xee0] sm:$0xff]
        %v5050 = vld [vmem:[#allocation8 + $0xee8] sm:$0xff]
        %v5051 = vld [vmem:[#allocation8 + $0xef0] sm:$0xff]
        %v5052 = vld [vmem:[#allocation8 + $0xef8] sm:$0xff]
        %v5053 = vld [vmem:[#allocation8 + $0xf00] sm:$0xff]
        %v5054 = vld [vmem:[#allocation8 + $0xf08] sm:$0xff]
        %v5055 = vld [vmem:[#allocation8 + $0xf10] sm:$0xff]
        %v5056 = vld [vmem:[#allocation8 + $0xf18] sm:$0xff]
        %v5057 = vld [vmem:[#allocation8 + $0xf20] sm:$0xff]
        %v5058 = vld [vmem:[#allocation8 + $0xf28] sm:$0xff]
        %v5059 = vld [vmem:[#allocation8 + $0xf30] sm:$0xff]
        %v5060 = vld [vmem:[#allocation8 + $0xf38] sm:$0xff]
        %v5061 = vld [vmem:[#allocation8 + $0xf40] sm:$0xff]
        %v5062 = vld [vmem:[#allocation8 + $0xf48] sm:$0xff]
        %v5063 = vld [vmem:[#allocation8 + $0xf50] sm:$0xff]
        %v5064 = vld [vmem:[#allocation8 + $0xf58] sm:$0xff]
        %v5065 = vld [vmem:[#allocation8 + $0xf60] sm:$0xff]
        %v5066 = vld [vmem:[#allocation8 + $0xf68] sm:$0xff]
        %v5067 = vld [vmem:[#allocation8 + $0xf70] sm:$0xff]
        %v5068 = vld [vmem:[#allocation8 + $0xf78] sm:$0xff]
        %v5069 = vld [vmem:[#allocation8 + $0xf80] sm:$0xff]
        %v5070 = vld [vmem:[#allocation8 + $0xf88] sm:$0xff]
        %v5071 = vld [vmem:[#allocation8 + $0xf90] sm:$0xff]
        %v5072 = vld [vmem:[#allocation8 + $0xf98] sm:$0xff]
        %v5073 = vld [vmem:[#allocation8 + $0xfa0] sm:$0xff]
        %v5074 = vld [vmem:[#allocation8 + $0xfa8] sm:$0xff]
        %v5075 = vld [vmem:[#allocation8 + $0xfb0] sm:$0xff]
        %v5076 = vld [vmem:[#allocation8 + $0xfb8] sm:$0xff]
        %v5077 = vld [vmem:[#allocation8 + $0xfc0] sm:$0xff]
        %v5078 = vld [vmem:[#allocation8 + $0xfc8] sm:$0xff]
        %v5079 = vld [vmem:[#allocation8 + $0xfd0] sm:$0xff]
        %v5080 = vld [vmem:[#allocation8 + $0xfd8] sm:$0xff]
        %v5081 = vld [vmem:[#allocation8 + $0xfe0] sm:$0xff]
        %v5082 = vld [vmem:[#allocation8 + $0xfe8] sm:$0xff]
        %v5083 = vld [vmem:[#allocation8 + $0xff0] sm:$0xff]
        %v5084 = vld [vmem:[#allocation8 + $0xff8] sm:$0xff]
        %v5085 = vld [vmem:[#allocation8 + $0x1000] sm:$0xff]
        %v5086 = vld [vmem:[#allocation8 + $0x1008] sm:$0xff]
        %v5087 = vld [vmem:[#allocation8 + $0x1010] sm:$0xff]
        %v5088 = vld [vmem:[#allocation8 + $0x1018] sm:$0xff]
        %v5089 = vld [vmem:[#allocation8 + $0x1020] sm:$0xff]
        %v5090 = vld [vmem:[#allocation8 + $0x1028] sm:$0xff]
        %v5091 = vld [vmem:[#allocation8 + $0x1030] sm:$0xff]
        %v5092 = vld [vmem:[#allocation8 + $0x1038] sm:$0xff]
        %v5093 = vld [vmem:[#allocation8 + $0x1040] sm:$0xff]
        %v5094 = vld [vmem:[#allocation8 + $0x1048] sm:$0xff]
        %v5095 = vld [vmem:[#allocation8 + $0x1050] sm:$0xff]
        %v5096 = vld [vmem:[#allocation8 + $0x1058] sm:$0xff]
        %v5097 = vld [vmem:[#allocation8 + $0x1060] sm:$0xff]
        %v5098 = vld [vmem:[#allocation8 + $0x1068] sm:$0xff]
        %v5099 = vld [vmem:[#allocation8 + $0x1070] sm:$0xff]
        %v5100 = vld [vmem:[#allocation8 + $0x1078] sm:$0xff]
        %v5101 = vld [vmem:[#allocation8 + $0x1080] sm:$0xff]
        %v5102 = vld [vmem:[#allocation8 + $0x1088] sm:$0xff]
        %v5103 = vld [vmem:[#allocation8 + $0x1090] sm:$0xff]
        %v5104 = vld [vmem:[#allocation8 + $0x1098] sm:$0xff]
        %v5105 = vld [vmem:[#allocation8 + $0x10a0] sm:$0xff]
        %v5106 = vld [vmem:[#allocation8 + $0x10a8] sm:$0xff]
        %v5107 = vld [vmem:[#allocation8 + $0x10b0] sm:$0xff]
        %v5108 = vld [vmem:[#allocation8 + $0x10b8] sm:$0xff]
        %v5109 = vld [vmem:[#allocation8 + $0x10c0] sm:$0xff]
        %v5110 = vld [vmem:[#allocation8 + $0x10c8] sm:$0xff]
        %v5111 = vld [vmem:[#allocation8 + $0x10d0] sm:$0xff]
        %v5112 = vld [vmem:[#allocation8 + $0x10d8] sm:$0xff]
        %v5113 = vld [vmem:[#allocation8 + $0x10e0] sm:$0xff]
        %v5114 = vld [vmem:[#allocation8 + $0x10e8] sm:$0xff]
        %v5115 = vld [vmem:[#allocation8 + $0x10f0] sm:$0xff]
        %v5116 = vld [vmem:[#allocation8 + $0x10f8] sm:$0xff]
        %v5117 = vld [vmem:[#allocation8 + $0x1100] sm:$0xff]
        %v5118 = vld [vmem:[#allocation8 + $0x1108] sm:$0xff]
        %v5119 = vld [vmem:[#allocation8 + $0x1110] sm:$0xff]
        %v5120 = vld [vmem:[#allocation8 + $0x1118] sm:$0xff]
        %v5121 = vld [vmem:[#allocation8 + $0x1120] sm:$0xff]
        %v5122 = vld [vmem:[#allocation8 + $0x1128] sm:$0xff]
        %v5123 = vld [vmem:[#allocation8 + $0x1130] sm:$0xff]
        %v5124 = vld [vmem:[#allocation8 + $0x1138] sm:$0xff]
        %v5125 = vld [vmem:[#allocation8 + $0x1140] sm:$0xff]
        %v5126 = vld [vmem:[#allocation8 + $0x1148] sm:$0xff]
        %v5127 = vld [vmem:[#allocation8 + $0x1150] sm:$0xff]
        %v5128 = vld [vmem:[#allocation8 + $0x1158] sm:$0xff]
        %v5129 = vld [vmem:[#allocation8 + $0x1160] sm:$0xff]
        %v5130 = vld [vmem:[#allocation8 + $0x1168] sm:$0xff]
        %v5131 = vld [vmem:[#allocation8 + $0x1170] sm:$0xff]
        %v5132 = vld [vmem:[#allocation8 + $0x1178] sm:$0xff]
        %v5133 = vld [vmem:[#allocation8 + $0x1180] sm:$0xff]
        %v5134 = vld [vmem:[#allocation8 + $0x1188] sm:$0xff]
        %v5135 = vld [vmem:[#allocation8 + $0x1190] sm:$0xff]
        %v5136 = vld [vmem:[#allocation8 + $0x1198] sm:$0xff]
        %v5137 = vld [vmem:[#allocation8 + $0x11a0] sm:$0xff]
        %v5138 = vld [vmem:[#allocation8 + $0x11a8] sm:$0xff]
        %v5139 = vld [vmem:[#allocation8 + $0x11b0] sm:$0xff]
        %v5140 = vld [vmem:[#allocation8 + $0x11b8] sm:$0xff]
        %v5141 = vld [vmem:[#allocation8 + $0x11c0] sm:$0xff]
        %v5142 = vld [vmem:[#allocation8 + $0x11c8] sm:$0xff]
        %v5143 = vld [vmem:[#allocation8 + $0x11d0] sm:$0xff]
        %v5144 = vld [vmem:[#allocation8 + $0x11d8] sm:$0xff]
        %v5145 = vld [vmem:[#allocation8 + $0x11e0] sm:$0xff]
        %v5146 = vld [vmem:[#allocation8 + $0x11e8] sm:$0xff]
        %v5147 = vld [vmem:[#allocation8 + $0x11f0] sm:$0xff]
        %v5148 = vld [vmem:[#allocation8 + $0x11f8] sm:$0xff]
        %v5149 = vld [vmem:[#allocation10] sm:$0x7]
        %v5151 = vlaneseq
        %v5152 = vshrl.u32 %v5151, 7
        %v5153 = vsub.s32 0, %v5152
        %v5154 = vrot.slane %v5149, %v5153
        %v5155 = vlaneseq
        %v5156 = vshrl.u32 %v5155, 7
        %v5157 = vsub.s32 1, %v5156
        %v5158 = vrot.slane %v5149, %v5157
        %v5159 = vlaneseq
        %v5160 = vshrl.u32 %v5159, 7
        %v5161 = vsub.s32 2, %v5160
        %v5162 = vrot.slane %v5149, %v5161
        %5166 = vmatprep.subr.mxu0 %v4574
        %5167 = vmatpush1.msra.mxu0 %v4573
        %5168 = vmatprep.subr.mxu0 %v4577
        %5169 = vmatpush1.msra.mxu0 %v4576
        %5170 = vmatprep.subr.mxu0 %v4580
        %5171 = vmatpush1.msra.mxu0 %v4579
        %5172 = vmatprep.subr.mxu0 %v4583
        %5173 = vmatpush1.msra.mxu0 %v4582
        %5174 = vmatprep.subr.mxu0 %v4586
        %5175 = vmatpush1.msra.mxu0 %v4585
        %5176 = vmatprep.subr.mxu0 %v4589
        %5177 = vmatpush1.msra.mxu0 %v4588
        %5178 = vmatprep.subr.mxu0 %v4592
        %5179 = vmatpush1.msra.mxu0 %v4591
        %5180 = vmatprep.subr.mxu0 %v4595
        %5181 = vmatpush1.msra.mxu0 %v4594
        %5182 = vmatprep.subr.mxu0 %v4598
        %5183 = vmatpush1.msra.mxu0 %v4597
        %5184 = vmatprep.subr.mxu0 %v4601
        %5185 = vmatpush1.msra.mxu0 %v4600
        %5186 = vmatprep.subr.mxu0 %v4604
        %5187 = vmatpush1.msra.mxu0 %v4603
        %5188 = vmatprep.subr.mxu0 %v4607
        %5189 = vmatpush1.msra.mxu0 %v4606
        %5190 = vmatprep.subr.mxu0 %v4610
        %5191 = vmatpush1.msra.mxu0 %v4609
        %5192 = vmatprep.subr.mxu0 %v4613
        %5193 = vmatpush1.msra.mxu0 %v4612
        %5194 = vmatprep.subr.mxu0 %v4616
        %5195 = vmatpush1.msra.mxu0 %v4615
        %5196 = vmatprep.subr.mxu0 %v4619
        %5197 = vmatpush1.msra.mxu0 %v4618
        %5198 = vmatprep.subr.mxu0 %v4622
        %5199 = vmatpush1.msra.mxu0 %v4621
        %5200 = vmatprep.subr.mxu0 %v4625
        %5201 = vmatpush1.msra.mxu0 %v4624
        %5202 = vmatprep.subr.mxu0 %v4628
        %5203 = vmatpush1.msra.mxu0 %v4627
        %5204 = vmatprep.subr.mxu0 %v4631
        %5205 = vmatpush1.msra.mxu0 %v4630
        %5206 = vmatprep.subr.mxu0 %v4634
        %5207 = vmatpush1.msra.mxu0 %v4633
        %5208 = vmatprep.subr.mxu0 %v4637
        %5209 = vmatpush1.msra.mxu0 %v4636
        %5210 = vmatprep.subr.mxu0 %v4640
        %5211 = vmatpush1.msra.mxu0 %v4639
        %5212 = vmatprep.subr.mxu0 %v4643
        %5213 = vmatpush1.msra.mxu0 %v4642
        %5214 = vmatprep.subr.mxu0 %v4646
        %5215 = vmatpush1.msra.mxu0 %v4645
        %5216 = vmatprep.subr.mxu0 %v4649
        %5217 = vmatpush1.msra.mxu0 %v4648
        %5218 = vmatprep.subr.mxu0 %v4652
        %5219 = vmatpush1.msra.mxu0 %v4651
        %5220 = vmatprep.subr.mxu0 %v4655
        %5221 = vmatpush1.msra.mxu0 %v4654
        %5222 = vmatprep.subr.mxu0 %v4658
        %5223 = vmatpush1.msra.mxu0 %v4657
        %5224 = vmatprep.subr.mxu0 %v4661
        %5225 = vmatpush1.msra.mxu0 %v4660
        %5226 = vmatprep.subr.mxu0 %v4664
        %5227 = vmatpush1.msra.mxu0 %v4663
        %5228 = vmatprep.subr.mxu0 %v4667
        %5229 = vmatpush1.msra.mxu0 %v4666
        %5230 = vmatprep.mubr.f32.mxu0 %v4190
        %5231 = vmatmul.mubr.f32.gmra.mrb[0].mxu0 %v4189
        %v5232 = vpop.f32.mrb[0].mxu0
        %v5233 = vadd.f32 %v5154, %v5232
        %v5234 = vpop.f32.mrb[0].mxu0
        %v5235 = vadd.f32 %v5158, %v5234
        %5236 = vmatprep.mubr.f32.mxu0 %v4202
        %5237 = vmatmul.mubr.f32.gmra.mrb[0].mxu0 %v4201
        %v5238 = vpop.f32.mrb[0].mxu0
        %v5239 = vadd.f32 %v5154, %v5238
        %v5240 = vpop.f32.mrb[0].mxu0
        %v5241 = vadd.f32 %v5158, %v5240
        %5242 = vmatprep.mubr.f32.mxu0 %v4214
        %5243 = vmatmul.mubr.f32.gmra.mrb[0].mxu0 %v4213
        %v5244 = vpop.f32.mrb[0].mxu0
        %v5245 = vadd.f32 %v5154, %v5244
        %v5246 = vpop.f32.mrb[0].mxu0
        %v5247 = vadd.f32 %v5158, %v5246
        %5248 = vmatprep.mubr.f32.mxu0 %v4226
        %5249 = vmatmul.mubr.f32.gmra.mrb[0].mxu0 %v4225
        %v5250 = vpop.f32.mrb[0].mxu0
        %v5251 = vadd.f32 %v5154, %v5250
        %v5252 = vpop.f32.mrb[0].mxu0
        %v5253 = vadd.f32 %v5158, %v5252
        %5254 = vmatprep.mubr.f32.mxu0 %v4238
        %5255 = vmatmul.mubr.f32.gmra.mrb[0].mxu0 %v4237
        %v5256 = vpop.f32.mrb[0].mxu0
        %v5257 = vadd.f32 %v5154, %v5256
        %v5258 = vpop.f32.mrb[0].mxu0
        %v5259 = vadd.f32 %v5158, %v5258
        %5260 = vmatprep.mubr.f32.mxu0 %v4250
        %5261 = vmatmul.mubr.f32.gmra.mrb[0].mxu0 %v4249
        %v5262 = vpop.f32.mrb[0].mxu0
        %v5263 = vadd.f32 %v5154, %v5262
        %v5264 = vpop.f32.mrb[0].mxu0
        %v5265 = vadd.f32 %v5158, %v5264
        %5266 = vmatprep.mubr.f32.mxu0 %v4262
        %5267 = vmatmul.mubr.f32.gmra.mrb[0].mxu0 %v4261
        %v5268 = vpop.f32.mrb[0].mxu0
        %v5269 = vadd.f32 %v5154, %v5268
        %v5270 = vpop.f32.mrb[0].mxu0
        %v5271 = vadd.f32 %v5158, %v5270
        %5272 = vmatprep.mubr.f32.mxu0 %v4274
        %5273 = vmatmul.mubr.f32.gmra.mrb[0].mxu0 %v4273
        %v5274 = vpop.f32.mrb[0].mxu0
        %v5275 = vadd.f32 %v5154, %v5274
        %v5276 = vpop.f32.mrb[0].mxu0
        %v5277 = vadd.f32 %v5158, %v5276
        %5278 = vmatprep.mubr.f32.mxu0 %v4286
        %5279 = vmatmul.mubr.f32.gmra.mrb[0].mxu0 %v4285
        %v5280 = vpop.f32.mrb[0].mxu0
        %v5281 = vadd.f32 %v5154, %v5280
        %v5282 = vpop.f32.mrb[0].mxu0
        %v5283 = vadd.f32 %v5158, %v5282
        %5284 = vmatprep.mubr.f32.mxu0 %v4298
        %5285 = vmatmul.mubr.f32.gmra.mrb[0].mxu0 %v4297
        %v5286 = vpop.f32.mrb[0].mxu0
        %v5287 = vadd.f32 %v5154, %v5286
        %v5288 = vpop.f32.mrb[0].mxu0
        %v5289 = vadd.f32 %v5158, %v5288
        %5290 = vmatprep.mubr.f32.mxu0 %v4310
        %5291 = vmatmul.mubr.f32.gmra.mrb[0].mxu0 %v4309
        %v5292 = vpop.f32.mrb[0].mxu0
        %v5293 = vadd.f32 %v5154, %v5292
        %v5294 = vpop.f32.mrb[0].mxu0
        %v5295 = vadd.f32 %v5158, %v5294
        %5296 = vmatprep.mubr.f32.mxu0 %v4322
        %5297 = vmatmul.mubr.f32.gmra.mrb[0].mxu0 %v4321
        %v5298 = vpop.f32.mrb[0].mxu0
        %v5299 = vadd.f32 %v5154, %v5298
        %v5300 = vpop.f32.mrb[0].mxu0
        %v5301 = vadd.f32 %v5158, %v5300
        %5302 = vmatprep.mubr.f32.mxu0 %v4334
        %5303 = vmatmul.mubr.f32.gmra.mrb[0].mxu0 %v4333
        %v5304 = vpop.f32.mrb[0].mxu0
        %v5305 = vadd.f32 %v5154, %v5304
        %v5306 = vpop.f32.mrb[0].mxu0
        %v5307 = vadd.f32 %v5158, %v5306
        %5308 = vmatprep.mubr.f32.mxu0 %v4346
        %5309 = vmatmul.mubr.f32.gmra.mrb[0].mxu0 %v4345
        %v5310 = vpop.f32.mrb[0].mxu0
        %v5311 = vadd.f32 %v5154, %v5310
        %v5312 = vpop.f32.mrb[0].mxu0
        %v5313 = vadd.f32 %v5158, %v5312
        %5314 = vmatprep.mubr.f32.mxu0 %v4358
        %5315 = vmatmul.mubr.f32.gmra.mrb[0].mxu0 %v4357
        %v5316 = vpop.f32.mrb[0].mxu0
        %v5317 = vadd.f32 %v5154, %v5316
        %v5318 = vpop.f32.mrb[0].mxu0
        %v5319 = vadd.f32 %v5158, %v5318
        %5320 = vmatprep.mubr.f32.mxu0 %v4370
        %5321 = vmatmul.mubr.f32.gmra.mrb[0].mxu0 %v4369
        %v5322 = vpop.f32.mrb[0].mxu0
        %v5323 = vadd.f32 %v5154, %v5322
        %v5324 = vpop.f32.mrb[0].mxu0
        %v5325 = vadd.f32 %v5158, %v5324
        %5326 = vmatprep.mubr.f32.mxu0 %v4382
        %5327 = vmatmul.mubr.f32.gmra.mrb[0].mxu0 %v4381
        %v5328 = vpop.f32.mrb[0].mxu0
        %v5329 = vadd.f32 %v5154, %v5328
        %v5330 = vpop.f32.mrb[0].mxu0
        %v5331 = vadd.f32 %v5158, %v5330
        %5332 = vmatprep.mubr.f32.mxu0 %v4394
        %5333 = vmatmul.mubr.f32.gmra.mrb[0].mxu0 %v4393
        %v5334 = vpop.f32.mrb[0].mxu0
        %v5335 = vadd.f32 %v5154, %v5334
        %v5336 = vpop.f32.mrb[0].mxu0
        %v5337 = vadd.f32 %v5158, %v5336
        %5338 = vmatprep.mubr.f32.mxu0 %v4406
        %5339 = vmatmul.mubr.f32.gmra.mrb[0].mxu0 %v4405
        %v5340 = vpop.f32.mrb[0].mxu0
        %v5341 = vadd.f32 %v5154, %v5340
        %v5342 = vpop.f32.mrb[0].mxu0
        %v5343 = vadd.f32 %v5158, %v5342
        %5344 = vmatprep.mubr.f32.mxu0 %v4418
        %5345 = vmatmul.mubr.f32.gmra.mrb[0].mxu0 %v4417
        %v5346 = vpop.f32.mrb[0].mxu0
        %v5347 = vadd.f32 %v5154, %v5346
        %v5348 = vpop.f32.mrb[0].mxu0
        %v5349 = vadd.f32 %v5158, %v5348
        %5350 = vmatprep.mubr.f32.mxu0 %v4430
        %5351 = vmatmul.mubr.f32.gmra.mrb[0].mxu0 %v4429
        %v5352 = vpop.f32.mrb[0].mxu0
        %v5353 = vadd.f32 %v5154, %v5352
        %v5354 = vpop.f32.mrb[0].mxu0
        %v5355 = vadd.f32 %v5158, %v5354
        %5356 = vmatprep.mubr.f32.mxu0 %v4442
        %5357 = vmatmul.mubr.f32.gmra.mrb[0].mxu0 %v4441
        %v5358 = vpop.f32.mrb[0].mxu0
        %v5359 = vadd.f32 %v5154, %v5358
        %v5360 = vpop.f32.mrb[0].mxu0
        %v5361 = vadd.f32 %v5158, %v5360
        %5362 = vmatprep.mubr.f32.mxu0 %v4454
        %5363 = vmatmul.mubr.f32.gmra.mrb[0].mxu0 %v4453
        %v5364 = vpop.f32.mrb[0].mxu0
        %v5365 = vadd.f32 %v5154, %v5364
        %v5366 = vpop.f32.mrb[0].mxu0
        %v5367 = vadd.f32 %v5158, %v5366
        %5368 = vmatprep.mubr.f32.mxu0 %v4466
        %5369 = vmatmul.mubr.f32.gmra.mrb[0].mxu0 %v4465
        %v5370 = vpop.f32.mrb[0].mxu0
        %v5371 = vadd.f32 %v5154, %v5370
        %v5372 = vpop.f32.mrb[0].mxu0
        %v5373 = vadd.f32 %v5158, %v5372
        %5374 = vmatprep.mubr.f32.mxu0 %v4478
        %5375 = vmatmul.mubr.f32.gmra.mrb[0].mxu0 %v4477
        %v5376 = vpop.f32.mrb[0].mxu0
        %v5377 = vadd.f32 %v5154, %v5376
        %v5378 = vpop.f32.mrb[0].mxu0
        %v5379 = vadd.f32 %v5158, %v5378
        %5380 = vmatprep.mubr.f32.mxu0 %v4490
        %5381 = vmatmul.mubr.f32.gmra.mrb[0].mxu0 %v4489
        %v5382 = vpop.f32.mrb[0].mxu0
        %v5383 = vadd.f32 %v5154, %v5382
        %v5384 = vpop.f32.mrb[0].mxu0
        %v5385 = vadd.f32 %v5158, %v5384
        %5386 = vmatprep.mubr.f32.mxu0 %v4502
        %5387 = vmatmul.mubr.f32.gmra.mrb[0].mxu0 %v4501
        %v5388 = vpop.f32.mrb[0].mxu0
        %v5389 = vadd.f32 %v5154, %v5388
        %v5390 = vpop.f32.mrb[0].mxu0
        %v5391 = vadd.f32 %v5158, %v5390
        %5392 = vmatprep.mubr.f32.mxu0 %v4514
        %5393 = vmatmul.mubr.f32.gmra.mrb[0].mxu0 %v4513
        %v5394 = vpop.f32.mrb[0].mxu0
        %v5395 = vadd.f32 %v5154, %v5394
        %v5396 = vpop.f32.mrb[0].mxu0
        %v5397 = vadd.f32 %v5158, %v5396
        %5398 = vmatprep.mubr.f32.mxu0 %v4526
        %5399 = vmatmul.mubr.f32.gmra.mrb[0].mxu0 %v4525
        %v5400 = vpop.f32.mrb[0].mxu0
        %v5401 = vadd.f32 %v5154, %v5400
        %v5402 = vpop.f32.mrb[0].mxu0
        %v5403 = vadd.f32 %v5158, %v5402
        %5404 = vmatprep.mubr.f32.mxu0 %v4538
        %5405 = vmatmul.mubr.f32.gmra.mrb[0].mxu0 %v4537
        %v5406 = vpop.f32.mrb[0].mxu0
        %v5407 = vadd.f32 %v5154, %v5406
        %v5408 = vpop.f32.mrb[0].mxu0
        %v5409 = vadd.f32 %v5158, %v5408
        %5410 = vmatprep.mubr.f32.mxu0 %v4550
        %5411 = vmatmul.mubr.f32.gmra.mrb[0].mxu0 %v4549
        %v5412 = vpop.f32.mrb[0].mxu0
        %v5413 = vadd.f32 %v5154, %v5412
        %v5414 = vpop.f32.mrb[0].mxu0
        %v5415 = vadd.f32 %v5158, %v5414
        %5416 = vmatprep.mubr.f32.mxu0 %v4562
        %5417 = vmatmul.mubr.f32.gmra.mrb[0].mxu0 %v4561
        %v5418 = vpop.f32.mrb[0].mxu0
        %v5419 = vadd.f32 %v5154, %v5418
        %v5420 = vpop.f32.mrb[0].mxu0
        %v5421 = vadd.f32 %v5158, %v5420
        %5422 = vdwg.mxu0
        %5423 = vmatprep.subr.mxu0 %v4670
        %5424 = vmatpush1.msra.mxu0 %v4669
        %5425 = vmatprep.subr.mxu0 %v4673
        %5426 = vmatpush1.msra.mxu0 %v4672
        %5427 = vmatprep.subr.mxu0 %v4676
        %5428 = vmatpush1.msra.mxu0 %v4675
        %5429 = vmatprep.subr.mxu0 %v4679
        %5430 = vmatpush1.msra.mxu0 %v4678
        %5431 = vmatprep.subr.mxu0 %v4682
        %5432 = vmatpush1.msra.mxu0 %v4681
        %5433 = vmatprep.subr.mxu0 %v4685
        %5434 = vmatpush1.msra.mxu0 %v4684
        %5435 = vmatprep.subr.mxu0 %v4688
        %5436 = vmatpush1.msra.mxu0 %v4687
        %5437 = vmatprep.subr.mxu0 %v4691
        %5438 = vmatpush1.msra.mxu0 %v4690
        %5439 = vmatprep.subr.mxu0 %v4694
        %5440 = vmatpush1.msra.mxu0 %v4693
        %5441 = vmatprep.subr.mxu0 %v4697
        %5442 = vmatpush1.msra.mxu0 %v4696
        %5443 = vmatprep.subr.mxu0 %v4700
        %5444 = vmatpush1.msra.mxu0 %v4699
        %5445 = vmatprep.subr.mxu0 %v4703
        %5446 = vmatpush1.msra.mxu0 %v4702
        %5447 = vmatprep.subr.mxu0 %v4706
        %5448 = vmatpush1.msra.mxu0 %v4705
        %5449 = vmatprep.subr.mxu0 %v4709
        %5450 = vmatpush1.msra.mxu0 %v4708
        %5451 = vmatprep.subr.mxu0 %v4712
        %5452 = vmatpush1.msra.mxu0 %v4711
        %5453 = vmatprep.subr.mxu0 %v4715
        %5454 = vmatpush1.msra.mxu0 %v4714
        %5455 = vmatprep.subr.mxu0 %v4718
        %5456 = vmatpush1.msra.mxu0 %v4717
        %5457 = vmatprep.subr.mxu0 %v4721
        %5458 = vmatpush1.msra.mxu0 %v4720
        %5459 = vmatprep.subr.mxu0 %v4724
        %5460 = vmatpush1.msra.mxu0 %v4723
        %5461 = vmatprep.subr.mxu0 %v4727
        %5462 = vmatpush1.msra.mxu0 %v4726
        %5463 = vmatprep.subr.mxu0 %v4730
        %5464 = vmatpush1.msra.mxu0 %v4729
        %5465 = vmatprep.subr.mxu0 %v4733
        %5466 = vmatpush1.msra.mxu0 %v4732
        %5467 = vmatprep.subr.mxu0 %v4736
        %5468 = vmatpush1.msra.mxu0 %v4735
        %5469 = vmatprep.subr.mxu0 %v4739
        %5470 = vmatpush1.msra.mxu0 %v4738
        %5471 = vmatprep.subr.mxu0 %v4742
        %5472 = vmatpush1.msra.mxu0 %v4741
        %5473 = vmatprep.subr.mxu0 %v4745
        %5474 = vmatpush1.msra.mxu0 %v4744
        %5475 = vmatprep.subr.mxu0 %v4748
        %5476 = vmatpush1.msra.mxu0 %v4747
        %5477 = vmatprep.subr.mxu0 %v4751
        %5478 = vmatpush1.msra.mxu0 %v4750
        %5479 = vmatprep.subr.mxu0 %v4754
        %5480 = vmatpush1.msra.mxu0 %v4753
        %5481 = vmatprep.subr.mxu0 %v4757
        %5482 = vmatpush1.msra.mxu0 %v4756
        %5483 = vmatprep.subr.mxu0 %v4760
        %5484 = vmatpush1.msra.mxu0 %v4759
        %5485 = vmatprep.subr.mxu0 %v4763
        %5486 = vmatpush1.msra.mxu0 %v4762
        %5487 = vmatprep.mubr.f32.mxu0 %v4192
        %5488 = vmatmul.mubr.f32.gmra.mrb[0].mxu0 %v4191
        %v5489 = vpop.f32.mrb[0].mxu0
        %v5490 = vadd.f32 %v5233, %v5489
        %v5491 = vpop.f32.mrb[0].mxu0
        %v5492 = vadd.f32 %v5235, %v5491
        %5493 = vmatprep.mubr.f32.mxu0 %v4204
        %5494 = vmatmul.mubr.f32.gmra.mrb[0].mxu0 %v4203
        %v5495 = vpop.f32.mrb[0].mxu0
        %v5496 = vadd.f32 %v5239, %v5495
        %v5497 = vpop.f32.mrb[0].mxu0
        %v5498 = vadd.f32 %v5241, %v5497
        %5499 = vmatprep.mubr.f32.mxu0 %v4216
        %5500 = vmatmul.mubr.f32.gmra.mrb[0].mxu0 %v4215
        %v5501 = vpop.f32.mrb[0].mxu0
        %v5502 = vadd.f32 %v5245, %v5501
        %v5503 = vpop.f32.mrb[0].mxu0
        %v5504 = vadd.f32 %v5247, %v5503
        %5505 = vmatprep.mubr.f32.mxu0 %v4228
        %5506 = vmatmul.mubr.f32.gmra.mrb[0].mxu0 %v4227
        %v5507 = vpop.f32.mrb[0].mxu0
        %v5508 = vadd.f32 %v5251, %v5507
        %v5509 = vpop.f32.mrb[0].mxu0
        %v5510 = vadd.f32 %v5253, %v5509
        %5511 = vmatprep.mubr.f32.mxu0 %v4240
        %5512 = vmatmul.mubr.f32.gmra.mrb[0].mxu0 %v4239
        %v5513 = vpop.f32.mrb[0].mxu0
        %v5514 = vadd.f32 %v5257, %v5513
        %v5515 = vpop.f32.mrb[0].mxu0
        %v5516 = vadd.f32 %v5259, %v5515
        %5517 = vmatprep.mubr.f32.mxu0 %v4252
        %5518 = vmatmul.mubr.f32.gmra.mrb[0].mxu0 %v4251
        %v5519 = vpop.f32.mrb[0].mxu0
        %v5520 = vadd.f32 %v5263, %v5519
        %v5521 = vpop.f32.mrb[0].mxu0
        %v5522 = vadd.f32 %v5265, %v5521
        %5523 = vmatprep.mubr.f32.mxu0 %v4264
        %5524 = vmatmul.mubr.f32.gmra.mrb[0].mxu0 %v4263
        %v5525 = vpop.f32.mrb[0].mxu0
        %v5526 = vadd.f32 %v5269, %v5525
        %v5527 = vpop.f32.mrb[0].mxu0
        %v5528 = vadd.f32 %v5271, %v5527
        %5529 = vmatprep.mubr.f32.mxu0 %v4276
        %5530 = vmatmul.mubr.f32.gmra.mrb[0].mxu0 %v4275
        %v5531 = vpop.f32.mrb[0].mxu0
        %v5532 = vadd.f32 %v5275, %v5531
        %v5533 = vpop.f32.mrb[0].mxu0
        %v5534 = vadd.f32 %v5277, %v5533
        %5535 = vmatprep.mubr.f32.mxu0 %v4288
        %5536 = vmatmul.mubr.f32.gmra.mrb[0].mxu0 %v4287
        %v5537 = vpop.f32.mrb[0].mxu0
        %v5538 = vadd.f32 %v5281, %v5537
        %v5539 = vpop.f32.mrb[0].mxu0
        %v5540 = vadd.f32 %v5283, %v5539
        %5541 = vmatprep.mubr.f32.mxu0 %v4300
        %5542 = vmatmul.mubr.f32.gmra.mrb[0].mxu0 %v4299
        %v5543 = vpop.f32.mrb[0].mxu0
        %v5544 = vadd.f32 %v5287, %v5543
        %v5545 = vpop.f32.mrb[0].mxu0
        %v5546 = vadd.f32 %v5289, %v5545
        %5547 = vmatprep.mubr.f32.mxu0 %v4312
        %5548 = vmatmul.mubr.f32.gmra.mrb[0].mxu0 %v4311
        %v5549 = vpop.f32.mrb[0].mxu0
        %v5550 = vadd.f32 %v5293, %v5549
        %v5551 = vpop.f32.mrb[0].mxu0
        %v5552 = vadd.f32 %v5295, %v5551
        %5553 = vmatprep.mubr.f32.mxu0 %v4324
        %5554 = vmatmul.mubr.f32.gmra.mrb[0].mxu0 %v4323
        %v5555 = vpop.f32.mrb[0].mxu0
        %v5556 = vadd.f32 %v5299, %v5555
        %v5557 = vpop.f32.mrb[0].mxu0
        %v5558 = vadd.f32 %v5301, %v5557
        %5559 = vmatprep.mubr.f32.mxu0 %v4336
        %5560 = vmatmul.mubr.f32.gmra.mrb[0].mxu0 %v4335
        %v5561 = vpop.f32.mrb[0].mxu0
        %v5562 = vadd.f32 %v5305, %v5561
        %v5563 = vpop.f32.mrb[0].mxu0
        %v5564 = vadd.f32 %v5307, %v5563
        %5565 = vmatprep.mubr.f32.mxu0 %v4348
        %5566 = vmatmul.mubr.f32.gmra.mrb[0].mxu0 %v4347
        %v5567 = vpop.f32.mrb[0].mxu0
        %v5568 = vadd.f32 %v5311, %v5567
        %v5569 = vpop.f32.mrb[0].mxu0
        %v5570 = vadd.f32 %v5313, %v5569
        %5571 = vmatprep.mubr.f32.mxu0 %v4360
        %5572 = vmatmul.mubr.f32.gmra.mrb[0].mxu0 %v4359
        %v5573 = vpop.f32.mrb[0].mxu0
        %v5574 = vadd.f32 %v5317, %v5573
        %v5575 = vpop.f32.mrb[0].mxu0
        %v5576 = vadd.f32 %v5319, %v5575
        %5577 = vmatprep.mubr.f32.mxu0 %v4372
        %5578 = vmatmul.mubr.f32.gmra.mrb[0].mxu0 %v4371
        %v5579 = vpop.f32.mrb[0].mxu0
        %v5580 = vadd.f32 %v5323, %v5579
        %v5581 = vpop.f32.mrb[0].mxu0
        %v5582 = vadd.f32 %v5325, %v5581
        %5583 = vmatprep.mubr.f32.mxu0 %v4384
        %5584 = vmatmul.mubr.f32.gmra.mrb[0].mxu0 %v4383
        %v5585 = vpop.f32.mrb[0].mxu0
        %v5586 = vadd.f32 %v5329, %v5585
        %v5587 = vpop.f32.mrb[0].mxu0
        %v5588 = vadd.f32 %v5331, %v5587
        %5589 = vmatprep.mubr.f32.mxu0 %v4396
        %5590 = vmatmul.mubr.f32.gmra.mrb[0].mxu0 %v4395
        %v5591 = vpop.f32.mrb[0].mxu0
        %v5592 = vadd.f32 %v5335, %v5591
        %v5593 = vpop.f32.mrb[0].mxu0
        %v5594 = vadd.f32 %v5337, %v5593
        %5595 = vmatprep.mubr.f32.mxu0 %v4408
        %5596 = vmatmul.mubr.f32.gmra.mrb[0].mxu0 %v4407
        %v5597 = vpop.f32.mrb[0].mxu0
        %v5598 = vadd.f32 %v5341, %v5597
        %v5599 = vpop.f32.mrb[0].mxu0
        %v5600 = vadd.f32 %v5343, %v5599
        %5601 = vmatprep.mubr.f32.mxu0 %v4420
        %5602 = vmatmul.mubr.f32.gmra.mrb[0].mxu0 %v4419
        %v5603 = vpop.f32.mrb[0].mxu0
        %v5604 = vadd.f32 %v5347, %v5603
        %v5605 = vpop.f32.mrb[0].mxu0
        %v5606 = vadd.f32 %v5349, %v5605
        %5607 = vmatprep.mubr.f32.mxu0 %v4432
        %5608 = vmatmul.mubr.f32.gmra.mrb[0].mxu0 %v4431
        %v5609 = vpop.f32.mrb[0].mxu0
        %v5610 = vadd.f32 %v5353, %v5609
        %v5611 = vpop.f32.mrb[0].mxu0
        %v5612 = vadd.f32 %v5355, %v5611
        %5613 = vmatprep.mubr.f32.mxu0 %v4444
        %5614 = vmatmul.mubr.f32.gmra.mrb[0].mxu0 %v4443
        %v5615 = vpop.f32.mrb[0].mxu0
        %v5616 = vadd.f32 %v5359, %v5615
        %v5617 = vpop.f32.mrb[0].mxu0
        %v5618 = vadd.f32 %v5361, %v5617
        %5619 = vmatprep.mubr.f32.mxu0 %v4456
        %5620 = vmatmul.mubr.f32.gmra.mrb[0].mxu0 %v4455
        %v5621 = vpop.f32.mrb[0].mxu0
        %v5622 = vadd.f32 %v5365, %v5621
        %v5623 = vpop.f32.mrb[0].mxu0
        %v5624 = vadd.f32 %v5367, %v5623
        %5625 = vmatprep.mubr.f32.mxu0 %v4468
        %5626 = vmatmul.mubr.f32.gmra.mrb[0].mxu0 %v4467
        %v5627 = vpop.f32.mrb[0].mxu0
        %v5628 = vadd.f32 %v5371, %v5627
        %v5629 = vpop.f32.mrb[0].mxu0
        %v5630 = vadd.f32 %v5373, %v5629
        %5631 = vmatprep.mubr.f32.mxu0 %v4480
        %5632 = vmatmul.mubr.f32.gmra.mrb[0].mxu0 %v4479
        %v5633 = vpop.f32.mrb[0].mxu0
        %v5634 = vadd.f32 %v5377, %v5633
        %v5635 = vpop.f32.mrb[0].mxu0
        %v5636 = vadd.f32 %v5379, %v5635
        %5637 = vmatprep.mubr.f32.mxu0 %v4492
        %5638 = vmatmul.mubr.f32.gmra.mrb[0].mxu0 %v4491
        %v5639 = vpop.f32.mrb[0].mxu0
        %v5640 = vadd.f32 %v5383, %v5639
        %v5641 = vpop.f32.mrb[0].mxu0
        %v5642 = vadd.f32 %v5385, %v5641
        %5643 = vmatprep.mubr.f32.mxu0 %v4504
        %5644 = vmatmul.mubr.f32.gmra.mrb[0].mxu0 %v4503
        %v5645 = vpop.f32.mrb[0].mxu0
        %v5646 = vadd.f32 %v5389, %v5645
        %v5647 = vpop.f32.mrb[0].mxu0
        %v5648 = vadd.f32 %v5391, %v5647
        %5649 = vmatprep.mubr.f32.mxu0 %v4516
        %5650 = vmatmul.mubr.f32.gmra.mrb[0].mxu0 %v4515
        %v5651 = vpop.f32.mrb[0].mxu0
        %v5652 = vadd.f32 %v5395, %v5651
        %v5653 = vpop.f32.mrb[0].mxu0
        %v5654 = vadd.f32 %v5397, %v5653
        %5655 = vmatprep.mubr.f32.mxu0 %v4528
        %5656 = vmatmul.mubr.f32.gmra.mrb[0].mxu0 %v4527
        %v5657 = vpop.f32.mrb[0].mxu0
        %v5658 = vadd.f32 %v5401, %v5657
        %v5659 = vpop.f32.mrb[0].mxu0
        %v5660 = vadd.f32 %v5403, %v5659
        %5661 = vmatprep.mubr.f32.mxu0 %v4540
        %5662 = vmatmul.mubr.f32.gmra.mrb[0].mxu0 %v4539
        %v5663 = vpop.f32.mrb[0].mxu0
        %v5664 = vadd.f32 %v5407, %v5663
        %v5665 = vpop.f32.mrb[0].mxu0
        %v5666 = vadd.f32 %v5409, %v5665
        %5667 = vmatprep.mubr.f32.mxu0 %v4552
        %5668 = vmatmul.mubr.f32.gmra.mrb[0].mxu0 %v4551
        %v5669 = vpop.f32.mrb[0].mxu0
        %v5670 = vadd.f32 %v5413, %v5669
        %v5671 = vpop.f32.mrb[0].mxu0
        %v5672 = vadd.f32 %v5415, %v5671
        %5673 = vmatprep.mubr.f32.mxu0 %v4564
        %5674 = vmatmul.mubr.f32.gmra.mrb[0].mxu0 %v4563
        %v5675 = vpop.f32.mrb[0].mxu0
        %v5676 = vadd.f32 %v5419, %v5675
        %v5677 = vpop.f32.mrb[0].mxu0
        %v5678 = vadd.f32 %v5421, %v5677
        %5679 = vdwg.mxu0
        %5680 = vmatprep.subr.mxu0 %v4766
        %5681 = vmatpush1.msra.mxu0 %v4765
        %5682 = vmatprep.subr.mxu0 %v4769
        %5683 = vmatpush1.msra.mxu0 %v4768
        %5684 = vmatprep.subr.mxu0 %v4772
        %5685 = vmatpush1.msra.mxu0 %v4771
        %5686 = vmatprep.subr.mxu0 %v4775
        %5687 = vmatpush1.msra.mxu0 %v4774
        %5688 = vmatprep.subr.mxu0 %v4778
        %5689 = vmatpush1.msra.mxu0 %v4777
        %5690 = vmatprep.subr.mxu0 %v4781
        %5691 = vmatpush1.msra.mxu0 %v4780
        %5692 = vmatprep.subr.mxu0 %v4784
        %5693 = vmatpush1.msra.mxu0 %v4783
        %5694 = vmatprep.subr.mxu0 %v4787
        %5695 = vmatpush1.msra.mxu0 %v4786
        %5696 = vmatprep.subr.mxu0 %v4790
        %5697 = vmatpush1.msra.mxu0 %v4789
        %5698 = vmatprep.subr.mxu0 %v4793
        %5699 = vmatpush1.msra.mxu0 %v4792
        %5700 = vmatprep.subr.mxu0 %v4796
        %5701 = vmatpush1.msra.mxu0 %v4795
        %5702 = vmatprep.subr.mxu0 %v4799
        %5703 = vmatpush1.msra.mxu0 %v4798
        %5704 = vmatprep.subr.mxu0 %v4802
        %5705 = vmatpush1.msra.mxu0 %v4801
        %5706 = vmatprep.subr.mxu0 %v4805
        %5707 = vmatpush1.msra.mxu0 %v4804
        %5708 = vmatprep.subr.mxu0 %v4808
        %5709 = vmatpush1.msra.mxu0 %v4807
        %5710 = vmatprep.subr.mxu0 %v4811
        %5711 = vmatpush1.msra.mxu0 %v4810
        %5712 = vmatprep.subr.mxu0 %v4814
        %5713 = vmatpush1.msra.mxu0 %v4813
        %5714 = vmatprep.subr.mxu0 %v4817
        %5715 = vmatpush1.msra.mxu0 %v4816
        %5716 = vmatprep.subr.mxu0 %v4820
        %5717 = vmatpush1.msra.mxu0 %v4819
        %5718 = vmatprep.subr.mxu0 %v4823
        %5719 = vmatpush1.msra.mxu0 %v4822
        %5720 = vmatprep.subr.mxu0 %v4826
        %5721 = vmatpush1.msra.mxu0 %v4825
        %5722 = vmatprep.subr.mxu0 %v4829
        %5723 = vmatpush1.msra.mxu0 %v4828
        %5724 = vmatprep.subr.mxu0 %v4832
        %5725 = vmatpush1.msra.mxu0 %v4831
        %5726 = vmatprep.subr.mxu0 %v4835
        %5727 = vmatpush1.msra.mxu0 %v4834
        %5728 = vmatprep.subr.mxu0 %v4838
        %5729 = vmatpush1.msra.mxu0 %v4837
        %5730 = vmatprep.subr.mxu0 %v4841
        %5731 = vmatpush1.msra.mxu0 %v4840
        %5732 = vmatprep.subr.mxu0 %v4844
        %5733 = vmatpush1.msra.mxu0 %v4843
        %5734 = vmatprep.subr.mxu0 %v4847
        %5735 = vmatpush1.msra.mxu0 %v4846
        %5736 = vmatprep.subr.mxu0 %v4850
        %5737 = vmatpush1.msra.mxu0 %v4849
        %5738 = vmatprep.subr.mxu0 %v4853
        %5739 = vmatpush1.msra.mxu0 %v4852
        %5740 = vmatprep.subr.mxu0 %v4856
        %5741 = vmatpush1.msra.mxu0 %v4855
        %5742 = vmatprep.subr.mxu0 %v4859
        %5743 = vmatpush1.msra.mxu0 %v4858
        %5744 = vmatprep.mubr.f32.mxu0 %v4194
        %5745 = vmatmul.mubr.f32.gmra.mrb[0].mxu0 %v4193
        %v5746 = vpop.f32.mrb[0].mxu0
        %v5747 = vadd.f32 %v5490, %v5746
        %v5748 = vpop.f32.mrb[0].mxu0
        %v5749 = vadd.f32 %v5492, %v5748
        %5750 = vmatprep.mubr.f32.mxu0 %v4206
        %5751 = vmatmul.mubr.f32.gmra.mrb[0].mxu0 %v4205
        %v5752 = vpop.f32.mrb[0].mxu0
        %v5753 = vadd.f32 %v5496, %v5752
        %v5754 = vpop.f32.mrb[0].mxu0
        %v5755 = vadd.f32 %v5498, %v5754
        %5756 = vmatprep.mubr.f32.mxu0 %v4218
        %5757 = vmatmul.mubr.f32.gmra.mrb[0].mxu0 %v4217
        %v5758 = vpop.f32.mrb[0].mxu0
        %v5759 = vadd.f32 %v5502, %v5758
        %v5760 = vpop.f32.mrb[0].mxu0
        %v5761 = vadd.f32 %v5504, %v5760
        %5762 = vmatprep.mubr.f32.mxu0 %v4230
        %5763 = vmatmul.mubr.f32.gmra.mrb[0].mxu0 %v4229
        %v5764 = vpop.f32.mrb[0].mxu0
        %v5765 = vadd.f32 %v5508, %v5764
        %v5766 = vpop.f32.mrb[0].mxu0
        %v5767 = vadd.f32 %v5510, %v5766
        %5768 = vmatprep.mubr.f32.mxu0 %v4242
        %5769 = vmatmul.mubr.f32.gmra.mrb[0].mxu0 %v4241
        %v5770 = vpop.f32.mrb[0].mxu0
        %v5771 = vadd.f32 %v5514, %v5770
        %v5772 = vpop.f32.mrb[0].mxu0
        %v5773 = vadd.f32 %v5516, %v5772
        %5774 = vmatprep.mubr.f32.mxu0 %v4254
        %5775 = vmatmul.mubr.f32.gmra.mrb[0].mxu0 %v4253
        %v5776 = vpop.f32.mrb[0].mxu0
        %v5777 = vadd.f32 %v5520, %v5776
        %v5778 = vpop.f32.mrb[0].mxu0
        %v5779 = vadd.f32 %v5522, %v5778
        %5780 = vmatprep.mubr.f32.mxu0 %v4266
        %5781 = vmatmul.mubr.f32.gmra.mrb[0].mxu0 %v4265
        %v5782 = vpop.f32.mrb[0].mxu0
        %v5783 = vadd.f32 %v5526, %v5782
        %v5784 = vpop.f32.mrb[0].mxu0
        %v5785 = vadd.f32 %v5528, %v5784
        %5786 = vmatprep.mubr.f32.mxu0 %v4278
        %5787 = vmatmul.mubr.f32.gmra.mrb[0].mxu0 %v4277
        %v5788 = vpop.f32.mrb[0].mxu0
        %v5789 = vadd.f32 %v5532, %v5788
        %v5790 = vpop.f32.mrb[0].mxu0
        %v5791 = vadd.f32 %v5534, %v5790
        %5792 = vmatprep.mubr.f32.mxu0 %v4290
        %5793 = vmatmul.mubr.f32.gmra.mrb[0].mxu0 %v4289
        %v5794 = vpop.f32.mrb[0].mxu0
        %v5795 = vadd.f32 %v5538, %v5794
        %v5796 = vpop.f32.mrb[0].mxu0
        %v5797 = vadd.f32 %v5540, %v5796
        %5798 = vmatprep.mubr.f32.mxu0 %v4302
        %5799 = vmatmul.mubr.f32.gmra.mrb[0].mxu0 %v4301
        %v5800 = vpop.f32.mrb[0].mxu0
        %v5801 = vadd.f32 %v5544, %v5800
        %v5802 = vpop.f32.mrb[0].mxu0
        %v5803 = vadd.f32 %v5546, %v5802
        %5804 = vmatprep.mubr.f32.mxu0 %v4314
        %5805 = vmatmul.mubr.f32.gmra.mrb[0].mxu0 %v4313
        %v5806 = vpop.f32.mrb[0].mxu0
        %v5807 = vadd.f32 %v5550, %v5806
        %v5808 = vpop.f32.mrb[0].mxu0
        %v5809 = vadd.f32 %v5552, %v5808
        %5810 = vmatprep.mubr.f32.mxu0 %v4326
        %5811 = vmatmul.mubr.f32.gmra.mrb[0].mxu0 %v4325
        %v5812 = vpop.f32.mrb[0].mxu0
        %v5813 = vadd.f32 %v5556, %v5812
        %v5814 = vpop.f32.mrb[0].mxu0
        %v5815 = vadd.f32 %v5558, %v5814
        %5816 = vmatprep.mubr.f32.mxu0 %v4338
        %5817 = vmatmul.mubr.f32.gmra.mrb[0].mxu0 %v4337
        %v5818 = vpop.f32.mrb[0].mxu0
        %v5819 = vadd.f32 %v5562, %v5818
        %v5820 = vpop.f32.mrb[0].mxu0
        %v5821 = vadd.f32 %v5564, %v5820
        %5822 = vmatprep.mubr.f32.mxu0 %v4350
        %5823 = vmatmul.mubr.f32.gmra.mrb[0].mxu0 %v4349
        %v5824 = vpop.f32.mrb[0].mxu0
        %v5825 = vadd.f32 %v5568, %v5824
        %v5826 = vpop.f32.mrb[0].mxu0
        %v5827 = vadd.f32 %v5570, %v5826
        %5828 = vmatprep.mubr.f32.mxu0 %v4362
        %5829 = vmatmul.mubr.f32.gmra.mrb[0].mxu0 %v4361
        %v5830 = vpop.f32.mrb[0].mxu0
        %v5831 = vadd.f32 %v5574, %v5830
        %v5832 = vpop.f32.mrb[0].mxu0
        %v5833 = vadd.f32 %v5576, %v5832
        %5834 = vmatprep.mubr.f32.mxu0 %v4374
        %5835 = vmatmul.mubr.f32.gmra.mrb[0].mxu0 %v4373
        %v5836 = vpop.f32.mrb[0].mxu0
        %v5837 = vadd.f32 %v5580, %v5836
        %v5838 = vpop.f32.mrb[0].mxu0
        %v5839 = vadd.f32 %v5582, %v5838
        %5840 = vmatprep.mubr.f32.mxu0 %v4386
        %5841 = vmatmul.mubr.f32.gmra.mrb[0].mxu0 %v4385
        %v5842 = vpop.f32.mrb[0].mxu0
        %v5843 = vadd.f32 %v5586, %v5842
        %v5844 = vpop.f32.mrb[0].mxu0
        %v5845 = vadd.f32 %v5588, %v5844
        %5846 = vmatprep.mubr.f32.mxu0 %v4398
        %5847 = vmatmul.mubr.f32.gmra.mrb[0].mxu0 %v4397
        %v5848 = vpop.f32.mrb[0].mxu0
        %v5849 = vadd.f32 %v5592, %v5848
        %v5850 = vpop.f32.mrb[0].mxu0
        %v5851 = vadd.f32 %v5594, %v5850
        %5852 = vmatprep.mubr.f32.mxu0 %v4410
        %5853 = vmatmul.mubr.f32.gmra.mrb[0].mxu0 %v4409
        %v5854 = vpop.f32.mrb[0].mxu0
        %v5855 = vadd.f32 %v5598, %v5854
        %v5856 = vpop.f32.mrb[0].mxu0
        %v5857 = vadd.f32 %v5600, %v5856
        %5858 = vmatprep.mubr.f32.mxu0 %v4422
        %5859 = vmatmul.mubr.f32.gmra.mrb[0].mxu0 %v4421
        %v5860 = vpop.f32.mrb[0].mxu0
        %v5861 = vadd.f32 %v5604, %v5860
        %v5862 = vpop.f32.mrb[0].mxu0
        %v5863 = vadd.f32 %v5606, %v5862
        %5864 = vmatprep.mubr.f32.mxu0 %v4434
        %5865 = vmatmul.mubr.f32.gmra.mrb[0].mxu0 %v4433
        %v5866 = vpop.f32.mrb[0].mxu0
        %v5867 = vadd.f32 %v5610, %v5866
        %v5868 = vpop.f32.mrb[0].mxu0
        %v5869 = vadd.f32 %v5612, %v5868
        %5870 = vmatprep.mubr.f32.mxu0 %v4446
        %5871 = vmatmul.mubr.f32.gmra.mrb[0].mxu0 %v4445
        %v5872 = vpop.f32.mrb[0].mxu0
        %v5873 = vadd.f32 %v5616, %v5872
        %v5874 = vpop.f32.mrb[0].mxu0
        %v5875 = vadd.f32 %v5618, %v5874
        %5876 = vmatprep.mubr.f32.mxu0 %v4458
        %5877 = vmatmul.mubr.f32.gmra.mrb[0].mxu0 %v4457
        %v5878 = vpop.f32.mrb[0].mxu0
        %v5879 = vadd.f32 %v5622, %v5878
        %v5880 = vpop.f32.mrb[0].mxu0
        %v5881 = vadd.f32 %v5624, %v5880
        %5882 = vmatprep.mubr.f32.mxu0 %v4470
        %5883 = vmatmul.mubr.f32.gmra.mrb[0].mxu0 %v4469
        %v5884 = vpop.f32.mrb[0].mxu0
        %v5885 = vadd.f32 %v5628, %v5884
        %v5886 = vpop.f32.mrb[0].mxu0
        %v5887 = vadd.f32 %v5630, %v5886
        %5888 = vmatprep.mubr.f32.mxu0 %v4482
        %5889 = vmatmul.mubr.f32.gmra.mrb[0].mxu0 %v4481
        %v5890 = vpop.f32.mrb[0].mxu0
        %v5891 = vadd.f32 %v5634, %v5890
        %v5892 = vpop.f32.mrb[0].mxu0
        %v5893 = vadd.f32 %v5636, %v5892
        %5894 = vmatprep.mubr.f32.mxu0 %v4494
        %5895 = vmatmul.mubr.f32.gmra.mrb[0].mxu0 %v4493
        %v5896 = vpop.f32.mrb[0].mxu0
        %v5897 = vadd.f32 %v5640, %v5896
        %v5898 = vpop.f32.mrb[0].mxu0
        %v5899 = vadd.f32 %v5642, %v5898
        %5900 = vmatprep.mubr.f32.mxu0 %v4506
        %5901 = vmatmul.mubr.f32.gmra.mrb[0].mxu0 %v4505
        %v5902 = vpop.f32.mrb[0].mxu0
        %v5903 = vadd.f32 %v5646, %v5902
        %v5904 = vpop.f32.mrb[0].mxu0
        %v5905 = vadd.f32 %v5648, %v5904
        %5906 = vmatprep.mubr.f32.mxu0 %v4518
        %5907 = vmatmul.mubr.f32.gmra.mrb[0].mxu0 %v4517
        %v5908 = vpop.f32.mrb[0].mxu0
        %v5909 = vadd.f32 %v5652, %v5908
        %v5910 = vpop.f32.mrb[0].mxu0
        %v5911 = vadd.f32 %v5654, %v5910
        %5912 = vmatprep.mubr.f32.mxu0 %v4530
        %5913 = vmatmul.mubr.f32.gmra.mrb[0].mxu0 %v4529
        %v5914 = vpop.f32.mrb[0].mxu0
        %v5915 = vadd.f32 %v5658, %v5914
        %v5916 = vpop.f32.mrb[0].mxu0
        %v5917 = vadd.f32 %v5660, %v5916
        %5918 = vmatprep.mubr.f32.mxu0 %v4542
        %5919 = vmatmul.mubr.f32.gmra.mrb[0].mxu0 %v4541
        %v5920 = vpop.f32.mrb[0].mxu0
        %v5921 = vadd.f32 %v5664, %v5920
        %v5922 = vpop.f32.mrb[0].mxu0
        %v5923 = vadd.f32 %v5666, %v5922
        %5924 = vmatprep.mubr.f32.mxu0 %v4554
        %5925 = vmatmul.mubr.f32.gmra.mrb[0].mxu0 %v4553
        %v5926 = vpop.f32.mrb[0].mxu0
        %v5927 = vadd.f32 %v5670, %v5926
        %v5928 = vpop.f32.mrb[0].mxu0
        %v5929 = vadd.f32 %v5672, %v5928
        %5930 = vmatprep.mubr.f32.mxu0 %v4566
        %5931 = vmatmul.mubr.f32.gmra.mrb[0].mxu0 %v4565
        %v5932 = vpop.f32.mrb[0].mxu0
        %v5933 = vadd.f32 %v5676, %v5932
        %v5934 = vpop.f32.mrb[0].mxu0
        %v5935 = vadd.f32 %v5678, %v5934
        %5936 = vdwg.mxu0
        %5937 = vmatprep.subr.mxu0 %v4862
        %5938 = vmatpush1.msra.mxu0 %v4861
        %5939 = vmatprep.subr.mxu0 %v4865
        %5940 = vmatpush1.msra.mxu0 %v4864
        %5941 = vmatprep.subr.mxu0 %v4868
        %5942 = vmatpush1.msra.mxu0 %v4867
        %5943 = vmatprep.subr.mxu0 %v4871
        %5944 = vmatpush1.msra.mxu0 %v4870
        %5945 = vmatprep.subr.mxu0 %v4874
        %5946 = vmatpush1.msra.mxu0 %v4873
        %5947 = vmatprep.subr.mxu0 %v4877
        %5948 = vmatpush1.msra.mxu0 %v4876
        %5949 = vmatprep.subr.mxu0 %v4880
        %5950 = vmatpush1.msra.mxu0 %v4879
        %5951 = vmatprep.subr.mxu0 %v4883
        %5952 = vmatpush1.msra.mxu0 %v4882
        %5953 = vmatprep.subr.mxu0 %v4886
        %5954 = vmatpush1.msra.mxu0 %v4885
        %5955 = vmatprep.subr.mxu0 %v4889
        %5956 = vmatpush1.msra.mxu0 %v4888
        %5957 = vmatprep.subr.mxu0 %v4892
        %5958 = vmatpush1.msra.mxu0 %v4891
        %5959 = vmatprep.subr.mxu0 %v4895
        %5960 = vmatpush1.msra.mxu0 %v4894
        %5961 = vmatprep.subr.mxu0 %v4898
        %5962 = vmatpush1.msra.mxu0 %v4897
        %5963 = vmatprep.subr.mxu0 %v4901
        %5964 = vmatpush1.msra.mxu0 %v4900
        %5965 = vmatprep.subr.mxu0 %v4904
        %5966 = vmatpush1.msra.mxu0 %v4903
        %5967 = vmatprep.subr.mxu0 %v4907
        %5968 = vmatpush1.msra.mxu0 %v4906
        %5969 = vmatprep.subr.mxu0 %v4910
        %5970 = vmatpush1.msra.mxu0 %v4909
        %5971 = vmatprep.subr.mxu0 %v4913
        %5972 = vmatpush1.msra.mxu0 %v4912
        %5973 = vmatprep.subr.mxu0 %v4916
        %5974 = vmatpush1.msra.mxu0 %v4915
        %5975 = vmatprep.subr.mxu0 %v4919
        %5976 = vmatpush1.msra.mxu0 %v4918
        %5977 = vmatprep.subr.mxu0 %v4922
        %5978 = vmatpush1.msra.mxu0 %v4921
        %5979 = vmatprep.subr.mxu0 %v4925
        %5980 = vmatpush1.msra.mxu0 %v4924
        %5981 = vmatprep.subr.mxu0 %v4928
        %5982 = vmatpush1.msra.mxu0 %v4927
        %5983 = vmatprep.subr.mxu0 %v4931
        %5984 = vmatpush1.msra.mxu0 %v4930
        %5985 = vmatprep.subr.mxu0 %v4934
        %5986 = vmatpush1.msra.mxu0 %v4933
        %5987 = vmatprep.subr.mxu0 %v4937
        %5988 = vmatpush1.msra.mxu0 %v4936
        %5989 = vmatprep.subr.mxu0 %v4940
        %5990 = vmatpush1.msra.mxu0 %v4939
        %5991 = vmatprep.subr.mxu0 %v4943
        %5992 = vmatpush1.msra.mxu0 %v4942
        %5993 = vmatprep.subr.mxu0 %v4946
        %5994 = vmatpush1.msra.mxu0 %v4945
        %5995 = vmatprep.subr.mxu0 %v4949
        %5996 = vmatpush1.msra.mxu0 %v4948
        %5997 = vmatprep.subr.mxu0 %v4952
        %5998 = vmatpush1.msra.mxu0 %v4951
        %5999 = vmatprep.subr.mxu0 %v4955
        %6000 = vmatpush1.msra.mxu0 %v4954
        %6001 = vmatprep.mubr.f32.mxu0 %v4196
        %6002 = vmatmul.mubr.f32.gmra.mrb[0].mxu0 %v4195
        %v6003 = vpop.f32.mrb[0].mxu0
        %v6004 = vadd.f32 %v5747, %v6003
        %v6005 = vpop.f32.mrb[0].mxu0
        %v6006 = vadd.f32 %v5749, %v6005
        %6007 = vmatprep.mubr.f32.mxu0 %v4208
        %6008 = vmatmul.mubr.f32.gmra.mrb[0].mxu0 %v4207
        %v6009 = vpop.f32.mrb[0].mxu0
        %v6010 = vadd.f32 %v5753, %v6009
        %v6011 = vpop.f32.mrb[0].mxu0
        %v6012 = vadd.f32 %v5755, %v6011
        %6013 = vmatprep.mubr.f32.mxu0 %v4220
        %6014 = vmatmul.mubr.f32.gmra.mrb[0].mxu0 %v4219
        %v6015 = vpop.f32.mrb[0].mxu0
        %v6016 = vadd.f32 %v5759, %v6015
        %v6017 = vpop.f32.mrb[0].mxu0
        %v6018 = vadd.f32 %v5761, %v6017
        %6019 = vmatprep.mubr.f32.mxu0 %v4232
        %6020 = vmatmul.mubr.f32.gmra.mrb[0].mxu0 %v4231
        %v6021 = vpop.f32.mrb[0].mxu0
        %v6022 = vadd.f32 %v5765, %v6021
        %v6023 = vpop.f32.mrb[0].mxu0
        %v6024 = vadd.f32 %v5767, %v6023
        %6025 = vmatprep.mubr.f32.mxu0 %v4244
        %6026 = vmatmul.mubr.f32.gmra.mrb[0].mxu0 %v4243
        %v6027 = vpop.f32.mrb[0].mxu0
        %v6028 = vadd.f32 %v5771, %v6027
        %v6029 = vpop.f32.mrb[0].mxu0
        %v6030 = vadd.f32 %v5773, %v6029
        %6031 = vmatprep.mubr.f32.mxu0 %v4256
        %6032 = vmatmul.mubr.f32.gmra.mrb[0].mxu0 %v4255
        %v6033 = vpop.f32.mrb[0].mxu0
        %v6034 = vadd.f32 %v5777, %v6033
        %v6035 = vpop.f32.mrb[0].mxu0
        %v6036 = vadd.f32 %v5779, %v6035
        %6037 = vmatprep.mubr.f32.mxu0 %v4268
        %6038 = vmatmul.mubr.f32.gmra.mrb[0].mxu0 %v4267
        %v6039 = vpop.f32.mrb[0].mxu0
        %v6040 = vadd.f32 %v5783, %v6039
        %v6041 = vpop.f32.mrb[0].mxu0
        %v6042 = vadd.f32 %v5785, %v6041
        %6043 = vmatprep.mubr.f32.mxu0 %v4280
        %6044 = vmatmul.mubr.f32.gmra.mrb[0].mxu0 %v4279
        %v6045 = vpop.f32.mrb[0].mxu0
        %v6046 = vadd.f32 %v5789, %v6045
        %v6047 = vpop.f32.mrb[0].mxu0
        %v6048 = vadd.f32 %v5791, %v6047
        %6049 = vmatprep.mubr.f32.mxu0 %v4292
        %6050 = vmatmul.mubr.f32.gmra.mrb[0].mxu0 %v4291
        %v6051 = vpop.f32.mrb[0].mxu0
        %v6052 = vadd.f32 %v5795, %v6051
        %v6053 = vpop.f32.mrb[0].mxu0
        %v6054 = vadd.f32 %v5797, %v6053
        %6055 = vmatprep.mubr.f32.mxu0 %v4304
        %6056 = vmatmul.mubr.f32.gmra.mrb[0].mxu0 %v4303
        %v6057 = vpop.f32.mrb[0].mxu0
        %v6058 = vadd.f32 %v5801, %v6057
        %v6059 = vpop.f32.mrb[0].mxu0
        %v6060 = vadd.f32 %v5803, %v6059
        %6061 = vmatprep.mubr.f32.mxu0 %v4316
        %6062 = vmatmul.mubr.f32.gmra.mrb[0].mxu0 %v4315
        %v6063 = vpop.f32.mrb[0].mxu0
        %v6064 = vadd.f32 %v5807, %v6063
        %v6065 = vpop.f32.mrb[0].mxu0
        %v6066 = vadd.f32 %v5809, %v6065
        %6067 = vmatprep.mubr.f32.mxu0 %v4328
        %6068 = vmatmul.mubr.f32.gmra.mrb[0].mxu0 %v4327
        %v6069 = vpop.f32.mrb[0].mxu0
        %v6070 = vadd.f32 %v5813, %v6069
        %v6071 = vpop.f32.mrb[0].mxu0
        %v6072 = vadd.f32 %v5815, %v6071
        %6073 = vmatprep.mubr.f32.mxu0 %v4340
        %6074 = vmatmul.mubr.f32.gmra.mrb[0].mxu0 %v4339
        %v6075 = vpop.f32.mrb[0].mxu0
        %v6076 = vadd.f32 %v5819, %v6075
        %v6077 = vpop.f32.mrb[0].mxu0
        %v6078 = vadd.f32 %v5821, %v6077
        %6079 = vmatprep.mubr.f32.mxu0 %v4352
        %6080 = vmatmul.mubr.f32.gmra.mrb[0].mxu0 %v4351
        %v6081 = vpop.f32.mrb[0].mxu0
        %v6082 = vadd.f32 %v5825, %v6081
        %v6083 = vpop.f32.mrb[0].mxu0
        %v6084 = vadd.f32 %v5827, %v6083
        %6085 = vmatprep.mubr.f32.mxu0 %v4364
        %6086 = vmatmul.mubr.f32.gmra.mrb[0].mxu0 %v4363
        %v6087 = vpop.f32.mrb[0].mxu0
        %v6088 = vadd.f32 %v5831, %v6087
        %v6089 = vpop.f32.mrb[0].mxu0
        %v6090 = vadd.f32 %v5833, %v6089
        %6091 = vmatprep.mubr.f32.mxu0 %v4376
        %6092 = vmatmul.mubr.f32.gmra.mrb[0].mxu0 %v4375
        %v6093 = vpop.f32.mrb[0].mxu0
        %v6094 = vadd.f32 %v5837, %v6093
        %v6095 = vpop.f32.mrb[0].mxu0
        %v6096 = vadd.f32 %v5839, %v6095
        %6097 = vmatprep.mubr.f32.mxu0 %v4388
        %6098 = vmatmul.mubr.f32.gmra.mrb[0].mxu0 %v4387
        %v6099 = vpop.f32.mrb[0].mxu0
        %v6100 = vadd.f32 %v5843, %v6099
        %v6101 = vpop.f32.mrb[0].mxu0
        %v6102 = vadd.f32 %v5845, %v6101
        %6103 = vmatprep.mubr.f32.mxu0 %v4400
        %6104 = vmatmul.mubr.f32.gmra.mrb[0].mxu0 %v4399
        %v6105 = vpop.f32.mrb[0].mxu0
        %v6106 = vadd.f32 %v5849, %v6105
        %v6107 = vpop.f32.mrb[0].mxu0
        %v6108 = vadd.f32 %v5851, %v6107
        %6109 = vmatprep.mubr.f32.mxu0 %v4412
        %6110 = vmatmul.mubr.f32.gmra.mrb[0].mxu0 %v4411
        %v6111 = vpop.f32.mrb[0].mxu0
        %v6112 = vadd.f32 %v5855, %v6111
        %v6113 = vpop.f32.mrb[0].mxu0
        %v6114 = vadd.f32 %v5857, %v6113
        %6115 = vmatprep.mubr.f32.mxu0 %v4424
        %6116 = vmatmul.mubr.f32.gmra.mrb[0].mxu0 %v4423
        %v6117 = vpop.f32.mrb[0].mxu0
        %v6118 = vadd.f32 %v5861, %v6117
        %v6119 = vpop.f32.mrb[0].mxu0
        %v6120 = vadd.f32 %v5863, %v6119
        %6121 = vmatprep.mubr.f32.mxu0 %v4436
        %6122 = vmatmul.mubr.f32.gmra.mrb[0].mxu0 %v4435
        %v6123 = vpop.f32.mrb[0].mxu0
        %v6124 = vadd.f32 %v5867, %v6123
        %v6125 = vpop.f32.mrb[0].mxu0
        %v6126 = vadd.f32 %v5869, %v6125
        %6127 = vmatprep.mubr.f32.mxu0 %v4448
        %6128 = vmatmul.mubr.f32.gmra.mrb[0].mxu0 %v4447
        %v6129 = vpop.f32.mrb[0].mxu0
        %v6130 = vadd.f32 %v5873, %v6129
        %v6131 = vpop.f32.mrb[0].mxu0
        %v6132 = vadd.f32 %v5875, %v6131
        %6133 = vmatprep.mubr.f32.mxu0 %v4460
        %6134 = vmatmul.mubr.f32.gmra.mrb[0].mxu0 %v4459
        %v6135 = vpop.f32.mrb[0].mxu0
        %v6136 = vadd.f32 %v5879, %v6135
        %v6137 = vpop.f32.mrb[0].mxu0
        %v6138 = vadd.f32 %v5881, %v6137
        %6139 = vmatprep.mubr.f32.mxu0 %v4472
        %6140 = vmatmul.mubr.f32.gmra.mrb[0].mxu0 %v4471
        %v6141 = vpop.f32.mrb[0].mxu0
        %v6142 = vadd.f32 %v5885, %v6141
        %v6143 = vpop.f32.mrb[0].mxu0
        %v6144 = vadd.f32 %v5887, %v6143
        %6145 = vmatprep.mubr.f32.mxu0 %v4484
        %6146 = vmatmul.mubr.f32.gmra.mrb[0].mxu0 %v4483
        %v6147 = vpop.f32.mrb[0].mxu0
        %v6148 = vadd.f32 %v5891, %v6147
        %v6149 = vpop.f32.mrb[0].mxu0
        %v6150 = vadd.f32 %v5893, %v6149
        %6151 = vmatprep.mubr.f32.mxu0 %v4496
        %6152 = vmatmul.mubr.f32.gmra.mrb[0].mxu0 %v4495
        %v6153 = vpop.f32.mrb[0].mxu0
        %v6154 = vadd.f32 %v5897, %v6153
        %v6155 = vpop.f32.mrb[0].mxu0
        %v6156 = vadd.f32 %v5899, %v6155
        %6157 = vmatprep.mubr.f32.mxu0 %v4508
        %6158 = vmatmul.mubr.f32.gmra.mrb[0].mxu0 %v4507
        %v6159 = vpop.f32.mrb[0].mxu0
        %v6160 = vadd.f32 %v5903, %v6159
        %v6161 = vpop.f32.mrb[0].mxu0
        %v6162 = vadd.f32 %v5905, %v6161
        %6163 = vmatprep.mubr.f32.mxu0 %v4520
        %6164 = vmatmul.mubr.f32.gmra.mrb[0].mxu0 %v4519
        %v6165 = vpop.f32.mrb[0].mxu0
        %v6166 = vadd.f32 %v5909, %v6165
        %v6167 = vpop.f32.mrb[0].mxu0
        %v6168 = vadd.f32 %v5911, %v6167
        %6169 = vmatprep.mubr.f32.mxu0 %v4532
        %6170 = vmatmul.mubr.f32.gmra.mrb[0].mxu0 %v4531
        %v6171 = vpop.f32.mrb[0].mxu0
        %v6172 = vadd.f32 %v5915, %v6171
        %v6173 = vpop.f32.mrb[0].mxu0
        %v6174 = vadd.f32 %v5917, %v6173
        %6175 = vmatprep.mubr.f32.mxu0 %v4544
        %6176 = vmatmul.mubr.f32.gmra.mrb[0].mxu0 %v4543
        %v6177 = vpop.f32.mrb[0].mxu0
        %v6178 = vadd.f32 %v5921, %v6177
        %v6179 = vpop.f32.mrb[0].mxu0
        %v6180 = vadd.f32 %v5923, %v6179
        %6181 = vmatprep.mubr.f32.mxu0 %v4556
        %6182 = vmatmul.mubr.f32.gmra.mrb[0].mxu0 %v4555
        %v6183 = vpop.f32.mrb[0].mxu0
        %v6184 = vadd.f32 %v5927, %v6183
        %v6185 = vpop.f32.mrb[0].mxu0
        %v6186 = vadd.f32 %v5929, %v6185
        %6187 = vmatprep.mubr.f32.mxu0 %v4568
        %6188 = vmatmul.mubr.f32.gmra.mrb[0].mxu0 %v4567
        %v6189 = vpop.f32.mrb[0].mxu0
        %v6190 = vadd.f32 %v5933, %v6189
        %v6191 = vpop.f32.mrb[0].mxu0
        %v6192 = vadd.f32 %v5935, %v6191
        %6193 = vdwg.mxu0
        %6194 = vmatprep.subr.mxu0 %v4958
        %6195 = vmatpush1.msra.mxu0 %v4957
        %6196 = vmatprep.subr.mxu0 %v4961
        %6197 = vmatpush1.msra.mxu0 %v4960
        %6198 = vmatprep.subr.mxu0 %v4964
        %6199 = vmatpush1.msra.mxu0 %v4963
        %6200 = vmatprep.subr.mxu0 %v4967
        %6201 = vmatpush1.msra.mxu0 %v4966
        %6202 = vmatprep.subr.mxu0 %v4970
        %6203 = vmatpush1.msra.mxu0 %v4969
        %6204 = vmatprep.subr.mxu0 %v4973
        %6205 = vmatpush1.msra.mxu0 %v4972
        %6206 = vmatprep.subr.mxu0 %v4976
        %6207 = vmatpush1.msra.mxu0 %v4975
        %6208 = vmatprep.subr.mxu0 %v4979
        %6209 = vmatpush1.msra.mxu0 %v4978
        %6210 = vmatprep.subr.mxu0 %v4982
        %6211 = vmatpush1.msra.mxu0 %v4981
        %6212 = vmatprep.subr.mxu0 %v4985
        %6213 = vmatpush1.msra.mxu0 %v4984
        %6214 = vmatprep.subr.mxu0 %v4988
        %6215 = vmatpush1.msra.mxu0 %v4987
        %6216 = vmatprep.subr.mxu0 %v4991
        %6217 = vmatpush1.msra.mxu0 %v4990
        %6218 = vmatprep.subr.mxu0 %v4994
        %6219 = vmatpush1.msra.mxu0 %v4993
        %6220 = vmatprep.subr.mxu0 %v4997
        %6221 = vmatpush1.msra.mxu0 %v4996
        %6222 = vmatprep.subr.mxu0 %v5000
        %6223 = vmatpush1.msra.mxu0 %v4999
        %6224 = vmatprep.subr.mxu0 %v5003
        %6225 = vmatpush1.msra.mxu0 %v5002
        %6226 = vmatprep.subr.mxu0 %v5006
        %6227 = vmatpush1.msra.mxu0 %v5005
        %6228 = vmatprep.subr.mxu0 %v5009
        %6229 = vmatpush1.msra.mxu0 %v5008
        %6230 = vmatprep.subr.mxu0 %v5012
        %6231 = vmatpush1.msra.mxu0 %v5011
        %6232 = vmatprep.subr.mxu0 %v5015
        %6233 = vmatpush1.msra.mxu0 %v5014
        %6234 = vmatprep.subr.mxu0 %v5018
        %6235 = vmatpush1.msra.mxu0 %v5017
        %6236 = vmatprep.subr.mxu0 %v5021
        %6237 = vmatpush1.msra.mxu0 %v5020
        %6238 = vmatprep.subr.mxu0 %v5024
        %6239 = vmatpush1.msra.mxu0 %v5023
        %6240 = vmatprep.subr.mxu0 %v5027
        %6241 = vmatpush1.msra.mxu0 %v5026
        %6242 = vmatprep.subr.mxu0 %v5030
        %6243 = vmatpush1.msra.mxu0 %v5029
        %6244 = vmatprep.subr.mxu0 %v5033
        %6245 = vmatpush1.msra.mxu0 %v5032
        %6246 = vmatprep.subr.mxu0 %v5036
        %6247 = vmatpush1.msra.mxu0 %v5035
        %6248 = vmatprep.subr.mxu0 %v5039
        %6249 = vmatpush1.msra.mxu0 %v5038
        %6250 = vmatprep.subr.mxu0 %v5042
        %6251 = vmatpush1.msra.mxu0 %v5041
        %6252 = vmatprep.subr.mxu0 %v5045
        %6253 = vmatpush1.msra.mxu0 %v5044
        %6254 = vmatprep.subr.mxu0 %v5048
        %6255 = vmatpush1.msra.mxu0 %v5047
        %6256 = vmatprep.subr.mxu0 %v5051
        %6257 = vmatpush1.msra.mxu0 %v5050
        %6258 = vmatprep.mubr.f32.mxu0 %v4198
        %6259 = vmatmul.mubr.f32.gmra.mrb[0].mxu0 %v4197
        %v6260 = vpop.f32.mrb[0].mxu0
        %v6261 = vadd.f32 %v6004, %v6260
        %v6262 = vpop.f32.mrb[0].mxu0
        %v6263 = vadd.f32 %v6006, %v6262
        %6264 = vmatprep.mubr.f32.mxu0 %v4210
        %6265 = vmatmul.mubr.f32.gmra.mrb[0].mxu0 %v4209
        %v6266 = vpop.f32.mrb[0].mxu0
        %v6267 = vadd.f32 %v6010, %v6266
        %v6268 = vpop.f32.mrb[0].mxu0
        %v6269 = vadd.f32 %v6012, %v6268
        %6270 = vmatprep.mubr.f32.mxu0 %v4222
        %6271 = vmatmul.mubr.f32.gmra.mrb[0].mxu0 %v4221
        %v6272 = vpop.f32.mrb[0].mxu0
        %v6273 = vadd.f32 %v6016, %v6272
        %v6274 = vpop.f32.mrb[0].mxu0
        %v6275 = vadd.f32 %v6018, %v6274
        %6276 = vmatprep.mubr.f32.mxu0 %v4234
        %6277 = vmatmul.mubr.f32.gmra.mrb[0].mxu0 %v4233
        %v6278 = vpop.f32.mrb[0].mxu0
        %v6279 = vadd.f32 %v6022, %v6278
        %v6280 = vpop.f32.mrb[0].mxu0
        %v6281 = vadd.f32 %v6024, %v6280
        %6282 = vmatprep.mubr.f32.mxu0 %v4246
        %6283 = vmatmul.mubr.f32.gmra.mrb[0].mxu0 %v4245
        %v6284 = vpop.f32.mrb[0].mxu0
        %v6285 = vadd.f32 %v6028, %v6284
        %v6286 = vpop.f32.mrb[0].mxu0
        %v6287 = vadd.f32 %v6030, %v6286
        %6288 = vmatprep.mubr.f32.mxu0 %v4258
        %6289 = vmatmul.mubr.f32.gmra.mrb[0].mxu0 %v4257
        %v6290 = vpop.f32.mrb[0].mxu0
        %v6291 = vadd.f32 %v6034, %v6290
        %v6292 = vpop.f32.mrb[0].mxu0
        %v6293 = vadd.f32 %v6036, %v6292
        %6294 = vmatprep.mubr.f32.mxu0 %v4270
        %6295 = vmatmul.mubr.f32.gmra.mrb[0].mxu0 %v4269
        %v6296 = vpop.f32.mrb[0].mxu0
        %v6297 = vadd.f32 %v6040, %v6296
        %v6298 = vpop.f32.mrb[0].mxu0
        %v6299 = vadd.f32 %v6042, %v6298
        %6300 = vmatprep.mubr.f32.mxu0 %v4282
        %6301 = vmatmul.mubr.f32.gmra.mrb[0].mxu0 %v4281
        %v6302 = vpop.f32.mrb[0].mxu0
        %v6303 = vadd.f32 %v6046, %v6302
        %v6304 = vpop.f32.mrb[0].mxu0
        %v6305 = vadd.f32 %v6048, %v6304
        %6306 = vmatprep.mubr.f32.mxu0 %v4294
        %6307 = vmatmul.mubr.f32.gmra.mrb[0].mxu0 %v4293
        %v6308 = vpop.f32.mrb[0].mxu0
        %v6309 = vadd.f32 %v6052, %v6308
        %v6310 = vpop.f32.mrb[0].mxu0
        %v6311 = vadd.f32 %v6054, %v6310
        %6312 = vmatprep.mubr.f32.mxu0 %v4306
        %6313 = vmatmul.mubr.f32.gmra.mrb[0].mxu0 %v4305
        %v6314 = vpop.f32.mrb[0].mxu0
        %v6315 = vadd.f32 %v6058, %v6314
        %v6316 = vpop.f32.mrb[0].mxu0
        %v6317 = vadd.f32 %v6060, %v6316
        %6318 = vmatprep.mubr.f32.mxu0 %v4318
        %6319 = vmatmul.mubr.f32.gmra.mrb[0].mxu0 %v4317
        %v6320 = vpop.f32.mrb[0].mxu0
        %v6321 = vadd.f32 %v6064, %v6320
        %v6322 = vpop.f32.mrb[0].mxu0
        %v6323 = vadd.f32 %v6066, %v6322
        %6324 = vmatprep.mubr.f32.mxu0 %v4330
        %6325 = vmatmul.mubr.f32.gmra.mrb[0].mxu0 %v4329
        %v6326 = vpop.f32.mrb[0].mxu0
        %v6327 = vadd.f32 %v6070, %v6326
        %v6328 = vpop.f32.mrb[0].mxu0
        %v6329 = vadd.f32 %v6072, %v6328
        %6330 = vmatprep.mubr.f32.mxu0 %v4342
        %6331 = vmatmul.mubr.f32.gmra.mrb[0].mxu0 %v4341
        %v6332 = vpop.f32.mrb[0].mxu0
        %v6333 = vadd.f32 %v6076, %v6332
        %v6334 = vpop.f32.mrb[0].mxu0
        %v6335 = vadd.f32 %v6078, %v6334
        %6336 = vmatprep.mubr.f32.mxu0 %v4354
        %6337 = vmatmul.mubr.f32.gmra.mrb[0].mxu0 %v4353
        %v6338 = vpop.f32.mrb[0].mxu0
        %v6339 = vadd.f32 %v6082, %v6338
        %v6340 = vpop.f32.mrb[0].mxu0
        %v6341 = vadd.f32 %v6084, %v6340
        %6342 = vmatprep.mubr.f32.mxu0 %v4366
        %6343 = vmatmul.mubr.f32.gmra.mrb[0].mxu0 %v4365
        %v6344 = vpop.f32.mrb[0].mxu0
        %v6345 = vadd.f32 %v6088, %v6344
        %v6346 = vpop.f32.mrb[0].mxu0
        %v6347 = vadd.f32 %v6090, %v6346
        %6348 = vmatprep.mubr.f32.mxu0 %v4378
        %6349 = vmatmul.mubr.f32.gmra.mrb[0].mxu0 %v4377
        %v6350 = vpop.f32.mrb[0].mxu0
        %v6351 = vadd.f32 %v6094, %v6350
        %v6352 = vpop.f32.mrb[0].mxu0
        %v6353 = vadd.f32 %v6096, %v6352
        %6354 = vmatprep.mubr.f32.mxu0 %v4390
        %6355 = vmatmul.mubr.f32.gmra.mrb[0].mxu0 %v4389
        %v6356 = vpop.f32.mrb[0].mxu0
        %v6357 = vadd.f32 %v6100, %v6356
        %v6358 = vpop.f32.mrb[0].mxu0
        %v6359 = vadd.f32 %v6102, %v6358
        %6360 = vmatprep.mubr.f32.mxu0 %v4402
        %6361 = vmatmul.mubr.f32.gmra.mrb[0].mxu0 %v4401
        %v6362 = vpop.f32.mrb[0].mxu0
        %v6363 = vadd.f32 %v6106, %v6362
        %v6364 = vpop.f32.mrb[0].mxu0
        %v6365 = vadd.f32 %v6108, %v6364
        %6366 = vmatprep.mubr.f32.mxu0 %v4414
        %6367 = vmatmul.mubr.f32.gmra.mrb[0].mxu0 %v4413
        %v6368 = vpop.f32.mrb[0].mxu0
        %v6369 = vadd.f32 %v6112, %v6368
        %v6370 = vpop.f32.mrb[0].mxu0
        %v6371 = vadd.f32 %v6114, %v6370
        %6372 = vmatprep.mubr.f32.mxu0 %v4426
        %6373 = vmatmul.mubr.f32.gmra.mrb[0].mxu0 %v4425
        %v6374 = vpop.f32.mrb[0].mxu0
        %v6375 = vadd.f32 %v6118, %v6374
        %v6376 = vpop.f32.mrb[0].mxu0
        %v6377 = vadd.f32 %v6120, %v6376
        %6378 = vmatprep.mubr.f32.mxu0 %v4438
        %6379 = vmatmul.mubr.f32.gmra.mrb[0].mxu0 %v4437
        %v6380 = vpop.f32.mrb[0].mxu0
        %v6381 = vadd.f32 %v6124, %v6380
        %v6382 = vpop.f32.mrb[0].mxu0
        %v6383 = vadd.f32 %v6126, %v6382
        %6384 = vmatprep.mubr.f32.mxu0 %v4450
        %6385 = vmatmul.mubr.f32.gmra.mrb[0].mxu0 %v4449
        %v6386 = vpop.f32.mrb[0].mxu0
        %v6387 = vadd.f32 %v6130, %v6386
        %v6388 = vpop.f32.mrb[0].mxu0
        %v6389 = vadd.f32 %v6132, %v6388
        %6390 = vmatprep.mubr.f32.mxu0 %v4462
        %6391 = vmatmul.mubr.f32.gmra.mrb[0].mxu0 %v4461
        %v6392 = vpop.f32.mrb[0].mxu0
        %v6393 = vadd.f32 %v6136, %v6392
        %v6394 = vpop.f32.mrb[0].mxu0
        %v6395 = vadd.f32 %v6138, %v6394
        %6396 = vmatprep.mubr.f32.mxu0 %v4474
        %6397 = vmatmul.mubr.f32.gmra.mrb[0].mxu0 %v4473
        %v6398 = vpop.f32.mrb[0].mxu0
        %v6399 = vadd.f32 %v6142, %v6398
        %v6400 = vpop.f32.mrb[0].mxu0
        %v6401 = vadd.f32 %v6144, %v6400
        %6402 = vmatprep.mubr.f32.mxu0 %v4486
        %6403 = vmatmul.mubr.f32.gmra.mrb[0].mxu0 %v4485
        %v6404 = vpop.f32.mrb[0].mxu0
        %v6405 = vadd.f32 %v6148, %v6404
        %v6406 = vpop.f32.mrb[0].mxu0
        %v6407 = vadd.f32 %v6150, %v6406
        %6408 = vmatprep.mubr.f32.mxu0 %v4498
        %6409 = vmatmul.mubr.f32.gmra.mrb[0].mxu0 %v4497
        %v6410 = vpop.f32.mrb[0].mxu0
        %v6411 = vadd.f32 %v6154, %v6410
        %v6412 = vpop.f32.mrb[0].mxu0
        %v6413 = vadd.f32 %v6156, %v6412
        %6414 = vmatprep.mubr.f32.mxu0 %v4510
        %6415 = vmatmul.mubr.f32.gmra.mrb[0].mxu0 %v4509
        %v6416 = vpop.f32.mrb[0].mxu0
        %v6417 = vadd.f32 %v6160, %v6416
        %v6418 = vpop.f32.mrb[0].mxu0
        %v6419 = vadd.f32 %v6162, %v6418
        %6420 = vmatprep.mubr.f32.mxu0 %v4522
        %6421 = vmatmul.mubr.f32.gmra.mrb[0].mxu0 %v4521
        %v6422 = vpop.f32.mrb[0].mxu0
        %v6423 = vadd.f32 %v6166, %v6422
        %v6424 = vpop.f32.mrb[0].mxu0
        %v6425 = vadd.f32 %v6168, %v6424
        %6426 = vmatprep.mubr.f32.mxu0 %v4534
        %6427 = vmatmul.mubr.f32.gmra.mrb[0].mxu0 %v4533
        %v6428 = vpop.f32.mrb[0].mxu0
        %v6429 = vadd.f32 %v6172, %v6428
        %v6430 = vpop.f32.mrb[0].mxu0
        %v6431 = vadd.f32 %v6174, %v6430
        %6432 = vmatprep.mubr.f32.mxu0 %v4546
        %6433 = vmatmul.mubr.f32.gmra.mrb[0].mxu0 %v4545
        %v6434 = vpop.f32.mrb[0].mxu0
        %v6435 = vadd.f32 %v6178, %v6434
        %v6436 = vpop.f32.mrb[0].mxu0
        %v6437 = vadd.f32 %v6180, %v6436
        %6438 = vmatprep.mubr.f32.mxu0 %v4558
        %6439 = vmatmul.mubr.f32.gmra.mrb[0].mxu0 %v4557
        %v6440 = vpop.f32.mrb[0].mxu0
        %v6441 = vadd.f32 %v6184, %v6440
        %v6442 = vpop.f32.mrb[0].mxu0
        %v6443 = vadd.f32 %v6186, %v6442
        %6444 = vmatprep.mubr.f32.mxu0 %v4570
        %6445 = vmatmul.mubr.f32.gmra.mrb[0].mxu0 %v4569
        %v6446 = vpop.f32.mrb[0].mxu0
        %v6447 = vadd.f32 %v6190, %v6446
        %v6448 = vpop.f32.mrb[0].mxu0
        %v6449 = vadd.f32 %v6192, %v6448
        %6450 = vdwg.mxu0
        %6451 = vmatprep.subr.mxu0 %v5054
        %6452 = vmatpush1.msra.mxu0 %v5053
        %6453 = vmatprep.subr.mxu0 %v5057
        %6454 = vmatpush1.msra.mxu0 %v5056
        %6455 = vmatprep.subr.mxu0 %v5060
        %6456 = vmatpush1.msra.mxu0 %v5059
        %6457 = vmatprep.subr.mxu0 %v5063
        %6458 = vmatpush1.msra.mxu0 %v5062
        %6459 = vmatprep.subr.mxu0 %v5066
        %6460 = vmatpush1.msra.mxu0 %v5065
        %6461 = vmatprep.subr.mxu0 %v5069
        %6462 = vmatpush1.msra.mxu0 %v5068
        %6463 = vmatprep.subr.mxu0 %v5072
        %6464 = vmatpush1.msra.mxu0 %v5071
        %6465 = vmatprep.subr.mxu0 %v5075
        %6466 = vmatpush1.msra.mxu0 %v5074
        %6467 = vmatprep.subr.mxu0 %v5078
        %6468 = vmatpush1.msra.mxu0 %v5077
        %6469 = vmatprep.subr.mxu0 %v5081
        %6470 = vmatpush1.msra.mxu0 %v5080
        %6471 = vmatprep.subr.mxu0 %v5084
        %6472 = vmatpush1.msra.mxu0 %v5083
        %6473 = vmatprep.subr.mxu0 %v5087
        %6474 = vmatpush1.msra.mxu0 %v5086
        %6475 = vmatprep.subr.mxu0 %v5090
        %6476 = vmatpush1.msra.mxu0 %v5089
        %6477 = vmatprep.subr.mxu0 %v5093
        %6478 = vmatpush1.msra.mxu0 %v5092
        %6479 = vmatprep.subr.mxu0 %v5096
        %6480 = vmatpush1.msra.mxu0 %v5095
        %6481 = vmatprep.subr.mxu0 %v5099
        %6482 = vmatpush1.msra.mxu0 %v5098
        %6483 = vmatprep.subr.mxu0 %v5102
        %6484 = vmatpush1.msra.mxu0 %v5101
        %6485 = vmatprep.subr.mxu0 %v5105
        %6486 = vmatpush1.msra.mxu0 %v5104
        %6487 = vmatprep.subr.mxu0 %v5108
        %6488 = vmatpush1.msra.mxu0 %v5107
        %6489 = vmatprep.subr.mxu0 %v5111
        %6490 = vmatpush1.msra.mxu0 %v5110
        %6491 = vmatprep.subr.mxu0 %v5114
        %6492 = vmatpush1.msra.mxu0 %v5113
        %6493 = vmatprep.subr.mxu0 %v5117
        %6494 = vmatpush1.msra.mxu0 %v5116
        %6495 = vmatprep.subr.mxu0 %v5120
        %6496 = vmatpush1.msra.mxu0 %v5119
        %6497 = vmatprep.subr.mxu0 %v5123
        %6498 = vmatpush1.msra.mxu0 %v5122
        %6499 = vmatprep.subr.mxu0 %v5126
        %6500 = vmatpush1.msra.mxu0 %v5125
        %6501 = vmatprep.subr.mxu0 %v5129
        %6502 = vmatpush1.msra.mxu0 %v5128
        %6503 = vmatprep.subr.mxu0 %v5132
        %6504 = vmatpush1.msra.mxu0 %v5131
        %6505 = vmatprep.subr.mxu0 %v5135
        %6506 = vmatpush1.msra.mxu0 %v5134
        %6507 = vmatprep.subr.mxu0 %v5138
        %6508 = vmatpush1.msra.mxu0 %v5137
        %6509 = vmatprep.subr.mxu0 %v5141
        %6510 = vmatpush1.msra.mxu0 %v5140
        %6511 = vmatprep.subr.mxu0 %v5144
        %6512 = vmatpush1.msra.mxu0 %v5143
        %6513 = vmatprep.subr.mxu0 %v5147
        %6514 = vmatpush1.msra.mxu0 %v5146
        %6515 = vmatprep.mubr.f32.mxu0 %v4200
        %6516 = vmatmul.mubr.f32.gmra.mrb[0].mxu0 %v4199
        %v6517 = vpop.f32.mrb[0].mxu0
        %v6518 = vadd.f32 %v6261, %v6517
        %v6519 = vpop.f32.mrb[0].mxu0
        %v6520 = vadd.f32 %v6263, %v6519
        %6521 = vmatprep.mubr.f32.mxu0 %v4212
        %6522 = vmatmul.mubr.f32.gmra.mrb[0].mxu0 %v4211
        %v6523 = vpop.f32.mrb[0].mxu0
        %v6524 = vadd.f32 %v6267, %v6523
        %v6525 = vpop.f32.mrb[0].mxu0
        %v6526 = vadd.f32 %v6269, %v6525
        %6527 = vmatprep.mubr.f32.mxu0 %v4224
        %6528 = vmatmul.mubr.f32.gmra.mrb[0].mxu0 %v4223
        %v6529 = vpop.f32.mrb[0].mxu0
        %v6530 = vadd.f32 %v6273, %v6529
        %v6531 = vpop.f32.mrb[0].mxu0
        %v6532 = vadd.f32 %v6275, %v6531
        %6533 = vmatprep.mubr.f32.mxu0 %v4236
        %6534 = vmatmul.mubr.f32.gmra.mrb[0].mxu0 %v4235
        %v6535 = vpop.f32.mrb[0].mxu0
        %v6536 = vadd.f32 %v6279, %v6535
        %v6537 = vpop.f32.mrb[0].mxu0
        %v6538 = vadd.f32 %v6281, %v6537
        %6539 = vmatprep.mubr.f32.mxu0 %v4248
        %6540 = vmatmul.mubr.f32.gmra.mrb[0].mxu0 %v4247
        %v6541 = vpop.f32.mrb[0].mxu0
        %v6542 = vadd.f32 %v6285, %v6541
        %v6543 = vpop.f32.mrb[0].mxu0
        %v6544 = vadd.f32 %v6287, %v6543
        %6545 = vmatprep.mubr.f32.mxu0 %v4260
        %6546 = vmatmul.mubr.f32.gmra.mrb[0].mxu0 %v4259
        %v6547 = vpop.f32.mrb[0].mxu0
        %v6548 = vadd.f32 %v6291, %v6547
        %v6549 = vpop.f32.mrb[0].mxu0
        %v6550 = vadd.f32 %v6293, %v6549
        %6551 = vmatprep.mubr.f32.mxu0 %v4272
        %6552 = vmatmul.mubr.f32.gmra.mrb[0].mxu0 %v4271
        %v6553 = vpop.f32.mrb[0].mxu0
        %v6554 = vadd.f32 %v6297, %v6553
        %v6555 = vpop.f32.mrb[0].mxu0
        %v6556 = vadd.f32 %v6299, %v6555
        %6557 = vmatprep.mubr.f32.mxu0 %v4284
        %6558 = vmatmul.mubr.f32.gmra.mrb[0].mxu0 %v4283
        %v6559 = vpop.f32.mrb[0].mxu0
        %v6560 = vadd.f32 %v6303, %v6559
        %v6561 = vpop.f32.mrb[0].mxu0
        %v6562 = vadd.f32 %v6305, %v6561
        %6563 = vmatprep.mubr.f32.mxu0 %v4296
        %6564 = vmatmul.mubr.f32.gmra.mrb[0].mxu0 %v4295
        %v6565 = vpop.f32.mrb[0].mxu0
        %v6566 = vadd.f32 %v6309, %v6565
        %v6567 = vpop.f32.mrb[0].mxu0
        %v6568 = vadd.f32 %v6311, %v6567
        %6569 = vmatprep.mubr.f32.mxu0 %v4308
        %6570 = vmatmul.mubr.f32.gmra.mrb[0].mxu0 %v4307
        %v6571 = vpop.f32.mrb[0].mxu0
        %v6572 = vadd.f32 %v6315, %v6571
        %v6573 = vpop.f32.mrb[0].mxu0
        %v6574 = vadd.f32 %v6317, %v6573
        %6575 = vmatprep.mubr.f32.mxu0 %v4320
        %6576 = vmatmul.mubr.f32.gmra.mrb[0].mxu0 %v4319
        %v6577 = vpop.f32.mrb[0].mxu0
        %v6578 = vadd.f32 %v6321, %v6577
        %v6579 = vpop.f32.mrb[0].mxu0
        %v6580 = vadd.f32 %v6323, %v6579
        %6581 = vmatprep.mubr.f32.mxu0 %v4332
        %6582 = vmatmul.mubr.f32.gmra.mrb[0].mxu0 %v4331
        %v6583 = vpop.f32.mrb[0].mxu0
        %v6584 = vadd.f32 %v6327, %v6583
        %v6585 = vpop.f32.mrb[0].mxu0
        %v6586 = vadd.f32 %v6329, %v6585
        %6587 = vmatprep.mubr.f32.mxu0 %v4344
        %6588 = vmatmul.mubr.f32.gmra.mrb[0].mxu0 %v4343
        %v6589 = vpop.f32.mrb[0].mxu0
        %v6590 = vadd.f32 %v6333, %v6589
        %v6591 = vpop.f32.mrb[0].mxu0
        %v6592 = vadd.f32 %v6335, %v6591
        %6593 = vmatprep.mubr.f32.mxu0 %v4356
        %6594 = vmatmul.mubr.f32.gmra.mrb[0].mxu0 %v4355
        %v6595 = vpop.f32.mrb[0].mxu0
        %v6596 = vadd.f32 %v6339, %v6595
        %v6597 = vpop.f32.mrb[0].mxu0
        %v6598 = vadd.f32 %v6341, %v6597
        %6599 = vmatprep.mubr.f32.mxu0 %v4368
        %6600 = vmatmul.mubr.f32.gmra.mrb[0].mxu0 %v4367
        %v6601 = vpop.f32.mrb[0].mxu0
        %v6602 = vadd.f32 %v6345, %v6601
        %v6603 = vpop.f32.mrb[0].mxu0
        %v6604 = vadd.f32 %v6347, %v6603
        %6605 = vmatprep.mubr.f32.mxu0 %v4380
        %6606 = vmatmul.mubr.f32.gmra.mrb[0].mxu0 %v4379
        %v6607 = vpop.f32.mrb[0].mxu0
        %v6608 = vadd.f32 %v6351, %v6607
        %v6609 = vpop.f32.mrb[0].mxu0
        %v6610 = vadd.f32 %v6353, %v6609
        %6611 = vmatprep.mubr.f32.mxu0 %v4392
        %6612 = vmatmul.mubr.f32.gmra.mrb[0].mxu0 %v4391
        %v6613 = vpop.f32.mrb[0].mxu0
        %v6614 = vadd.f32 %v6357, %v6613
        %v6615 = vpop.f32.mrb[0].mxu0
        %v6616 = vadd.f32 %v6359, %v6615
        %6617 = vmatprep.mubr.f32.mxu0 %v4404
        %6618 = vmatmul.mubr.f32.gmra.mrb[0].mxu0 %v4403
        %v6619 = vpop.f32.mrb[0].mxu0
        %v6620 = vadd.f32 %v6363, %v6619
        %v6621 = vpop.f32.mrb[0].mxu0
        %v6622 = vadd.f32 %v6365, %v6621
        %6623 = vmatprep.mubr.f32.mxu0 %v4416
        %6624 = vmatmul.mubr.f32.gmra.mrb[0].mxu0 %v4415
        %v6625 = vpop.f32.mrb[0].mxu0
        %v6626 = vadd.f32 %v6369, %v6625
        %v6627 = vpop.f32.mrb[0].mxu0
        %v6628 = vadd.f32 %v6371, %v6627
        %6629 = vmatprep.mubr.f32.mxu0 %v4428
        %6630 = vmatmul.mubr.f32.gmra.mrb[0].mxu0 %v4427
        %v6631 = vpop.f32.mrb[0].mxu0
        %v6632 = vadd.f32 %v6375, %v6631
        %v6633 = vpop.f32.mrb[0].mxu0
        %v6634 = vadd.f32 %v6377, %v6633
        %6635 = vmatprep.mubr.f32.mxu0 %v4440
        %6636 = vmatmul.mubr.f32.gmra.mrb[0].mxu0 %v4439
        %v6637 = vpop.f32.mrb[0].mxu0
        %v6638 = vadd.f32 %v6381, %v6637
        %v6639 = vpop.f32.mrb[0].mxu0
        %v6640 = vadd.f32 %v6383, %v6639
        %6641 = vmatprep.mubr.f32.mxu0 %v4452
        %6642 = vmatmul.mubr.f32.gmra.mrb[0].mxu0 %v4451
        %v6643 = vpop.f32.mrb[0].mxu0
        %v6644 = vadd.f32 %v6387, %v6643
        %v6645 = vpop.f32.mrb[0].mxu0
        %v6646 = vadd.f32 %v6389, %v6645
        %6647 = vmatprep.mubr.f32.mxu0 %v4464
        %6648 = vmatmul.mubr.f32.gmra.mrb[0].mxu0 %v4463
        %v6649 = vpop.f32.mrb[0].mxu0
        %v6650 = vadd.f32 %v6393, %v6649
        %v6651 = vpop.f32.mrb[0].mxu0
        %v6652 = vadd.f32 %v6395, %v6651
        %6653 = vmatprep.mubr.f32.mxu0 %v4476
        %6654 = vmatmul.mubr.f32.gmra.mrb[0].mxu0 %v4475
        %v6655 = vpop.f32.mrb[0].mxu0
        %v6656 = vadd.f32 %v6399, %v6655
        %v6657 = vpop.f32.mrb[0].mxu0
        %v6658 = vadd.f32 %v6401, %v6657
        %6659 = vmatprep.mubr.f32.mxu0 %v4488
        %6660 = vmatmul.mubr.f32.gmra.mrb[0].mxu0 %v4487
        %v6661 = vpop.f32.mrb[0].mxu0
        %v6662 = vadd.f32 %v6405, %v6661
        %v6663 = vpop.f32.mrb[0].mxu0
        %v6664 = vadd.f32 %v6407, %v6663
        %6665 = vmatprep.mubr.f32.mxu0 %v4500
        %6666 = vmatmul.mubr.f32.gmra.mrb[0].mxu0 %v4499
        %v6667 = vpop.f32.mrb[0].mxu0
        %v6668 = vadd.f32 %v6411, %v6667
        %v6669 = vpop.f32.mrb[0].mxu0
        %v6670 = vadd.f32 %v6413, %v6669
        %6671 = vmatprep.mubr.f32.mxu0 %v4512
        %6672 = vmatmul.mubr.f32.gmra.mrb[0].mxu0 %v4511
        %v6673 = vpop.f32.mrb[0].mxu0
        %v6674 = vadd.f32 %v6417, %v6673
        %v6675 = vpop.f32.mrb[0].mxu0
        %v6676 = vadd.f32 %v6419, %v6675
        %6677 = vmatprep.mubr.f32.mxu0 %v4524
        %6678 = vmatmul.mubr.f32.gmra.mrb[0].mxu0 %v4523
        %v6679 = vpop.f32.mrb[0].mxu0
        %v6680 = vadd.f32 %v6423, %v6679
        %v6681 = vpop.f32.mrb[0].mxu0
        %v6682 = vadd.f32 %v6425, %v6681
        %6683 = vmatprep.mubr.f32.mxu0 %v4536
        %6684 = vmatmul.mubr.f32.gmra.mrb[0].mxu0 %v4535
        %v6685 = vpop.f32.mrb[0].mxu0
        %v6686 = vadd.f32 %v6429, %v6685
        %v6687 = vpop.f32.mrb[0].mxu0
        %v6688 = vadd.f32 %v6431, %v6687
        %6689 = vmatprep.mubr.f32.mxu0 %v4548
        %6690 = vmatmul.mubr.f32.gmra.mrb[0].mxu0 %v4547
        %v6691 = vpop.f32.mrb[0].mxu0
        %v6692 = vadd.f32 %v6435, %v6691
        %v6693 = vpop.f32.mrb[0].mxu0
        %v6694 = vadd.f32 %v6437, %v6693
        %6695 = vmatprep.mubr.f32.mxu0 %v4560
        %6696 = vmatmul.mubr.f32.gmra.mrb[0].mxu0 %v4559
        %v6697 = vpop.f32.mrb[0].mxu0
        %v6698 = vadd.f32 %v6441, %v6697
        %v6699 = vpop.f32.mrb[0].mxu0
        %v6700 = vadd.f32 %v6443, %v6699
        %6701 = vmatprep.mubr.f32.mxu0 %v4572
        %6702 = vmatmul.mubr.f32.gmra.mrb[0].mxu0 %v4571
        %v6703 = vpop.f32.mrb[0].mxu0
        %v6704 = vadd.f32 %v6447, %v6703
        %v6705 = vpop.f32.mrb[0].mxu0
        %v6706 = vadd.f32 %v6449, %v6705
        %6707 = vdwg.mxu0
        %6708 = vmatprep.subr.mxu0 0.0
        %6709 = vmatpush1.msra.mxu0 %v4575
        %6710 = vmatprep.subr.mxu0 0.0
        %6711 = vmatpush1.msra.mxu0 %v4578
        %6712 = vmatprep.subr.mxu0 0.0
        %6713 = vmatpush1.msra.mxu0 %v4581
        %6714 = vmatprep.subr.mxu0 0.0
        %6715 = vmatpush1.msra.mxu0 %v4584
        %6716 = vmatprep.subr.mxu0 0.0
        %6717 = vmatpush1.msra.mxu0 %v4587
        %6718 = vmatprep.subr.mxu0 0.0
        %6719 = vmatpush1.msra.mxu0 %v4590
        %6720 = vmatprep.subr.mxu0 0.0
        %6721 = vmatpush1.msra.mxu0 %v4593
        %6722 = vmatprep.subr.mxu0 0.0
        %6723 = vmatpush1.msra.mxu0 %v4596
        %6724 = vmatprep.subr.mxu0 0.0
        %6725 = vmatpush1.msra.mxu0 %v4599
        %6726 = vmatprep.subr.mxu0 0.0
        %6727 = vmatpush1.msra.mxu0 %v4602
        %6728 = vmatprep.subr.mxu0 0.0
        %6729 = vmatpush1.msra.mxu0 %v4605
        %6730 = vmatprep.subr.mxu0 0.0
        %6731 = vmatpush1.msra.mxu0 %v4608
        %6732 = vmatprep.subr.mxu0 0.0
        %6733 = vmatpush1.msra.mxu0 %v4611
        %6734 = vmatprep.subr.mxu0 0.0
        %6735 = vmatpush1.msra.mxu0 %v4614
        %6736 = vmatprep.subr.mxu0 0.0
        %6737 = vmatpush1.msra.mxu0 %v4617
        %6738 = vmatprep.subr.mxu0 0.0
        %6739 = vmatpush1.msra.mxu0 %v4620
        %6740 = vmatprep.subr.mxu0 0.0
        %6741 = vmatpush1.msra.mxu0 %v4623
        %6742 = vmatprep.subr.mxu0 0.0
        %6743 = vmatpush1.msra.mxu0 %v4626
        %6744 = vmatprep.subr.mxu0 0.0
        %6745 = vmatpush1.msra.mxu0 %v4629
        %6746 = vmatprep.subr.mxu0 0.0
        %6747 = vmatpush1.msra.mxu0 %v4632
        %6748 = vmatprep.subr.mxu0 0.0
        %6749 = vmatpush1.msra.mxu0 %v4635
        %6750 = vmatprep.subr.mxu0 0.0
        %6751 = vmatpush1.msra.mxu0 %v4638
        %6752 = vmatprep.subr.mxu0 0.0
        %6753 = vmatpush1.msra.mxu0 %v4641
        %6754 = vmatprep.subr.mxu0 0.0
        %6755 = vmatpush1.msra.mxu0 %v4644
        %6756 = vmatprep.subr.mxu0 0.0
        %6757 = vmatpush1.msra.mxu0 %v4647
        %6758 = vmatprep.subr.mxu0 0.0
        %6759 = vmatpush1.msra.mxu0 %v4650
        %6760 = vmatprep.subr.mxu0 0.0
        %6761 = vmatpush1.msra.mxu0 %v4653
        %6762 = vmatprep.subr.mxu0 0.0
        %6763 = vmatpush1.msra.mxu0 %v4656
        %6764 = vmatprep.subr.mxu0 0.0
        %6765 = vmatpush1.msra.mxu0 %v4659
        %6766 = vmatprep.subr.mxu0 0.0
        %6767 = vmatpush1.msra.mxu0 %v4662
        %6768 = vmatprep.subr.mxu0 0.0
        %6769 = vmatpush1.msra.mxu0 %v4665
        %6770 = vmatprep.subr.mxu0 0.0
        %6771 = vmatpush1.msra.mxu0 %v4668
        %6772 = vmatprep.mubr.f32.mxu0 %v4190
        %6773 = vmatmul.mubr.f32.gmra.mrb[0].mxu0 %v4189
        %v6774 = vpop.f32.mrb[0].mxu0
        %v6775 = vadd.f32 %v5162, %v6774
        %v6776 = vpop.f32.mrb[0].mxu0
        %6777 = vmatprep.mubr.f32.mxu0 %v4202
        %6778 = vmatmul.mubr.f32.gmra.mrb[0].mxu0 %v4201
        %v6779 = vpop.f32.mrb[0].mxu0
        %v6780 = vadd.f32 %v5162, %v6779
        %v6781 = vpop.f32.mrb[0].mxu0
        %6782 = vmatprep.mubr.f32.mxu0 %v4214
        %6783 = vmatmul.mubr.f32.gmra.mrb[0].mxu0 %v4213
        %v6784 = vpop.f32.mrb[0].mxu0
        %v6785 = vadd.f32 %v5162, %v6784
        %v6786 = vpop.f32.mrb[0].mxu0
        %6787 = vmatprep.mubr.f32.mxu0 %v4226
        %6788 = vmatmul.mubr.f32.gmra.mrb[0].mxu0 %v4225
        %v6789 = vpop.f32.mrb[0].mxu0
        %v6790 = vadd.f32 %v5162, %v6789
        %v6791 = vpop.f32.mrb[0].mxu0
        %6792 = vmatprep.mubr.f32.mxu0 %v4238
        %6793 = vmatmul.mubr.f32.gmra.mrb[0].mxu0 %v4237
        %v6794 = vpop.f32.mrb[0].mxu0
        %v6795 = vadd.f32 %v5162, %v6794
        %v6796 = vpop.f32.mrb[0].mxu0
        %6797 = vmatprep.mubr.f32.mxu0 %v4250
        %6798 = vmatmul.mubr.f32.gmra.mrb[0].mxu0 %v4249
        %v6799 = vpop.f32.mrb[0].mxu0
        %v6800 = vadd.f32 %v5162, %v6799
        %v6801 = vpop.f32.mrb[0].mxu0
        %6802 = vmatprep.mubr.f32.mxu0 %v4262
        %6803 = vmatmul.mubr.f32.gmra.mrb[0].mxu0 %v4261
        %v6804 = vpop.f32.mrb[0].mxu0
        %v6805 = vadd.f32 %v5162, %v6804
        %v6806 = vpop.f32.mrb[0].mxu0
        %6807 = vmatprep.mubr.f32.mxu0 %v4274
        %6808 = vmatmul.mubr.f32.gmra.mrb[0].mxu0 %v4273
        %v6809 = vpop.f32.mrb[0].mxu0
        %v6810 = vadd.f32 %v5162, %v6809
        %v6811 = vpop.f32.mrb[0].mxu0
        %6812 = vmatprep.mubr.f32.mxu0 %v4286
        %6813 = vmatmul.mubr.f32.gmra.mrb[0].mxu0 %v4285
        %v6814 = vpop.f32.mrb[0].mxu0
        %v6815 = vadd.f32 %v5162, %v6814
        %v6816 = vpop.f32.mrb[0].mxu0
        %6817 = vmatprep.mubr.f32.mxu0 %v4298
        %6818 = vmatmul.mubr.f32.gmra.mrb[0].mxu0 %v4297
        %v6819 = vpop.f32.mrb[0].mxu0
        %v6820 = vadd.f32 %v5162, %v6819
        %v6821 = vpop.f32.mrb[0].mxu0
        %6822 = vmatprep.mubr.f32.mxu0 %v4310
        %6823 = vmatmul.mubr.f32.gmra.mrb[0].mxu0 %v4309
        %v6824 = vpop.f32.mrb[0].mxu0
        %v6825 = vadd.f32 %v5162, %v6824
        %v6826 = vpop.f32.mrb[0].mxu0
        %6827 = vmatprep.mubr.f32.mxu0 %v4322
        %6828 = vmatmul.mubr.f32.gmra.mrb[0].mxu0 %v4321
        %v6829 = vpop.f32.mrb[0].mxu0
        %v6830 = vadd.f32 %v5162, %v6829
        %v6831 = vpop.f32.mrb[0].mxu0
        %6832 = vmatprep.mubr.f32.mxu0 %v4334
        %6833 = vmatmul.mubr.f32.gmra.mrb[0].mxu0 %v4333
        %v6834 = vpop.f32.mrb[0].mxu0
        %v6835 = vadd.f32 %v5162, %v6834
        %v6836 = vpop.f32.mrb[0].mxu0
        %6837 = vmatprep.mubr.f32.mxu0 %v4346
        %6838 = vmatmul.mubr.f32.gmra.mrb[0].mxu0 %v4345
        %v6839 = vpop.f32.mrb[0].mxu0
        %v6840 = vadd.f32 %v5162, %v6839
        %v6841 = vpop.f32.mrb[0].mxu0
        %6842 = vmatprep.mubr.f32.mxu0 %v4358
        %6843 = vmatmul.mubr.f32.gmra.mrb[0].mxu0 %v4357
        %v6844 = vpop.f32.mrb[0].mxu0
        %v6845 = vadd.f32 %v5162, %v6844
        %v6846 = vpop.f32.mrb[0].mxu0
        %6847 = vmatprep.mubr.f32.mxu0 %v4370
        %6848 = vmatmul.mubr.f32.gmra.mrb[0].mxu0 %v4369
        %v6849 = vpop.f32.mrb[0].mxu0
        %v6850 = vadd.f32 %v5162, %v6849
        %v6851 = vpop.f32.mrb[0].mxu0
        %6852 = vmatprep.mubr.f32.mxu0 %v4382
        %6853 = vmatmul.mubr.f32.gmra.mrb[0].mxu0 %v4381
        %v6854 = vpop.f32.mrb[0].mxu0
        %v6855 = vadd.f32 %v5162, %v6854
        %v6856 = vpop.f32.mrb[0].mxu0
        %6857 = vmatprep.mubr.f32.mxu0 %v4394
        %6858 = vmatmul.mubr.f32.gmra.mrb[0].mxu0 %v4393
        %v6859 = vpop.f32.mrb[0].mxu0
        %v6860 = vadd.f32 %v5162, %v6859
        %v6861 = vpop.f32.mrb[0].mxu0
        %6862 = vmatprep.mubr.f32.mxu0 %v4406
        %6863 = vmatmul.mubr.f32.gmra.mrb[0].mxu0 %v4405
        %v6864 = vpop.f32.mrb[0].mxu0
        %v6865 = vadd.f32 %v5162, %v6864
        %v6866 = vpop.f32.mrb[0].mxu0
        %6867 = vmatprep.mubr.f32.mxu0 %v4418
        %6868 = vmatmul.mubr.f32.gmra.mrb[0].mxu0 %v4417
        %v6869 = vpop.f32.mrb[0].mxu0
        %v6870 = vadd.f32 %v5162, %v6869
        %v6871 = vpop.f32.mrb[0].mxu0
        %6872 = vmatprep.mubr.f32.mxu0 %v4430
        %6873 = vmatmul.mubr.f32.gmra.mrb[0].mxu0 %v4429
        %v6874 = vpop.f32.mrb[0].mxu0
        %v6875 = vadd.f32 %v5162, %v6874
        %v6876 = vpop.f32.mrb[0].mxu0
        %6877 = vmatprep.mubr.f32.mxu0 %v4442
        %6878 = vmatmul.mubr.f32.gmra.mrb[0].mxu0 %v4441
        %v6879 = vpop.f32.mrb[0].mxu0
        %v6880 = vadd.f32 %v5162, %v6879
        %v6881 = vpop.f32.mrb[0].mxu0
        %6882 = vmatprep.mubr.f32.mxu0 %v4454
        %6883 = vmatmul.mubr.f32.gmra.mrb[0].mxu0 %v4453
        %v6884 = vpop.f32.mrb[0].mxu0
        %v6885 = vadd.f32 %v5162, %v6884
        %v6886 = vpop.f32.mrb[0].mxu0
        %6887 = vmatprep.mubr.f32.mxu0 %v4466
        %6888 = vmatmul.mubr.f32.gmra.mrb[0].mxu0 %v4465
        %v6889 = vpop.f32.mrb[0].mxu0
        %v6890 = vadd.f32 %v5162, %v6889
        %v6891 = vpop.f32.mrb[0].mxu0
        %6892 = vmatprep.mubr.f32.mxu0 %v4478
        %6893 = vmatmul.mubr.f32.gmra.mrb[0].mxu0 %v4477
        %v6894 = vpop.f32.mrb[0].mxu0
        %v6895 = vadd.f32 %v5162, %v6894
        %v6896 = vpop.f32.mrb[0].mxu0
        %6897 = vmatprep.mubr.f32.mxu0 %v4490
        %6898 = vmatmul.mubr.f32.gmra.mrb[0].mxu0 %v4489
        %v6899 = vpop.f32.mrb[0].mxu0
        %v6900 = vadd.f32 %v5162, %v6899
        %v6901 = vpop.f32.mrb[0].mxu0
        %6902 = vmatprep.mubr.f32.mxu0 %v4502
        %6903 = vmatmul.mubr.f32.gmra.mrb[0].mxu0 %v4501
        %v6904 = vpop.f32.mrb[0].mxu0
        %v6905 = vadd.f32 %v5162, %v6904
        %v6906 = vpop.f32.mrb[0].mxu0
        %6907 = vmatprep.mubr.f32.mxu0 %v4514
        %6908 = vmatmul.mubr.f32.gmra.mrb[0].mxu0 %v4513
        %v6909 = vpop.f32.mrb[0].mxu0
        %v6910 = vadd.f32 %v5162, %v6909
        %v6911 = vpop.f32.mrb[0].mxu0
        %6912 = vmatprep.mubr.f32.mxu0 %v4526
        %6913 = vmatmul.mubr.f32.gmra.mrb[0].mxu0 %v4525
        %v6914 = vpop.f32.mrb[0].mxu0
        %v6915 = vadd.f32 %v5162, %v6914
        %v6916 = vpop.f32.mrb[0].mxu0
        %6917 = vmatprep.mubr.f32.mxu0 %v4538
        %6918 = vmatmul.mubr.f32.gmra.mrb[0].mxu0 %v4537
        %v6919 = vpop.f32.mrb[0].mxu0
        %v6920 = vadd.f32 %v5162, %v6919
        %v6921 = vpop.f32.mrb[0].mxu0
        %6922 = vmatprep.mubr.f32.mxu0 %v4550
        %6923 = vmatmul.mubr.f32.gmra.mrb[0].mxu0 %v4549
        %v6924 = vpop.f32.mrb[0].mxu0
        %v6925 = vadd.f32 %v5162, %v6924
        %v6926 = vpop.f32.mrb[0].mxu0
        %6927 = vmatprep.mubr.f32.mxu0 %v4562
        %6928 = vmatmul.mubr.f32.gmra.mrb[0].mxu0 %v4561
        %v6929 = vpop.f32.mrb[0].mxu0
        %v6930 = vadd.f32 %v5162, %v6929
        %v6931 = vpop.f32.mrb[0].mxu0
        %6932 = vdwg.mxu0
        %6933 = vmatprep.subr.mxu0 0.0
        %6934 = vmatpush1.msra.mxu0 %v4671
        %6935 = vmatprep.subr.mxu0 0.0
        %6936 = vmatpush1.msra.mxu0 %v4674
        %6937 = vmatprep.subr.mxu0 0.0
        %6938 = vmatpush1.msra.mxu0 %v4677
        %6939 = vmatprep.subr.mxu0 0.0
        %6940 = vmatpush1.msra.mxu0 %v4680
        %6941 = vmatprep.subr.mxu0 0.0
        %6942 = vmatpush1.msra.mxu0 %v4683
        %6943 = vmatprep.subr.mxu0 0.0
        %6944 = vmatpush1.msra.mxu0 %v4686
        %6945 = vmatprep.subr.mxu0 0.0
        %6946 = vmatpush1.msra.mxu0 %v4689
        %6947 = vmatprep.subr.mxu0 0.0
        %6948 = vmatpush1.msra.mxu0 %v4692
        %6949 = vmatprep.subr.mxu0 0.0
        %6950 = vmatpush1.msra.mxu0 %v4695
        %6951 = vmatprep.subr.mxu0 0.0
        %6952 = vmatpush1.msra.mxu0 %v4698
        %6953 = vmatprep.subr.mxu0 0.0
        %6954 = vmatpush1.msra.mxu0 %v4701
        %6955 = vmatprep.subr.mxu0 0.0
        %6956 = vmatpush1.msra.mxu0 %v4704
        %6957 = vmatprep.subr.mxu0 0.0
        %6958 = vmatpush1.msra.mxu0 %v4707
        %6959 = vmatprep.subr.mxu0 0.0
        %6960 = vmatpush1.msra.mxu0 %v4710
        %6961 = vmatprep.subr.mxu0 0.0
        %6962 = vmatpush1.msra.mxu0 %v4713
        %6963 = vmatprep.subr.mxu0 0.0
        %6964 = vmatpush1.msra.mxu0 %v4716
        %6965 = vmatprep.subr.mxu0 0.0
        %6966 = vmatpush1.msra.mxu0 %v4719
        %6967 = vmatprep.subr.mxu0 0.0
        %6968 = vmatpush1.msra.mxu0 %v4722
        %6969 = vmatprep.subr.mxu0 0.0
        %6970 = vmatpush1.msra.mxu0 %v4725
        %6971 = vmatprep.subr.mxu0 0.0
        %6972 = vmatpush1.msra.mxu0 %v4728
        %6973 = vmatprep.subr.mxu0 0.0
        %6974 = vmatpush1.msra.mxu0 %v4731
        %6975 = vmatprep.subr.mxu0 0.0
        %6976 = vmatpush1.msra.mxu0 %v4734
        %6977 = vmatprep.subr.mxu0 0.0
        %6978 = vmatpush1.msra.mxu0 %v4737
        %6979 = vmatprep.subr.mxu0 0.0
        %6980 = vmatpush1.msra.mxu0 %v4740
        %6981 = vmatprep.subr.mxu0 0.0
        %6982 = vmatpush1.msra.mxu0 %v4743
        %6983 = vmatprep.subr.mxu0 0.0
        %6984 = vmatpush1.msra.mxu0 %v4746
        %6985 = vmatprep.subr.mxu0 0.0
        %6986 = vmatpush1.msra.mxu0 %v4749
        %6987 = vmatprep.subr.mxu0 0.0
        %6988 = vmatpush1.msra.mxu0 %v4752
        %6989 = vmatprep.subr.mxu0 0.0
        %6990 = vmatpush1.msra.mxu0 %v4755
        %6991 = vmatprep.subr.mxu0 0.0
        %6992 = vmatpush1.msra.mxu0 %v4758
        %6993 = vmatprep.subr.mxu0 0.0
        %6994 = vmatpush1.msra.mxu0 %v4761
        %6995 = vmatprep.subr.mxu0 0.0
        %6996 = vmatpush1.msra.mxu0 %v4764
        %6997 = vmatprep.mubr.f32.mxu0 %v4192
        %6998 = vmatmul.mubr.f32.gmra.mrb[0].mxu0 %v4191
        %v6999 = vpop.f32.mrb[0].mxu0
        %v7000 = vadd.f32 %v6775, %v6999
        %v7001 = vpop.f32.mrb[0].mxu0
        %7002 = vmatprep.mubr.f32.mxu0 %v4204
        %7003 = vmatmul.mubr.f32.gmra.mrb[0].mxu0 %v4203
        %v7004 = vpop.f32.mrb[0].mxu0
        %v7005 = vadd.f32 %v6780, %v7004
        %v7006 = vpop.f32.mrb[0].mxu0
        %7007 = vmatprep.mubr.f32.mxu0 %v4216
        %7008 = vmatmul.mubr.f32.gmra.mrb[0].mxu0 %v4215
        %v7009 = vpop.f32.mrb[0].mxu0
        %v7010 = vadd.f32 %v6785, %v7009
        %v7011 = vpop.f32.mrb[0].mxu0
        %7012 = vmatprep.mubr.f32.mxu0 %v4228
        %7013 = vmatmul.mubr.f32.gmra.mrb[0].mxu0 %v4227
        %v7014 = vpop.f32.mrb[0].mxu0
        %v7015 = vadd.f32 %v6790, %v7014
        %v7016 = vpop.f32.mrb[0].mxu0
        %7017 = vmatprep.mubr.f32.mxu0 %v4240
        %7018 = vmatmul.mubr.f32.gmra.mrb[0].mxu0 %v4239
        %v7019 = vpop.f32.mrb[0].mxu0
        %v7020 = vadd.f32 %v6795, %v7019
        %v7021 = vpop.f32.mrb[0].mxu0
        %7022 = vmatprep.mubr.f32.mxu0 %v4252
        %7023 = vmatmul.mubr.f32.gmra.mrb[0].mxu0 %v4251
        %v7024 = vpop.f32.mrb[0].mxu0
        %v7025 = vadd.f32 %v6800, %v7024
        %v7026 = vpop.f32.mrb[0].mxu0
        %7027 = vmatprep.mubr.f32.mxu0 %v4264
        %7028 = vmatmul.mubr.f32.gmra.mrb[0].mxu0 %v4263
        %v7029 = vpop.f32.mrb[0].mxu0
        %v7030 = vadd.f32 %v6805, %v7029
        %v7031 = vpop.f32.mrb[0].mxu0
        %7032 = vmatprep.mubr.f32.mxu0 %v4276
        %7033 = vmatmul.mubr.f32.gmra.mrb[0].mxu0 %v4275
        %v7034 = vpop.f32.mrb[0].mxu0
        %v7035 = vadd.f32 %v6810, %v7034
        %v7036 = vpop.f32.mrb[0].mxu0
        %7037 = vmatprep.mubr.f32.mxu0 %v4288
        %7038 = vmatmul.mubr.f32.gmra.mrb[0].mxu0 %v4287
        %v7039 = vpop.f32.mrb[0].mxu0
        %v7040 = vadd.f32 %v6815, %v7039
        %v7041 = vpop.f32.mrb[0].mxu0
        %7042 = vmatprep.mubr.f32.mxu0 %v4300
        %7043 = vmatmul.mubr.f32.gmra.mrb[0].mxu0 %v4299
        %v7044 = vpop.f32.mrb[0].mxu0
        %v7045 = vadd.f32 %v6820, %v7044
        %v7046 = vpop.f32.mrb[0].mxu0
        %7047 = vmatprep.mubr.f32.mxu0 %v4312
        %7048 = vmatmul.mubr.f32.gmra.mrb[0].mxu0 %v4311
        %v7049 = vpop.f32.mrb[0].mxu0
        %v7050 = vadd.f32 %v6825, %v7049
        %v7051 = vpop.f32.mrb[0].mxu0
        %7052 = vmatprep.mubr.f32.mxu0 %v4324
        %7053 = vmatmul.mubr.f32.gmra.mrb[0].mxu0 %v4323
        %v7054 = vpop.f32.mrb[0].mxu0
        %v7055 = vadd.f32 %v6830, %v7054
        %v7056 = vpop.f32.mrb[0].mxu0
        %7057 = vmatprep.mubr.f32.mxu0 %v4336
        %7058 = vmatmul.mubr.f32.gmra.mrb[0].mxu0 %v4335
        %v7059 = vpop.f32.mrb[0].mxu0
        %v7060 = vadd.f32 %v6835, %v7059
        %v7061 = vpop.f32.mrb[0].mxu0
        %7062 = vmatprep.mubr.f32.mxu0 %v4348
        %7063 = vmatmul.mubr.f32.gmra.mrb[0].mxu0 %v4347
        %v7064 = vpop.f32.mrb[0].mxu0
        %v7065 = vadd.f32 %v6840, %v7064
        %v7066 = vpop.f32.mrb[0].mxu0
        %7067 = vmatprep.mubr.f32.mxu0 %v4360
        %7068 = vmatmul.mubr.f32.gmra.mrb[0].mxu0 %v4359
        %v7069 = vpop.f32.mrb[0].mxu0
        %v7070 = vadd.f32 %v6845, %v7069
        %v7071 = vpop.f32.mrb[0].mxu0
        %7072 = vmatprep.mubr.f32.mxu0 %v4372
        %7073 = vmatmul.mubr.f32.gmra.mrb[0].mxu0 %v4371
        %v7074 = vpop.f32.mrb[0].mxu0
        %v7075 = vadd.f32 %v6850, %v7074
        %v7076 = vpop.f32.mrb[0].mxu0
        %7077 = vmatprep.mubr.f32.mxu0 %v4384
        %7078 = vmatmul.mubr.f32.gmra.mrb[0].mxu0 %v4383
        %v7079 = vpop.f32.mrb[0].mxu0
        %v7080 = vadd.f32 %v6855, %v7079
        %v7081 = vpop.f32.mrb[0].mxu0
        %7082 = vmatprep.mubr.f32.mxu0 %v4396
        %7083 = vmatmul.mubr.f32.gmra.mrb[0].mxu0 %v4395
        %v7084 = vpop.f32.mrb[0].mxu0
        %v7085 = vadd.f32 %v6860, %v7084
        %v7086 = vpop.f32.mrb[0].mxu0
        %7087 = vmatprep.mubr.f32.mxu0 %v4408
        %7088 = vmatmul.mubr.f32.gmra.mrb[0].mxu0 %v4407
        %v7089 = vpop.f32.mrb[0].mxu0
        %v7090 = vadd.f32 %v6865, %v7089
        %v7091 = vpop.f32.mrb[0].mxu0
        %7092 = vmatprep.mubr.f32.mxu0 %v4420
        %7093 = vmatmul.mubr.f32.gmra.mrb[0].mxu0 %v4419
        %v7094 = vpop.f32.mrb[0].mxu0
        %v7095 = vadd.f32 %v6870, %v7094
        %v7096 = vpop.f32.mrb[0].mxu0
        %7097 = vmatprep.mubr.f32.mxu0 %v4432
        %7098 = vmatmul.mubr.f32.gmra.mrb[0].mxu0 %v4431
        %v7099 = vpop.f32.mrb[0].mxu0
        %v7100 = vadd.f32 %v6875, %v7099
        %v7101 = vpop.f32.mrb[0].mxu0
        %7102 = vmatprep.mubr.f32.mxu0 %v4444
        %7103 = vmatmul.mubr.f32.gmra.mrb[0].mxu0 %v4443
        %v7104 = vpop.f32.mrb[0].mxu0
        %v7105 = vadd.f32 %v6880, %v7104
        %v7106 = vpop.f32.mrb[0].mxu0
        %7107 = vmatprep.mubr.f32.mxu0 %v4456
        %7108 = vmatmul.mubr.f32.gmra.mrb[0].mxu0 %v4455
        %v7109 = vpop.f32.mrb[0].mxu0
        %v7110 = vadd.f32 %v6885, %v7109
        %v7111 = vpop.f32.mrb[0].mxu0
        %7112 = vmatprep.mubr.f32.mxu0 %v4468
        %7113 = vmatmul.mubr.f32.gmra.mrb[0].mxu0 %v4467
        %v7114 = vpop.f32.mrb[0].mxu0
        %v7115 = vadd.f32 %v6890, %v7114
        %v7116 = vpop.f32.mrb[0].mxu0
        %7117 = vmatprep.mubr.f32.mxu0 %v4480
        %7118 = vmatmul.mubr.f32.gmra.mrb[0].mxu0 %v4479
        %v7119 = vpop.f32.mrb[0].mxu0
        %v7120 = vadd.f32 %v6895, %v7119
        %v7121 = vpop.f32.mrb[0].mxu0
        %7122 = vmatprep.mubr.f32.mxu0 %v4492
        %7123 = vmatmul.mubr.f32.gmra.mrb[0].mxu0 %v4491
        %v7124 = vpop.f32.mrb[0].mxu0
        %v7125 = vadd.f32 %v6900, %v7124
        %v7126 = vpop.f32.mrb[0].mxu0
        %7127 = vmatprep.mubr.f32.mxu0 %v4504
        %7128 = vmatmul.mubr.f32.gmra.mrb[0].mxu0 %v4503
        %v7129 = vpop.f32.mrb[0].mxu0
        %v7130 = vadd.f32 %v6905, %v7129
        %v7131 = vpop.f32.mrb[0].mxu0
        %7132 = vmatprep.mubr.f32.mxu0 %v4516
        %7133 = vmatmul.mubr.f32.gmra.mrb[0].mxu0 %v4515
        %v7134 = vpop.f32.mrb[0].mxu0
        %v7135 = vadd.f32 %v6910, %v7134
        %v7136 = vpop.f32.mrb[0].mxu0
        %7137 = vmatprep.mubr.f32.mxu0 %v4528
        %7138 = vmatmul.mubr.f32.gmra.mrb[0].mxu0 %v4527
        %v7139 = vpop.f32.mrb[0].mxu0
        %v7140 = vadd.f32 %v6915, %v7139
        %v7141 = vpop.f32.mrb[0].mxu0
        %7142 = vmatprep.mubr.f32.mxu0 %v4540
        %7143 = vmatmul.mubr.f32.gmra.mrb[0].mxu0 %v4539
        %v7144 = vpop.f32.mrb[0].mxu0
        %v7145 = vadd.f32 %v6920, %v7144
        %v7146 = vpop.f32.mrb[0].mxu0
        %7147 = vmatprep.mubr.f32.mxu0 %v4552
        %7148 = vmatmul.mubr.f32.gmra.mrb[0].mxu0 %v4551
        %v7149 = vpop.f32.mrb[0].mxu0
        %v7150 = vadd.f32 %v6925, %v7149
        %v7151 = vpop.f32.mrb[0].mxu0
        %7152 = vmatprep.mubr.f32.mxu0 %v4564
        %7153 = vmatmul.mubr.f32.gmra.mrb[0].mxu0 %v4563
        %v7154 = vpop.f32.mrb[0].mxu0
        %v7155 = vadd.f32 %v6930, %v7154
        %v7156 = vpop.f32.mrb[0].mxu0
        %7157 = vdwg.mxu0
        %7158 = vmatprep.subr.mxu0 0.0
        %7159 = vmatpush1.msra.mxu0 %v4767
        %7160 = vmatprep.subr.mxu0 0.0
        %7161 = vmatpush1.msra.mxu0 %v4770
        %7162 = vmatprep.subr.mxu0 0.0
        %7163 = vmatpush1.msra.mxu0 %v4773
        %7164 = vmatprep.subr.mxu0 0.0
        %7165 = vmatpush1.msra.mxu0 %v4776
        %7166 = vmatprep.subr.mxu0 0.0
        %7167 = vmatpush1.msra.mxu0 %v4779
        %7168 = vmatprep.subr.mxu0 0.0
        %7169 = vmatpush1.msra.mxu0 %v4782
        %7170 = vmatprep.subr.mxu0 0.0
        %7171 = vmatpush1.msra.mxu0 %v4785
        %7172 = vmatprep.subr.mxu0 0.0
        %7173 = vmatpush1.msra.mxu0 %v4788
        %7174 = vmatprep.subr.mxu0 0.0
        %7175 = vmatpush1.msra.mxu0 %v4791
        %7176 = vmatprep.subr.mxu0 0.0
        %7177 = vmatpush1.msra.mxu0 %v4794
        %7178 = vmatprep.subr.mxu0 0.0
        %7179 = vmatpush1.msra.mxu0 %v4797
        %7180 = vmatprep.subr.mxu0 0.0
        %7181 = vmatpush1.msra.mxu0 %v4800
        %7182 = vmatprep.subr.mxu0 0.0
        %7183 = vmatpush1.msra.mxu0 %v4803
        %7184 = vmatprep.subr.mxu0 0.0
        %7185 = vmatpush1.msra.mxu0 %v4806
        %7186 = vmatprep.subr.mxu0 0.0
        %7187 = vmatpush1.msra.mxu0 %v4809
        %7188 = vmatprep.subr.mxu0 0.0
        %7189 = vmatpush1.msra.mxu0 %v4812
        %7190 = vmatprep.subr.mxu0 0.0
        %7191 = vmatpush1.msra.mxu0 %v4815
        %7192 = vmatprep.subr.mxu0 0.0
        %7193 = vmatpush1.msra.mxu0 %v4818
        %7194 = vmatprep.subr.mxu0 0.0
        %7195 = vmatpush1.msra.mxu0 %v4821
        %7196 = vmatprep.subr.mxu0 0.0
        %7197 = vmatpush1.msra.mxu0 %v4824
        %7198 = vmatprep.subr.mxu0 0.0
        %7199 = vmatpush1.msra.mxu0 %v4827
        %7200 = vmatprep.subr.mxu0 0.0
        %7201 = vmatpush1.msra.mxu0 %v4830
        %7202 = vmatprep.subr.mxu0 0.0
        %7203 = vmatpush1.msra.mxu0 %v4833
        %7204 = vmatprep.subr.mxu0 0.0
        %7205 = vmatpush1.msra.mxu0 %v4836
        %7206 = vmatprep.subr.mxu0 0.0
        %7207 = vmatpush1.msra.mxu0 %v4839
        %7208 = vmatprep.subr.mxu0 0.0
        %7209 = vmatpush1.msra.mxu0 %v4842
        %7210 = vmatprep.subr.mxu0 0.0
        %7211 = vmatpush1.msra.mxu0 %v4845
        %7212 = vmatprep.subr.mxu0 0.0
        %7213 = vmatpush1.msra.mxu0 %v4848
        %7214 = vmatprep.subr.mxu0 0.0
        %7215 = vmatpush1.msra.mxu0 %v4851
        %7216 = vmatprep.subr.mxu0 0.0
        %7217 = vmatpush1.msra.mxu0 %v4854
        %7218 = vmatprep.subr.mxu0 0.0
        %7219 = vmatpush1.msra.mxu0 %v4857
        %7220 = vmatprep.subr.mxu0 0.0
        %7221 = vmatpush1.msra.mxu0 %v4860
        %7222 = vmatprep.mubr.f32.mxu0 %v4194
        %7223 = vmatmul.mubr.f32.gmra.mrb[0].mxu0 %v4193
        %v7224 = vpop.f32.mrb[0].mxu0
        %v7225 = vadd.f32 %v7000, %v7224
        %v7226 = vpop.f32.mrb[0].mxu0
        %7227 = vmatprep.mubr.f32.mxu0 %v4206
        %7228 = vmatmul.mubr.f32.gmra.mrb[0].mxu0 %v4205
        %v7229 = vpop.f32.mrb[0].mxu0
        %v7230 = vadd.f32 %v7005, %v7229
        %v7231 = vpop.f32.mrb[0].mxu0
        %7232 = vmatprep.mubr.f32.mxu0 %v4218
        %7233 = vmatmul.mubr.f32.gmra.mrb[0].mxu0 %v4217
        %v7234 = vpop.f32.mrb[0].mxu0
        %v7235 = vadd.f32 %v7010, %v7234
        %v7236 = vpop.f32.mrb[0].mxu0
        %7237 = vmatprep.mubr.f32.mxu0 %v4230
        %7238 = vmatmul.mubr.f32.gmra.mrb[0].mxu0 %v4229
        %v7239 = vpop.f32.mrb[0].mxu0
        %v7240 = vadd.f32 %v7015, %v7239
        %v7241 = vpop.f32.mrb[0].mxu0
        %7242 = vmatprep.mubr.f32.mxu0 %v4242
        %7243 = vmatmul.mubr.f32.gmra.mrb[0].mxu0 %v4241
        %v7244 = vpop.f32.mrb[0].mxu0
        %v7245 = vadd.f32 %v7020, %v7244
        %v7246 = vpop.f32.mrb[0].mxu0
        %7247 = vmatprep.mubr.f32.mxu0 %v4254
        %7248 = vmatmul.mubr.f32.gmra.mrb[0].mxu0 %v4253
        %v7249 = vpop.f32.mrb[0].mxu0
        %v7250 = vadd.f32 %v7025, %v7249
        %v7251 = vpop.f32.mrb[0].mxu0
        %7252 = vmatprep.mubr.f32.mxu0 %v4266
        %7253 = vmatmul.mubr.f32.gmra.mrb[0].mxu0 %v4265
        %v7254 = vpop.f32.mrb[0].mxu0
        %v7255 = vadd.f32 %v7030, %v7254
        %v7256 = vpop.f32.mrb[0].mxu0
        %7257 = vmatprep.mubr.f32.mxu0 %v4278
        %7258 = vmatmul.mubr.f32.gmra.mrb[0].mxu0 %v4277
        %v7259 = vpop.f32.mrb[0].mxu0
        %v7260 = vadd.f32 %v7035, %v7259
        %v7261 = vpop.f32.mrb[0].mxu0
        %7262 = vmatprep.mubr.f32.mxu0 %v4290
        %7263 = vmatmul.mubr.f32.gmra.mrb[0].mxu0 %v4289
        %v7264 = vpop.f32.mrb[0].mxu0
        %v7265 = vadd.f32 %v7040, %v7264
        %v7266 = vpop.f32.mrb[0].mxu0
        %7267 = vmatprep.mubr.f32.mxu0 %v4302
        %7268 = vmatmul.mubr.f32.gmra.mrb[0].mxu0 %v4301
        %v7269 = vpop.f32.mrb[0].mxu0
        %v7270 = vadd.f32 %v7045, %v7269
        %v7271 = vpop.f32.mrb[0].mxu0
        %7272 = vmatprep.mubr.f32.mxu0 %v4314
        %7273 = vmatmul.mubr.f32.gmra.mrb[0].mxu0 %v4313
        %v7274 = vpop.f32.mrb[0].mxu0
        %v7275 = vadd.f32 %v7050, %v7274
        %v7276 = vpop.f32.mrb[0].mxu0
        %7277 = vmatprep.mubr.f32.mxu0 %v4326
        %7278 = vmatmul.mubr.f32.gmra.mrb[0].mxu0 %v4325
        %v7279 = vpop.f32.mrb[0].mxu0
        %v7280 = vadd.f32 %v7055, %v7279
        %v7281 = vpop.f32.mrb[0].mxu0
        %7282 = vmatprep.mubr.f32.mxu0 %v4338
        %7283 = vmatmul.mubr.f32.gmra.mrb[0].mxu0 %v4337
        %v7284 = vpop.f32.mrb[0].mxu0
        %v7285 = vadd.f32 %v7060, %v7284
        %v7286 = vpop.f32.mrb[0].mxu0
        %7287 = vmatprep.mubr.f32.mxu0 %v4350
        %7288 = vmatmul.mubr.f32.gmra.mrb[0].mxu0 %v4349
        %v7289 = vpop.f32.mrb[0].mxu0
        %v7290 = vadd.f32 %v7065, %v7289
        %v7291 = vpop.f32.mrb[0].mxu0
        %7292 = vmatprep.mubr.f32.mxu0 %v4362
        %7293 = vmatmul.mubr.f32.gmra.mrb[0].mxu0 %v4361
        %v7294 = vpop.f32.mrb[0].mxu0
        %v7295 = vadd.f32 %v7070, %v7294
        %v7296 = vpop.f32.mrb[0].mxu0
        %7297 = vmatprep.mubr.f32.mxu0 %v4374
        %7298 = vmatmul.mubr.f32.gmra.mrb[0].mxu0 %v4373
        %v7299 = vpop.f32.mrb[0].mxu0
        %v7300 = vadd.f32 %v7075, %v7299
        %v7301 = vpop.f32.mrb[0].mxu0
        %7302 = vmatprep.mubr.f32.mxu0 %v4386
        %7303 = vmatmul.mubr.f32.gmra.mrb[0].mxu0 %v4385
        %v7304 = vpop.f32.mrb[0].mxu0
        %v7305 = vadd.f32 %v7080, %v7304
        %v7306 = vpop.f32.mrb[0].mxu0
        %7307 = vmatprep.mubr.f32.mxu0 %v4398
        %7308 = vmatmul.mubr.f32.gmra.mrb[0].mxu0 %v4397
        %v7309 = vpop.f32.mrb[0].mxu0
        %v7310 = vadd.f32 %v7085, %v7309
        %v7311 = vpop.f32.mrb[0].mxu0
        %7312 = vmatprep.mubr.f32.mxu0 %v4410
        %7313 = vmatmul.mubr.f32.gmra.mrb[0].mxu0 %v4409
        %v7314 = vpop.f32.mrb[0].mxu0
        %v7315 = vadd.f32 %v7090, %v7314
        %v7316 = vpop.f32.mrb[0].mxu0
        %7317 = vmatprep.mubr.f32.mxu0 %v4422
        %7318 = vmatmul.mubr.f32.gmra.mrb[0].mxu0 %v4421
        %v7319 = vpop.f32.mrb[0].mxu0
        %v7320 = vadd.f32 %v7095, %v7319
        %v7321 = vpop.f32.mrb[0].mxu0
        %7322 = vmatprep.mubr.f32.mxu0 %v4434
        %7323 = vmatmul.mubr.f32.gmra.mrb[0].mxu0 %v4433
        %v7324 = vpop.f32.mrb[0].mxu0
        %v7325 = vadd.f32 %v7100, %v7324
        %v7326 = vpop.f32.mrb[0].mxu0
        %7327 = vmatprep.mubr.f32.mxu0 %v4446
        %7328 = vmatmul.mubr.f32.gmra.mrb[0].mxu0 %v4445
        %v7329 = vpop.f32.mrb[0].mxu0
        %v7330 = vadd.f32 %v7105, %v7329
        %v7331 = vpop.f32.mrb[0].mxu0
        %7332 = vmatprep.mubr.f32.mxu0 %v4458
        %7333 = vmatmul.mubr.f32.gmra.mrb[0].mxu0 %v4457
        %v7334 = vpop.f32.mrb[0].mxu0
        %v7335 = vadd.f32 %v7110, %v7334
        %v7336 = vpop.f32.mrb[0].mxu0
        %7337 = vmatprep.mubr.f32.mxu0 %v4470
        %7338 = vmatmul.mubr.f32.gmra.mrb[0].mxu0 %v4469
        %v7339 = vpop.f32.mrb[0].mxu0
        %v7340 = vadd.f32 %v7115, %v7339
        %v7341 = vpop.f32.mrb[0].mxu0
        %7342 = vmatprep.mubr.f32.mxu0 %v4482
        %7343 = vmatmul.mubr.f32.gmra.mrb[0].mxu0 %v4481
        %v7344 = vpop.f32.mrb[0].mxu0
        %v7345 = vadd.f32 %v7120, %v7344
        %v7346 = vpop.f32.mrb[0].mxu0
        %7347 = vmatprep.mubr.f32.mxu0 %v4494
        %7348 = vmatmul.mubr.f32.gmra.mrb[0].mxu0 %v4493
        %v7349 = vpop.f32.mrb[0].mxu0
        %v7350 = vadd.f32 %v7125, %v7349
        %v7351 = vpop.f32.mrb[0].mxu0
        %7352 = vmatprep.mubr.f32.mxu0 %v4506
        %7353 = vmatmul.mubr.f32.gmra.mrb[0].mxu0 %v4505
        %v7354 = vpop.f32.mrb[0].mxu0
        %v7355 = vadd.f32 %v7130, %v7354
        %v7356 = vpop.f32.mrb[0].mxu0
        %7357 = vmatprep.mubr.f32.mxu0 %v4518
        %7358 = vmatmul.mubr.f32.gmra.mrb[0].mxu0 %v4517
        %v7359 = vpop.f32.mrb[0].mxu0
        %v7360 = vadd.f32 %v7135, %v7359
        %v7361 = vpop.f32.mrb[0].mxu0
        %7362 = vmatprep.mubr.f32.mxu0 %v4530
        %7363 = vmatmul.mubr.f32.gmra.mrb[0].mxu0 %v4529
        %v7364 = vpop.f32.mrb[0].mxu0
        %v7365 = vadd.f32 %v7140, %v7364
        %v7366 = vpop.f32.mrb[0].mxu0
        %7367 = vmatprep.mubr.f32.mxu0 %v4542
        %7368 = vmatmul.mubr.f32.gmra.mrb[0].mxu0 %v4541
        %v7369 = vpop.f32.mrb[0].mxu0
        %v7370 = vadd.f32 %v7145, %v7369
        %v7371 = vpop.f32.mrb[0].mxu0
        %7372 = vmatprep.mubr.f32.mxu0 %v4554
        %7373 = vmatmul.mubr.f32.gmra.mrb[0].mxu0 %v4553
        %v7374 = vpop.f32.mrb[0].mxu0
        %v7375 = vadd.f32 %v7150, %v7374
        %v7376 = vpop.f32.mrb[0].mxu0
        %7377 = vmatprep.mubr.f32.mxu0 %v4566
        %7378 = vmatmul.mubr.f32.gmra.mrb[0].mxu0 %v4565
        %v7379 = vpop.f32.mrb[0].mxu0
        %v7380 = vadd.f32 %v7155, %v7379
        %v7381 = vpop.f32.mrb[0].mxu0
        %7382 = vdwg.mxu0
        %7383 = vmatprep.subr.mxu0 0.0
        %7384 = vmatpush1.msra.mxu0 %v4863
        %7385 = vmatprep.subr.mxu0 0.0
        %7386 = vmatpush1.msra.mxu0 %v4866
        %7387 = vmatprep.subr.mxu0 0.0
        %7388 = vmatpush1.msra.mxu0 %v4869
        %7389 = vmatprep.subr.mxu0 0.0
        %7390 = vmatpush1.msra.mxu0 %v4872
        %7391 = vmatprep.subr.mxu0 0.0
        %7392 = vmatpush1.msra.mxu0 %v4875
        %7393 = vmatprep.subr.mxu0 0.0
        %7394 = vmatpush1.msra.mxu0 %v4878
        %7395 = vmatprep.subr.mxu0 0.0
        %7396 = vmatpush1.msra.mxu0 %v4881
        %7397 = vmatprep.subr.mxu0 0.0
        %7398 = vmatpush1.msra.mxu0 %v4884
        %7399 = vmatprep.subr.mxu0 0.0
        %7400 = vmatpush1.msra.mxu0 %v4887
        %7401 = vmatprep.subr.mxu0 0.0
        %7402 = vmatpush1.msra.mxu0 %v4890
        %7403 = vmatprep.subr.mxu0 0.0
        %7404 = vmatpush1.msra.mxu0 %v4893
        %7405 = vmatprep.subr.mxu0 0.0
        %7406 = vmatpush1.msra.mxu0 %v4896
        %7407 = vmatprep.subr.mxu0 0.0
        %7408 = vmatpush1.msra.mxu0 %v4899
        %7409 = vmatprep.subr.mxu0 0.0
        %7410 = vmatpush1.msra.mxu0 %v4902
        %7411 = vmatprep.subr.mxu0 0.0
        %7412 = vmatpush1.msra.mxu0 %v4905
        %7413 = vmatprep.subr.mxu0 0.0
        %7414 = vmatpush1.msra.mxu0 %v4908
        %7415 = vmatprep.subr.mxu0 0.0
        %7416 = vmatpush1.msra.mxu0 %v4911
        %7417 = vmatprep.subr.mxu0 0.0
        %7418 = vmatpush1.msra.mxu0 %v4914
        %7419 = vmatprep.subr.mxu0 0.0
        %7420 = vmatpush1.msra.mxu0 %v4917
        %7421 = vmatprep.subr.mxu0 0.0
        %7422 = vmatpush1.msra.mxu0 %v4920
        %7423 = vmatprep.subr.mxu0 0.0
        %7424 = vmatpush1.msra.mxu0 %v4923
        %7425 = vmatprep.subr.mxu0 0.0
        %7426 = vmatpush1.msra.mxu0 %v4926
        %7427 = vmatprep.subr.mxu0 0.0
        %7428 = vmatpush1.msra.mxu0 %v4929
        %7429 = vmatprep.subr.mxu0 0.0
        %7430 = vmatpush1.msra.mxu0 %v4932
        %7431 = vmatprep.subr.mxu0 0.0
        %7432 = vmatpush1.msra.mxu0 %v4935
        %7433 = vmatprep.subr.mxu0 0.0
        %7434 = vmatpush1.msra.mxu0 %v4938
        %7435 = vmatprep.subr.mxu0 0.0
        %7436 = vmatpush1.msra.mxu0 %v4941
        %7437 = vmatprep.subr.mxu0 0.0
        %7438 = vmatpush1.msra.mxu0 %v4944
        %7439 = vmatprep.subr.mxu0 0.0
        %7440 = vmatpush1.msra.mxu0 %v4947
        %7441 = vmatprep.subr.mxu0 0.0
        %7442 = vmatpush1.msra.mxu0 %v4950
        %7443 = vmatprep.subr.mxu0 0.0
        %7444 = vmatpush1.msra.mxu0 %v4953
        %7445 = vmatprep.subr.mxu0 0.0
        %7446 = vmatpush1.msra.mxu0 %v4956
        %7447 = vmatprep.mubr.f32.mxu0 %v4196
        %7448 = vmatmul.mubr.f32.gmra.mrb[0].mxu0 %v4195
        %v7449 = vpop.f32.mrb[0].mxu0
        %v7450 = vadd.f32 %v7225, %v7449
        %v7451 = vpop.f32.mrb[0].mxu0
        %7452 = vmatprep.mubr.f32.mxu0 %v4208
        %7453 = vmatmul.mubr.f32.gmra.mrb[0].mxu0 %v4207
        %v7454 = vpop.f32.mrb[0].mxu0
        %v7455 = vadd.f32 %v7230, %v7454
        %v7456 = vpop.f32.mrb[0].mxu0
        %7457 = vmatprep.mubr.f32.mxu0 %v4220
        %7458 = vmatmul.mubr.f32.gmra.mrb[0].mxu0 %v4219
        %v7459 = vpop.f32.mrb[0].mxu0
        %v7460 = vadd.f32 %v7235, %v7459
        %v7461 = vpop.f32.mrb[0].mxu0
        %7462 = vmatprep.mubr.f32.mxu0 %v4232
        %7463 = vmatmul.mubr.f32.gmra.mrb[0].mxu0 %v4231
        %v7464 = vpop.f32.mrb[0].mxu0
        %v7465 = vadd.f32 %v7240, %v7464
        %v7466 = vpop.f32.mrb[0].mxu0
        %7467 = vmatprep.mubr.f32.mxu0 %v4244
        %7468 = vmatmul.mubr.f32.gmra.mrb[0].mxu0 %v4243
        %v7469 = vpop.f32.mrb[0].mxu0
        %v7470 = vadd.f32 %v7245, %v7469
        %v7471 = vpop.f32.mrb[0].mxu0
        %7472 = vmatprep.mubr.f32.mxu0 %v4256
        %7473 = vmatmul.mubr.f32.gmra.mrb[0].mxu0 %v4255
        %v7474 = vpop.f32.mrb[0].mxu0
        %v7475 = vadd.f32 %v7250, %v7474
        %v7476 = vpop.f32.mrb[0].mxu0
        %7477 = vmatprep.mubr.f32.mxu0 %v4268
        %7478 = vmatmul.mubr.f32.gmra.mrb[0].mxu0 %v4267
        %v7479 = vpop.f32.mrb[0].mxu0
        %v7480 = vadd.f32 %v7255, %v7479
        %v7481 = vpop.f32.mrb[0].mxu0
        %7482 = vmatprep.mubr.f32.mxu0 %v4280
        %7483 = vmatmul.mubr.f32.gmra.mrb[0].mxu0 %v4279
        %v7484 = vpop.f32.mrb[0].mxu0
        %v7485 = vadd.f32 %v7260, %v7484
        %v7486 = vpop.f32.mrb[0].mxu0
        %7487 = vmatprep.mubr.f32.mxu0 %v4292
        %7488 = vmatmul.mubr.f32.gmra.mrb[0].mxu0 %v4291
        %v7489 = vpop.f32.mrb[0].mxu0
        %v7490 = vadd.f32 %v7265, %v7489
        %v7491 = vpop.f32.mrb[0].mxu0
        %7492 = vmatprep.mubr.f32.mxu0 %v4304
        %7493 = vmatmul.mubr.f32.gmra.mrb[0].mxu0 %v4303
        %v7494 = vpop.f32.mrb[0].mxu0
        %v7495 = vadd.f32 %v7270, %v7494
        %v7496 = vpop.f32.mrb[0].mxu0
        %7497 = vmatprep.mubr.f32.mxu0 %v4316
        %7498 = vmatmul.mubr.f32.gmra.mrb[0].mxu0 %v4315
        %v7499 = vpop.f32.mrb[0].mxu0
        %v7500 = vadd.f32 %v7275, %v7499
        %v7501 = vpop.f32.mrb[0].mxu0
        %7502 = vmatprep.mubr.f32.mxu0 %v4328
        %7503 = vmatmul.mubr.f32.gmra.mrb[0].mxu0 %v4327
        %v7504 = vpop.f32.mrb[0].mxu0
        %v7505 = vadd.f32 %v7280, %v7504
        %v7506 = vpop.f32.mrb[0].mxu0
        %7507 = vmatprep.mubr.f32.mxu0 %v4340
        %7508 = vmatmul.mubr.f32.gmra.mrb[0].mxu0 %v4339
        %v7509 = vpop.f32.mrb[0].mxu0
        %v7510 = vadd.f32 %v7285, %v7509
        %v7511 = vpop.f32.mrb[0].mxu0
        %7512 = vmatprep.mubr.f32.mxu0 %v4352
        %7513 = vmatmul.mubr.f32.gmra.mrb[0].mxu0 %v4351
        %v7514 = vpop.f32.mrb[0].mxu0
        %v7515 = vadd.f32 %v7290, %v7514
        %v7516 = vpop.f32.mrb[0].mxu0
        %7517 = vmatprep.mubr.f32.mxu0 %v4364
        %7518 = vmatmul.mubr.f32.gmra.mrb[0].mxu0 %v4363
        %v7519 = vpop.f32.mrb[0].mxu0
        %v7520 = vadd.f32 %v7295, %v7519
        %v7521 = vpop.f32.mrb[0].mxu0
        %7522 = vmatprep.mubr.f32.mxu0 %v4376
        %7523 = vmatmul.mubr.f32.gmra.mrb[0].mxu0 %v4375
        %v7524 = vpop.f32.mrb[0].mxu0
        %v7525 = vadd.f32 %v7300, %v7524
        %v7526 = vpop.f32.mrb[0].mxu0
        %7527 = vmatprep.mubr.f32.mxu0 %v4388
        %7528 = vmatmul.mubr.f32.gmra.mrb[0].mxu0 %v4387
        %v7529 = vpop.f32.mrb[0].mxu0
        %v7530 = vadd.f32 %v7305, %v7529
        %v7531 = vpop.f32.mrb[0].mxu0
        %7532 = vmatprep.mubr.f32.mxu0 %v4400
        %7533 = vmatmul.mubr.f32.gmra.mrb[0].mxu0 %v4399
        %v7534 = vpop.f32.mrb[0].mxu0
        %v7535 = vadd.f32 %v7310, %v7534
        %v7536 = vpop.f32.mrb[0].mxu0
        %7537 = vmatprep.mubr.f32.mxu0 %v4412
        %7538 = vmatmul.mubr.f32.gmra.mrb[0].mxu0 %v4411
        %v7539 = vpop.f32.mrb[0].mxu0
        %v7540 = vadd.f32 %v7315, %v7539
        %v7541 = vpop.f32.mrb[0].mxu0
        %7542 = vmatprep.mubr.f32.mxu0 %v4424
        %7543 = vmatmul.mubr.f32.gmra.mrb[0].mxu0 %v4423
        %v7544 = vpop.f32.mrb[0].mxu0
        %v7545 = vadd.f32 %v7320, %v7544
        %v7546 = vpop.f32.mrb[0].mxu0
        %7547 = vmatprep.mubr.f32.mxu0 %v4436
        %7548 = vmatmul.mubr.f32.gmra.mrb[0].mxu0 %v4435
        %v7549 = vpop.f32.mrb[0].mxu0
        %v7550 = vadd.f32 %v7325, %v7549
        %v7551 = vpop.f32.mrb[0].mxu0
        %7552 = vmatprep.mubr.f32.mxu0 %v4448
        %7553 = vmatmul.mubr.f32.gmra.mrb[0].mxu0 %v4447
        %v7554 = vpop.f32.mrb[0].mxu0
        %v7555 = vadd.f32 %v7330, %v7554
        %v7556 = vpop.f32.mrb[0].mxu0
        %7557 = vmatprep.mubr.f32.mxu0 %v4460
        %7558 = vmatmul.mubr.f32.gmra.mrb[0].mxu0 %v4459
        %v7559 = vpop.f32.mrb[0].mxu0
        %v7560 = vadd.f32 %v7335, %v7559
        %v7561 = vpop.f32.mrb[0].mxu0
        %7562 = vmatprep.mubr.f32.mxu0 %v4472
        %7563 = vmatmul.mubr.f32.gmra.mrb[0].mxu0 %v4471
        %v7564 = vpop.f32.mrb[0].mxu0
        %v7565 = vadd.f32 %v7340, %v7564
        %v7566 = vpop.f32.mrb[0].mxu0
        %7567 = vmatprep.mubr.f32.mxu0 %v4484
        %7568 = vmatmul.mubr.f32.gmra.mrb[0].mxu0 %v4483
        %v7569 = vpop.f32.mrb[0].mxu0
        %v7570 = vadd.f32 %v7345, %v7569
        %v7571 = vpop.f32.mrb[0].mxu0
        %7572 = vmatprep.mubr.f32.mxu0 %v4496
        %7573 = vmatmul.mubr.f32.gmra.mrb[0].mxu0 %v4495
        %v7574 = vpop.f32.mrb[0].mxu0
        %v7575 = vadd.f32 %v7350, %v7574
        %v7576 = vpop.f32.mrb[0].mxu0
        %7577 = vmatprep.mubr.f32.mxu0 %v4508
        %7578 = vmatmul.mubr.f32.gmra.mrb[0].mxu0 %v4507
        %v7579 = vpop.f32.mrb[0].mxu0
        %v7580 = vadd.f32 %v7355, %v7579
        %v7581 = vpop.f32.mrb[0].mxu0
        %7582 = vmatprep.mubr.f32.mxu0 %v4520
        %7583 = vmatmul.mubr.f32.gmra.mrb[0].mxu0 %v4519
        %v7584 = vpop.f32.mrb[0].mxu0
        %v7585 = vadd.f32 %v7360, %v7584
        %v7586 = vpop.f32.mrb[0].mxu0
        %7587 = vmatprep.mubr.f32.mxu0 %v4532
        %7588 = vmatmul.mubr.f32.gmra.mrb[0].mxu0 %v4531
        %v7589 = vpop.f32.mrb[0].mxu0
        %v7590 = vadd.f32 %v7365, %v7589
        %v7591 = vpop.f32.mrb[0].mxu0
        %7592 = vmatprep.mubr.f32.mxu0 %v4544
        %7593 = vmatmul.mubr.f32.gmra.mrb[0].mxu0 %v4543
        %v7594 = vpop.f32.mrb[0].mxu0
        %v7595 = vadd.f32 %v7370, %v7594
        %v7596 = vpop.f32.mrb[0].mxu0
        %7597 = vmatprep.mubr.f32.mxu0 %v4556
        %7598 = vmatmul.mubr.f32.gmra.mrb[0].mxu0 %v4555
        %v7599 = vpop.f32.mrb[0].mxu0
        %v7600 = vadd.f32 %v7375, %v7599
        %v7601 = vpop.f32.mrb[0].mxu0
        %7602 = vmatprep.mubr.f32.mxu0 %v4568
        %7603 = vmatmul.mubr.f32.gmra.mrb[0].mxu0 %v4567
        %v7604 = vpop.f32.mrb[0].mxu0
        %v7605 = vadd.f32 %v7380, %v7604
        %v7606 = vpop.f32.mrb[0].mxu0
        %7607 = vdwg.mxu0
        %7608 = vmatprep.subr.mxu0 0.0
        %7609 = vmatpush1.msra.mxu0 %v4959
        %7610 = vmatprep.subr.mxu0 0.0
        %7611 = vmatpush1.msra.mxu0 %v4962
        %7612 = vmatprep.subr.mxu0 0.0
        %7613 = vmatpush1.msra.mxu0 %v4965
        %7614 = vmatprep.subr.mxu0 0.0
        %7615 = vmatpush1.msra.mxu0 %v4968
        %7616 = vmatprep.subr.mxu0 0.0
        %7617 = vmatpush1.msra.mxu0 %v4971
        %7618 = vmatprep.subr.mxu0 0.0
        %7619 = vmatpush1.msra.mxu0 %v4974
        %7620 = vmatprep.subr.mxu0 0.0
        %7621 = vmatpush1.msra.mxu0 %v4977
        %7622 = vmatprep.subr.mxu0 0.0
        %7623 = vmatpush1.msra.mxu0 %v4980
        %7624 = vmatprep.subr.mxu0 0.0
        %7625 = vmatpush1.msra.mxu0 %v4983
        %7626 = vmatprep.subr.mxu0 0.0
        %7627 = vmatpush1.msra.mxu0 %v4986
        %7628 = vmatprep.subr.mxu0 0.0
        %7629 = vmatpush1.msra.mxu0 %v4989
        %7630 = vmatprep.subr.mxu0 0.0
        %7631 = vmatpush1.msra.mxu0 %v4992
        %7632 = vmatprep.subr.mxu0 0.0
        %7633 = vmatpush1.msra.mxu0 %v4995
        %7634 = vmatprep.subr.mxu0 0.0
        %7635 = vmatpush1.msra.mxu0 %v4998
        %7636 = vmatprep.subr.mxu0 0.0
        %7637 = vmatpush1.msra.mxu0 %v5001
        %7638 = vmatprep.subr.mxu0 0.0
        %7639 = vmatpush1.msra.mxu0 %v5004
        %7640 = vmatprep.subr.mxu0 0.0
        %7641 = vmatpush1.msra.mxu0 %v5007
        %7642 = vmatprep.subr.mxu0 0.0
        %7643 = vmatpush1.msra.mxu0 %v5010
        %7644 = vmatprep.subr.mxu0 0.0
        %7645 = vmatpush1.msra.mxu0 %v5013
        %7646 = vmatprep.subr.mxu0 0.0
        %7647 = vmatpush1.msra.mxu0 %v5016
        %7648 = vmatprep.subr.mxu0 0.0
        %7649 = vmatpush1.msra.mxu0 %v5019
        %7650 = vmatprep.subr.mxu0 0.0
        %7651 = vmatpush1.msra.mxu0 %v5022
        %7652 = vmatprep.subr.mxu0 0.0
        %7653 = vmatpush1.msra.mxu0 %v5025
        %7654 = vmatprep.subr.mxu0 0.0
        %7655 = vmatpush1.msra.mxu0 %v5028
        %7656 = vmatprep.subr.mxu0 0.0
        %7657 = vmatpush1.msra.mxu0 %v5031
        %7658 = vmatprep.subr.mxu0 0.0
        %7659 = vmatpush1.msra.mxu0 %v5034
        %7660 = vmatprep.subr.mxu0 0.0
        %7661 = vmatpush1.msra.mxu0 %v5037
        %7662 = vmatprep.subr.mxu0 0.0
        %7663 = vmatpush1.msra.mxu0 %v5040
        %7664 = vmatprep.subr.mxu0 0.0
        %7665 = vmatpush1.msra.mxu0 %v5043
        %7666 = vmatprep.subr.mxu0 0.0
        %7667 = vmatpush1.msra.mxu0 %v5046
        %7668 = vmatprep.subr.mxu0 0.0
        %7669 = vmatpush1.msra.mxu0 %v5049
        %7670 = vmatprep.subr.mxu0 0.0
        %7671 = vmatpush1.msra.mxu0 %v5052
        %7672 = vmatprep.mubr.f32.mxu0 %v4198
        %7673 = vmatmul.mubr.f32.gmra.mrb[0].mxu0 %v4197
        %v7674 = vpop.f32.mrb[0].mxu0
        %v7675 = vadd.f32 %v7450, %v7674
        %v7676 = vpop.f32.mrb[0].mxu0
        %7677 = vmatprep.mubr.f32.mxu0 %v4210
        %7678 = vmatmul.mubr.f32.gmra.mrb[0].mxu0 %v4209
        %v7679 = vpop.f32.mrb[0].mxu0
        %v7680 = vadd.f32 %v7455, %v7679
        %v7681 = vpop.f32.mrb[0].mxu0
        %7682 = vmatprep.mubr.f32.mxu0 %v4222
        %7683 = vmatmul.mubr.f32.gmra.mrb[0].mxu0 %v4221
        %v7684 = vpop.f32.mrb[0].mxu0
        %v7685 = vadd.f32 %v7460, %v7684
        %v7686 = vpop.f32.mrb[0].mxu0
        %7687 = vmatprep.mubr.f32.mxu0 %v4234
        %7688 = vmatmul.mubr.f32.gmra.mrb[0].mxu0 %v4233
        %v7689 = vpop.f32.mrb[0].mxu0
        %v7690 = vadd.f32 %v7465, %v7689
        %v7691 = vpop.f32.mrb[0].mxu0
        %7692 = vmatprep.mubr.f32.mxu0 %v4246
        %7693 = vmatmul.mubr.f32.gmra.mrb[0].mxu0 %v4245
        %v7694 = vpop.f32.mrb[0].mxu0
        %v7695 = vadd.f32 %v7470, %v7694
        %v7696 = vpop.f32.mrb[0].mxu0
        %7697 = vmatprep.mubr.f32.mxu0 %v4258
        %7698 = vmatmul.mubr.f32.gmra.mrb[0].mxu0 %v4257
        %v7699 = vpop.f32.mrb[0].mxu0
        %v7700 = vadd.f32 %v7475, %v7699
        %v7701 = vpop.f32.mrb[0].mxu0
        %7702 = vmatprep.mubr.f32.mxu0 %v4270
        %7703 = vmatmul.mubr.f32.gmra.mrb[0].mxu0 %v4269
        %v7704 = vpop.f32.mrb[0].mxu0
        %v7705 = vadd.f32 %v7480, %v7704
        %v7706 = vpop.f32.mrb[0].mxu0
        %7707 = vmatprep.mubr.f32.mxu0 %v4282
        %7708 = vmatmul.mubr.f32.gmra.mrb[0].mxu0 %v4281
        %v7709 = vpop.f32.mrb[0].mxu0
        %v7710 = vadd.f32 %v7485, %v7709
        %v7711 = vpop.f32.mrb[0].mxu0
        %7712 = vmatprep.mubr.f32.mxu0 %v4294
        %7713 = vmatmul.mubr.f32.gmra.mrb[0].mxu0 %v4293
        %v7714 = vpop.f32.mrb[0].mxu0
        %v7715 = vadd.f32 %v7490, %v7714
        %v7716 = vpop.f32.mrb[0].mxu0
        %7717 = vmatprep.mubr.f32.mxu0 %v4306
        %7718 = vmatmul.mubr.f32.gmra.mrb[0].mxu0 %v4305
        %v7719 = vpop.f32.mrb[0].mxu0
        %v7720 = vadd.f32 %v7495, %v7719
        %v7721 = vpop.f32.mrb[0].mxu0
        %7722 = vmatprep.mubr.f32.mxu0 %v4318
        %7723 = vmatmul.mubr.f32.gmra.mrb[0].mxu0 %v4317
        %v7724 = vpop.f32.mrb[0].mxu0
        %v7725 = vadd.f32 %v7500, %v7724
        %v7726 = vpop.f32.mrb[0].mxu0
        %7727 = vmatprep.mubr.f32.mxu0 %v4330
        %7728 = vmatmul.mubr.f32.gmra.mrb[0].mxu0 %v4329
        %v7729 = vpop.f32.mrb[0].mxu0
        %v7730 = vadd.f32 %v7505, %v7729
        %v7731 = vpop.f32.mrb[0].mxu0
        %7732 = vmatprep.mubr.f32.mxu0 %v4342
        %7733 = vmatmul.mubr.f32.gmra.mrb[0].mxu0 %v4341
        %v7734 = vpop.f32.mrb[0].mxu0
        %v7735 = vadd.f32 %v7510, %v7734
        %v7736 = vpop.f32.mrb[0].mxu0
        %7737 = vmatprep.mubr.f32.mxu0 %v4354
        %7738 = vmatmul.mubr.f32.gmra.mrb[0].mxu0 %v4353
        %v7739 = vpop.f32.mrb[0].mxu0
        %v7740 = vadd.f32 %v7515, %v7739
        %v7741 = vpop.f32.mrb[0].mxu0
        %7742 = vmatprep.mubr.f32.mxu0 %v4366
        %7743 = vmatmul.mubr.f32.gmra.mrb[0].mxu0 %v4365
        %v7744 = vpop.f32.mrb[0].mxu0
        %v7745 = vadd.f32 %v7520, %v7744
        %v7746 = vpop.f32.mrb[0].mxu0
        %7747 = vmatprep.mubr.f32.mxu0 %v4378
        %7748 = vmatmul.mubr.f32.gmra.mrb[0].mxu0 %v4377
        %v7749 = vpop.f32.mrb[0].mxu0
        %v7750 = vadd.f32 %v7525, %v7749
        %v7751 = vpop.f32.mrb[0].mxu0
        %7752 = vmatprep.mubr.f32.mxu0 %v4390
        %7753 = vmatmul.mubr.f32.gmra.mrb[0].mxu0 %v4389
        %v7754 = vpop.f32.mrb[0].mxu0
        %v7755 = vadd.f32 %v7530, %v7754
        %v7756 = vpop.f32.mrb[0].mxu0
        %7757 = vmatprep.mubr.f32.mxu0 %v4402
        %7758 = vmatmul.mubr.f32.gmra.mrb[0].mxu0 %v4401
        %v7759 = vpop.f32.mrb[0].mxu0
        %v7760 = vadd.f32 %v7535, %v7759
        %v7761 = vpop.f32.mrb[0].mxu0
        %7762 = vmatprep.mubr.f32.mxu0 %v4414
        %7763 = vmatmul.mubr.f32.gmra.mrb[0].mxu0 %v4413
        %v7764 = vpop.f32.mrb[0].mxu0
        %v7765 = vadd.f32 %v7540, %v7764
        %v7766 = vpop.f32.mrb[0].mxu0
        %7767 = vmatprep.mubr.f32.mxu0 %v4426
        %7768 = vmatmul.mubr.f32.gmra.mrb[0].mxu0 %v4425
        %v7769 = vpop.f32.mrb[0].mxu0
        %v7770 = vadd.f32 %v7545, %v7769
        %v7771 = vpop.f32.mrb[0].mxu0
        %7772 = vmatprep.mubr.f32.mxu0 %v4438
        %7773 = vmatmul.mubr.f32.gmra.mrb[0].mxu0 %v4437
        %v7774 = vpop.f32.mrb[0].mxu0
        %v7775 = vadd.f32 %v7550, %v7774
        %v7776 = vpop.f32.mrb[0].mxu0
        %7777 = vmatprep.mubr.f32.mxu0 %v4450
        %7778 = vmatmul.mubr.f32.gmra.mrb[0].mxu0 %v4449
        %v7779 = vpop.f32.mrb[0].mxu0
        %v7780 = vadd.f32 %v7555, %v7779
        %v7781 = vpop.f32.mrb[0].mxu0
        %7782 = vmatprep.mubr.f32.mxu0 %v4462
        %7783 = vmatmul.mubr.f32.gmra.mrb[0].mxu0 %v4461
        %v7784 = vpop.f32.mrb[0].mxu0
        %v7785 = vadd.f32 %v7560, %v7784
        %v7786 = vpop.f32.mrb[0].mxu0
        %7787 = vmatprep.mubr.f32.mxu0 %v4474
        %7788 = vmatmul.mubr.f32.gmra.mrb[0].mxu0 %v4473
        %v7789 = vpop.f32.mrb[0].mxu0
        %v7790 = vadd.f32 %v7565, %v7789
        %v7791 = vpop.f32.mrb[0].mxu0
        %7792 = vmatprep.mubr.f32.mxu0 %v4486
        %7793 = vmatmul.mubr.f32.gmra.mrb[0].mxu0 %v4485
        %v7794 = vpop.f32.mrb[0].mxu0
        %v7795 = vadd.f32 %v7570, %v7794
        %v7796 = vpop.f32.mrb[0].mxu0
        %7797 = vmatprep.mubr.f32.mxu0 %v4498
        %7798 = vmatmul.mubr.f32.gmra.mrb[0].mxu0 %v4497
        %v7799 = vpop.f32.mrb[0].mxu0
        %v7800 = vadd.f32 %v7575, %v7799
        %v7801 = vpop.f32.mrb[0].mxu0
        %7802 = vmatprep.mubr.f32.mxu0 %v4510
        %7803 = vmatmul.mubr.f32.gmra.mrb[0].mxu0 %v4509
        %v7804 = vpop.f32.mrb[0].mxu0
        %v7805 = vadd.f32 %v7580, %v7804
        %v7806 = vpop.f32.mrb[0].mxu0
        %7807 = vmatprep.mubr.f32.mxu0 %v4522
        %7808 = vmatmul.mubr.f32.gmra.mrb[0].mxu0 %v4521
        %v7809 = vpop.f32.mrb[0].mxu0
        %v7810 = vadd.f32 %v7585, %v7809
        %v7811 = vpop.f32.mrb[0].mxu0
        %7812 = vmatprep.mubr.f32.mxu0 %v4534
        %7813 = vmatmul.mubr.f32.gmra.mrb[0].mxu0 %v4533
        %v7814 = vpop.f32.mrb[0].mxu0
        %v7815 = vadd.f32 %v7590, %v7814
        %v7816 = vpop.f32.mrb[0].mxu0
        %7817 = vmatprep.mubr.f32.mxu0 %v4546
        %7818 = vmatmul.mubr.f32.gmra.mrb[0].mxu0 %v4545
        %v7819 = vpop.f32.mrb[0].mxu0
        %v7820 = vadd.f32 %v7595, %v7819
        %v7821 = vpop.f32.mrb[0].mxu0
        %7822 = vmatprep.mubr.f32.mxu0 %v4558
        %7823 = vmatmul.mubr.f32.gmra.mrb[0].mxu0 %v4557
        %v7824 = vpop.f32.mrb[0].mxu0
        %v7825 = vadd.f32 %v7600, %v7824
        %v7826 = vpop.f32.mrb[0].mxu0
        %7827 = vmatprep.mubr.f32.mxu0 %v4570
        %7828 = vmatmul.mubr.f32.gmra.mrb[0].mxu0 %v4569
        %v7829 = vpop.f32.mrb[0].mxu0
        %v7830 = vadd.f32 %v7605, %v7829
        %v7831 = vpop.f32.mrb[0].mxu0
        %7832 = vdwg.mxu0
        %7833 = vmatprep.subr.mxu0 0.0
        %7834 = vmatpush1.msra.mxu0 %v5055
        %7835 = vmatprep.subr.mxu0 0.0
        %7836 = vmatpush1.msra.mxu0 %v5058
        %7837 = vmatprep.subr.mxu0 0.0
        %7838 = vmatpush1.msra.mxu0 %v5061
        %7839 = vmatprep.subr.mxu0 0.0
        %7840 = vmatpush1.msra.mxu0 %v5064
        %7841 = vmatprep.subr.mxu0 0.0
        %7842 = vmatpush1.msra.mxu0 %v5067
        %7843 = vmatprep.subr.mxu0 0.0
        %7844 = vmatpush1.msra.mxu0 %v5070
        %7845 = vmatprep.subr.mxu0 0.0
        %7846 = vmatpush1.msra.mxu0 %v5073
        %7847 = vmatprep.subr.mxu0 0.0
        %7848 = vmatpush1.msra.mxu0 %v5076
        %7849 = vmatprep.subr.mxu0 0.0
        %7850 = vmatpush1.msra.mxu0 %v5079
        %7851 = vmatprep.subr.mxu0 0.0
        %7852 = vmatpush1.msra.mxu0 %v5082
        %7853 = vmatprep.subr.mxu0 0.0
        %7854 = vmatpush1.msra.mxu0 %v5085
        %7855 = vmatprep.subr.mxu0 0.0
        %7856 = vmatpush1.msra.mxu0 %v5088
        %7857 = vmatprep.subr.mxu0 0.0
        %7858 = vmatpush1.msra.mxu0 %v5091
        %7859 = vmatprep.subr.mxu0 0.0
        %7860 = vmatpush1.msra.mxu0 %v5094
        %7861 = vmatprep.subr.mxu0 0.0
        %7862 = vmatpush1.msra.mxu0 %v5097
        %7863 = vmatprep.subr.mxu0 0.0
        %7864 = vmatpush1.msra.mxu0 %v5100
        %7865 = vmatprep.subr.mxu0 0.0
        %7866 = vmatpush1.msra.mxu0 %v5103
        %7867 = vmatprep.subr.mxu0 0.0
        %7868 = vmatpush1.msra.mxu0 %v5106
        %7869 = vmatprep.subr.mxu0 0.0
        %7870 = vmatpush1.msra.mxu0 %v5109
        %7871 = vmatprep.subr.mxu0 0.0
        %7872 = vmatpush1.msra.mxu0 %v5112
        %7873 = vmatprep.subr.mxu0 0.0
        %7874 = vmatpush1.msra.mxu0 %v5115
        %7875 = vmatprep.subr.mxu0 0.0
        %7876 = vmatpush1.msra.mxu0 %v5118
        %7877 = vmatprep.subr.mxu0 0.0
        %7878 = vmatpush1.msra.mxu0 %v5121
        %7879 = vmatprep.subr.mxu0 0.0
        %7880 = vmatpush1.msra.mxu0 %v5124
        %7881 = vmatprep.subr.mxu0 0.0
        %7882 = vmatpush1.msra.mxu0 %v5127
        %7883 = vmatprep.subr.mxu0 0.0
        %7884 = vmatpush1.msra.mxu0 %v5130
        %7885 = vmatprep.subr.mxu0 0.0
        %7886 = vmatpush1.msra.mxu0 %v5133
        %7887 = vmatprep.subr.mxu0 0.0
        %7888 = vmatpush1.msra.mxu0 %v5136
        %7889 = vmatprep.subr.mxu0 0.0
        %7890 = vmatpush1.msra.mxu0 %v5139
        %7891 = vmatprep.subr.mxu0 0.0
        %7892 = vmatpush1.msra.mxu0 %v5142
        %7893 = vmatprep.subr.mxu0 0.0
        %7894 = vmatpush1.msra.mxu0 %v5145
        %7895 = vmatprep.subr.mxu0 0.0
        %7896 = vmatpush1.msra.mxu0 %v5148
        %7897 = vmatprep.mubr.f32.mxu0 %v4200
        %7898 = vmatmul.mubr.f32.gmra.mrb[0].mxu0 %v4199
        %v7899 = vpop.f32.mrb[0].mxu0
        %v7900 = vadd.f32 %v7675, %v7899
        %v7901 = vpop.f32.mrb[0].mxu0
        %7902 = vmatprep.mubr.f32.mxu0 %v4212
        %7903 = vmatmul.mubr.f32.gmra.mrb[0].mxu0 %v4211
        %v7904 = vpop.f32.mrb[0].mxu0
        %v7905 = vadd.f32 %v7680, %v7904
        %v7906 = vpop.f32.mrb[0].mxu0
        %7907 = vmatprep.mubr.f32.mxu0 %v4224
        %7908 = vmatmul.mubr.f32.gmra.mrb[0].mxu0 %v4223
        %v7909 = vpop.f32.mrb[0].mxu0
        %v7910 = vadd.f32 %v7685, %v7909
        %v7911 = vpop.f32.mrb[0].mxu0
        %7912 = vmatprep.mubr.f32.mxu0 %v4236
        %7913 = vmatmul.mubr.f32.gmra.mrb[0].mxu0 %v4235
        %v7914 = vpop.f32.mrb[0].mxu0
        %v7915 = vadd.f32 %v7690, %v7914
        %v7916 = vpop.f32.mrb[0].mxu0
        %7917 = vmatprep.mubr.f32.mxu0 %v4248
        %7918 = vmatmul.mubr.f32.gmra.mrb[0].mxu0 %v4247
        %v7919 = vpop.f32.mrb[0].mxu0
        %v7920 = vadd.f32 %v7695, %v7919
        %v7921 = vpop.f32.mrb[0].mxu0
        %7922 = vmatprep.mubr.f32.mxu0 %v4260
        %7923 = vmatmul.mubr.f32.gmra.mrb[0].mxu0 %v4259
        %v7924 = vpop.f32.mrb[0].mxu0
        %v7925 = vadd.f32 %v7700, %v7924
        %v7926 = vpop.f32.mrb[0].mxu0
        %7927 = vmatprep.mubr.f32.mxu0 %v4272
        %7928 = vmatmul.mubr.f32.gmra.mrb[0].mxu0 %v4271
        %v7929 = vpop.f32.mrb[0].mxu0
        %v7930 = vadd.f32 %v7705, %v7929
        %v7931 = vpop.f32.mrb[0].mxu0
        %7932 = vmatprep.mubr.f32.mxu0 %v4284
        %7933 = vmatmul.mubr.f32.gmra.mrb[0].mxu0 %v4283
        %v7934 = vpop.f32.mrb[0].mxu0
        %v7935 = vadd.f32 %v7710, %v7934
        %v7936 = vpop.f32.mrb[0].mxu0
        %7937 = vmatprep.mubr.f32.mxu0 %v4296
        %7938 = vmatmul.mubr.f32.gmra.mrb[0].mxu0 %v4295
        %v7939 = vpop.f32.mrb[0].mxu0
        %v7940 = vadd.f32 %v7715, %v7939
        %v7941 = vpop.f32.mrb[0].mxu0
        %7942 = vmatprep.mubr.f32.mxu0 %v4308
        %7943 = vmatmul.mubr.f32.gmra.mrb[0].mxu0 %v4307
        %v7944 = vpop.f32.mrb[0].mxu0
        %v7945 = vadd.f32 %v7720, %v7944
        %v7946 = vpop.f32.mrb[0].mxu0
        %7947 = vmatprep.mubr.f32.mxu0 %v4320
        %7948 = vmatmul.mubr.f32.gmra.mrb[0].mxu0 %v4319
        %v7949 = vpop.f32.mrb[0].mxu0
        %v7950 = vadd.f32 %v7725, %v7949
        %v7951 = vpop.f32.mrb[0].mxu0
        %7952 = vmatprep.mubr.f32.mxu0 %v4332
        %7953 = vmatmul.mubr.f32.gmra.mrb[0].mxu0 %v4331
        %v7954 = vpop.f32.mrb[0].mxu0
        %v7955 = vadd.f32 %v7730, %v7954
        %v7956 = vpop.f32.mrb[0].mxu0
        %7957 = vmatprep.mubr.f32.mxu0 %v4344
        %7958 = vmatmul.mubr.f32.gmra.mrb[0].mxu0 %v4343
        %v7959 = vpop.f32.mrb[0].mxu0
        %v7960 = vadd.f32 %v7735, %v7959
        %v7961 = vpop.f32.mrb[0].mxu0
        %7962 = vmatprep.mubr.f32.mxu0 %v4356
        %7963 = vmatmul.mubr.f32.gmra.mrb[0].mxu0 %v4355
        %v7964 = vpop.f32.mrb[0].mxu0
        %v7965 = vadd.f32 %v7740, %v7964
        %v7966 = vpop.f32.mrb[0].mxu0
        %7967 = vmatprep.mubr.f32.mxu0 %v4368
        %7968 = vmatmul.mubr.f32.gmra.mrb[0].mxu0 %v4367
        %v7969 = vpop.f32.mrb[0].mxu0
        %v7970 = vadd.f32 %v7745, %v7969
        %v7971 = vpop.f32.mrb[0].mxu0
        %7972 = vmatprep.mubr.f32.mxu0 %v4380
        %7973 = vmatmul.mubr.f32.gmra.mrb[0].mxu0 %v4379
        %v7974 = vpop.f32.mrb[0].mxu0
        %v7975 = vadd.f32 %v7750, %v7974
        %v7976 = vpop.f32.mrb[0].mxu0
        %7977 = vmatprep.mubr.f32.mxu0 %v4392
        %7978 = vmatmul.mubr.f32.gmra.mrb[0].mxu0 %v4391
        %v7979 = vpop.f32.mrb[0].mxu0
        %v7980 = vadd.f32 %v7755, %v7979
        %v7981 = vpop.f32.mrb[0].mxu0
        %7982 = vmatprep.mubr.f32.mxu0 %v4404
        %7983 = vmatmul.mubr.f32.gmra.mrb[0].mxu0 %v4403
        %v7984 = vpop.f32.mrb[0].mxu0
        %v7985 = vadd.f32 %v7760, %v7984
        %v7986 = vpop.f32.mrb[0].mxu0
        %7987 = vmatprep.mubr.f32.mxu0 %v4416
        %7988 = vmatmul.mubr.f32.gmra.mrb[0].mxu0 %v4415
        %v7989 = vpop.f32.mrb[0].mxu0
        %v7990 = vadd.f32 %v7765, %v7989
        %v7991 = vpop.f32.mrb[0].mxu0
        %7992 = vmatprep.mubr.f32.mxu0 %v4428
        %7993 = vmatmul.mubr.f32.gmra.mrb[0].mxu0 %v4427
        %v7994 = vpop.f32.mrb[0].mxu0
        %v7995 = vadd.f32 %v7770, %v7994
        %v7996 = vpop.f32.mrb[0].mxu0
        %7997 = vmatprep.mubr.f32.mxu0 %v4440
        %7998 = vmatmul.mubr.f32.gmra.mrb[0].mxu0 %v4439
        %v7999 = vpop.f32.mrb[0].mxu0
        %v8000 = vadd.f32 %v7775, %v7999
        %v8001 = vpop.f32.mrb[0].mxu0
        %8002 = vmatprep.mubr.f32.mxu0 %v4452
        %8003 = vmatmul.mubr.f32.gmra.mrb[0].mxu0 %v4451
        %v8004 = vpop.f32.mrb[0].mxu0
        %v8005 = vadd.f32 %v7780, %v8004
        %v8006 = vpop.f32.mrb[0].mxu0
        %8007 = vmatprep.mubr.f32.mxu0 %v4464
        %8008 = vmatmul.mubr.f32.gmra.mrb[0].mxu0 %v4463
        %v8009 = vpop.f32.mrb[0].mxu0
        %v8010 = vadd.f32 %v7785, %v8009
        %v8011 = vpop.f32.mrb[0].mxu0
        %8012 = vmatprep.mubr.f32.mxu0 %v4476
        %8013 = vmatmul.mubr.f32.gmra.mrb[0].mxu0 %v4475
        %v8014 = vpop.f32.mrb[0].mxu0
        %v8015 = vadd.f32 %v7790, %v8014
        %v8016 = vpop.f32.mrb[0].mxu0
        %8017 = vmatprep.mubr.f32.mxu0 %v4488
        %8018 = vmatmul.mubr.f32.gmra.mrb[0].mxu0 %v4487
        %v8019 = vpop.f32.mrb[0].mxu0
        %v8020 = vadd.f32 %v7795, %v8019
        %v8021 = vpop.f32.mrb[0].mxu0
        %8022 = vmatprep.mubr.f32.mxu0 %v4500
        %8023 = vmatmul.mubr.f32.gmra.mrb[0].mxu0 %v4499
        %v8024 = vpop.f32.mrb[0].mxu0
        %v8025 = vadd.f32 %v7800, %v8024
        %v8026 = vpop.f32.mrb[0].mxu0
        %8027 = vmatprep.mubr.f32.mxu0 %v4512
        %8028 = vmatmul.mubr.f32.gmra.mrb[0].mxu0 %v4511
        %v8029 = vpop.f32.mrb[0].mxu0
        %v8030 = vadd.f32 %v7805, %v8029
        %v8031 = vpop.f32.mrb[0].mxu0
        %8032 = vmatprep.mubr.f32.mxu0 %v4524
        %8033 = vmatmul.mubr.f32.gmra.mrb[0].mxu0 %v4523
        %v8034 = vpop.f32.mrb[0].mxu0
        %v8035 = vadd.f32 %v7810, %v8034
        %v8036 = vpop.f32.mrb[0].mxu0
        %8037 = vmatprep.mubr.f32.mxu0 %v4536
        %8038 = vmatmul.mubr.f32.gmra.mrb[0].mxu0 %v4535
        %v8039 = vpop.f32.mrb[0].mxu0
        %v8040 = vadd.f32 %v7815, %v8039
        %v8041 = vpop.f32.mrb[0].mxu0
        %8042 = vmatprep.mubr.f32.mxu0 %v4548
        %8043 = vmatmul.mubr.f32.gmra.mrb[0].mxu0 %v4547
        %v8044 = vpop.f32.mrb[0].mxu0
        %v8045 = vadd.f32 %v7820, %v8044
        %v8046 = vpop.f32.mrb[0].mxu0
        %8047 = vmatprep.mubr.f32.mxu0 %v4560
        %8048 = vmatmul.mubr.f32.gmra.mrb[0].mxu0 %v4559
        %v8049 = vpop.f32.mrb[0].mxu0
        %v8050 = vadd.f32 %v7825, %v8049
        %v8051 = vpop.f32.mrb[0].mxu0
        %8052 = vmatprep.mubr.f32.mxu0 %v4572
        %8053 = vmatmul.mubr.f32.gmra.mrb[0].mxu0 %v4571
        %v8054 = vpop.f32.mrb[0].mxu0
        %v8055 = vadd.f32 %v7830, %v8054
        %v8056 = vpop.f32.mrb[0].mxu0
        %8057 = vdwg.mxu0
        %v8058 = vld [vmem:[%s332] sm:$0xff]
        %v8059 = vld [vmem:[%s332 + $0x8] sm:$0xff]
        %v8060 = vld [vmem:[%s332 + $0x10] sm:$0xff]
        %v8061 = vld [vmem:[%s332 + $0x18] sm:$0xff]
        %v8062 = vld [vmem:[%s332 + $0x20] sm:$0xff]
        %v8063 = vld [vmem:[%s332 + $0x28] sm:$0xff]
        %v8064 = vld [vmem:[%s332 + $0x30] sm:$0xff]
        %v8065 = vld [vmem:[%s332 + $0x38] sm:$0xff]
        %v8066 = vld [vmem:[%s332 + $0x40] sm:$0xff]
        %v8067 = vld [vmem:[%s332 + $0x48] sm:$0xff]
        %v8068 = vld [vmem:[%s332 + $0x50] sm:$0xff]
        %v8069 = vld [vmem:[%s332 + $0x58] sm:$0xff]
        %v8070 = vld [vmem:[%s332 + $0x60] sm:$0xff]
        %v8071 = vld [vmem:[%s332 + $0x68] sm:$0xff]
        %v8072 = vld [vmem:[%s332 + $0x70] sm:$0xff]
        %v8073 = vld [vmem:[%s332 + $0x78] sm:$0xff]
        %v8074 = vld [vmem:[%s332 + $0x80] sm:$0xff]
        %v8075 = vld [vmem:[%s332 + $0x88] sm:$0xff]
        %v8076 = vld [vmem:[%s332 + $0x90] sm:$0xff]
        %v8077 = vld [vmem:[%s332 + $0x98] sm:$0xff]
        %v8078 = vld [vmem:[%s332 + $0xa0] sm:$0xff]
        %v8079 = vld [vmem:[%s332 + $0xa8] sm:$0xff]
        %v8080 = vld [vmem:[%s332 + $0xb0] sm:$0xff]
        %v8081 = vld [vmem:[%s332 + $0xb8] sm:$0xff]
        %v8082 = vld [vmem:[%s332 + $0xc0] sm:$0xff]
        %v8083 = vld [vmem:[%s332 + $0xc8] sm:$0xff]
        %v8084 = vld [vmem:[%s332 + $0xd0] sm:$0xff]
        %v8085 = vld [vmem:[%s332 + $0xd8] sm:$0xff]
        %v8086 = vld [vmem:[%s332 + $0xe0] sm:$0xff]
        %v8087 = vld [vmem:[%s332 + $0xe8] sm:$0xff]
        %v8088 = vld [vmem:[%s332 + $0xf0] sm:$0xff]
        %v8089 = vld [vmem:[%s332 + $0xf8] sm:$0xff]
        %v8090 = vld [vmem:[%s332 + $0x100] sm:$0xff]
        %v8091 = vld [vmem:[%s332 + $0x108] sm:$0xff]
        %v8092 = vld [vmem:[%s332 + $0x110] sm:$0xff]
        %v8093 = vld [vmem:[%s332 + $0x118] sm:$0xff]
        %v8094 = vld [vmem:[%s332 + $0x120] sm:$0xff]
        %v8095 = vld [vmem:[%s332 + $0x128] sm:$0xff]
        %v8096 = vld [vmem:[%s332 + $0x130] sm:$0xff]
        %v8097 = vld [vmem:[%s332 + $0x138] sm:$0xff]
        %v8098 = vld [vmem:[%s332 + $0x140] sm:$0xff]
        %v8099 = vld [vmem:[%s332 + $0x148] sm:$0xff]
        %v8100 = vld [vmem:[%s332 + $0x150] sm:$0xff]
        %v8101 = vld [vmem:[%s332 + $0x158] sm:$0xff]
        %v8102 = vld [vmem:[%s332 + $0x160] sm:$0xff]
        %v8103 = vld [vmem:[%s332 + $0x168] sm:$0xff]
        %v8104 = vld [vmem:[%s332 + $0x170] sm:$0xff]
        %v8105 = vld [vmem:[%s332 + $0x178] sm:$0xff]
        %v8106 = vld [vmem:[%s332 + $0x180] sm:$0xff]
        %v8107 = vld [vmem:[%s332 + $0x188] sm:$0xff]
        %v8108 = vld [vmem:[%s332 + $0x190] sm:$0xff]
        %v8109 = vld [vmem:[%s332 + $0x198] sm:$0xff]
        %v8110 = vld [vmem:[%s332 + $0x1a0] sm:$0xff]
        %v8111 = vld [vmem:[%s332 + $0x1a8] sm:$0xff]
        %v8112 = vld [vmem:[%s332 + $0x1b0] sm:$0xff]
        %v8113 = vld [vmem:[%s332 + $0x1b8] sm:$0xff]
        %v8114 = vld [vmem:[%s332 + $0x1c0] sm:$0xff]
        %v8115 = vld [vmem:[%s332 + $0x1c8] sm:$0xff]
        %v8116 = vld [vmem:[%s332 + $0x1d0] sm:$0xff]
        %v8117 = vld [vmem:[%s332 + $0x1d8] sm:$0xff]
        %v8118 = vld [vmem:[%s332 + $0x1e0] sm:$0xff]
        %v8119 = vld [vmem:[%s332 + $0x1e8] sm:$0xff]
        %v8120 = vld [vmem:[%s332 + $0x1f0] sm:$0xff]
        %v8121 = vld [vmem:[%s332 + $0x1f8] sm:$0xff]
        %v8122 = vld [vmem:[%s332 + $0x200] sm:$0xff]
        %v8123 = vld [vmem:[%s332 + $0x208] sm:$0xff]
        %v8124 = vld [vmem:[%s332 + $0x210] sm:$0xff]
        %v8125 = vld [vmem:[%s332 + $0x218] sm:$0xff]
        %v8126 = vld [vmem:[%s332 + $0x220] sm:$0xff]
        %v8127 = vld [vmem:[%s332 + $0x228] sm:$0xff]
        %v8128 = vld [vmem:[%s332 + $0x230] sm:$0xff]
        %v8129 = vld [vmem:[%s332 + $0x238] sm:$0xff]
        %v8130 = vld [vmem:[%s332 + $0x240] sm:$0xff]
        %v8131 = vld [vmem:[%s332 + $0x248] sm:$0xff]
        %v8132 = vld [vmem:[%s332 + $0x250] sm:$0xff]
        %v8133 = vld [vmem:[%s332 + $0x258] sm:$0xff]
        %v8134 = vld [vmem:[%s332 + $0x260] sm:$0xff]
        %v8135 = vld [vmem:[%s332 + $0x268] sm:$0xff]
        %v8136 = vld [vmem:[%s332 + $0x270] sm:$0xff]
        %v8137 = vld [vmem:[%s332 + $0x278] sm:$0xff]
        %v8138 = vld [vmem:[%s332 + $0x280] sm:$0xff]
        %v8139 = vld [vmem:[%s332 + $0x288] sm:$0xff]
        %v8140 = vld [vmem:[%s332 + $0x290] sm:$0xff]
        %v8141 = vld [vmem:[%s332 + $0x298] sm:$0xff]
        %v8142 = vld [vmem:[%s332 + $0x2a0] sm:$0xff]
        %v8143 = vld [vmem:[%s332 + $0x2a8] sm:$0xff]
        %v8144 = vld [vmem:[%s332 + $0x2b0] sm:$0xff]
        %v8145 = vld [vmem:[%s332 + $0x2b8] sm:$0xff]
        %v8146 = vld [vmem:[%s332 + $0x2c0] sm:$0xff]
        %v8147 = vld [vmem:[%s332 + $0x2c8] sm:$0xff]
        %v8148 = vld [vmem:[%s332 + $0x2d0] sm:$0xff]
        %v8149 = vld [vmem:[%s332 + $0x2d8] sm:$0xff]
        %v8150 = vld [vmem:[%s332 + $0x2e0] sm:$0xff]
        %v8151 = vld [vmem:[%s332 + $0x2e8] sm:$0xff]
        %v8152 = vld [vmem:[%s332 + $0x2f0] sm:$0xff]
        %v8153 = vld [vmem:[%s332 + $0x2f8] sm:$0xff]
        %vm8154 = vcmp.ge.u32.totalorder %v8058, 858993459
        %vm8155 = vcmp.ge.u32.totalorder %v8059, 858993459
        %vm8156 = vcmp.ge.u32.totalorder %v8060, 858993459
        %vm8157 = vcmp.ge.u32.totalorder %v8061, 858993459
        %vm8158 = vcmp.ge.u32.totalorder %v8062, 858993459
        %vm8159 = vcmp.ge.u32.totalorder %v8063, 858993459
        %vm8160 = vcmp.ge.u32.totalorder %v8064, 858993459
        %vm8161 = vcmp.ge.u32.totalorder %v8065, 858993459
        %vm8162 = vcmp.ge.u32.totalorder %v8066, 858993459
        %vm8163 = vcmp.ge.u32.totalorder %v8067, 858993459
        %vm8164 = vcmp.ge.u32.totalorder %v8068, 858993459
        %vm8165 = vcmp.ge.u32.totalorder %v8069, 858993459
        %vm8166 = vcmp.ge.u32.totalorder %v8070, 858993459
        %vm8167 = vcmp.ge.u32.totalorder %v8071, 858993459
        %vm8168 = vcmp.ge.u32.totalorder %v8072, 858993459
        %vm8169 = vcmp.ge.u32.totalorder %v8073, 858993459
        %vm8170 = vcmp.ge.u32.totalorder %v8074, 858993459
        %vm8171 = vcmp.ge.u32.totalorder %v8075, 858993459
        %vm8172 = vcmp.ge.u32.totalorder %v8076, 858993459
        %vm8173 = vcmp.ge.u32.totalorder %v8077, 858993459
        %vm8174 = vcmp.ge.u32.totalorder %v8078, 858993459
        %vm8175 = vcmp.ge.u32.totalorder %v8079, 858993459
        %vm8176 = vcmp.ge.u32.totalorder %v8080, 858993459
        %vm8177 = vcmp.ge.u32.totalorder %v8081, 858993459
        %vm8178 = vcmp.ge.u32.totalorder %v8082, 858993459
        %vm8179 = vcmp.ge.u32.totalorder %v8083, 858993459
        %vm8180 = vcmp.ge.u32.totalorder %v8084, 858993459
        %vm8181 = vcmp.ge.u32.totalorder %v8085, 858993459
        %vm8182 = vcmp.ge.u32.totalorder %v8086, 858993459
        %vm8183 = vcmp.ge.u32.totalorder %v8087, 858993459
        %vm8184 = vcmp.ge.u32.totalorder %v8088, 858993459
        %vm8185 = vcmp.ge.u32.totalorder %v8089, 858993459
        %vm8186 = vcmp.ge.u32.totalorder %v8090, 858993459
        %vm8187 = vcmp.ge.u32.totalorder %v8091, 858993459
        %vm8188 = vcmp.ge.u32.totalorder %v8092, 858993459
        %vm8189 = vcmp.ge.u32.totalorder %v8093, 858993459
        %vm8190 = vcmp.ge.u32.totalorder %v8094, 858993459
        %vm8191 = vcmp.ge.u32.totalorder %v8095, 858993459
        %vm8192 = vcmp.ge.u32.totalorder %v8096, 858993459
        %vm8193 = vcmp.ge.u32.totalorder %v8097, 858993459
        %vm8194 = vcmp.ge.u32.totalorder %v8098, 858993459
        %vm8195 = vcmp.ge.u32.totalorder %v8099, 858993459
        %vm8196 = vcmp.ge.u32.totalorder %v8100, 858993459
        %vm8197 = vcmp.ge.u32.totalorder %v8101, 858993459
        %vm8198 = vcmp.ge.u32.totalorder %v8102, 858993459
        %vm8199 = vcmp.ge.u32.totalorder %v8103, 858993459
        %vm8200 = vcmp.ge.u32.totalorder %v8104, 858993459
        %vm8201 = vcmp.ge.u32.totalorder %v8105, 858993459
        %vm8202 = vcmp.ge.u32.totalorder %v8106, 858993459
        %vm8203 = vcmp.ge.u32.totalorder %v8107, 858993459
        %vm8204 = vcmp.ge.u32.totalorder %v8108, 858993459
        %vm8205 = vcmp.ge.u32.totalorder %v8109, 858993459
        %vm8206 = vcmp.ge.u32.totalorder %v8110, 858993459
        %vm8207 = vcmp.ge.u32.totalorder %v8111, 858993459
        %vm8208 = vcmp.ge.u32.totalorder %v8112, 858993459
        %vm8209 = vcmp.ge.u32.totalorder %v8113, 858993459
        %vm8210 = vcmp.ge.u32.totalorder %v8114, 858993459
        %vm8211 = vcmp.ge.u32.totalorder %v8115, 858993459
        %vm8212 = vcmp.ge.u32.totalorder %v8116, 858993459
        %vm8213 = vcmp.ge.u32.totalorder %v8117, 858993459
        %vm8214 = vcmp.ge.u32.totalorder %v8118, 858993459
        %vm8215 = vcmp.ge.u32.totalorder %v8119, 858993459
        %vm8216 = vcmp.ge.u32.totalorder %v8120, 858993459
        %vm8217 = vcmp.ge.u32.totalorder %v8121, 858993459
        %vm8218 = vcmp.ge.u32.totalorder %v8122, 858993459
        %vm8219 = vcmp.ge.u32.totalorder %v8123, 858993459
        %vm8220 = vcmp.ge.u32.totalorder %v8124, 858993459
        %vm8221 = vcmp.ge.u32.totalorder %v8125, 858993459
        %vm8222 = vcmp.ge.u32.totalorder %v8126, 858993459
        %vm8223 = vcmp.ge.u32.totalorder %v8127, 858993459
        %vm8224 = vcmp.ge.u32.totalorder %v8128, 858993459
        %vm8225 = vcmp.ge.u32.totalorder %v8129, 858993459
        %vm8226 = vcmp.ge.u32.totalorder %v8130, 858993459
        %vm8227 = vcmp.ge.u32.totalorder %v8131, 858993459
        %vm8228 = vcmp.ge.u32.totalorder %v8132, 858993459
        %vm8229 = vcmp.ge.u32.totalorder %v8133, 858993459
        %vm8230 = vcmp.ge.u32.totalorder %v8134, 858993459
        %vm8231 = vcmp.ge.u32.totalorder %v8135, 858993459
        %vm8232 = vcmp.ge.u32.totalorder %v8136, 858993459
        %vm8233 = vcmp.ge.u32.totalorder %v8137, 858993459
        %vm8234 = vcmp.ge.u32.totalorder %v8138, 858993459
        %vm8235 = vcmp.ge.u32.totalorder %v8139, 858993459
        %vm8236 = vcmp.ge.u32.totalorder %v8140, 858993459
        %vm8237 = vcmp.ge.u32.totalorder %v8141, 858993459
        %vm8238 = vcmp.ge.u32.totalorder %v8142, 858993459
        %vm8239 = vcmp.ge.u32.totalorder %v8143, 858993459
        %vm8240 = vcmp.ge.u32.totalorder %v8144, 858993459
        %vm8241 = vcmp.ge.u32.totalorder %v8145, 858993459
        %vm8242 = vcmp.ge.u32.totalorder %v8146, 858993459
        %vm8243 = vcmp.ge.u32.totalorder %v8147, 858993459
        %vm8244 = vcmp.ge.u32.totalorder %v8148, 858993459
        %vm8245 = vcmp.ge.u32.totalorder %v8149, 858993459
        %vm8246 = vcmp.ge.u32.totalorder %v8150, 858993459
        %vm8247 = vcmp.ge.u32.totalorder %v8151, 858993459
        %vm8248 = vcmp.ge.u32.totalorder %v8152, 858993459
        %vm8249 = vcmp.ge.u32.totalorder %v8153, 858993459
        %v8250 = vmul.f32 %v6518, 1.25
        %v8251 = vmul.f32 %v6520, 1.25
        %v8252 = vmul.f32 %v7900, 1.25
        %v8253 = vmul.f32 %v6524, 1.25
        %v8254 = vmul.f32 %v6526, 1.25
        %v8255 = vmul.f32 %v7905, 1.25
        %v8256 = vmul.f32 %v6530, 1.25
        %v8257 = vmul.f32 %v6532, 1.25
        %v8258 = vmul.f32 %v7910, 1.25
        %v8259 = vmul.f32 %v6536, 1.25
        %v8260 = vmul.f32 %v6538, 1.25
        %v8261 = vmul.f32 %v7915, 1.25
        %v8262 = vmul.f32 %v6542, 1.25
        %v8263 = vmul.f32 %v6544, 1.25
        %v8264 = vmul.f32 %v7920, 1.25
        %v8265 = vmul.f32 %v6548, 1.25
        %v8266 = vmul.f32 %v6550, 1.25
        %v8267 = vmul.f32 %v7925, 1.25
        %v8268 = vmul.f32 %v6554, 1.25
        %v8269 = vmul.f32 %v6556, 1.25
        %v8270 = vmul.f32 %v7930, 1.25
        %v8271 = vmul.f32 %v6560, 1.25
        %v8272 = vmul.f32 %v6562, 1.25
        %v8273 = vmul.f32 %v7935, 1.25
        %v8274 = vmul.f32 %v6566, 1.25
        %v8275 = vmul.f32 %v6568, 1.25
        %v8276 = vmul.f32 %v7940, 1.25
        %v8277 = vmul.f32 %v6572, 1.25
        %v8278 = vmul.f32 %v6574, 1.25
        %v8279 = vmul.f32 %v7945, 1.25
        %v8280 = vmul.f32 %v6578, 1.25
        %v8281 = vmul.f32 %v6580, 1.25
        %v8282 = vmul.f32 %v7950, 1.25
        %v8283 = vmul.f32 %v6584, 1.25
        %v8284 = vmul.f32 %v6586, 1.25
        %v8285 = vmul.f32 %v7955, 1.25
        %v8286 = vmul.f32 %v6590, 1.25
        %v8287 = vmul.f32 %v6592, 1.25
        %v8288 = vmul.f32 %v7960, 1.25
        %v8289 = vmul.f32 %v6596, 1.25
        %v8290 = vmul.f32 %v6598, 1.25
        %v8291 = vmul.f32 %v7965, 1.25
        %v8292 = vmul.f32 %v6602, 1.25
        %v8293 = vmul.f32 %v6604, 1.25
        %v8294 = vmul.f32 %v7970, 1.25
        %v8295 = vmul.f32 %v6608, 1.25
        %v8296 = vmul.f32 %v6610, 1.25
        %v8297 = vmul.f32 %v7975, 1.25
        %v8298 = vmul.f32 %v6614, 1.25
        %v8299 = vmul.f32 %v6616, 1.25
        %v8300 = vmul.f32 %v7980, 1.25
        %v8301 = vmul.f32 %v6620, 1.25
        %v8302 = vmul.f32 %v6622, 1.25
        %v8303 = vmul.f32 %v7985, 1.25
        %v8304 = vmul.f32 %v6626, 1.25
        %v8305 = vmul.f32 %v6628, 1.25
        %v8306 = vmul.f32 %v7990, 1.25
        %v8307 = vmul.f32 %v6632, 1.25
        %v8308 = vmul.f32 %v6634, 1.25
        %v8309 = vmul.f32 %v7995, 1.25
        %v8310 = vmul.f32 %v6638, 1.25
        %v8311 = vmul.f32 %v6640, 1.25
        %v8312 = vmul.f32 %v8000, 1.25
        %v8313 = vmul.f32 %v6644, 1.25
        %v8314 = vmul.f32 %v6646, 1.25
        %v8315 = vmul.f32 %v8005, 1.25
        %v8316 = vmul.f32 %v6650, 1.25
        %v8317 = vmul.f32 %v6652, 1.25
        %v8318 = vmul.f32 %v8010, 1.25
        %v8319 = vmul.f32 %v6656, 1.25
        %v8320 = vmul.f32 %v6658, 1.25
        %v8321 = vmul.f32 %v8015, 1.25
        %v8322 = vmul.f32 %v6662, 1.25
        %v8323 = vmul.f32 %v6664, 1.25
        %v8324 = vmul.f32 %v8020, 1.25
        %v8325 = vmul.f32 %v6668, 1.25
        %v8326 = vmul.f32 %v6670, 1.25
        %v8327 = vmul.f32 %v8025, 1.25
        %v8328 = vmul.f32 %v6674, 1.25
        %v8329 = vmul.f32 %v6676, 1.25
        %v8330 = vmul.f32 %v8030, 1.25
        %v8331 = vmul.f32 %v6680, 1.25
        %v8332 = vmul.f32 %v6682, 1.25
        %v8333 = vmul.f32 %v8035, 1.25
        %v8334 = vmul.f32 %v6686, 1.25
        %v8335 = vmul.f32 %v6688, 1.25
        %v8336 = vmul.f32 %v8040, 1.25
        %v8337 = vmul.f32 %v6692, 1.25
        %v8338 = vmul.f32 %v6694, 1.25
        %v8339 = vmul.f32 %v8045, 1.25
        %v8340 = vmul.f32 %v6698, 1.25
        %v8341 = vmul.f32 %v6700, 1.25
        %v8342 = vmul.f32 %v8050, 1.25
        %v8343 = vmul.f32 %v6704, 1.25
        %v8344 = vmul.f32 %v6706, 1.25
        %v8345 = vmul.f32 %v8055, 1.25
        %v8346 = vsel %vm8154, %v8250, 0.0
        %v8347 = vsel %vm8155, %v8251, 0.0
        %v8348 = vsel %vm8156, %v8252, 0.0
        %v8349 = vsel %vm8157, %v8253, 0.0
        %v8350 = vsel %vm8158, %v8254, 0.0
        %v8351 = vsel %vm8159, %v8255, 0.0
        %v8352 = vsel %vm8160, %v8256, 0.0
        %v8353 = vsel %vm8161, %v8257, 0.0
        %v8354 = vsel %vm8162, %v8258, 0.0
        %v8355 = vsel %vm8163, %v8259, 0.0
        %v8356 = vsel %vm8164, %v8260, 0.0
        %v8357 = vsel %vm8165, %v8261, 0.0
        %v8358 = vsel %vm8166, %v8262, 0.0
        %v8359 = vsel %vm8167, %v8263, 0.0
        %v8360 = vsel %vm8168, %v8264, 0.0
        %v8361 = vsel %vm8169, %v8265, 0.0
        %v8362 = vsel %vm8170, %v8266, 0.0
        %v8363 = vsel %vm8171, %v8267, 0.0
        %v8364 = vsel %vm8172, %v8268, 0.0
        %v8365 = vsel %vm8173, %v8269, 0.0
        %v8366 = vsel %vm8174, %v8270, 0.0
        %v8367 = vsel %vm8175, %v8271, 0.0
        %v8368 = vsel %vm8176, %v8272, 0.0
        %v8369 = vsel %vm8177, %v8273, 0.0
        %v8370 = vsel %vm8178, %v8274, 0.0
        %v8371 = vsel %vm8179, %v8275, 0.0
        %v8372 = vsel %vm8180, %v8276, 0.0
        %v8373 = vsel %vm8181, %v8277, 0.0
        %v8374 = vsel %vm8182, %v8278, 0.0
        %v8375 = vsel %vm8183, %v8279, 0.0
        %v8376 = vsel %vm8184, %v8280, 0.0
        %v8377 = vsel %vm8185, %v8281, 0.0
        %v8378 = vsel %vm8186, %v8282, 0.0
        %v8379 = vsel %vm8187, %v8283, 0.0
        %v8380 = vsel %vm8188, %v8284, 0.0
        %v8381 = vsel %vm8189, %v8285, 0.0
        %v8382 = vsel %vm8190, %v8286, 0.0
        %v8383 = vsel %vm8191, %v8287, 0.0
        %v8384 = vsel %vm8192, %v8288, 0.0
        %v8385 = vsel %vm8193, %v8289, 0.0
        %v8386 = vsel %vm8194, %v8290, 0.0
        %v8387 = vsel %vm8195, %v8291, 0.0
        %v8388 = vsel %vm8196, %v8292, 0.0
        %v8389 = vsel %vm8197, %v8293, 0.0
        %v8390 = vsel %vm8198, %v8294, 0.0
        %v8391 = vsel %vm8199, %v8295, 0.0
        %v8392 = vsel %vm8200, %v8296, 0.0
        %v8393 = vsel %vm8201, %v8297, 0.0
        %v8394 = vsel %vm8202, %v8298, 0.0
        %v8395 = vsel %vm8203, %v8299, 0.0
        %v8396 = vsel %vm8204, %v8300, 0.0
        %v8397 = vsel %vm8205, %v8301, 0.0
        %v8398 = vsel %vm8206, %v8302, 0.0
        %v8399 = vsel %vm8207, %v8303, 0.0
        %v8400 = vsel %vm8208, %v8304, 0.0
        %v8401 = vsel %vm8209, %v8305, 0.0
        %v8402 = vsel %vm8210, %v8306, 0.0
        %v8403 = vsel %vm8211, %v8307, 0.0
        %v8404 = vsel %vm8212, %v8308, 0.0
        %v8405 = vsel %vm8213, %v8309, 0.0
        %v8406 = vsel %vm8214, %v8310, 0.0
        %v8407 = vsel %vm8215, %v8311, 0.0
        %v8408 = vsel %vm8216, %v8312, 0.0
        %v8409 = vsel %vm8217, %v8313, 0.0
        %v8410 = vsel %vm8218, %v8314, 0.0
        %v8411 = vsel %vm8219, %v8315, 0.0
        %v8412 = vsel %vm8220, %v8316, 0.0
        %v8413 = vsel %vm8221, %v8317, 0.0
        %v8414 = vsel %vm8222, %v8318, 0.0
        %v8415 = vsel %vm8223, %v8319, 0.0
        %v8416 = vsel %vm8224, %v8320, 0.0
        %v8417 = vsel %vm8225, %v8321, 0.0
        %v8418 = vsel %vm8226, %v8322, 0.0
        %v8419 = vsel %vm8227, %v8323, 0.0
        %v8420 = vsel %vm8228, %v8324, 0.0
        %v8421 = vsel %vm8229, %v8325, 0.0
        %v8422 = vsel %vm8230, %v8326, 0.0
        %v8423 = vsel %vm8231, %v8327, 0.0
        %v8424 = vsel %vm8232, %v8328, 0.0
        %v8425 = vsel %vm8233, %v8329, 0.0
        %v8426 = vsel %vm8234, %v8330, 0.0
        %v8427 = vsel %vm8235, %v8331, 0.0
        %v8428 = vsel %vm8236, %v8332, 0.0
        %v8429 = vsel %vm8237, %v8333, 0.0
        %v8430 = vsel %vm8238, %v8334, 0.0
        %v8431 = vsel %vm8239, %v8335, 0.0
        %v8432 = vsel %vm8240, %v8336, 0.0
        %v8433 = vsel %vm8241, %v8337, 0.0
        %v8434 = vsel %vm8242, %v8338, 0.0
        %v8435 = vsel %vm8243, %v8339, 0.0
        %v8436 = vsel %vm8244, %v8340, 0.0
        %v8437 = vsel %vm8245, %v8341, 0.0
        %v8438 = vsel %vm8246, %v8342, 0.0
        %v8439 = vsel %vm8247, %v8343, 0.0
        %v8440 = vsel %vm8248, %v8344, 0.0
        %v8441 = vsel %vm8249, %v8345, 0.0
        %8442 = vst [vmem:[%s365] sm:$0xff] %v8346
        %8443 = vst [vmem:[%s365 + $0x8] sm:$0xff] %v8347
        %8444 = vst [vmem:[%s365 + $0x10] sm:$0xff] %v8348
        %8445 = vst [vmem:[%s365 + $0x18] sm:$0xff] %v8349
        %8446 = vst [vmem:[%s365 + $0x20] sm:$0xff] %v8350
        %8447 = vst [vmem:[%s365 + $0x28] sm:$0xff] %v8351
        %8448 = vst [vmem:[%s365 + $0x30] sm:$0xff] %v8352
        %8449 = vst [vmem:[%s365 + $0x38] sm:$0xff] %v8353
        %8450 = vst [vmem:[%s365 + $0x40] sm:$0xff] %v8354
        %8451 = vst [vmem:[%s365 + $0x48] sm:$0xff] %v8355
        %8452 = vst [vmem:[%s365 + $0x50] sm:$0xff] %v8356
        %8453 = vst [vmem:[%s365 + $0x58] sm:$0xff] %v8357
        %8454 = vst [vmem:[%s365 + $0x60] sm:$0xff] %v8358
        %8455 = vst [vmem:[%s365 + $0x68] sm:$0xff] %v8359
        %8456 = vst [vmem:[%s365 + $0x70] sm:$0xff] %v8360
        %8457 = vst [vmem:[%s365 + $0x78] sm:$0xff] %v8361
        %8458 = vst [vmem:[%s365 + $0x80] sm:$0xff] %v8362
        %8459 = vst [vmem:[%s365 + $0x88] sm:$0xff] %v8363
        %8460 = vst [vmem:[%s365 + $0x90] sm:$0xff] %v8364
        %8461 = vst [vmem:[%s365 + $0x98] sm:$0xff] %v8365
        %8462 = vst [vmem:[%s365 + $0xa0] sm:$0xff] %v8366
        %8463 = vst [vmem:[%s365 + $0xa8] sm:$0xff] %v8367
        %8464 = vst [vmem:[%s365 + $0xb0] sm:$0xff] %v8368
        %8465 = vst [vmem:[%s365 + $0xb8] sm:$0xff] %v8369
        %8466 = vst [vmem:[%s365 + $0xc0] sm:$0xff] %v8370
        %8467 = vst [vmem:[%s365 + $0xc8] sm:$0xff] %v8371
        %8468 = vst [vmem:[%s365 + $0xd0] sm:$0xff] %v8372
        %8469 = vst [vmem:[%s365 + $0xd8] sm:$0xff] %v8373
        %8470 = vst [vmem:[%s365 + $0xe0] sm:$0xff] %v8374
        %8471 = vst [vmem:[%s365 + $0xe8] sm:$0xff] %v8375
        %8472 = vst [vmem:[%s365 + $0xf0] sm:$0xff] %v8376
        %8473 = vst [vmem:[%s365 + $0xf8] sm:$0xff] %v8377
        %8474 = vst [vmem:[%s365 + $0x100] sm:$0xff] %v8378
        %8475 = vst [vmem:[%s365 + $0x108] sm:$0xff] %v8379
        %8476 = vst [vmem:[%s365 + $0x110] sm:$0xff] %v8380
        %8477 = vst [vmem:[%s365 + $0x118] sm:$0xff] %v8381
        %8478 = vst [vmem:[%s365 + $0x120] sm:$0xff] %v8382
        %8479 = vst [vmem:[%s365 + $0x128] sm:$0xff] %v8383
        %8480 = vst [vmem:[%s365 + $0x130] sm:$0xff] %v8384
        %8481 = vst [vmem:[%s365 + $0x138] sm:$0xff] %v8385
        %8482 = vst [vmem:[%s365 + $0x140] sm:$0xff] %v8386
        %8483 = vst [vmem:[%s365 + $0x148] sm:$0xff] %v8387
        %8484 = vst [vmem:[%s365 + $0x150] sm:$0xff] %v8388
        %8485 = vst [vmem:[%s365 + $0x158] sm:$0xff] %v8389
        %8486 = vst [vmem:[%s365 + $0x160] sm:$0xff] %v8390
        %8487 = vst [vmem:[%s365 + $0x168] sm:$0xff] %v8391
        %8488 = vst [vmem:[%s365 + $0x170] sm:$0xff] %v8392
        %8489 = vst [vmem:[%s365 + $0x178] sm:$0xff] %v8393
        %8490 = vst [vmem:[%s365 + $0x180] sm:$0xff] %v8394
        %8491 = vst [vmem:[%s365 + $0x188] sm:$0xff] %v8395
        %8492 = vst [vmem:[%s365 + $0x190] sm:$0xff] %v8396
        %8493 = vst [vmem:[%s365 + $0x198] sm:$0xff] %v8397
        %8494 = vst [vmem:[%s365 + $0x1a0] sm:$0xff] %v8398
        %8495 = vst [vmem:[%s365 + $0x1a8] sm:$0xff] %v8399
        %8496 = vst [vmem:[%s365 + $0x1b0] sm:$0xff] %v8400
        %8497 = vst [vmem:[%s365 + $0x1b8] sm:$0xff] %v8401
        %8498 = vst [vmem:[%s365 + $0x1c0] sm:$0xff] %v8402
        %8499 = vst [vmem:[%s365 + $0x1c8] sm:$0xff] %v8403
        %8500 = vst [vmem:[%s365 + $0x1d0] sm:$0xff] %v8404
        %8501 = vst [vmem:[%s365 + $0x1d8] sm:$0xff] %v8405
        %8502 = vst [vmem:[%s365 + $0x1e0] sm:$0xff] %v8406
        %8503 = vst [vmem:[%s365 + $0x1e8] sm:$0xff] %v8407
        %8504 = vst [vmem:[%s365 + $0x1f0] sm:$0xff] %v8408
        %8505 = vst [vmem:[%s365 + $0x1f8] sm:$0xff] %v8409
        %8506 = vst [vmem:[%s365 + $0x200] sm:$0xff] %v8410
        %8507 = vst [vmem:[%s365 + $0x208] sm:$0xff] %v8411
        %8508 = vst [vmem:[%s365 + $0x210] sm:$0xff] %v8412
        %8509 = vst [vmem:[%s365 + $0x218] sm:$0xff] %v8413
        %8510 = vst [vmem:[%s365 + $0x220] sm:$0xff] %v8414
        %8511 = vst [vmem:[%s365 + $0x228] sm:$0xff] %v8415
        %8512 = vst [vmem:[%s365 + $0x230] sm:$0xff] %v8416
        %8513 = vst [vmem:[%s365 + $0x238] sm:$0xff] %v8417
        %8514 = vst [vmem:[%s365 + $0x240] sm:$0xff] %v8418
        %8515 = vst [vmem:[%s365 + $0x248] sm:$0xff] %v8419
        %8516 = vst [vmem:[%s365 + $0x250] sm:$0xff] %v8420
        %8517 = vst [vmem:[%s365 + $0x258] sm:$0xff] %v8421
        %8518 = vst [vmem:[%s365 + $0x260] sm:$0xff] %v8422
        %8519 = vst [vmem:[%s365 + $0x268] sm:$0xff] %v8423
        %8520 = vst [vmem:[%s365 + $0x270] sm:$0xff] %v8424
        %8521 = vst [vmem:[%s365 + $0x278] sm:$0xff] %v8425
        %8522 = vst [vmem:[%s365 + $0x280] sm:$0xff] %v8426
        %8523 = vst [vmem:[%s365 + $0x288] sm:$0xff] %v8427
        %8524 = vst [vmem:[%s365 + $0x290] sm:$0xff] %v8428
        %8525 = vst [vmem:[%s365 + $0x298] sm:$0xff] %v8429
        %8526 = vst [vmem:[%s365 + $0x2a0] sm:$0xff] %v8430
        %8527 = vst [vmem:[%s365 + $0x2a8] sm:$0xff] %v8431
        %8528 = vst [vmem:[%s365 + $0x2b0] sm:$0xff] %v8432
        %8529 = vst [vmem:[%s365 + $0x2b8] sm:$0xff] %v8433
        %8530 = vst [vmem:[%s365 + $0x2c0] sm:$0xff] %v8434
        %8531 = vst [vmem:[%s365 + $0x2c8] sm:$0xff] %v8435
        %8532 = vst [vmem:[%s365 + $0x2d0] sm:$0xff] %v8436
        %8533 = vst [vmem:[%s365 + $0x2d8] sm:$0xff] %v8437
        %8534 = vst [vmem:[%s365 + $0x2e0] sm:$0xff] %v8438
        %8535 = vst [vmem:[%s365 + $0x2e8] sm:$0xff] %v8439
        %8536 = vst [vmem:[%s365 + $0x2f0] sm:$0xff] %v8440
        %8537 = vst [vmem:[%s365 + $0x2f8] sm:$0xff] %v8441
        %s8538 = sand.u32 %s172, 1
        %s8539 = scalar_lea.sflag [#allocation4], %s8538
        %s8540 = sand.u32 %s172, 1
        %s8541 = smul.addr %s8540, 768
        %s8542 = scalar_lea.vmem [#allocation13], %s8541
        // Predicated region
        $region69: #{tpu_custom_call.1} parent=43 // pred_check
          %p8543 = pneg %p182
        $region70: #{tpu_custom_call.1} parent=43 // pred_check_branch
          %8545 = sbr.rel (%p8543) target = $region72
        $region71: #{tpu_custom_call.1} parent=43 // pred_region
          %s8546 = smul.u32 32, %s28
          %s8548 = ssub.s32 12288, 12288
          %8549 = vsyncadd %s8539, %s8548
          %s8550 = smul.addr %s8546, 3
          %s8551 = smul.addr %s8550, 128
          %s8552 = scalar_lea.hbm %s6, %s8551
          %s8553 = sshll.u32 %s8542, 4
          %s8554 = int_to_ptr.vmem [resolvable:$true] %s8553
          %8559 = dma.vmem_to_hbm [thread:$0]  %s8554, 12288, %s8552, %s8539, 384, 384, 24
        $region72: #{tpu_custom_call.1} parent=43 // pred_fallthru
          _
      $region44: #{tpu_custom_call.1} parent=5 // pred_fallthru
        _
      %p8560 = scmp.le.s32.totalorder 2, %s23
      // Predicated region
      $region73: #{tpu_custom_call.1} parent=5 // pred_check
        %p8561 = pneg %p8560
      $region74: #{tpu_custom_call.1} parent=5 // pred_check_branch
        %8563 = sbr.rel (%p8561) target = $region76
      $region75: #{tpu_custom_call.1} parent=5 // pred_region
        %s8564 = ssub.s32 %s23, 2
        // Predicated region
        $region77: #{tpu_custom_call.1} parent=75 // pred_check
          %p8565 = pneg %p188
        $region78: #{tpu_custom_call.1} parent=75 // pred_check_branch
          %8567 = sbr.rel (%p8565) target = $region80
        $region79: #{tpu_custom_call.1} parent=75 // pred_region
          %s8568 = sand.u32 %s173, 1
          %s8569 = scalar_lea.sflag [#allocation4], %s8568
          %s8570 = sand.u32 %s173, 1
          %s8571 = smul.addr %s8570, 768
          %s8572 = scalar_lea.vmem [#allocation13], %s8571
          %8573 = dma.done %s8569, 12288
        $region80: #{tpu_custom_call.1} parent=75 // pred_fallthru
          _
      $region76: #{tpu_custom_call.1} parent=5 // pred_fallthru
        _
    $region6: #{tpu_custom_call.1} parent=1 // loop_footer
      %s27 = sadd.s32 1, %s23
    $region7: #{tpu_custom_call.1} parent=1 // loop_footer_branch
      %22 = sbr.rel target = $region3
    $region8: #{tpu_custom_call.1} parent=1 // loop_exit
      _
    %8574 = vsyncpa [#allocation3], 1
    %s8575 = scalar_lea.sflag [#allocation3], 1
    %8576 = vsyncpa %s8575, 1
    %8577 = vsyncpa [#allocation6], 1
    %8578 = vsyncpa [#allocation9], 1
    %8579 = vsyncpa [#allocation12], 1
    %s8580 = scalar_lea.sflag [#allocation12], 1
    %8581 = vsyncpa %s8580, 1
    %8582 = vsyncpa [#allocation4], 1
    %s8583 = scalar_lea.sflag [#allocation4], 1
    %8584 = vsyncpa %s8583, 1

</llo_original>
